<compile_context>
chip_gen: v7x
topology: tpu7x:2x2x1
jax: 0.10.0
libtpu: 0.0.40
codegen_flags: <defaults>
</compile_context>

<pallas_src>
import functools
import numpy as np
import jax
import jax.numpy as jnp
from jax import lax
from jax.experimental import pallas as pl
from jax.experimental.pallas import tpu as pltpu

# ---------------- configuration (scaled-down Xmodel) ----------------
N_BATCH = 2
EMBED_DIM = 128                         # d_model == signal length (orig 3500)
CONV_KS = (5, 9, 17)                    # conv kernel sizes        (orig 17..513)
CONV_CH = 4                             # out-channels per conv    (orig 32)
N_FILTER_BANKS = 4                      # raw + 3 FFT-filtered copies
S_BANK = len(CONV_KS) * CONV_CH         # channels per bank (12)
SEQ_LEN = N_FILTER_BANKS * S_BANK       # 48 == dim_feedforward    (orig 768)
DIM_FF = SEQ_LEN                        # logical FFN width (48)
FF_PAD = 128                            # FFN width zero-padded to a lane-dense 128
NHEAD = 2                               # orig 5
HEAD_DIM = EMBED_DIM // NHEAD
NUM_LAYERS = 3
ELEM_DIM = 12                           # orig 92
NUM_CLASSES = 10
CLS_H1, CLS_H2 = 64, 32                 # orig 2048, 1024
BN_EPS = 1e-5
LN_EPS = 1e-5
MAX_K = max(CONV_KS)                    # 17
MAX_PAD = (MAX_K - 1) // 2              # 8
M_ROWS = SEQ_LEN * N_BATCH              # 96 flattened (s, n) rows


def _full(shape):
    nd = len(shape)
    return pl.BlockSpec(shape, lambda *_, nd=nd: (0,) * nd)


# =====================================================================
# 1) Fused conv front-end: 3 branches x 4 banks, BN(eval) scale folded
#    into the weights, ReLU, output stored directly in the dense
#    flattened row layout (bank, ch, n) -> (S_BANK*N, E) per bank.
# =====================================================================
def _conv_kernel(xp_ref, wk_ref, shift_ref, o_ref, *, kmax, length, lpad, n_batch, s_bank):
    xp = xp_ref[0]                                    # (N, LPAD) padded signals (one bank)
    acc = wk_ref[0][:, None, :] * xp[None, :, :length]           # tap k = 0
    for k in range(1, kmax):
        # shifted view xp[:, k:k+length] built with an XLU rotation (lane aligned)
        xk = pltpu.roll(xp, shift=lpad - k, axis=1)[:, :length]
        acc = acc + wk_ref[k][:, None, :] * xk[None, :, :]
    res = jnp.maximum(acc + shift_ref[...][:, None, :], 0.0)     # (S_BANK, N, E)
    # dense (S_BANK*N, E) output block: rows interleaved (ch, n)
    for ch in range(s_bank):
        o_ref[0, ch * n_batch:(ch + 1) * n_batch, :] = res[ch]


def conv_frontend(x_banks, conv_p):
    """x_banks: (4, N, E) raw + filtered signals -> (4, S_BANK*N, E) features."""
    nb, n, length = x_banks.shape
    lpad = 2 * length                                 # 256: room for max pad, lane aligned
    xpad = jnp.pad(x_banks, ((0, 0), (0, 0), (MAX_PAD, lpad - length - MAX_PAD)))
    return pl.pallas_call(
        functools.partial(_conv_kernel, kmax=MAX_K, length=length, lpad=lpad,
                          n_batch=n, s_bank=S_BANK),
        out_shape=jax.ShapeDtypeStruct((nb, S_BANK * n, length), jnp.float32),
        grid=(nb,),
        in_specs=[pl.BlockSpec((1, n, lpad), lambda b: (b, 0, 0)),
                  _full((MAX_K, S_BANK, length)),
                  _full((S_BANK, length))],
        out_specs=pl.BlockSpec((1, S_BANK * n, length), lambda b: (b, 0, 0)),
        compiler_params=pltpu.CompilerParams(dimension_semantics=("parallel",)),
    )(xpad, conv_p["wk"], conv_p["shift"])


# =====================================================================
# 2) One fused encoder kernel: grid over layers ("arbitrary"), src kept
#    resident in VMEM scratch. Per grid step: element_map, fused K/V
#    projection (computed once), Q projection, per-head SDPA + per-head
#    out-proj accumulation, residual+LN1, FFN+residual+LN2. At the last
#    step: norm_after + classification head (BN folded) -> logits.
# =====================================================================
def _encoder_kernel(src_ref, pos_ref, mask_ref, elem_ref,
                    wem_ref, bem_ref, wq_ref, wkv_ref, wo_ref,
                    ff1w_ref, ff2w_ref, bkv_ref, vec_ref,
                    ng_ref, nbeta_ref, w1_ref, b1_ref, w2_ref, b2_ref, w3_ref, b3_ref,
                    o_ref, src_sc,
                    *, n_batch, nhead, head_dim, elem_dim, num_layers):
    f32, bf16 = jnp.float32, jnp.bfloat16
    li = pl.program_id(0)
    m_rows, e = src_ref.shape

    @pl.when(li == 0)
    def _():
        src_sc[...] = src_ref[...]                    # load conv features once

    src = src_sc[...]                                 # (M, E) f32, carried across layers

    def ln(xv, g, b):
        mu = jnp.mean(xv, axis=-1, keepdims=True)
        xc = xv - mu
        var = jnp.mean(xc * xc, axis=-1, keepdims=True)
        return xc * lax.rsqrt(var + LN_EPS) * g + b

    # ---- element_map (Linear + Dropout(eval) + ReLU); rows match src's (s,n) flattening ----
    ev = elem_ref[...]                                # (N, ELEM_DIM) f32
    accs = [bem_ref[0] for _ in range(n_batch)]       # (S, E) each
    for k in range(elem_dim):
        wk = wem_ref[0, k]                            # (S, E) f32
        for n in range(n_batch):
            accs[n] = accs[n] + ev[n:n + 1, k:k + 1] * wk
    q0 = jnp.maximum(jnp.concatenate(accs, axis=0), 0.0)          # (M, E) f32

    vec = vec_ref[0]                                  # packed (8, E) f32 per-layer vectors
    bq, bo, ff2b, ff1b = vec[0:1], vec[1:2], vec[2:3], vec[3:4]
    ln1g, ln1b, ln2g, ln2b = vec[4:5], vec[5:6], vec[6:7], vec[7:8]

    # ---- fused K/V projection over ALL rows (computed exactly once per layer) ----
    kv_in = (src + pos_ref[...]).astype(bf16)                      # with_pos_embed
    kvp = (jnp.dot(kv_in, wkv_ref[0], preferred_element_type=f32)
           + bkv_ref[0]).astype(bf16)                              # (M, 2E) bf16

    # ---- Q projection ----
    qp = jnp.dot(q0.astype(bf16), wq_ref[0], preferred_element_type=f32) + bq     # (M, E)

    maskb = mask_ref[...]                             # (M, M) additive batch mask (0/-1e30)
    sm_scale = 1.0 / float(np.sqrt(head_dim))

    # ---- per-head SDPA with per-head out-proj accumulation (no lane concat) ----
    proj = None
    for h in range(nhead):
        qh = qp[:, h * head_dim:(h + 1) * head_dim].astype(bf16)
        kh = kvp[:, h * head_dim:(h + 1) * head_dim]
        vh = kvp[:, e + h * head_dim:e + (h + 1) * head_dim]
        s = lax.dot_general(qh, kh, (((1,), (1,)), ((), ())),
                            preferred_element_type=f32) * sm_scale + maskb
        s = s - jnp.max(s, axis=-1, keepdims=True)
        p = jnp.exp(s)
        p = p * pl.reciprocal(jnp.sum(p, axis=-1, keepdims=True), approx=True)
        oh = jnp.dot(p.astype(bf16), vh, preferred_element_type=f32)              # (M, hd)
        term = jnp.dot(oh.astype(bf16), wo_ref[0, h], preferred_element_type=f32) # (M, E)
        proj = term if proj is None else proj + term
    proj = proj + bo

    # ---- residual + LayerNorm1, FFN + residual + LayerNorm2 ----
    h1 = ln(src + proj, ln1g, ln1b)
    f = jnp.maximum(jnp.dot(h1.astype(bf16), ff1w_ref[0], preferred_element_type=f32)
                    + ff1b, 0.0)
    f2 = jnp.dot(f.astype(bf16), ff2w_ref[0], preferred_element_type=f32) + ff2b
    out = ln(h1 + f2, ln2g, ln2b)
    src_sc[...] = out                                 # carry to next layer

    # ---- last layer epilogue: norm_after + classification head on the s==0 rows ----
    @pl.when(li == num_layers - 1)
    def _():
        xh = ln(out[0:n_batch, :], ng_ref[...], nbeta_ref[...])
        hc = jnp.maximum(jnp.dot(xh.astype(bf16), w1_ref[...], preferred_element_type=f32)
                         + b1_ref[...], 0.0)
        hc = jnp.maximum(jnp.dot(hc.astype(bf16), w2_ref[...], preferred_element_type=f32)
                         + b2_ref[...], 0.0)
        o_ref[...] = (jnp.dot(hc.astype(bf16), w3_ref[...], preferred_element_type=f32)
                      + b3_ref[...])


def encoder_and_head(src, elem, params):
    m_rows, e = src.shape
    lay = params["layers"]
    head = params["head"]
    kern = functools.partial(_encoder_kernel, n_batch=N_BATCH, nhead=NHEAD,
                             head_dim=HEAD_DIM, elem_dim=ELEM_DIM, num_layers=NUM_LAYERS)
    return pl.pallas_call(
        kern,
        out_shape=jax.ShapeDtypeStruct((N_BATCH, NUM_CLASSES), jnp.float32),
        grid=(NUM_LAYERS,),
        in_specs=[
            _full((m_rows, e)),                                            # src (layer-0 input)
            _full((m_rows, e)),                                            # pos_rep
            _full((m_rows, m_rows)),                                       # additive batch mask
            _full((N_BATCH, ELEM_DIM)),                                    # element features
            pl.BlockSpec((1, ELEM_DIM, SEQ_LEN, e), lambda l: (l, 0, 0, 0)),  # emap weights
            pl.BlockSpec((1, SEQ_LEN, e), lambda l: (l, 0, 0)),            # emap bias
            pl.BlockSpec((1, e, e), lambda l: (l, 0, 0)),                  # wq
            pl.BlockSpec((1, e, 2 * e), lambda l: (l, 0, 0)),              # wkv = [wk|wv]
            pl.BlockSpec((1, NHEAD, HEAD_DIM, e), lambda l: (l, 0, 0, 0)), # wo (per head)
            pl.BlockSpec((1, e, FF_PAD), lambda l: (l, 0, 0)),             # ff1_w (padded)
            pl.BlockSpec((1, FF_PAD, e), lambda l: (l, 0, 0)),             # ff2_w (padded)
            pl.BlockSpec((1, 1, 2 * e), lambda l: (l, 0, 0)),              # bkv
            pl.BlockSpec((1, 8, e), lambda l: (l, 0, 0)),                  # packed per-layer vecs
            _full((1, e)), _full((1, e)),                                  # norm_after gamma/beta
            _full((e, CLS_H1)), _full((1, CLS_H1)),                        # head w1/b1
            _full((CLS_H1, CLS_H2)), _full((1, CLS_H2)),                   # head w2/b2
            _full((CLS_H2, NUM_CLASSES)), _full((1, NUM_CLASSES)),         # head w3/b3
        ],
        out_specs=_full((N_BATCH, NUM_CLASSES)),
        scratch_shapes=[pltpu.VMEM((m_rows, e), jnp.float32)],
        compiler_params=pltpu.CompilerParams(dimension_semantics=("arbitrary",)),
    )(src, params["pos_rep"], params["mask_bias"], elem,
      params["emap_w"], params["emap_b"],
      lay["wq"], lay["wkv"], lay["wo"], lay["ff1_w"], lay["ff2_w"], lay["bkv"], lay["vecs"],
      head["norm_g"], head["norm_b"], head["w1"], head["b1"],
      head["w2"], head["b2"], head["w3"], head["b3"])


# ---------------- JAX glue ----------------
def filter_high_frequencies(x, percentage):
    # TODO(synk): FFT/IFFT has no Pallas-TPU equivalent; computed with jnp.fft glue.
    n = x.shape[-1]
    cutoff = int(n * (1 - percentage) / 2)
    if cutoff == 0:
        return x
    xf = jnp.fft.fft(x, axis=-1)
    idx = jnp.arange(n)
    mask = jnp.where((idx >= cutoff) & (idx < n - cutoff), 0.0, 1.0)
    return jnp.real(jnp.fft.ifft(xf * mask, axis=-1)).astype(jnp.float32)


def xmodel_forward(x, elem, params):
    x = x[:, :EMBED_DIM]
    n = x.shape[0]
    # sampling_rate = x[0,1] - x[0,0] is computed in the reference but never
    # influences the index-based FFT filter, so it is omitted.
    x = x / 100.0
    banks = jnp.stack([x,
                       filter_high_frequencies(x, 0.3),
                       filter_high_frequencies(x, 0.6),
                       filter_high_frequencies(x, 0.9)], axis=0)           # (4, N, E)
    feats = conv_frontend(banks, params["conv"])                           # (4, 24, E)
    # rows are already (bank, ch, n) ordered and 8-aligned -> layout-free reshape
    src = feats.reshape(SEQ_LEN * n, EMBED_DIM)                            # (S*N, E)
    return encoder_and_head(src, elem, params)                             # (N, classes)


# ---------------- deterministic parameter init ----------------
def init_params(key):
    keys = iter(jax.random.split(key, 32))

    def nrm(shape, fan_in):
        return jax.random.normal(next(keys), shape, jnp.float32) / np.sqrt(fan_in)

    params = {}

    # --- conv branches: weights embedded in a shared MAX_K window, BN(eval) scale folded ---
    rows = []
    for K in CONV_KS:
        w = nrm((CONV_CH, K), K)
        off = MAX_PAD - (K - 1) // 2
        rows.append(jnp.zeros((CONV_CH, MAX_K), jnp.float32).at[:, off:off + K].set(w))
    w_cat = jnp.concatenate(rows, axis=0)                                  # (12, 17)
    inv = 1.0 / np.sqrt(1.0 + BN_EPS)      # gamma=1, beta=0, mean=0, var=1, conv bias=0
    wk = (w_cat * inv).T                                                   # (17, 12)
    params["conv"] = dict(
        wk=jnp.asarray(jnp.broadcast_to(wk[:, :, None], (MAX_K, S_BANK, EMBED_DIM))),
        shift=jnp.zeros((S_BANK, EMBED_DIM), jnp.float32),                 # BN shift (zero)
    )

    # --- sin/cos positional embedding, pre-repeated over batch (row r = s*N + n) ---
    pos = np.arange(SEQ_LEN, dtype=np.float32)
    omega = np.arange(EMBED_DIM // 2, dtype=np.float32) / (EMBED_DIM / 2.0)
    omega = 1.0 / (10000.0 ** omega)
    out = np.einsum("m,d->md", pos, omega)
    emb = np.concatenate([np.sin(out), np.cos(out)], axis=1).astype(np.float32)   # (S, E)
    params["pos_rep"] = jnp.asarray(np.repeat(emb, N_BATCH, axis=0))               # (M, E)

    # --- additive batch mask over flattened (s, n) rows ---
    r = np.arange(M_ROWS)
    mask = np.where((r[:, None] % N_BATCH) == (r[None, :] % N_BATCH), 0.0, -1e30)
    params["mask_bias"] = jnp.asarray(mask.astype(np.float32))                     # (M, M)

    # --- element_map for all layers, weight reshaped to (ELEM_DIM, S, E) ---
    se = SEQ_LEN * EMBED_DIM
    ws = [nrm((ELEM_DIM, se), ELEM_DIM).reshape(ELEM_DIM, SEQ_LEN, EMBED_DIM)
          for _ in range(NUM_LAYERS)]
    params["emap_w"] = jnp.stack(ws)                                       # (L, 12, S, E) f32
    params["emap_b"] = jnp.zeros((NUM_LAYERS, SEQ_LEN, EMBED_DIM), jnp.float32)

    # --- encoder layers, stacked over the layer axis ---
    e = EMBED_DIM
    wq_l, wkv_l, wo_l, f1_l, f2_l, bkv_l, vec_l = [], [], [], [], [], [], []
    for _ in range(NUM_LAYERS):
        wq, wk_, wv, wo = nrm((e, e), e), nrm((e, e), e), nrm((e, e), e), nrm((e, e), e)
        ff1 = jnp.pad(nrm((e, DIM_FF), e), ((0, 0), (0, FF_PAD - DIM_FF)))
        ff2 = jnp.pad(nrm((DIM_FF, e), DIM_FF), ((0, FF_PAD - DIM_FF), (0, 0)))
        wq_l.append(wq)
        wkv_l.append(jnp.concatenate([wk_, wv], axis=1))                   # (E, 2E)
        wo_l.append(wo.reshape(NHEAD, HEAD_DIM, e))                        # per-head rows of Wo
        f1_l.append(ff1)
        f2_l.append(ff2)
        bkv_l.append(jnp.zeros((1, 2 * e), jnp.float32))
        vec_l.append(jnp.stack([jnp.zeros((e,)),   # bq
                                jnp.zeros((e,)),   # bo
                                jnp.zeros((e,)),   # ff2_b
                                jnp.zeros((e,)),   # ff1_b (padded width == E)
                                jnp.ones((e,)),    # ln1 gamma
                                jnp.zeros((e,)),   # ln1 beta
                                jnp.ones((e,)),    # ln2 gamma
                                jnp.zeros((e,))]).astype(jnp.float32))
    params["layers"] = dict(
        wq=jnp.stack(wq_l).astype(jnp.bfloat16),
        wkv=jnp.stack(wkv_l).astype(jnp.bfloat16),
        wo=jnp.stack(wo_l).astype(jnp.bfloat16),
        ff1_w=jnp.stack(f1_l).astype(jnp.bfloat16),
        ff2_w=jnp.stack(f2_l).astype(jnp.bfloat16),
        bkv=jnp.stack(bkv_l),
        vecs=jnp.stack(vec_l),
    )

    # --- norm_after + cls head (eval-mode BatchNorm folded into w/b) ---
    def fold_bn(w, b, gamma, beta, mean, var):
        s = gamma / jnp.sqrt(var + BN_EPS)
        return w * s[None, :], b * s + (beta - mean * s)

    w1, b1 = fold_bn(nrm((e, CLS_H1), e), jnp.zeros((CLS_H1,)),
                     jnp.ones((CLS_H1,)), jnp.zeros((CLS_H1,)),
                     jnp.zeros((CLS_H1,)), jnp.ones((CLS_H1,)))
    w2, b2 = fold_bn(nrm((CLS_H1, CLS_H2), CLS_H1), jnp.zeros((CLS_H2,)),
                     jnp.ones((CLS_H2,)), jnp.zeros((CLS_H2,)),
                     jnp.zeros((CLS_H2,)), jnp.ones((CLS_H2,)))
    w3, b3 = nrm((CLS_H2, NUM_CLASSES), CLS_H2), jnp.zeros((NUM_CLASSES,))
    params["head"] = dict(
        norm_g=jnp.ones((1, e), jnp.float32), norm_b=jnp.zeros((1, e), jnp.float32),
        w1=w1.astype(jnp.bfloat16), b1=b1.reshape(1, -1).astype(jnp.float32),
        w2=w2.astype(jnp.bfloat16), b2=b2.reshape(1, -1).astype(jnp.float32),
        w3=w3.astype(jnp.bfloat16), b3=b3.reshape(1, -1).astype(jnp.float32),
    )
    return params


if __name__ == "__main__":
    key = jax.random.PRNGKey(0)
    pk, xk, ek = jax.random.split(key, 3)
    params = init_params(pk)
    x = jax.random.normal(xk, (N_BATCH, EMBED_DIM), jnp.float32)        # raw signal
    elem = jax.random.normal(ek, (N_BATCH, ELEM_DIM), jnp.float32)      # element features
    logits = jax.jit(xmodel_forward)(x, elem, params)
    jax.block_until_ready(logits)
    assert logits.shape == (N_BATCH, NUM_CLASSES)
    assert bool(jnp.all(jnp.isfinite(logits)))
    print("KERNEL_OK")
</pallas_src>

<mosaic_0001>
module attributes {stable_mosaic.version = 11 : i64} {
  func.func @_conv_kernel(%arg0: i32, %arg1: memref<1x2x256xf32, #tpu.memory_space<vmem>>, %arg2: memref<17x12x128xf32, #tpu.memory_space<vmem>>, %arg3: memref<12x128xf32, #tpu.memory_space<vmem>>, %arg4: memref<1x24x128xf32, #tpu.memory_space<vmem>>) attributes {dimension_semantics = [#tpu.dimension_semantics<parallel>], iteration_bounds = array<i64: 4>, scalar_prefetch = 0 : i64, scratch_operands = 0 : i64, tpu.core_type = #tpu.core_type<tc>, window_params = [{transform_indices = @transform_0, window_bounds = array<i64: 1, 2, 256>}, {pipeline_mode = #tpu.pipeline_mode<synchronous>, transform_indices = @transform_1, window_bounds = array<i64: 17, 12, 128>}, {pipeline_mode = #tpu.pipeline_mode<synchronous>, transform_indices = @transform_2, window_bounds = array<i64: 12, 128>}, {transform_indices = @transform_3, window_bounds = array<i64: 1, 24, 128>}]} {
    %c0 = arith.constant 0 : index
    %c0_0 = arith.constant 0 : index
    %c0_1 = arith.constant 0 : index
    %0 = vector.load %arg1[%c0, %c0_0, %c0_1] : memref<1x2x256xf32, #tpu.memory_space<vmem>>, vector<1x2x256xf32>
    %1 = vector.shape_cast %0 : vector<1x2x256xf32> to vector<2x256xf32>
    %c0_2 = arith.constant 0 : index
    %c0_3 = arith.constant 0 : index
    %c0_4 = arith.constant 0 : index
    %2 = vector.load %arg2[%c0_2, %c0_3, %c0_4] : memref<17x12x128xf32, #tpu.memory_space<vmem>>, vector<1x12x128xf32>
    %3 = vector.shape_cast %2 : vector<1x12x128xf32> to vector<12x128xf32>
    %4 = vector.shape_cast %3 : vector<12x128xf32> to vector<12x1x128xf32>
    %5 = vector.extract_strided_slice %1 {offsets = [0, 0], sizes = [2, 128], strides = [1, 1]} : vector<2x256xf32> to vector<2x128xf32>
    %6 = vector.shape_cast %5 : vector<2x128xf32> to vector<1x2x128xf32>
    %7 = vector.broadcast %4 : vector<12x1x128xf32> to vector<12x2x128xf32>
    %8 = vector.broadcast %6 : vector<1x2x128xf32> to vector<12x2x128xf32>
    %9 = arith.mulf %7, %8 : vector<12x2x128xf32>
    %c255_i32 = arith.constant 255 : i32
    %10 = tpu.dynamic_rotate %1 by %c255_i32 dim 1 : vector<2x256xf32>, i32 -> vector<2x256xf32>
    %11 = vector.extract_strided_slice %10 {offsets = [0, 0], sizes = [2, 128], strides = [1, 1]} : vector<2x256xf32> to vector<2x128xf32>
    %c1 = arith.constant 1 : index
    %c0_5 = arith.constant 0 : index
    %c0_6 = arith.constant 0 : index
    %12 = vector.load %arg2[%c1, %c0_5, %c0_6] : memref<17x12x128xf32, #tpu.memory_space<vmem>>, vector<1x12x128xf32>
    %13 = vector.shape_cast %12 : vector<1x12x128xf32> to vector<12x128xf32>
    %14 = vector.shape_cast %13 : vector<12x128xf32> to vector<12x1x128xf32>
    %15 = vector.shape_cast %11 : vector<2x128xf32> to vector<1x2x128xf32>
    %16 = vector.broadcast %14 : vector<12x1x128xf32> to vector<12x2x128xf32>
    %17 = vector.broadcast %15 : vector<1x2x128xf32> to vector<12x2x128xf32>
    %18 = arith.mulf %16, %17 : vector<12x2x128xf32>
    %19 = arith.addf %9, %18 : vector<12x2x128xf32>
    %c254_i32 = arith.constant 254 : i32
    %20 = tpu.dynamic_rotate %1 by %c254_i32 dim 1 : vector<2x256xf32>, i32 -> vector<2x256xf32>
    %21 = vector.extract_strided_slice %20 {offsets = [0, 0], sizes = [2, 128], strides = [1, 1]} : vector<2x256xf32> to vector<2x128xf32>
    %c2 = arith.constant 2 : index
    %c0_7 = arith.constant 0 : index
    %c0_8 = arith.constant 0 : index
    %22 = vector.load %arg2[%c2, %c0_7, %c0_8] : memref<17x12x128xf32, #tpu.memory_space<vmem>>, vector<1x12x128xf32>
    %23 = vector.shape_cast %22 : vector<1x12x128xf32> to vector<12x128xf32>
    %24 = vector.shape_cast %23 : vector<12x128xf32> to vector<12x1x128xf32>
    %25 = vector.shape_cast %21 : vector<2x128xf32> to vector<1x2x128xf32>
    %26 = vector.broadcast %24 : vector<12x1x128xf32> to vector<12x2x128xf32>
    %27 = vector.broadcast %25 : vector<1x2x128xf32> to vector<12x2x128xf32>
    %28 = arith.mulf %26, %27 : vector<12x2x128xf32>
    %29 = arith.addf %19, %28 : vector<12x2x128xf32>
    %c253_i32 = arith.constant 253 : i32
    %30 = tpu.dynamic_rotate %1 by %c253_i32 dim 1 : vector<2x256xf32>, i32 -> vector<2x256xf32>
    %31 = vector.extract_strided_slice %30 {offsets = [0, 0], sizes = [2, 128], strides = [1, 1]} : vector<2x256xf32> to vector<2x128xf32>
    %c3 = arith.constant 3 : index
    %c0_9 = arith.constant 0 : index
    %c0_10 = arith.constant 0 : index
    %32 = vector.load %arg2[%c3, %c0_9, %c0_10] : memref<17x12x128xf32, #tpu.memory_space<vmem>>, vector<1x12x128xf32>
    %33 = vector.shape_cast %32 : vector<1x12x128xf32> to vector<12x128xf32>
    %34 = vector.shape_cast %33 : vector<12x128xf32> to vector<12x1x128xf32>
    %35 = vector.shape_cast %31 : vector<2x128xf32> to vector<1x2x128xf32>
    %36 = vector.broadcast %34 : vector<12x1x128xf32> to vector<12x2x128xf32>
    %37 = vector.broadcast %35 : vector<1x2x128xf32> to vector<12x2x128xf32>
    %38 = arith.mulf %36, %37 : vector<12x2x128xf32>
    %39 = arith.addf %29, %38 : vector<12x2x128xf32>
    %c252_i32 = arith.constant 252 : i32
    %40 = tpu.dynamic_rotate %1 by %c252_i32 dim 1 : vector<2x256xf32>, i32 -> vector<2x256xf32>
    %41 = vector.extract_strided_slice %40 {offsets = [0, 0], sizes = [2, 128], strides = [1, 1]} : vector<2x256xf32> to vector<2x128xf32>
    %c4 = arith.constant 4 : index
    %c0_11 = arith.constant 0 : index
    %c0_12 = arith.constant 0 : index
    %42 = vector.load %arg2[%c4, %c0_11, %c0_12] : memref<17x12x128xf32, #tpu.memory_space<vmem>>, vector<1x12x128xf32>
    %43 = vector.shape_cast %42 : vector<1x12x128xf32> to vector<12x128xf32>
    %44 = vector.shape_cast %43 : vector<12x128xf32> to vector<12x1x128xf32>
    %45 = vector.shape_cast %41 : vector<2x128xf32> to vector<1x2x128xf32>
    %46 = vector.broadcast %44 : vector<12x1x128xf32> to vector<12x2x128xf32>
    %47 = vector.broadcast %45 : vector<1x2x128xf32> to vector<12x2x128xf32>
    %48 = arith.mulf %46, %47 : vector<12x2x128xf32>
    %49 = arith.addf %39, %48 : vector<12x2x128xf32>
    %c251_i32 = arith.constant 251 : i32
    %50 = tpu.dynamic_rotate %1 by %c251_i32 dim 1 : vector<2x256xf32>, i32 -> vector<2x256xf32>
    %51 = vector.extract_strided_slice %50 {offsets = [0, 0], sizes = [2, 128], strides = [1, 1]} : vector<2x256xf32> to vector<2x128xf32>
    %c5 = arith.constant 5 : index
    %c0_13 = arith.constant 0 : index
    %c0_14 = arith.constant 0 : index
    %52 = vector.load %arg2[%c5, %c0_13, %c0_14] : memref<17x12x128xf32, #tpu.memory_space<vmem>>, vector<1x12x128xf32>
    %53 = vector.shape_cast %52 : vector<1x12x128xf32> to vector<12x128xf32>
    %54 = vector.shape_cast %53 : vector<12x128xf32> to vector<12x1x128xf32>
    %55 = vector.shape_cast %51 : vector<2x128xf32> to vector<1x2x128xf32>
    %56 = vector.broadcast %54 : vector<12x1x128xf32> to vector<12x2x128xf32>
    %57 = vector.broadcast %55 : vector<1x2x128xf32> to vector<12x2x128xf32>
    %58 = arith.mulf %56, %57 : vector<12x2x128xf32>
    %59 = arith.addf %49, %58 : vector<12x2x128xf32>
    %c250_i32 = arith.constant 250 : i32
    %60 = tpu.dynamic_rotate %1 by %c250_i32 dim 1 : vector<2x256xf32>, i32 -> vector<2x256xf32>
    %61 = vector.extract_strided_slice %60 {offsets = [0, 0], sizes = [2, 128], strides = [1, 1]} : vector<2x256xf32> to vector<2x128xf32>
    %c6 = arith.constant 6 : index
    %c0_15 = arith.constant 0 : index
    %c0_16 = arith.constant 0 : index
    %62 = vector.load %arg2[%c6, %c0_15, %c0_16] : memref<17x12x128xf32, #tpu.memory_space<vmem>>, vector<1x12x128xf32>
    %63 = vector.shape_cast %62 : vector<1x12x128xf32> to vector<12x128xf32>
    %64 = vector.shape_cast %63 : vector<12x128xf32> to vector<12x1x128xf32>
    %65 = vector.shape_cast %61 : vector<2x128xf32> to vector<1x2x128xf32>
    %66 = vector.broadcast %64 : vector<12x1x128xf32> to vector<12x2x128xf32>
    %67 = vector.broadcast %65 : vector<1x2x128xf32> to vector<12x2x128xf32>
    %68 = arith.mulf %66, %67 : vector<12x2x128xf32>
    %69 = arith.addf %59, %68 : vector<12x2x128xf32>
    %c249_i32 = arith.constant 249 : i32
    %70 = tpu.dynamic_rotate %1 by %c249_i32 dim 1 : vector<2x256xf32>, i32 -> vector<2x256xf32>
    %71 = vector.extract_strided_slice %70 {offsets = [0, 0], sizes = [2, 128], strides = [1, 1]} : vector<2x256xf32> to vector<2x128xf32>
    %c7 = arith.constant 7 : index
    %c0_17 = arith.constant 0 : index
    %c0_18 = arith.constant 0 : index
    %72 = vector.load %arg2[%c7, %c0_17, %c0_18] : memref<17x12x128xf32, #tpu.memory_space<vmem>>, vector<1x12x128xf32>
    %73 = vector.shape_cast %72 : vector<1x12x128xf32> to vector<12x128xf32>
    %74 = vector.shape_cast %73 : vector<12x128xf32> to vector<12x1x128xf32>
    %75 = vector.shape_cast %71 : vector<2x128xf32> to vector<1x2x128xf32>
    %76 = vector.broadcast %74 : vector<12x1x128xf32> to vector<12x2x128xf32>
    %77 = vector.broadcast %75 : vector<1x2x128xf32> to vector<12x2x128xf32>
    %78 = arith.mulf %76, %77 : vector<12x2x128xf32>
    %79 = arith.addf %69, %78 : vector<12x2x128xf32>
    %c248_i32 = arith.constant 248 : i32
    %80 = tpu.dynamic_rotate %1 by %c248_i32 dim 1 : vector<2x256xf32>, i32 -> vector<2x256xf32>
    %81 = vector.extract_strided_slice %80 {offsets = [0, 0], sizes = [2, 128], strides = [1, 1]} : vector<2x256xf32> to vector<2x128xf32>
    %c8 = arith.constant 8 : index
    %c0_19 = arith.constant 0 : index
    %c0_20 = arith.constant 0 : index
    %82 = vector.load %arg2[%c8, %c0_19, %c0_20] : memref<17x12x128xf32, #tpu.memory_space<vmem>>, vector<1x12x128xf32>
    %83 = vector.shape_cast %82 : vector<1x12x128xf32> to vector<12x128xf32>
    %84 = vector.shape_cast %83 : vector<12x128xf32> to vector<12x1x128xf32>
    %85 = vector.shape_cast %81 : vector<2x128xf32> to vector<1x2x128xf32>
    %86 = vector.broadcast %84 : vector<12x1x128xf32> to vector<12x2x128xf32>
    %87 = vector.broadcast %85 : vector<1x2x128xf32> to vector<12x2x128xf32>
    %88 = arith.mulf %86, %87 : vector<12x2x128xf32>
    %89 = arith.addf %79, %88 : vector<12x2x128xf32>
    %c247_i32 = arith.constant 247 : i32
    %90 = tpu.dynamic_rotate %1 by %c247_i32 dim 1 : vector<2x256xf32>, i32 -> vector<2x256xf32>
    %91 = vector.extract_strided_slice %90 {offsets = [0, 0], sizes = [2, 128], strides = [1, 1]} : vector<2x256xf32> to vector<2x128xf32>
    %c9 = arith.constant 9 : index
    %c0_21 = arith.constant 0 : index
    %c0_22 = arith.constant 0 : index
    %92 = vector.load %arg2[%c9, %c0_21, %c0_22] : memref<17x12x128xf32, #tpu.memory_space<vmem>>, vector<1x12x128xf32>
    %93 = vector.shape_cast %92 : vector<1x12x128xf32> to vector<12x128xf32>
    %94 = vector.shape_cast %93 : vector<12x128xf32> to vector<12x1x128xf32>
    %95 = vector.shape_cast %91 : vector<2x128xf32> to vector<1x2x128xf32>
    %96 = vector.broadcast %94 : vector<12x1x128xf32> to vector<12x2x128xf32>
    %97 = vector.broadcast %95 : vector<1x2x128xf32> to vector<12x2x128xf32>
    %98 = arith.mulf %96, %97 : vector<12x2x128xf32>
    %99 = arith.addf %89, %98 : vector<12x2x128xf32>
    %c246_i32 = arith.constant 246 : i32
    %100 = tpu.dynamic_rotate %1 by %c246_i32 dim 1 : vector<2x256xf32>, i32 -> vector<2x256xf32>
    %101 = vector.extract_strided_slice %100 {offsets = [0, 0], sizes = [2, 128], strides = [1, 1]} : vector<2x256xf32> to vector<2x128xf32>
    %c10 = arith.constant 10 : index
    %c0_23 = arith.constant 0 : index
    %c0_24 = arith.constant 0 : index
    %102 = vector.load %arg2[%c10, %c0_23, %c0_24] : memref<17x12x128xf32, #tpu.memory_space<vmem>>, vector<1x12x128xf32>
    %103 = vector.shape_cast %102 : vector<1x12x128xf32> to vector<12x128xf32>
    %104 = vector.shape_cast %103 : vector<12x128xf32> to vector<12x1x128xf32>
    %105 = vector.shape_cast %101 : vector<2x128xf32> to vector<1x2x128xf32>
    %106 = vector.broadcast %104 : vector<12x1x128xf32> to vector<12x2x128xf32>
    %107 = vector.broadcast %105 : vector<1x2x128xf32> to vector<12x2x128xf32>
    %108 = arith.mulf %106, %107 : vector<12x2x128xf32>
    %109 = arith.addf %99, %108 : vector<12x2x128xf32>
    %c245_i32 = arith.constant 245 : i32
    %110 = tpu.dynamic_rotate %1 by %c245_i32 dim 1 : vector<2x256xf32>, i32 -> vector<2x256xf32>
    %111 = vector.extract_strided_slice %110 {offsets = [0, 0], sizes = [2, 128], strides = [1, 1]} : vector<2x256xf32> to vector<2x128xf32>
    %c11 = arith.constant 11 : index
    %c0_25 = arith.constant 0 : index
    %c0_26 = arith.constant 0 : index
    %112 = vector.load %arg2[%c11, %c0_25, %c0_26] : memref<17x12x128xf32, #tpu.memory_space<vmem>>, vector<1x12x128xf32>
    %113 = vector.shape_cast %112 : vector<1x12x128xf32> to vector<12x128xf32>
    %114 = vector.shape_cast %113 : vector<12x128xf32> to vector<12x1x128xf32>
    %115 = vector.shape_cast %111 : vector<2x128xf32> to vector<1x2x128xf32>
    %116 = vector.broadcast %114 : vector<12x1x128xf32> to vector<12x2x128xf32>
    %117 = vector.broadcast %115 : vector<1x2x128xf32> to vector<12x2x128xf32>
    %118 = arith.mulf %116, %117 : vector<12x2x128xf32>
    %119 = arith.addf %109, %118 : vector<12x2x128xf32>
    %c244_i32 = arith.constant 244 : i32
    %120 = tpu.dynamic_rotate %1 by %c244_i32 dim 1 : vector<2x256xf32>, i32 -> vector<2x256xf32>
    %121 = vector.extract_strided_slice %120 {offsets = [0, 0], sizes = [2, 128], strides = [1, 1]} : vector<2x256xf32> to vector<2x128xf32>
    %c12 = arith.constant 12 : index
    %c0_27 = arith.constant 0 : index
    %c0_28 = arith.constant 0 : index
    %122 = vector.load %arg2[%c12, %c0_27, %c0_28] : memref<17x12x128xf32, #tpu.memory_space<vmem>>, vector<1x12x128xf32>
    %123 = vector.shape_cast %122 : vector<1x12x128xf32> to vector<12x128xf32>
    %124 = vector.shape_cast %123 : vector<12x128xf32> to vector<12x1x128xf32>
    %125 = vector.shape_cast %121 : vector<2x128xf32> to vector<1x2x128xf32>
    %126 = vector.broadcast %124 : vector<12x1x128xf32> to vector<12x2x128xf32>
    %127 = vector.broadcast %125 : vector<1x2x128xf32> to vector<12x2x128xf32>
    %128 = arith.mulf %126, %127 : vector<12x2x128xf32>
    %129 = arith.addf %119, %128 : vector<12x2x128xf32>
    %c243_i32 = arith.constant 243 : i32
    %130 = tpu.dynamic_rotate %1 by %c243_i32 dim 1 : vector<2x256xf32>, i32 -> vector<2x256xf32>
    %131 = vector.extract_strided_slice %130 {offsets = [0, 0], sizes = [2, 128], strides = [1, 1]} : vector<2x256xf32> to vector<2x128xf32>
    %c13 = arith.constant 13 : index
    %c0_29 = arith.constant 0 : index
    %c0_30 = arith.constant 0 : index
    %132 = vector.load %arg2[%c13, %c0_29, %c0_30] : memref<17x12x128xf32, #tpu.memory_space<vmem>>, vector<1x12x128xf32>
    %133 = vector.shape_cast %132 : vector<1x12x128xf32> to vector<12x128xf32>
    %134 = vector.shape_cast %133 : vector<12x128xf32> to vector<12x1x128xf32>
    %135 = vector.shape_cast %131 : vector<2x128xf32> to vector<1x2x128xf32>
    %136 = vector.broadcast %134 : vector<12x1x128xf32> to vector<12x2x128xf32>
    %137 = vector.broadcast %135 : vector<1x2x128xf32> to vector<12x2x128xf32>
    %138 = arith.mulf %136, %137 : vector<12x2x128xf32>
    %139 = arith.addf %129, %138 : vector<12x2x128xf32>
    %c242_i32 = arith.constant 242 : i32
    %140 = tpu.dynamic_rotate %1 by %c242_i32 dim 1 : vector<2x256xf32>, i32 -> vector<2x256xf32>
    %141 = vector.extract_strided_slice %140 {offsets = [0, 0], sizes = [2, 128], strides = [1, 1]} : vector<2x256xf32> to vector<2x128xf32>
    %c14 = arith.constant 14 : index
    %c0_31 = arith.constant 0 : index
    %c0_32 = arith.constant 0 : index
    %142 = vector.load %arg2[%c14, %c0_31, %c0_32] : memref<17x12x128xf32, #tpu.memory_space<vmem>>, vector<1x12x128xf32>
    %143 = vector.shape_cast %142 : vector<1x12x128xf32> to vector<12x128xf32>
    %144 = vector.shape_cast %143 : vector<12x128xf32> to vector<12x1x128xf32>
    %145 = vector.shape_cast %141 : vector<2x128xf32> to vector<1x2x128xf32>
    %146 = vector.broadcast %144 : vector<12x1x128xf32> to vector<12x2x128xf32>
    %147 = vector.broadcast %145 : vector<1x2x128xf32> to vector<12x2x128xf32>
    %148 = arith.mulf %146, %147 : vector<12x2x128xf32>
    %149 = arith.addf %139, %148 : vector<12x2x128xf32>
    %c241_i32 = arith.constant 241 : i32
    %150 = tpu.dynamic_rotate %1 by %c241_i32 dim 1 : vector<2x256xf32>, i32 -> vector<2x256xf32>
    %151 = vector.extract_strided_slice %150 {offsets = [0, 0], sizes = [2, 128], strides = [1, 1]} : vector<2x256xf32> to vector<2x128xf32>
    %c15 = arith.constant 15 : index
    %c0_33 = arith.constant 0 : index
    %c0_34 = arith.constant 0 : index
    %152 = vector.load %arg2[%c15, %c0_33, %c0_34] : memref<17x12x128xf32, #tpu.memory_space<vmem>>, vector<1x12x128xf32>
    %153 = vector.shape_cast %152 : vector<1x12x128xf32> to vector<12x128xf32>
    %154 = vector.shape_cast %153 : vector<12x128xf32> to vector<12x1x128xf32>
    %155 = vector.shape_cast %151 : vector<2x128xf32> to vector<1x2x128xf32>
    %156 = vector.broadcast %154 : vector<12x1x128xf32> to vector<12x2x128xf32>
    %157 = vector.broadcast %155 : vector<1x2x128xf32> to vector<12x2x128xf32>
    %158 = arith.mulf %156, %157 : vector<12x2x128xf32>
    %159 = arith.addf %149, %158 : vector<12x2x128xf32>
    %c240_i32 = arith.constant 240 : i32
    %160 = tpu.dynamic_rotate %1 by %c240_i32 dim 1 : vector<2x256xf32>, i32 -> vector<2x256xf32>
    %161 = vector.extract_strided_slice %160 {offsets = [0, 0], sizes = [2, 128], strides = [1, 1]} : vector<2x256xf32> to vector<2x128xf32>
    %c16 = arith.constant 16 : index
    %c0_35 = arith.constant 0 : index
    %c0_36 = arith.constant 0 : index
    %162 = vector.load %arg2[%c16, %c0_35, %c0_36] : memref<17x12x128xf32, #tpu.memory_space<vmem>>, vector<1x12x128xf32>
    %163 = vector.shape_cast %162 : vector<1x12x128xf32> to vector<12x128xf32>
    %164 = vector.shape_cast %163 : vector<12x128xf32> to vector<12x1x128xf32>
    %165 = vector.shape_cast %161 : vector<2x128xf32> to vector<1x2x128xf32>
    %166 = vector.broadcast %164 : vector<12x1x128xf32> to vector<12x2x128xf32>
    %167 = vector.broadcast %165 : vector<1x2x128xf32> to vector<12x2x128xf32>
    %168 = arith.mulf %166, %167 : vector<12x2x128xf32>
    %169 = arith.addf %159, %168 : vector<12x2x128xf32>
    %c0_37 = arith.constant 0 : index
    %c0_38 = arith.constant 0 : index
    %170 = vector.load %arg3[%c0_37, %c0_38] : memref<12x128xf32, #tpu.memory_space<vmem>>, vector<12x128xf32>
    %171 = vector.shape_cast %170 : vector<12x128xf32> to vector<12x1x128xf32>
    %172 = vector.broadcast %171 : vector<12x1x128xf32> to vector<12x2x128xf32>
    %173 = arith.addf %169, %172 : vector<12x2x128xf32>
    %cst = arith.constant 0.000000e+00 : f32
    %174 = vector.broadcast %cst : f32 to vector<12x2x128xf32>
    %175 = arith.maximumf %173, %174 : vector<12x2x128xf32>
    %176 = vector.extract_strided_slice %175 {offsets = [0, 0, 0], sizes = [1, 2, 128], strides = [1, 1, 1]} : vector<12x2x128xf32> to vector<1x2x128xf32>
    %177 = vector.shape_cast %176 : vector<1x2x128xf32> to vector<2x128xf32>
    %c0_39 = arith.constant 0 : index
    %c0_40 = arith.constant 0 : index
    %c0_41 = arith.constant 0 : index
    %178 = vector.load %arg4[%c0_39, %c0_40, %c0_41] : memref<1x24x128xf32, #tpu.memory_space<vmem>>, vector<1x2x128xf32>
    %179 = vector.shape_cast %178 : vector<1x2x128xf32> to vector<2x128xf32>
    %180 = vector.shape_cast %177 : vector<2x128xf32> to vector<1x2x128xf32>
    tpu.vector_store %arg4[%c0_39, %c0_40, %c0_41], %180 {strides = array<i32>} : memref<1x24x128xf32, #tpu.memory_space<vmem>>, vector<1x2x128xf32>,
    %181 = vector.extract_strided_slice %175 {offsets = [1, 0, 0], sizes = [1, 2, 128], strides = [1, 1, 1]} : vector<12x2x128xf32> to vector<1x2x128xf32>
    %182 = vector.shape_cast %181 : vector<1x2x128xf32> to vector<2x128xf32>
    %c0_42 = arith.constant 0 : index
    %c2_43 = arith.constant 2 : index
    %c0_44 = arith.constant 0 : index
    %183 = vector.load %arg4[%c0_42, %c2_43, %c0_44] : memref<1x24x128xf32, #tpu.memory_space<vmem>>, vector<1x2x128xf32>
    %184 = vector.shape_cast %183 : vector<1x2x128xf32> to vector<2x128xf32>
    %185 = vector.shape_cast %182 : vector<2x128xf32> to vector<1x2x128xf32>
    tpu.vector_store %arg4[%c0_42, %c2_43, %c0_44], %185 {strides = array<i32>} : memref<1x24x128xf32, #tpu.memory_space<vmem>>, vector<1x2x128xf32>,
    %186 = vector.extract_strided_slice %175 {offsets = [2, 0, 0], sizes = [1, 2, 128], strides = [1, 1, 1]} : vector<12x2x128xf32> to vector<1x2x128xf32>
    %187 = vector.shape_cast %186 : vector<1x2x128xf32> to vector<2x128xf32>
    %c0_45 = arith.constant 0 : index
    %c4_46 = arith.constant 4 : index
    %c0_47 = arith.constant 0 : index
    %188 = vector.load %arg4[%c0_45, %c4_46, %c0_47] : memref<1x24x128xf32, #tpu.memory_space<vmem>>, vector<1x2x128xf32>
    %189 = vector.shape_cast %188 : vector<1x2x128xf32> to vector<2x128xf32>
    %190 = vector.shape_cast %187 : vector<2x128xf32> to vector<1x2x128xf32>
    tpu.vector_store %arg4[%c0_45, %c4_46, %c0_47], %190 {strides = array<i32>} : memref<1x24x128xf32, #tpu.memory_space<vmem>>, vector<1x2x128xf32>,
    %191 = vector.extract_strided_slice %175 {offsets = [3, 0, 0], sizes = [1, 2, 128], strides = [1, 1, 1]} : vector<12x2x128xf32> to vector<1x2x128xf32>
    %192 = vector.shape_cast %191 : vector<1x2x128xf32> to vector<2x128xf32>
    %c0_48 = arith.constant 0 : index
    %c6_49 = arith.constant 6 : index
    %c0_50 = arith.constant 0 : index
    %193 = vector.load %arg4[%c0_48, %c6_49, %c0_50] : memref<1x24x128xf32, #tpu.memory_space<vmem>>, vector<1x2x128xf32>
    %194 = vector.shape_cast %193 : vector<1x2x128xf32> to vector<2x128xf32>
    %195 = vector.shape_cast %192 : vector<2x128xf32> to vector<1x2x128xf32>
    tpu.vector_store %arg4[%c0_48, %c6_49, %c0_50], %195 {strides = array<i32>} : memref<1x24x128xf32, #tpu.memory_space<vmem>>, vector<1x2x128xf32>,
    %196 = vector.extract_strided_slice %175 {offsets = [4, 0, 0], sizes = [1, 2, 128], strides = [1, 1, 1]} : vector<12x2x128xf32> to vector<1x2x128xf32>
    %197 = vector.shape_cast %196 : vector<1x2x128xf32> to vector<2x128xf32>
    %c0_51 = arith.constant 0 : index
    %c8_52 = arith.constant 8 : index
    %c0_53 = arith.constant 0 : index
    %198 = vector.load %arg4[%c0_51, %c8_52, %c0_53] : memref<1x24x128xf32, #tpu.memory_space<vmem>>, vector<1x2x128xf32>
    %199 = vector.shape_cast %198 : vector<1x2x128xf32> to vector<2x128xf32>
    %200 = vector.shape_cast %197 : vector<2x128xf32> to vector<1x2x128xf32>
    tpu.vector_store %arg4[%c0_51, %c8_52, %c0_53], %200 {strides = array<i32>} : memref<1x24x128xf32, #tpu.memory_space<vmem>>, vector<1x2x128xf32>,
    %201 = vector.extract_strided_slice %175 {offsets = [5, 0, 0], sizes = [1, 2, 128], strides = [1, 1, 1]} : vector<12x2x128xf32> to vector<1x2x128xf32>
    %202 = vector.shape_cast %201 : vector<1x2x128xf32> to vector<2x128xf32>
    %c0_54 = arith.constant 0 : index
    %c10_55 = arith.constant 10 : index
    %c0_56 = arith.constant 0 : index
    %203 = vector.load %arg4[%c0_54, %c10_55, %c0_56] : memref<1x24x128xf32, #tpu.memory_space<vmem>>, vector<1x2x128xf32>
    %204 = vector.shape_cast %203 : vector<1x2x128xf32> to vector<2x128xf32>
    %205 = vector.shape_cast %202 : vector<2x128xf32> to vector<1x2x128xf32>
    tpu.vector_store %arg4[%c0_54, %c10_55, %c0_56], %205 {strides = array<i32>} : memref<1x24x128xf32, #tpu.memory_space<vmem>>, vector<1x2x128xf32>,
    %206 = vector.extract_strided_slice %175 {offsets = [6, 0, 0], sizes = [1, 2, 128], strides = [1, 1, 1]} : vector<12x2x128xf32> to vector<1x2x128xf32>
    %207 = vector.shape_cast %206 : vector<1x2x128xf32> to vector<2x128xf32>
    %c0_57 = arith.constant 0 : index
    %c12_58 = arith.constant 12 : index
    %c0_59 = arith.constant 0 : index
    %208 = vector.load %arg4[%c0_57, %c12_58, %c0_59] : memref<1x24x128xf32, #tpu.memory_space<vmem>>, vector<1x2x128xf32>
    %209 = vector.shape_cast %208 : vector<1x2x128xf32> to vector<2x128xf32>
    %210 = vector.shape_cast %207 : vector<2x128xf32> to vector<1x2x128xf32>
    tpu.vector_store %arg4[%c0_57, %c12_58, %c0_59], %210 {strides = array<i32>} : memref<1x24x128xf32, #tpu.memory_space<vmem>>, vector<1x2x128xf32>,
    %211 = vector.extract_strided_slice %175 {offsets = [7, 0, 0], sizes = [1, 2, 128], strides = [1, 1, 1]} : vector<12x2x128xf32> to vector<1x2x128xf32>
    %212 = vector.shape_cast %211 : vector<1x2x128xf32> to vector<2x128xf32>
    %c0_60 = arith.constant 0 : index
    %c14_61 = arith.constant 14 : index
    %c0_62 = arith.constant 0 : index
    %213 = vector.load %arg4[%c0_60, %c14_61, %c0_62] : memref<1x24x128xf32, #tpu.memory_space<vmem>>, vector<1x2x128xf32>
    %214 = vector.shape_cast %213 : vector<1x2x128xf32> to vector<2x128xf32>
    %215 = vector.shape_cast %212 : vector<2x128xf32> to vector<1x2x128xf32>
    tpu.vector_store %arg4[%c0_60, %c14_61, %c0_62], %215 {strides = array<i32>} : memref<1x24x128xf32, #tpu.memory_space<vmem>>, vector<1x2x128xf32>,
    %216 = vector.extract_strided_slice %175 {offsets = [8, 0, 0], sizes = [1, 2, 128], strides = [1, 1, 1]} : vector<12x2x128xf32> to vector<1x2x128xf32>
    %217 = vector.shape_cast %216 : vector<1x2x128xf32> to vector<2x128xf32>
    %c0_63 = arith.constant 0 : index
    %c16_64 = arith.constant 16 : index
    %c0_65 = arith.constant 0 : index
    %218 = vector.load %arg4[%c0_63, %c16_64, %c0_65] : memref<1x24x128xf32, #tpu.memory_space<vmem>>, vector<1x2x128xf32>
    %219 = vector.shape_cast %218 : vector<1x2x128xf32> to vector<2x128xf32>
    %220 = vector.shape_cast %217 : vector<2x128xf32> to vector<1x2x128xf32>
    tpu.vector_store %arg4[%c0_63, %c16_64, %c0_65], %220 {strides = array<i32>} : memref<1x24x128xf32, #tpu.memory_space<vmem>>, vector<1x2x128xf32>,
    %221 = vector.extract_strided_slice %175 {offsets = [9, 0, 0], sizes = [1, 2, 128], strides = [1, 1, 1]} : vector<12x2x128xf32> to vector<1x2x128xf32>
    %222 = vector.shape_cast %221 : vector<1x2x128xf32> to vector<2x128xf32>
    %c0_66 = arith.constant 0 : index
    %c18 = arith.constant 18 : index
    %c0_67 = arith.constant 0 : index
    %223 = vector.load %arg4[%c0_66, %c18, %c0_67] : memref<1x24x128xf32, #tpu.memory_space<vmem>>, vector<1x2x128xf32>
    %224 = vector.shape_cast %223 : vector<1x2x128xf32> to vector<2x128xf32>
    %225 = vector.shape_cast %222 : vector<2x128xf32> to vector<1x2x128xf32>
    tpu.vector_store %arg4[%c0_66, %c18, %c0_67], %225 {strides = array<i32>} : memref<1x24x128xf32, #tpu.memory_space<vmem>>, vector<1x2x128xf32>,
    %226 = vector.extract_strided_slice %175 {offsets = [10, 0, 0], sizes = [1, 2, 128], strides = [1, 1, 1]} : vector<12x2x128xf32> to vector<1x2x128xf32>
    %227 = vector.shape_cast %226 : vector<1x2x128xf32> to vector<2x128xf32>
    %c0_68 = arith.constant 0 : index
    %c20 = arith.constant 20 : index
    %c0_69 = arith.constant 0 : index
    %228 = vector.load %arg4[%c0_68, %c20, %c0_69] : memref<1x24x128xf32, #tpu.memory_space<vmem>>, vector<1x2x128xf32>
    %229 = vector.shape_cast %228 : vector<1x2x128xf32> to vector<2x128xf32>
    %230 = vector.shape_cast %227 : vector<2x128xf32> to vector<1x2x128xf32>
    tpu.vector_store %arg4[%c0_68, %c20, %c0_69], %230 {strides = array<i32>} : memref<1x24x128xf32, #tpu.memory_space<vmem>>, vector<1x2x128xf32>,
    %231 = vector.extract_strided_slice %175 {offsets = [11, 0, 0], sizes = [1, 2, 128], strides = [1, 1, 1]} : vector<12x2x128xf32> to vector<1x2x128xf32>
    %232 = vector.shape_cast %231 : vector<1x2x128xf32> to vector<2x128xf32>
    %c0_70 = arith.constant 0 : index
    %c22 = arith.constant 22 : index
    %c0_71 = arith.constant 0 : index
    %233 = vector.load %arg4[%c0_70, %c22, %c0_71] : memref<1x24x128xf32, #tpu.memory_space<vmem>>, vector<1x2x128xf32>
    %234 = vector.shape_cast %233 : vector<1x2x128xf32> to vector<2x128xf32>
    %235 = vector.shape_cast %232 : vector<2x128xf32> to vector<1x2x128xf32>
    tpu.vector_store %arg4[%c0_70, %c22, %c0_71], %235 {strides = array<i32>} : memref<1x24x128xf32, #tpu.memory_space<vmem>>, vector<1x2x128xf32>,
    return
  }
  func.func @transform_0(%arg0: i32) -> (i32, i32, i32) {
    %c0_i32 = arith.constant 0 : i32
    %c0_i32_0 = arith.constant 0 : i32
    %c0_i32_1 = arith.constant 0 : i32
    return %arg0, %c0_i32, %c0_i32_0 : i32, i32, i32
  }
  func.func @transform_1(%arg0: i32) -> (i32, i32, i32) {
    %c0_i32 = arith.constant 0 : i32
    %c0_i32_0 = arith.constant 0 : i32
    %c0_i32_1 = arith.constant 0 : i32
    %c0_i32_2 = arith.constant 0 : i32
    return %c0_i32, %c0_i32_0, %c0_i32_1 : i32, i32, i32
  }
  func.func @transform_2(%arg0: i32) -> (i32, i32) {
    %c0_i32 = arith.constant 0 : i32
    %c0_i32_0 = arith.constant 0 : i32
    %c0_i32_1 = arith.constant 0 : i32
    return %c0_i32, %c0_i32_0 : i32, i32
  }
  func.func @transform_3(%arg0: i32) -> (i32, i32, i32) {
    %c0_i32 = arith.constant 0 : i32
    %c0_i32_0 = arith.constant 0 : i32
    %c0_i32_1 = arith.constant 0 : i32
    return %arg0, %c0_i32, %c0_i32_0 : i32, i32, i32
  }
}

module attributes {stable_mosaic.version = 11 : i64} {
  func.func @_encoder_kernel(%arg0: i32, %arg1: memref<96x128xf32, #tpu.memory_space<vmem>>, %arg2: memref<96x128xf32, #tpu.memory_space<vmem>>, %arg3: memref<96x96xf32, #tpu.memory_space<vmem>>, %arg4: memref<2x12xf32, #tpu.memory_space<vmem>>, %arg5: memref<1x12x48x128xf32, #tpu.memory_space<vmem>>, %arg6: memref<1x48x128xf32, #tpu.memory_space<vmem>>, %arg7: memref<1x128x128xbf16, #tpu.memory_space<vmem>>, %arg8: memref<1x128x256xbf16, #tpu.memory_space<vmem>>, %arg9: memref<1x2x64x128xbf16, #tpu.memory_space<vmem>>, %arg10: memref<1x128x128xbf16, #tpu.memory_space<vmem>>, %arg11: memref<1x128x128xbf16, #tpu.memory_space<vmem>>, %arg12: memref<1x1x256xf32, #tpu.memory_space<vmem>>, %arg13: memref<1x8x128xf32, #tpu.memory_space<vmem>>, %arg14: memref<1x128xf32, #tpu.memory_space<vmem>>, %arg15: memref<1x128xf32, #tpu.memory_space<vmem>>, %arg16: memref<128x64xbf16, #tpu.memory_space<vmem>>, %arg17: memref<1x64xf32, #tpu.memory_space<vmem>>, %arg18: memref<64x32xbf16, #tpu.memory_space<vmem>>, %arg19: memref<1x32xf32, #tpu.memory_space<vmem>>, %arg20: memref<32x10xbf16, #tpu.memory_space<vmem>>, %arg21: memref<1x10xf32, #tpu.memory_space<vmem>>, %arg22: memref<2x10xf32, #tpu.memory_space<vmem>>, %arg23: memref<96x128xf32, #tpu.memory_space<vmem>>) attributes {dimension_semantics = [#tpu.dimension_semantics<arbitrary>], iteration_bounds = array<i64: 3>, scalar_prefetch = 0 : i64, scratch_operands = 1 : i64, tpu.core_type = #tpu.core_type<tc>, window_params = [{pipeline_mode = #tpu.pipeline_mode<synchronous>, transform_indices = @transform_0, window_bounds = array<i64: 96, 128>}, {pipeline_mode = #tpu.pipeline_mode<synchronous>, transform_indices = @transform_1, window_bounds = array<i64: 96, 128>}, {pipeline_mode = #tpu.pipeline_mode<synchronous>, transform_indices = @transform_2, window_bounds = array<i64: 96, 96>}, {pipeline_mode = #tpu.pipeline_mode<synchronous>, transform_indices = @transform_3, window_bounds = array<i64: 2, 12>}, {transform_indices = @transform_4, window_bounds = array<i64: 1, 12, 48, 128>}, {transform_indices = @transform_5, window_bounds = array<i64: 1, 48, 128>}, {transform_indices = @transform_6, window_bounds = array<i64: 1, 128, 128>}, {transform_indices = @transform_7, window_bounds = array<i64: 1, 128, 256>}, {transform_indices = @transform_8, window_bounds = array<i64: 1, 2, 64, 128>}, {transform_indices = @transform_9, window_bounds = array<i64: 1, 128, 128>}, {transform_indices = @transform_10, window_bounds = array<i64: 1, 128, 128>}, {transform_indices = @transform_11, window_bounds = array<i64: 1, 1, 256>}, {transform_indices = @transform_12, window_bounds = array<i64: 1, 8, 128>}, {pipeline_mode = #tpu.pipeline_mode<synchronous>, transform_indices = @transform_13, window_bounds = array<i64: 1, 128>}, {pipeline_mode = #tpu.pipeline_mode<synchronous>, transform_indices = @transform_14, window_bounds = array<i64: 1, 128>}, {pipeline_mode = #tpu.pipeline_mode<synchronous>, transform_indices = @transform_15, window_bounds = array<i64: 128, 64>}, {pipeline_mode = #tpu.pipeline_mode<synchronous>, transform_indices = @transform_16, window_bounds = array<i64: 1, 64>}, {pipeline_mode = #tpu.pipeline_mode<synchronous>, transform_indices = @transform_17, window_bounds = array<i64: 64, 32>}, {pipeline_mode = #tpu.pipeline_mode<synchronous>, transform_indices = @transform_18, window_bounds = array<i64: 1, 32>}, {pipeline_mode = #tpu.pipeline_mode<synchronous>, transform_indices = @transform_19, window_bounds = array<i64: 32, 10>}, {pipeline_mode = #tpu.pipeline_mode<synchronous>, transform_indices = @transform_20, window_bounds = array<i64: 1, 10>}, {pipeline_mode = #tpu.pipeline_mode<synchronous>, transform_indices = @transform_21, window_bounds = array<i64: 2, 10>}]} {
    %c0_i32 = arith.constant 0 : i32
    %0 = arith.cmpi eq, %arg0, %c0_i32 : i32
    %1 = arith.extui %0 : i1 to i32
    %c0_i32_0 = arith.constant 0 : i32
    %2 = arith.cmpi ne, %1, %c0_i32_0 : i32
    scf.if %2 {
      %c0_107 = arith.constant 0 : index
      %c0_108 = arith.constant 0 : index
      %271 = vector.load %arg1[%c0_107, %c0_108] : memref<96x128xf32, #tpu.memory_space<vmem>>, vector<96x128xf32>
      %c0_109 = arith.constant 0 : index
      %c0_110 = arith.constant 0 : index
      %272 = vector.load %arg23[%c0_109, %c0_110] : memref<96x128xf32, #tpu.memory_space<vmem>>, vector<96x128xf32>
      tpu.vector_store %arg23[%c0_109, %c0_110], %271 {strides = array<i32>} : memref<96x128xf32, #tpu.memory_space<vmem>>, vector<96x128xf32>,
    } else {
    }
    %c0 = arith.constant 0 : index
    %c0_1 = arith.constant 0 : index
    %3 = vector.load %arg23[%c0, %c0_1] : memref<96x128xf32, #tpu.memory_space<vmem>>, vector<96x128xf32>
    %c0_2 = arith.constant 0 : index
    %c0_3 = arith.constant 0 : index
    %4 = vector.load %arg4[%c0_2, %c0_3] : memref<2x12xf32, #tpu.memory_space<vmem>>, vector<2x12xf32>
    %c0_4 = arith.constant 0 : index
    %c0_5 = arith.constant 0 : index
    %c0_6 = arith.constant 0 : index
    %5 = vector.load %arg6[%c0_4, %c0_5, %c0_6] : memref<1x48x128xf32, #tpu.memory_space<vmem>>, vector<1x48x128xf32>
    %6 = vector.shape_cast %5 : vector<1x48x128xf32> to vector<48x128xf32>
    %c0_7 = arith.constant 0 : index
    %c0_8 = arith.constant 0 : index
    %c0_9 = arith.constant 0 : index
    %7 = vector.load %arg6[%c0_7, %c0_8, %c0_9] : memref<1x48x128xf32, #tpu.memory_space<vmem>>, vector<1x48x128xf32>
    %8 = vector.shape_cast %7 : vector<1x48x128xf32> to vector<48x128xf32>
    %c0_10 = arith.constant 0 : index
    %c0_11 = arith.constant 0 : index
    %c0_12 = arith.constant 0 : index
    %c0_13 = arith.constant 0 : index
    %9 = vector.load %arg5[%c0_10, %c0_11, %c0_12, %c0_13] : memref<1x12x48x128xf32, #tpu.memory_space<vmem>>, vector<1x1x48x128xf32>
    %10 = vector.shape_cast %9 : vector<1x1x48x128xf32> to vector<48x128xf32>
    %11 = vector.extract_strided_slice %4 {offsets = [0, 0], sizes = [1, 1], strides = [1, 1]} : vector<2x12xf32> to vector<1x1xf32>
    %12 = vector.broadcast %11 : vector<1x1xf32> to vector<48x128xf32>
    %13 = arith.mulf %12, %10 : vector<48x128xf32>
    %14 = arith.addf %6, %13 : vector<48x128xf32>
    %15 = vector.extract_strided_slice %4 {offsets = [1, 0], sizes = [1, 1], strides = [1, 1]} : vector<2x12xf32> to vector<1x1xf32>
    %16 = vector.broadcast %15 : vector<1x1xf32> to vector<48x128xf32>
    %17 = arith.mulf %16, %10 : vector<48x128xf32>
    %18 = arith.addf %8, %17 : vector<48x128xf32>
    %c0_14 = arith.constant 0 : index
    %c1 = arith.constant 1 : index
    %c0_15 = arith.constant 0 : index
    %c0_16 = arith.constant 0 : index
    %19 = vector.load %arg5[%c0_14, %c1, %c0_15, %c0_16] : memref<1x12x48x128xf32, #tpu.memory_space<vmem>>, vector<1x1x48x128xf32>
    %20 = vector.shape_cast %19 : vector<1x1x48x128xf32> to vector<48x128xf32>
    %21 = vector.extract_strided_slice %4 {offsets = [0, 1], sizes = [1, 1], strides = [1, 1]} : vector<2x12xf32> to vector<1x1xf32>
    %22 = vector.broadcast %21 : vector<1x1xf32> to vector<48x128xf32>
    %23 = arith.mulf %22, %20 : vector<48x128xf32>
    %24 = arith.addf %14, %23 : vector<48x128xf32>
    %25 = vector.extract_strided_slice %4 {offsets = [1, 1], sizes = [1, 1], strides = [1, 1]} : vector<2x12xf32> to vector<1x1xf32>
    %26 = vector.broadcast %25 : vector<1x1xf32> to vector<48x128xf32>
    %27 = arith.mulf %26, %20 : vector<48x128xf32>
    %28 = arith.addf %18, %27 : vector<48x128xf32>
    %c0_17 = arith.constant 0 : index
    %c2 = arith.constant 2 : index
    %c0_18 = arith.constant 0 : index
    %c0_19 = arith.constant 0 : index
    %29 = vector.load %arg5[%c0_17, %c2, %c0_18, %c0_19] : memref<1x12x48x128xf32, #tpu.memory_space<vmem>>, vector<1x1x48x128xf32>
    %30 = vector.shape_cast %29 : vector<1x1x48x128xf32> to vector<48x128xf32>
    %31 = vector.extract_strided_slice %4 {offsets = [0, 2], sizes = [1, 1], strides = [1, 1]} : vector<2x12xf32> to vector<1x1xf32>
    %32 = vector.broadcast %31 : vector<1x1xf32> to vector<48x128xf32>
    %33 = arith.mulf %32, %30 : vector<48x128xf32>
    %34 = arith.addf %24, %33 : vector<48x128xf32>
    %35 = vector.extract_strided_slice %4 {offsets = [1, 2], sizes = [1, 1], strides = [1, 1]} : vector<2x12xf32> to vector<1x1xf32>
    %36 = vector.broadcast %35 : vector<1x1xf32> to vector<48x128xf32>
    %37 = arith.mulf %36, %30 : vector<48x128xf32>
    %38 = arith.addf %28, %37 : vector<48x128xf32>
    %c0_20 = arith.constant 0 : index
    %c3 = arith.constant 3 : index
    %c0_21 = arith.constant 0 : index
    %c0_22 = arith.constant 0 : index
    %39 = vector.load %arg5[%c0_20, %c3, %c0_21, %c0_22] : memref<1x12x48x128xf32, #tpu.memory_space<vmem>>, vector<1x1x48x128xf32>
    %40 = vector.shape_cast %39 : vector<1x1x48x128xf32> to vector<48x128xf32>
    %41 = vector.extract_strided_slice %4 {offsets = [0, 3], sizes = [1, 1], strides = [1, 1]} : vector<2x12xf32> to vector<1x1xf32>
    %42 = vector.broadcast %41 : vector<1x1xf32> to vector<48x128xf32>
    %43 = arith.mulf %42, %40 : vector<48x128xf32>
    %44 = arith.addf %34, %43 : vector<48x128xf32>
    %45 = vector.extract_strided_slice %4 {offsets = [1, 3], sizes = [1, 1], strides = [1, 1]} : vector<2x12xf32> to vector<1x1xf32>
    %46 = vector.broadcast %45 : vector<1x1xf32> to vector<48x128xf32>
    %47 = arith.mulf %46, %40 : vector<48x128xf32>
    %48 = arith.addf %38, %47 : vector<48x128xf32>
    %c0_23 = arith.constant 0 : index
    %c4 = arith.constant 4 : index
    %c0_24 = arith.constant 0 : index
    %c0_25 = arith.constant 0 : index
    %49 = vector.load %arg5[%c0_23, %c4, %c0_24, %c0_25] : memref<1x12x48x128xf32, #tpu.memory_space<vmem>>, vector<1x1x48x128xf32>
    %50 = vector.shape_cast %49 : vector<1x1x48x128xf32> to vector<48x128xf32>
    %51 = vector.extract_strided_slice %4 {offsets = [0, 4], sizes = [1, 1], strides = [1, 1]} : vector<2x12xf32> to vector<1x1xf32>
    %52 = vector.broadcast %51 : vector<1x1xf32> to vector<48x128xf32>
    %53 = arith.mulf %52, %50 : vector<48x128xf32>
    %54 = arith.addf %44, %53 : vector<48x128xf32>
    %55 = vector.extract_strided_slice %4 {offsets = [1, 4], sizes = [1, 1], strides = [1, 1]} : vector<2x12xf32> to vector<1x1xf32>
    %56 = vector.broadcast %55 : vector<1x1xf32> to vector<48x128xf32>
    %57 = arith.mulf %56, %50 : vector<48x128xf32>
    %58 = arith.addf %48, %57 : vector<48x128xf32>
    %c0_26 = arith.constant 0 : index
    %c5 = arith.constant 5 : index
    %c0_27 = arith.constant 0 : index
    %c0_28 = arith.constant 0 : index
    %59 = vector.load %arg5[%c0_26, %c5, %c0_27, %c0_28] : memref<1x12x48x128xf32, #tpu.memory_space<vmem>>, vector<1x1x48x128xf32>
    %60 = vector.shape_cast %59 : vector<1x1x48x128xf32> to vector<48x128xf32>
    %61 = vector.extract_strided_slice %4 {offsets = [0, 5], sizes = [1, 1], strides = [1, 1]} : vector<2x12xf32> to vector<1x1xf32>
    %62 = vector.broadcast %61 : vector<1x1xf32> to vector<48x128xf32>
    %63 = arith.mulf %62, %60 : vector<48x128xf32>
    %64 = arith.addf %54, %63 : vector<48x128xf32>
    %65 = vector.extract_strided_slice %4 {offsets = [1, 5], sizes = [1, 1], strides = [1, 1]} : vector<2x12xf32> to vector<1x1xf32>
    %66 = vector.broadcast %65 : vector<1x1xf32> to vector<48x128xf32>
    %67 = arith.mulf %66, %60 : vector<48x128xf32>
    %68 = arith.addf %58, %67 : vector<48x128xf32>
    %c0_29 = arith.constant 0 : index
    %c6 = arith.constant 6 : index
    %c0_30 = arith.constant 0 : index
    %c0_31 = arith.constant 0 : index
    %69 = vector.load %arg5[%c0_29, %c6, %c0_30, %c0_31] : memref<1x12x48x128xf32, #tpu.memory_space<vmem>>, vector<1x1x48x128xf32>
    %70 = vector.shape_cast %69 : vector<1x1x48x128xf32> to vector<48x128xf32>
    %71 = vector.extract_strided_slice %4 {offsets = [0, 6], sizes = [1, 1], strides = [1, 1]} : vector<2x12xf32> to vector<1x1xf32>
    %72 = vector.broadcast %71 : vector<1x1xf32> to vector<48x128xf32>
    %73 = arith.mulf %72, %70 : vector<48x128xf32>
    %74 = arith.addf %64, %73 : vector<48x128xf32>
    %75 = vector.extract_strided_slice %4 {offsets = [1, 6], sizes = [1, 1], strides = [1, 1]} : vector<2x12xf32> to vector<1x1xf32>
    %76 = vector.broadcast %75 : vector<1x1xf32> to vector<48x128xf32>
    %77 = arith.mulf %76, %70 : vector<48x128xf32>
    %78 = arith.addf %68, %77 : vector<48x128xf32>
    %c0_32 = arith.constant 0 : index
    %c7 = arith.constant 7 : index
    %c0_33 = arith.constant 0 : index
    %c0_34 = arith.constant 0 : index
    %79 = vector.load %arg5[%c0_32, %c7, %c0_33, %c0_34] : memref<1x12x48x128xf32, #tpu.memory_space<vmem>>, vector<1x1x48x128xf32>
    %80 = vector.shape_cast %79 : vector<1x1x48x128xf32> to vector<48x128xf32>
    %81 = vector.extract_strided_slice %4 {offsets = [0, 7], sizes = [1, 1], strides = [1, 1]} : vector<2x12xf32> to vector<1x1xf32>
    %82 = vector.broadcast %81 : vector<1x1xf32> to vector<48x128xf32>
    %83 = arith.mulf %82, %80 : vector<48x128xf32>
    %84 = arith.addf %74, %83 : vector<48x128xf32>
    %85 = vector.extract_strided_slice %4 {offsets = [1, 7], sizes = [1, 1], strides = [1, 1]} : vector<2x12xf32> to vector<1x1xf32>
    %86 = vector.broadcast %85 : vector<1x1xf32> to vector<48x128xf32>
    %87 = arith.mulf %86, %80 : vector<48x128xf32>
    %88 = arith.addf %78, %87 : vector<48x128xf32>
    %c0_35 = arith.constant 0 : index
    %c8 = arith.constant 8 : index
    %c0_36 = arith.constant 0 : index
    %c0_37 = arith.constant 0 : index
    %89 = vector.load %arg5[%c0_35, %c8, %c0_36, %c0_37] : memref<1x12x48x128xf32, #tpu.memory_space<vmem>>, vector<1x1x48x128xf32>
    %90 = vector.shape_cast %89 : vector<1x1x48x128xf32> to vector<48x128xf32>
    %91 = vector.extract_strided_slice %4 {offsets = [0, 8], sizes = [1, 1], strides = [1, 1]} : vector<2x12xf32> to vector<1x1xf32>
    %92 = vector.broadcast %91 : vector<1x1xf32> to vector<48x128xf32>
    %93 = arith.mulf %92, %90 : vector<48x128xf32>
    %94 = arith.addf %84, %93 : vector<48x128xf32>
    %95 = vector.extract_strided_slice %4 {offsets = [1, 8], sizes = [1, 1], strides = [1, 1]} : vector<2x12xf32> to vector<1x1xf32>
    %96 = vector.broadcast %95 : vector<1x1xf32> to vector<48x128xf32>
    %97 = arith.mulf %96, %90 : vector<48x128xf32>
    %98 = arith.addf %88, %97 : vector<48x128xf32>
    %c0_38 = arith.constant 0 : index
    %c9 = arith.constant 9 : index
    %c0_39 = arith.constant 0 : index
    %c0_40 = arith.constant 0 : index
    %99 = vector.load %arg5[%c0_38, %c9, %c0_39, %c0_40] : memref<1x12x48x128xf32, #tpu.memory_space<vmem>>, vector<1x1x48x128xf32>
    %100 = vector.shape_cast %99 : vector<1x1x48x128xf32> to vector<48x128xf32>
    %101 = vector.extract_strided_slice %4 {offsets = [0, 9], sizes = [1, 1], strides = [1, 1]} : vector<2x12xf32> to vector<1x1xf32>
    %102 = vector.broadcast %101 : vector<1x1xf32> to vector<48x128xf32>
    %103 = arith.mulf %102, %100 : vector<48x128xf32>
    %104 = arith.addf %94, %103 : vector<48x128xf32>
    %105 = vector.extract_strided_slice %4 {offsets = [1, 9], sizes = [1, 1], strides = [1, 1]} : vector<2x12xf32> to vector<1x1xf32>
    %106 = vector.broadcast %105 : vector<1x1xf32> to vector<48x128xf32>
    %107 = arith.mulf %106, %100 : vector<48x128xf32>
    %108 = arith.addf %98, %107 : vector<48x128xf32>
    %c0_41 = arith.constant 0 : index
    %c10 = arith.constant 10 : index
    %c0_42 = arith.constant 0 : index
    %c0_43 = arith.constant 0 : index
    %109 = vector.load %arg5[%c0_41, %c10, %c0_42, %c0_43] : memref<1x12x48x128xf32, #tpu.memory_space<vmem>>, vector<1x1x48x128xf32>
    %110 = vector.shape_cast %109 : vector<1x1x48x128xf32> to vector<48x128xf32>
    %111 = vector.extract_strided_slice %4 {offsets = [0, 10], sizes = [1, 1], strides = [1, 1]} : vector<2x12xf32> to vector<1x1xf32>
    %112 = vector.broadcast %111 : vector<1x1xf32> to vector<48x128xf32>
    %113 = arith.mulf %112, %110 : vector<48x128xf32>
    %114 = arith.addf %104, %113 : vector<48x128xf32>
    %115 = vector.extract_strided_slice %4 {offsets = [1, 10], sizes = [1, 1], strides = [1, 1]} : vector<2x12xf32> to vector<1x1xf32>
    %116 = vector.broadcast %115 : vector<1x1xf32> to vector<48x128xf32>
    %117 = arith.mulf %116, %110 : vector<48x128xf32>
    %118 = arith.addf %108, %117 : vector<48x128xf32>
    %c0_44 = arith.constant 0 : index
    %c11 = arith.constant 11 : index
    %c0_45 = arith.constant 0 : index
    %c0_46 = arith.constant 0 : index
    %119 = vector.load %arg5[%c0_44, %c11, %c0_45, %c0_46] : memref<1x12x48x128xf32, #tpu.memory_space<vmem>>, vector<1x1x48x128xf32>
    %120 = vector.shape_cast %119 : vector<1x1x48x128xf32> to vector<48x128xf32>
    %121 = vector.extract_strided_slice %4 {offsets = [0, 11], sizes = [1, 1], strides = [1, 1]} : vector<2x12xf32> to vector<1x1xf32>
    %122 = vector.broadcast %121 : vector<1x1xf32> to vector<48x128xf32>
    %123 = arith.mulf %122, %120 : vector<48x128xf32>
    %124 = arith.addf %114, %123 : vector<48x128xf32>
    %125 = vector.extract_strided_slice %4 {offsets = [1, 11], sizes = [1, 1], strides = [1, 1]} : vector<2x12xf32> to vector<1x1xf32>
    %126 = vector.broadcast %125 : vector<1x1xf32> to vector<48x128xf32>
    %127 = arith.mulf %126, %120 : vector<48x128xf32>
    %128 = arith.addf %118, %127 : vector<48x128xf32>
    %129 = tpu.concatenate %124, %128 in 0 : vector<48x128xf32>, vector<48x128xf32> -> vector<96x128xf32>
    %cst = arith.constant 0.000000e+00 : f32
    %130 = vector.broadcast %cst : f32 to vector<96x128xf32>
    %131 = arith.maximumf %129, %130 : vector<96x128xf32>
    %c0_47 = arith.constant 0 : index
    %c0_48 = arith.constant 0 : index
    %c0_49 = arith.constant 0 : index
    %132 = vector.load %arg13[%c0_47, %c0_48, %c0_49] : memref<1x8x128xf32, #tpu.memory_space<vmem>>, vector<1x8x128xf32>
    %133 = vector.shape_cast %132 : vector<1x8x128xf32> to vector<8x128xf32>
    %134 = vector.extract_strided_slice %133 {offsets = [0, 0], sizes = [1, 128], strides = [1, 1]} : vector<8x128xf32> to vector<1x128xf32>
    %135 = vector.extract_strided_slice %133 {offsets = [1, 0], sizes = [1, 128], strides = [1, 1]} : vector<8x128xf32> to vector<1x128xf32>
    %136 = vector.extract_strided_slice %133 {offsets = [2, 0], sizes = [1, 128], strides = [1, 1]} : vector<8x128xf32> to vector<1x128xf32>
    %137 = vector.extract_strided_slice %133 {offsets = [3, 0], sizes = [1, 128], strides = [1, 1]} : vector<8x128xf32> to vector<1x128xf32>
    %138 = vector.extract_strided_slice %133 {offsets = [4, 0], sizes = [1, 128], strides = [1, 1]} : vector<8x128xf32> to vector<1x128xf32>
    %139 = vector.extract_strided_slice %133 {offsets = [5, 0], sizes = [1, 128], strides = [1, 1]} : vector<8x128xf32> to vector<1x128xf32>
    %140 = vector.extract_strided_slice %133 {offsets = [6, 0], sizes = [1, 128], strides = [1, 1]} : vector<8x128xf32> to vector<1x128xf32>
    %141 = vector.extract_strided_slice %133 {offsets = [7, 0], sizes = [1, 128], strides = [1, 1]} : vector<8x128xf32> to vector<1x128xf32>
    %c0_50 = arith.constant 0 : index
    %c0_51 = arith.constant 0 : index
    %142 = vector.load %arg2[%c0_50, %c0_51] : memref<96x128xf32, #tpu.memory_space<vmem>>, vector<96x128xf32>
    %143 = arith.addf %3, %142 : vector<96x128xf32>
    %144 = arith.truncf %143 : vector<96x128xf32> to vector<96x128xbf16>
    %c0_52 = arith.constant 0 : index
    %c0_53 = arith.constant 0 : index
    %c0_54 = arith.constant 0 : index
    %145 = vector.load %arg8[%c0_52, %c0_53, %c0_54] : memref<1x128x256xbf16, #tpu.memory_space<vmem>>, vector<1x128x256xbf16>
    %146 = vector.shape_cast %145 : vector<1x128x256xbf16> to vector<128x256xbf16>
    %cst_55 = arith.constant dense<0.000000e+00> : vector<96x256xf32>
    %147 = tpu.matmul %144, %146, %cst_55 {dimension_numbers = #tpu.dot_dimension_numbers<[1], [0], [0], [1], [0, 0, 1, 1], [], []>} : vector<96x128xbf16>, vector<128x256xbf16>, vector<96x256xf32> -> vector<96x256xf32>
    %c0_56 = arith.constant 0 : index
    %c0_57 = arith.constant 0 : index
    %c0_58 = arith.constant 0 : index
    %148 = vector.load %arg12[%c0_56, %c0_57, %c0_58] : memref<1x1x256xf32, #tpu.memory_space<vmem>>, vector<1x1x256xf32>
    %149 = vector.shape_cast %148 : vector<1x1x256xf32> to vector<1x256xf32>
    %150 = vector.broadcast %149 : vector<1x256xf32> to vector<96x256xf32>
    %151 = arith.addf %147, %150 : vector<96x256xf32>
    %152 = arith.truncf %151 : vector<96x256xf32> to vector<96x256xbf16>
    %153 = arith.truncf %131 : vector<96x128xf32> to vector<96x128xbf16>
    %c0_59 = arith.constant 0 : index
    %c0_60 = arith.constant 0 : index
    %c0_61 = arith.constant 0 : index
    %154 = vector.load %arg7[%c0_59, %c0_60, %c0_61] : memref<1x128x128xbf16, #tpu.memory_space<vmem>>, vector<1x128x128xbf16>
    %155 = vector.shape_cast %154 : vector<1x128x128xbf16> to vector<128x128xbf16>
    %cst_62 = arith.constant dense<0.000000e+00> : vector<96x128xf32>
    %156 = tpu.matmul %153, %155, %cst_62 {dimension_numbers = #tpu.dot_dimension_numbers<[1], [0], [0], [1], [0, 0, 1, 1], [], []>} : vector<96x128xbf16>, vector<128x128xbf16>, vector<96x128xf32> -> vector<96x128xf32>
    %157 = vector.broadcast %134 : vector<1x128xf32> to vector<96x128xf32>
    %158 = arith.addf %156, %157 : vector<96x128xf32>
    %c0_63 = arith.constant 0 : index
    %c0_64 = arith.constant 0 : index
    %159 = vector.load %arg3[%c0_63, %c0_64] : memref<96x96xf32, #tpu.memory_space<vmem>>, vector<96x96xf32>
    %160 = vector.extract_strided_slice %158 {offsets = [0, 0], sizes = [96, 64], strides = [1, 1]} : vector<96x128xf32> to vector<96x64xf32>
    %161 = arith.truncf %160 : vector<96x64xf32> to vector<96x64xbf16>
    %162 = vector.extract_strided_slice %152 {offsets = [0, 0], sizes = [96, 64], strides = [1, 1]} : vector<96x256xbf16> to vector<96x64xbf16>
    %163 = vector.extract_strided_slice %152 {offsets = [0, 128], sizes = [96, 64], strides = [1, 1]} : vector<96x256xbf16> to vector<96x64xbf16>
    %cst_65 = arith.constant dense<0.000000e+00> : vector<96x96xf32>
    %164 = tpu.matmul %161, %162, %cst_65 {dimension_numbers = #tpu.dot_dimension_numbers<[1], [1], [0], [0], [0, 0, 1, 0], [], []>} : vector<96x64xbf16>, vector<96x64xbf16>, vector<96x96xf32> -> vector<96x96xf32>
    %cst_66 = arith.constant 1.250000e-01 : f32
    %165 = vector.broadcast %cst_66 : f32 to vector<96x96xf32>
    %166 = arith.mulf %164, %165 : vector<96x96xf32>
    %167 = arith.addf %166, %159 : vector<96x96xf32>
    %cst_67 = arith.constant dense<0xFF800000> : vector<96xf32>
    %168 = vector.multi_reduction <maximumf>, %167, %cst_67 [1] : vector<96x96xf32> to vector<96xf32>
    %169 = vector.shape_cast %168 : vector<96xf32> to vector<96x1xf32>
    %170 = vector.broadcast %169 : vector<96x1xf32> to vector<96x96xf32>
    %171 = arith.subf %167, %170 : vector<96x96xf32>
    %172 = math.exp %171 : vector<96x96xf32>
    %cst_68 = arith.constant dense<0.000000e+00> : vector<96xf32>
    %173 = vector.multi_reduction <add>, %172, %cst_68 [1] : vector<96x96xf32> to vector<96xf32>
    %174 = vector.shape_cast %173 : vector<96xf32> to vector<96x1xf32>
    %175 = tpu.reciprocal %174 {approx = true} : vector<96x1xf32> -> vector<96x1xf32>
    %176 = vector.broadcast %175 : vector<96x1xf32> to vector<96x96xf32>
    %177 = arith.mulf %172, %176 : vector<96x96xf32>
    %178 = arith.truncf %177 : vector<96x96xf32> to vector<96x96xbf16>
    %cst_69 = arith.constant dense<0.000000e+00> : vector<96x64xf32>
    %179 = tpu.matmul %178, %163, %cst_69 {dimension_numbers = #tpu.dot_dimension_numbers<[1], [0], [0], [1], [0, 0, 1, 1], [], []>} : vector<96x96xbf16>, vector<96x64xbf16>, vector<96x64xf32> -> vector<96x64xf32>
    %180 = arith.truncf %179 : vector<96x64xf32> to vector<96x64xbf16>
    %c0_70 = arith.constant 0 : index
    %c0_71 = arith.constant 0 : index
    %c0_72 = arith.constant 0 : index
    %c0_73 = arith.constant 0 : index
    %181 = vector.load %arg9[%c0_70, %c0_71, %c0_72, %c0_73] : memref<1x2x64x128xbf16, #tpu.memory_space<vmem>>, vector<1x1x64x128xbf16>
    %182 = vector.shape_cast %181 : vector<1x1x64x128xbf16> to vector<64x128xbf16>
    %cst_74 = arith.constant dense<0.000000e+00> : vector<96x128xf32>
    %183 = tpu.matmul %180, %182, %cst_74 {dimension_numbers = #tpu.dot_dimension_numbers<[1], [0], [0], [1], [0, 0, 1, 1], [], []>} : vector<96x64xbf16>, vector<64x128xbf16>, vector<96x128xf32> -> vector<96x128xf32>
    %184 = vector.extract_strided_slice %158 {offsets = [0, 64], sizes = [96, 64], strides = [1, 1]} : vector<96x128xf32> to vector<96x64xf32>
    %185 = arith.truncf %184 : vector<96x64xf32> to vector<96x64xbf16>
    %186 = vector.extract_strided_slice %152 {offsets = [0, 64], sizes = [96, 64], strides = [1, 1]} : vector<96x256xbf16> to vector<96x64xbf16>
    %187 = vector.extract_strided_slice %152 {offsets = [0, 192], sizes = [96, 64], strides = [1, 1]} : vector<96x256xbf16> to vector<96x64xbf16>
    %cst_75 = arith.constant dense<0.000000e+00> : vector<96x96xf32>
    %188 = tpu.matmul %185, %186, %cst_75 {dimension_numbers = #tpu.dot_dimension_numbers<[1], [1], [0], [0], [0, 0, 1, 0], [], []>} : vector<96x64xbf16>, vector<96x64xbf16>, vector<96x96xf32> -> vector<96x96xf32>
    %cst_76 = arith.constant 1.250000e-01 : f32
    %189 = vector.broadcast %cst_76 : f32 to vector<96x96xf32>
    %190 = arith.mulf %188, %189 : vector<96x96xf32>
    %191 = arith.addf %190, %159 : vector<96x96xf32>
    %cst_77 = arith.constant dense<0xFF800000> : vector<96xf32>
    %192 = vector.multi_reduction <maximumf>, %191, %cst_77 [1] : vector<96x96xf32> to vector<96xf32>
    %193 = vector.shape_cast %192 : vector<96xf32> to vector<96x1xf32>
    %194 = vector.broadcast %193 : vector<96x1xf32> to vector<96x96xf32>
    %195 = arith.subf %191, %194 : vector<96x96xf32>
    %196 = math.exp %195 : vector<96x96xf32>
    %cst_78 = arith.constant dense<0.000000e+00> : vector<96xf32>
    %197 = vector.multi_reduction <add>, %196, %cst_78 [1] : vector<96x96xf32> to vector<96xf32>
    %198 = vector.shape_cast %197 : vector<96xf32> to vector<96x1xf32>
    %199 = tpu.reciprocal %198 {approx = true} : vector<96x1xf32> -> vector<96x1xf32>
    %200 = vector.broadcast %199 : vector<96x1xf32> to vector<96x96xf32>
    %201 = arith.mulf %196, %200 : vector<96x96xf32>
    %202 = arith.truncf %201 : vector<96x96xf32> to vector<96x96xbf16>
    %cst_79 = arith.constant dense<0.000000e+00> : vector<96x64xf32>
    %203 = tpu.matmul %202, %187, %cst_79 {dimension_numbers = #tpu.dot_dimension_numbers<[1], [0], [0], [1], [0, 0, 1, 1], [], []>} : vector<96x96xbf16>, vector<96x64xbf16>, vector<96x64xf32> -> vector<96x64xf32>
    %204 = arith.truncf %203 : vector<96x64xf32> to vector<96x64xbf16>
    %c0_80 = arith.constant 0 : index
    %c1_81 = arith.constant 1 : index
    %c0_82 = arith.constant 0 : index
    %c0_83 = arith.constant 0 : index
    %205 = vector.load %arg9[%c0_80, %c1_81, %c0_82, %c0_83] : memref<1x2x64x128xbf16, #tpu.memory_space<vmem>>, vector<1x1x64x128xbf16>
    %206 = vector.shape_cast %205 : vector<1x1x64x128xbf16> to vector<64x128xbf16>
    %cst_84 = arith.constant dense<0.000000e+00> : vector<96x128xf32>
    %207 = tpu.matmul %204, %206, %cst_84 {dimension_numbers = #tpu.dot_dimension_numbers<[1], [0], [0], [1], [0, 0, 1, 1], [], []>} : vector<96x64xbf16>, vector<64x128xbf16>, vector<96x128xf32> -> vector<96x128xf32>
    %208 = arith.addf %183, %207 : vector<96x128xf32>
    %209 = vector.broadcast %135 : vector<1x128xf32> to vector<96x128xf32>
    %210 = arith.addf %208, %209 : vector<96x128xf32>
    %211 = arith.addf %3, %210 : vector<96x128xf32>
    %cst_85 = arith.constant dense<0.000000e+00> : vector<96xf32>
    %212 = vector.multi_reduction <add>, %211, %cst_85 [1] : vector<96x128xf32> to vector<96xf32>
    %213 = vector.shape_cast %212 : vector<96xf32> to vector<96x1xf32>
    %cst_86 = arith.constant 1.280000e+02 : f32
    %214 = vector.broadcast %cst_86 : f32 to vector<96x1xf32>
    %215 = arith.divf %213, %214 : vector<96x1xf32>
    %216 = vector.broadcast %215 : vector<96x1xf32> to vector<96x128xf32>
    %217 = arith.subf %211, %216 : vector<96x128xf32>
    %218 = arith.mulf %217, %217 : vector<96x128xf32>
    %cst_87 = arith.constant dense<0.000000e+00> : vector<96xf32>
    %219 = vector.multi_reduction <add>, %218, %cst_87 [1] : vector<96x128xf32> to vector<96xf32>
    %220 = vector.shape_cast %219 : vector<96xf32> to vector<96x1xf32>
    %cst_88 = arith.constant 1.280000e+02 : f32
    %221 = vector.broadcast %cst_88 : f32 to vector<96x1xf32>
    %222 = arith.divf %220, %221 : vector<96x1xf32>
    %cst_89 = arith.constant 9.99999974E-6 : f32
    %223 = vector.broadcast %cst_89 : f32 to vector<96x1xf32>
    %224 = arith.addf %222, %223 : vector<96x1xf32>
    %225 = math.rsqrt %224 : vector<96x1xf32>
    %226 = vector.broadcast %225 : vector<96x1xf32> to vector<96x128xf32>
    %227 = arith.mulf %217, %226 : vector<96x128xf32>
    %228 = vector.broadcast %138 : vector<1x128xf32> to vector<96x128xf32>
    %229 = arith.mulf %227, %228 : vector<96x128xf32>
    %230 = vector.broadcast %139 : vector<1x128xf32> to vector<96x128xf32>
    %231 = arith.addf %229, %230 : vector<96x128xf32>
    %232 = arith.truncf %231 : vector<96x128xf32> to vector<96x128xbf16>
    %c0_90 = arith.constant 0 : index
    %c0_91 = arith.constant 0 : index
    %c0_92 = arith.constant 0 : index
    %233 = vector.load %arg10[%c0_90, %c0_91, %c0_92] : memref<1x128x128xbf16, #tpu.memory_space<vmem>>, vector<1x128x128xbf16>
    %234 = vector.shape_cast %233 : vector<1x128x128xbf16> to vector<128x128xbf16>
    %cst_93 = arith.constant dense<0.000000e+00> : vector<96x128xf32>
    %235 = tpu.matmul %232, %234, %cst_93 {dimension_numbers = #tpu.dot_dimension_numbers<[1], [0], [0], [1], [0, 0, 1, 1], [], []>} : vector<96x128xbf16>, vector<128x128xbf16>, vector<96x128xf32> -> vector<96x128xf32>
    %236 = vector.broadcast %137 : vector<1x128xf32> to vector<96x128xf32>
    %237 = arith.addf %235, %236 : vector<96x128xf32>
    %cst_94 = arith.constant 0.000000e+00 : f32
    %238 = vector.broadcast %cst_94 : f32 to vector<96x128xf32>
    %239 = arith.maximumf %237, %238 : vector<96x128xf32>
    %240 = arith.truncf %239 : vector<96x128xf32> to vector<96x128xbf16>
    %c0_95 = arith.constant 0 : index
    %c0_96 = arith.constant 0 : index
    %c0_97 = arith.constant 0 : index
    %241 = vector.load %arg11[%c0_95, %c0_96, %c0_97] : memref<1x128x128xbf16, #tpu.memory_space<vmem>>, vector<1x128x128xbf16>
    %242 = vector.shape_cast %241 : vector<1x128x128xbf16> to vector<128x128xbf16>
    %cst_98 = arith.constant dense<0.000000e+00> : vector<96x128xf32>
    %243 = tpu.matmul %240, %242, %cst_98 {dimension_numbers = #tpu.dot_dimension_numbers<[1], [0], [0], [1], [0, 0, 1, 1], [], []>} : vector<96x128xbf16>, vector<128x128xbf16>, vector<96x128xf32> -> vector<96x128xf32>
    %244 = vector.broadcast %136 : vector<1x128xf32> to vector<96x128xf32>
    %245 = arith.addf %243, %244 : vector<96x128xf32>
    %246 = arith.addf %231, %245 : vector<96x128xf32>
    %cst_99 = arith.constant dense<0.000000e+00> : vector<96xf32>
    %247 = vector.multi_reduction <add>, %246, %cst_99 [1] : vector<96x128xf32> to vector<96xf32>
    %248 = vector.shape_cast %247 : vector<96xf32> to vector<96x1xf32>
    %cst_100 = arith.constant 1.280000e+02 : f32
    %249 = vector.broadcast %cst_100 : f32 to vector<96x1xf32>
    %250 = arith.divf %248, %249 : vector<96x1xf32>
    %251 = vector.broadcast %250 : vector<96x1xf32> to vector<96x128xf32>
    %252 = arith.subf %246, %251 : vector<96x128xf32>
    %253 = arith.mulf %252, %252 : vector<96x128xf32>
    %cst_101 = arith.constant dense<0.000000e+00> : vector<96xf32>
    %254 = vector.multi_reduction <add>, %253, %cst_101 [1] : vector<96x128xf32> to vector<96xf32>
    %255 = vector.shape_cast %254 : vector<96xf32> to vector<96x1xf32>
    %cst_102 = arith.constant 1.280000e+02 : f32
    %256 = vector.broadcast %cst_102 : f32 to vector<96x1xf32>
    %257 = arith.divf %255, %256 : vector<96x1xf32>
    %cst_103 = arith.constant 9.99999974E-6 : f32
    %258 = vector.broadcast %cst_103 : f32 to vector<96x1xf32>
    %259 = arith.addf %257, %258 : vector<96x1xf32>
    %260 = math.rsqrt %259 : vector<96x1xf32>
    %261 = vector.broadcast %260 : vector<96x1xf32> to vector<96x128xf32>
    %262 = arith.mulf %252, %261 : vector<96x128xf32>
    %263 = vector.broadcast %140 : vector<1x128xf32> to vector<96x128xf32>
    %264 = arith.mulf %262, %263 : vector<96x128xf32>
    %265 = vector.broadcast %141 : vector<1x128xf32> to vector<96x128xf32>
    %266 = arith.addf %264, %265 : vector<96x128xf32>
    %c0_104 = arith.constant 0 : index
    %c0_105 = arith.constant 0 : index
    %267 = vector.load %arg23[%c0_104, %c0_105] : memref<96x128xf32, #tpu.memory_space<vmem>>, vector<96x128xf32>
    tpu.vector_store %arg23[%c0_104, %c0_105], %266 {strides = array<i32>} : memref<96x128xf32, #tpu.memory_space<vmem>>, vector<96x128xf32>,
    %c2_i32 = arith.constant 2 : i32
    %268 = arith.cmpi eq, %arg0, %c2_i32 : i32
    %269 = arith.extui %268 : i1 to i32
    %c0_i32_106 = arith.constant 0 : i32
    %270 = arith.cmpi ne, %269, %c0_i32_106 : i32
    scf.if %270 {
      %271 = vector.extract_strided_slice %266 {offsets = [0, 0], sizes = [2, 128], strides = [1, 1]} : vector<96x128xf32> to vector<2x128xf32>
      %c0_107 = arith.constant 0 : index
      %c0_108 = arith.constant 0 : index
      %272 = vector.load %arg14[%c0_107, %c0_108] : memref<1x128xf32, #tpu.memory_space<vmem>>, vector<1x128xf32>
      %c0_109 = arith.constant 0 : index
      %c0_110 = arith.constant 0 : index
      %273 = vector.load %arg15[%c0_109, %c0_110] : memref<1x128xf32, #tpu.memory_space<vmem>>, vector<1x128xf32>
      %cst_111 = arith.constant dense<0.000000e+00> : vector<2xf32>
      %274 = vector.multi_reduction <add>, %271, %cst_111 [1] : vector<2x128xf32> to vector<2xf32>
      %275 = vector.shape_cast %274 : vector<2xf32> to vector<2x1xf32>
      %cst_112 = arith.constant 1.280000e+02 : f32
      %276 = vector.broadcast %cst_112 : f32 to vector<2x1xf32>
      %277 = arith.divf %275, %276 : vector<2x1xf32>
      %278 = vector.broadcast %277 : vector<2x1xf32> to vector<2x128xf32>
      %279 = arith.subf %271, %278 : vector<2x128xf32>
      %280 = arith.mulf %279, %279 : vector<2x128xf32>
      %cst_113 = arith.constant dense<0.000000e+00> : vector<2xf32>
      %281 = vector.multi_reduction <add>, %280, %cst_113 [1] : vector<2x128xf32> to vector<2xf32>
      %282 = vector.shape_cast %281 : vector<2xf32> to vector<2x1xf32>
      %cst_114 = arith.constant 1.280000e+02 : f32
      %283 = vector.broadcast %cst_114 : f32 to vector<2x1xf32>
      %284 = arith.divf %282, %283 : vector<2x1xf32>
      %cst_115 = arith.constant 9.99999974E-6 : f32
      %285 = vector.broadcast %cst_115 : f32 to vector<2x1xf32>
      %286 = arith.addf %284, %285 : vector<2x1xf32>
      %287 = math.rsqrt %286 : vector<2x1xf32>
      %288 = vector.broadcast %287 : vector<2x1xf32> to vector<2x128xf32>
      %289 = arith.mulf %279, %288 : vector<2x128xf32>
      %290 = vector.broadcast %272 : vector<1x128xf32> to vector<2x128xf32>
      %291 = arith.mulf %289, %290 : vector<2x128xf32>
      %292 = vector.broadcast %273 : vector<1x128xf32> to vector<2x128xf32>
      %293 = arith.addf %291, %292 : vector<2x128xf32>
      %294 = arith.truncf %293 : vector<2x128xf32> to vector<2x128xbf16>
      %c0_116 = arith.constant 0 : index
      %c0_117 = arith.constant 0 : index
      %295 = vector.load %arg16[%c0_116, %c0_117] : memref<128x64xbf16, #tpu.memory_space<vmem>>, vector<128x64xbf16>
      %cst_118 = arith.constant dense<0.000000e+00> : vector<2x64xf32>
      %296 = tpu.matmul %294, %295, %cst_118 {dimension_numbers = #tpu.dot_dimension_numbers<[1], [0], [0], [1], [0, 0, 1, 1], [], []>} : vector<2x128xbf16>, vector<128x64xbf16>, vector<2x64xf32> -> vector<2x64xf32>
      %c0_119 = arith.constant 0 : index
      %c0_120 = arith.constant 0 : index
      %297 = vector.load %arg17[%c0_119, %c0_120] : memref<1x64xf32, #tpu.memory_space<vmem>>, vector<1x64xf32>
      %298 = vector.broadcast %297 : vector<1x64xf32> to vector<2x64xf32>
      %299 = arith.addf %296, %298 : vector<2x64xf32>
      %cst_121 = arith.constant 0.000000e+00 : f32
      %300 = vector.broadcast %cst_121 : f32 to vector<2x64xf32>
      %301 = arith.maximumf %299, %300 : vector<2x64xf32>
      %302 = arith.truncf %301 : vector<2x64xf32> to vector<2x64xbf16>
      %c0_122 = arith.constant 0 : index
      %c0_123 = arith.constant 0 : index
      %303 = vector.load %arg18[%c0_122, %c0_123] : memref<64x32xbf16, #tpu.memory_space<vmem>>, vector<64x32xbf16>
      %cst_124 = arith.constant dense<0.000000e+00> : vector<2x32xf32>
      %304 = tpu.matmul %302, %303, %cst_124 {dimension_numbers = #tpu.dot_dimension_numbers<[1], [0], [0], [1], [0, 0, 1, 1], [], []>} : vector<2x64xbf16>, vector<64x32xbf16>, vector<2x32xf32> -> vector<2x32xf32>
      %c0_125 = arith.constant 0 : index
      %c0_126 = arith.constant 0 : index
      %305 = vector.load %arg19[%c0_125, %c0_126] : memref<1x32xf32, #tpu.memory_space<vmem>>, vector<1x32xf32>
      %306 = vector.broadcast %305 : vector<1x32xf32> to vector<2x32xf32>
      %307 = arith.addf %304, %306 : vector<2x32xf32>
      %cst_127 = arith.constant 0.000000e+00 : f32
      %308 = vector.broadcast %cst_127 : f32 to vector<2x32xf32>
      %309 = arith.maximumf %307, %308 : vector<2x32xf32>
      %310 = arith.truncf %309 : vector<2x32xf32> to vector<2x32xbf16>
      %c0_128 = arith.constant 0 : index
      %c0_129 = arith.constant 0 : index
      %311 = vector.load %arg20[%c0_128, %c0_129] : memref<32x10xbf16, #tpu.memory_space<vmem>>, vector<32x10xbf16>
      %cst_130 = arith.constant dense<0.000000e+00> : vector<2x10xf32>
      %312 = tpu.matmul %310, %311, %cst_130 {dimension_numbers = #tpu.dot_dimension_numbers<[1], [0], [0], [1], [0, 0, 1, 1], [], []>} : vector<2x32xbf16>, vector<32x10xbf16>, vector<2x10xf32> -> vector<2x10xf32>
      %c0_131 = arith.constant 0 : index
      %c0_132 = arith.constant 0 : index
      %313 = vector.load %arg21[%c0_131, %c0_132] : memref<1x10xf32, #tpu.memory_space<vmem>>, vector<1x10xf32>
      %314 = vector.broadcast %313 : vector<1x10xf32> to vector<2x10xf32>
      %315 = arith.addf %312, %314 : vector<2x10xf32>
      %c0_133 = arith.constant 0 : index
      %c0_134 = arith.constant 0 : index
      %316 = vector.load %arg22[%c0_133, %c0_134] : memref<2x10xf32, #tpu.memory_space<vmem>>, vector<2x10xf32>
      tpu.vector_store %arg22[%c0_133, %c0_134], %315 {strides = array<i32>} : memref<2x10xf32, #tpu.memory_space<vmem>>, vector<2x10xf32>,
    } else {
    }
    return
  }
  func.func @transform_0(%arg0: i32) -> (i32, i32) {
    %c0_i32 = arith.constant 0 : i32
    %c0_i32_0 = arith.constant 0 : i32
    %c0_i32_1 = arith.constant 0 : i32
    return %c0_i32, %c0_i32_0 : i32, i32
  }
  func.func @transform_1(%arg0: i32) -> (i32, i32) {
    %c0_i32 = arith.constant 0 : i32
    %c0_i32_0 = arith.constant 0 : i32
    %c0_i32_1 = arith.constant 0 : i32
    return %c0_i32, %c0_i32_0 : i32, i32
  }
  func.func @transform_2(%arg0: i32) -> (i32, i32) {
    %c0_i32 = arith.constant 0 : i32
    %c0_i32_0 = arith.constant 0 : i32
    %c0_i32_1 = arith.constant 0 : i32
    return %c0_i32, %c0_i32_0 : i32, i32
  }
  func.func @transform_3(%arg0: i32) -> (i32, i32) {
    %c0_i32 = arith.constant 0 : i32
    %c0_i32_0 = arith.constant 0 : i32
    %c0_i32_1 = arith.constant 0 : i32
    return %c0_i32, %c0_i32_0 : i32, i32
  }
  func.func @transform_4(%arg0: i32) -> (i32, i32, i32, i32) {
    %c0_i32 = arith.constant 0 : i32
    %c0_i32_0 = arith.constant 0 : i32
    %c0_i32_1 = arith.constant 0 : i32
    %c0_i32_2 = arith.constant 0 : i32
    return %arg0, %c0_i32, %c0_i32_0, %c0_i32_1 : i32, i32, i32, i32
  }
  func.func @transform_5(%arg0: i32) -> (i32, i32, i32) {
    %c0_i32 = arith.constant 0 : i32
    %c0_i32_0 = arith.constant 0 : i32
    %c0_i32_1 = arith.constant 0 : i32
    return %arg0, %c0_i32, %c0_i32_0 : i32, i32, i32
  }
  func.func @transform_6(%arg0: i32) -> (i32, i32, i32) {
    %c0_i32 = arith.constant 0 : i32
    %c0_i32_0 = arith.constant 0 : i32
    %c0_i32_1 = arith.constant 0 : i32
    return %arg0, %c0_i32, %c0_i32_0 : i32, i32, i32
  }
  func.func @transform_7(%arg0: i32) -> (i32, i32, i32) {
    %c0_i32 = arith.constant 0 : i32
    %c0_i32_0 = arith.constant 0 : i32
    %c0_i32_1 = arith.constant 0 : i32
    return %arg0, %c0_i32, %c0_i32_0 : i32, i32, i32
  }
  func.func @transform_8(%arg0: i32) -> (i32, i32, i32, i32) {
    %c0_i32 = arith.constant 0 : i32
    %c0_i32_0 = arith.constant 0 : i32
    %c0_i32_1 = arith.constant 0 : i32
    %c0_i32_2 = arith.constant 0 : i32
    return %arg0, %c0_i32, %c0_i32_0, %c0_i32_1 : i32, i32, i32, i32
  }
  func.func @transform_9(%arg0: i32) -> (i32, i32, i32) {
    %c0_i32 = arith.constant 0 : i32
    %c0_i32_0 = arith.constant 0 : i32
    %c0_i32_1 = arith.constant 0 : i32
    return %arg0, %c0_i32, %c0_i32_0 : i32, i32, i32
  }
  func.func @transform_10(%arg0: i32) -> (i32, i32, i32) {
    %c0_i32 = arith.constant 0 : i32
    %c0_i32_0 = arith.constant 0 : i32
    %c0_i32_1 = arith.constant 0 : i32
    return %arg0, %c0_i32, %c0_i32_0 : i32, i32, i32
  }
  func.func @transform_11(%arg0: i32) -> (i32, i32, i32) {
    %c0_i32 = arith.constant 0 : i32
    %c0_i32_0 = arith.constant 0 : i32
    %c0_i32_1 = arith.constant 0 : i32
    return %arg0, %c0_i32, %c0_i32_0 : i32, i32, i32
  }
  func.func @transform_12(%arg0: i32) -> (i32, i32, i32) {
    %c0_i32 = arith.constant 0 : i32
    %c0_i32_0 = arith.constant 0 : i32
    %c0_i32_1 = arith.constant 0 : i32
    return %arg0, %c0_i32, %c0_i32_0 : i32, i32, i32
  }
  func.func @transform_13(%arg0: i32) -> (i32, i32) {
    %c0_i32 = arith.constant 0 : i32
    %c0_i32_0 = arith.constant 0 : i32
    %c0_i32_1 = arith.constant 0 : i32
    return %c0_i32, %c0_i32_0 : i32, i32
  }
  func.func @transform_14(%arg0: i32) -> (i32, i32) {
    %c0_i32 = arith.constant 0 : i32
    %c0_i32_0 = arith.constant 0 : i32
    %c0_i32_1 = arith.constant 0 : i32
    return %c0_i32, %c0_i32_0 : i32, i32
  }
  func.func @transform_15(%arg0: i32) -> (i32, i32) {
    %c0_i32 = arith.constant 0 : i32
    %c0_i32_0 = arith.constant 0 : i32
    %c0_i32_1 = arith.constant 0 : i32
    return %c0_i32, %c0_i32_0 : i32, i32
  }
  func.func @transform_16(%arg0: i32) -> (i32, i32) {
    %c0_i32 = arith.constant 0 : i32
    %c0_i32_0 = arith.constant 0 : i32
    %c0_i32_1 = arith.constant 0 : i32
    return %c0_i32, %c0_i32_0 : i32, i32
  }
  func.func @transform_17(%arg0: i32) -> (i32, i32) {
    %c0_i32 = arith.constant 0 : i32
    %c0_i32_0 = arith.constant 0 : i32
    %c0_i32_1 = arith.constant 0 : i32
    return %c0_i32, %c0_i32_0 : i32, i32
  }
  func.func @transform_18(%arg0: i32) -> (i32, i32) {
    %c0_i32 = arith.constant 0 : i32
    %c0_i32_0 = arith.constant 0 : i32
    %c0_i32_1 = arith.constant 0 : i32
    return %c0_i32, %c0_i32_0 : i32, i32
  }
  func.func @transform_19(%arg0: i32) -> (i32, i32) {
    %c0_i32 = arith.constant 0 : i32
    %c0_i32_0 = arith.constant 0 : i32
    %c0_i32_1 = arith.constant 0 : i32
    return %c0_i32, %c0_i32_0 : i32, i32
  }
  func.func @transform_20(%arg0: i32) -> (i32, i32) {
    %c0_i32 = arith.constant 0 : i32
    %c0_i32_0 = arith.constant 0 : i32
    %c0_i32_1 = arith.constant 0 : i32
    return %c0_i32, %c0_i32_0 : i32, i32
  }
  func.func @transform_21(%arg0: i32) -> (i32, i32) {
    %c0_i32 = arith.constant 0 : i32
    %c0_i32_0 = arith.constant 0 : i32
    %c0_i32_1 = arith.constant 0 : i32
    return %c0_i32, %c0_i32_0 : i32, i32
  }
}

</mosaic_0001>

<llo_original>
// kernel: xmodel_forward.2
$region0: #{xmodel_forward.2}
  #allocation0 [shape = 'u32[]', space=smem, size = 0x4, offset = 0x4, fixed_abs, tag = 'smem constant byte address 0x4 - core index']
  #allocation1 [shape = 'u32[144,128]{1,0:T(1,128)}', space=vmem, size = 0x12000, scoped, tag = 'internal scratch']
  %s0 = inlined_call_operand.vmem [shape: f32[4,2,256], index: 0, kind: input, shape index: {}]
  %s1 = inlined_call_operand.vmem [shape: f32[17,12,128], index: 1, kind: input, shape index: {}]
  %s2 = inlined_call_operand.vmem [shape: f32[12,128], index: 2, kind: input, shape index: {}]
  %s3 = inlined_call_operand.vmem [shape: f32[4,24,128], index: 3, kind: output, shape index: {}]
  %s4 = sld [smem:[#allocation0]]
  $region45: #{xmodel_forward.2} parent=0
    _
  %s6 = ssub.s32 1, %s4
  %s7 = scalar_select 0, %s6, %s4
  loop: start=0, step=1, limit=6
  $region2: #{xmodel_forward.2} parent=0 // loop_pre_header
    _
  $region3: #{xmodel_forward.2} parent=0 // loop_header
    %s9 = sphi 0, %s13
    %p10 = scmp.ge.s32.totalorder %s9, 6
    %s19 = sphi 0, %s21
    %s22 = sphi 0, %s19
    %s23 = sphi 0, %s22
    %s39 = sphi 0, %s23
    %s43 = sphi 0, %s43
    %s45 = sphi 0, %s43
    %s46 = sphi 0, %s45
    %s60 = sphi 0, %s46
    %s64 = sphi 0, %s64
    %s66 = sphi 0, %s64
    %s67 = sphi 0, %s66
    %s81 = sphi 0, %s67
    %s87 = sphi 0, %s89
    %s90 = sphi 0, %s87
    %s91 = sphi 0, %s90
    %s107 = sphi 0, %s91
  $region4: #{xmodel_forward.2} parent=0 // loop_header_branch
    %12 = sbr.rel (%p10) target = $region8
  $region5: #{xmodel_forward.2} parent=0 // loop_body
    %s14 = ssub.s32 %s9, 1
    %s15 = ssub.s32 %s9, 2
    %s16 = sadd.s32 %s9, 1
    %s17 = ssub.s32 %s9, %s16
    %p18 = scmp.eq.s32.totalorder %s17, 0
    %s20 = sadd.s32 %s19, 1
    %s21 = scalar_select %p18, %s19, %s20
    %p24 = pneg %p18
    %p25 = scmp.eq.s32.totalorder %s9, 3
    %p26 = por %p24, %p25
    %p27 = scmp.ne.s32.totalorder %s19, %s22
    %p28 = scmp.eq.s32.totalorder %s9, 0
    %p29 = por %p27, %p28
    %p30 = scmp.ne.s32.totalorder %s19, %s22
    %p31 = scmp.eq.s32.totalorder %s14, 3
    %p32 = por %p30, %p31
    %p33 = scmp.ne.s32.totalorder %s22, %s23
    %p34 = scmp.eq.s32.totalorder %s14, 0
    %p35 = por %p33, %p34
    %p36 = scmp.ne.s32.totalorder %s22, %s23
    %p37 = scmp.eq.s32.totalorder %s15, 3
    %p38 = por %p36, %p37
    %p40 = scmp.ne.s32.totalorder %s23, %s39
    %p41 = scmp.eq.s32.totalorder %s15, 0
    %p42 = por %p40, %p41
    %s44 = sadd.s32 %s43, 1
    %p47 = scmp.eq.s32.totalorder %s9, 3
    %p48 = scmp.ne.s32.totalorder %s43, %s45
    %p49 = scmp.eq.s32.totalorder %s9, 0
    %p50 = por %p48, %p49
    %p51 = scmp.ne.s32.totalorder %s43, %s45
    %p52 = scmp.eq.s32.totalorder %s14, 3
    %p53 = por %p51, %p52
    %p54 = scmp.ne.s32.totalorder %s45, %s46
    %p55 = scmp.eq.s32.totalorder %s14, 0
    %p56 = por %p54, %p55
    %p57 = scmp.ne.s32.totalorder %s45, %s46
    %p58 = scmp.eq.s32.totalorder %s15, 3
    %p59 = por %p57, %p58
    %p61 = scmp.ne.s32.totalorder %s46, %s60
    %p62 = scmp.eq.s32.totalorder %s15, 0
    %p63 = por %p61, %p62
    %s65 = sadd.s32 %s64, 1
    %p68 = scmp.eq.s32.totalorder %s9, 3
    %p69 = scmp.ne.s32.totalorder %s64, %s66
    %p70 = scmp.eq.s32.totalorder %s9, 0
    %p71 = por %p69, %p70
    %p72 = scmp.ne.s32.totalorder %s64, %s66
    %p73 = scmp.eq.s32.totalorder %s14, 3
    %p74 = por %p72, %p73
    %p75 = scmp.ne.s32.totalorder %s66, %s67
    %p76 = scmp.eq.s32.totalorder %s14, 0
    %p77 = por %p75, %p76
    %p78 = scmp.ne.s32.totalorder %s66, %s67
    %p79 = scmp.eq.s32.totalorder %s15, 3
    %p80 = por %p78, %p79
    %p82 = scmp.ne.s32.totalorder %s67, %s81
    %p83 = scmp.eq.s32.totalorder %s15, 0
    %p84 = por %p82, %p83
    %s85 = ssub.s32 %s9, %s16
    %p86 = scmp.eq.s32.totalorder %s85, 0
    %s88 = sadd.s32 %s87, 1
    %s89 = scalar_select %p86, %s87, %s88
    %p92 = pneg %p86
    %p93 = scmp.eq.s32.totalorder %s9, 3
    %p94 = por %p92, %p93
    %p95 = scmp.ne.s32.totalorder %s87, %s90
    %p96 = scmp.eq.s32.totalorder %s9, 0
    %p97 = por %p95, %p96
    %p98 = scmp.ne.s32.totalorder %s87, %s90
    %p99 = scmp.eq.s32.totalorder %s14, 3
    %p100 = por %p98, %p99
    %p101 = scmp.ne.s32.totalorder %s90, %s91
    %p102 = scmp.eq.s32.totalorder %s14, 0
    %p103 = por %p101, %p102
    %p104 = scmp.ne.s32.totalorder %s90, %s91
    %p105 = scmp.eq.s32.totalorder %s15, 3
    %p106 = por %p104, %p105
    %p108 = scmp.ne.s32.totalorder %s91, %s107
    %p109 = scmp.eq.s32.totalorder %s15, 0
    %p110 = por %p108, %p109
    %p111 = scmp.le.s32.totalorder 1, %s9
    %p112 = scmp.lt.s32.totalorder %s9, 5
    %p113 = pnand %p111, %p112
    %p114 = pneg %p113
    // Predicated region
    $region9: #{xmodel_forward.2} parent=5 // pred_check
      _
    $region10: #{xmodel_forward.2} parent=5 // pred_check_branch
      %116 = sbr.rel (%p113) target = $region12
    $region11: #{xmodel_forward.2} parent=5 // pred_region
      %s117 = ssub.s32 %s9, 1
      // Predicated region
      $region13: #{xmodel_forward.2} parent=11 // pred_check
        %p118 = pneg %p56
      $region14: #{xmodel_forward.2} parent=11 // pred_check_branch
        %120 = sbr.rel (%p118) target = $region16
      $region15: #{xmodel_forward.2} parent=11 // pred_region
        _
      $region16: #{xmodel_forward.2} parent=11 // pred_fallthru
        _
      // Predicated region
      $region17: #{xmodel_forward.2} parent=11 // pred_check
        %p121 = pneg %p77
      $region18: #{xmodel_forward.2} parent=11 // pred_check_branch
        %123 = sbr.rel (%p121) target = $region20
      $region19: #{xmodel_forward.2} parent=11 // pred_region
        _
      $region20: #{xmodel_forward.2} parent=11 // pred_fallthru
        _
    $region12: #{xmodel_forward.2} parent=5 // pred_fallthru
      _
    %p124 = scmp.lt.s32.totalorder %s9, 4
    // Predicated region
    $region21: #{xmodel_forward.2} parent=5 // pred_check
      %p125 = pneg %p124
    $region22: #{xmodel_forward.2} parent=5 // pred_check_branch
      %127 = sbr.rel (%p125) target = $region24
    $region23: #{xmodel_forward.2} parent=5 // pred_region
      // Predicated region
      $region25: #{xmodel_forward.2} parent=23 // pred_check
        %p128 = pneg %p29
      $region26: #{xmodel_forward.2} parent=23 // pred_check_branch
        %130 = sbr.rel (%p128) target = $region28
      $region27: #{xmodel_forward.2} parent=23 // pred_region
        %p131 = scmp.lt.s32.totalorder %s9, 3
        %s132 = scalar_select %p131, %s9, 3
        %s133 = smul.addr %s132, 2
        %s134 = smul.addr %s133, 2
        %s135 = scalar_lea.vmem %s0, %s134
      $region28: #{xmodel_forward.2} parent=23 // pred_fallthru
        _
    $region24: #{xmodel_forward.2} parent=5 // pred_fallthru
      _
    %p136 = scmp.le.s32.totalorder 1, %s9
    %p137 = scmp.lt.s32.totalorder %s9, 5
    %p138 = pnand %p136, %p137
    %p139 = pneg %p138
    // Predicated region
    $region29: #{xmodel_forward.2} parent=5 // pred_check
      _
    $region30: #{xmodel_forward.2} parent=5 // pred_check_branch
      %141 = sbr.rel (%p138) target = $region32
    $region31: #{xmodel_forward.2} parent=5 // pred_region
      %s142 = ssub.s32 %s9, 1
      %p143 = scmp.lt.s32.totalorder %s14, 3
      %s144 = scalar_select %p143, %s14, 3
      %s145 = smul.addr %s144, 2
      %s146 = smul.addr %s145, 2
      %s147 = scalar_lea.vmem %s0, %s146
      %p148 = pneg %p35
      %p149 = pneg %p32
      %p150 = pneg %p56
      %p151 = pneg %p53
      %p152 = pneg %p77
      %p153 = pneg %p74
      %p154 = pneg %p103
      %p155 = pneg %p100
      %p156 = scmp.lt.s32.totalorder %s14, 3
      %s157 = scalar_select %p156, %s14, 3
      %s158 = smul.addr %s157, 3
      %s159 = smul.addr %s158, 8
      %s160 = scalar_lea.vmem %s3, %s159
      %p161 = scmp.lt.s32.totalorder %s14, 3
      %s162 = scalar_select %p161, %s14, 3
      %s163 = smul.addr %s162, 2
      %s164 = smul.addr %s163, 2
      %s165 = scalar_lea.vmem %s0, %s164
      %p166 = scmp.lt.s32.totalorder %s14, 3
      %s167 = scalar_select %p166, %s14, 3
      %s168 = smul.addr %s167, 3
      %s169 = smul.addr %s168, 8
      %s170 = scalar_lea.vmem %s3, %s169
      %v171 = vld [vmem:[%s165] sm:$0xf]
      %v172 = vld [vmem:[%s1] sm:$0xff]
      %v173 = vld [vmem:[%s1 + $0x8] sm:$0xf]
      %v176 = vcombine.high %v172, %v172
      %v178 = vunpack.c.l.s4 1966171168
      %v179 = vunpack.c.0.s8 %v178
      %v180 = vlaneseq
      %v181 = vshrl.u32 %v180, 7
      %v182 = vsub.s32 %v179, %v181
      %v183 = vrot.slane %v172, %v182
      %v185 = vunpack.c.l.s4 1966171168
      %v186 = vunpack.c.0.s8 %v185
      %v187 = vlaneseq
      %v188 = vshrl.u32 %v187, 7
      %v189 = vsub.s32 %v186, %v188
      %v190 = vrot.slane %v176, %v189
      %v191 = vcombine.high %v183, %v183
      %v192 = vcombine.high %v190, %v190
      %v194 = vunpack.c.l.s4 1966171168
      %v195 = vunpack.c.0.s8 %v194
      %v196 = vlaneseq
      %v197 = vshrl.u32 %v196, 7
      %v198 = vsub.s32 %v195, %v197
      %v199 = vrot.slane %v183, %v198
      %v201 = vunpack.c.l.s4 1966171168
      %v202 = vunpack.c.0.s8 %v201
      %v203 = vlaneseq
      %v204 = vshrl.u32 %v203, 7
      %v205 = vsub.s32 %v202, %v204
      %v206 = vrot.slane %v190, %v205
      %v208 = vunpack.c.l.s4 1966171168
      %v209 = vunpack.c.0.s8 %v208
      %v210 = vlaneseq
      %v211 = vshrl.u32 %v210, 7
      %v212 = vsub.s32 %v209, %v211
      %v213 = vrot.slane %v191, %v212
      %v215 = vunpack.c.l.s4 1966171168
      %v216 = vunpack.c.0.s8 %v215
      %v217 = vlaneseq
      %v218 = vshrl.u32 %v217, 7
      %v219 = vsub.s32 %v216, %v218
      %v220 = vrot.slane %v192, %v219
      %v221 = vcombine.high %v199, %v199
      %v222 = vcombine.high %v206, %v206
      %v223 = vcombine.high %v213, %v213
      %v224 = vcombine.high %v220, %v220
      %v226 = vunpack.c.l.s4 1966171168
      %v227 = vunpack.c.0.s8 %v226
      %v228 = vlaneseq
      %v229 = vshrl.u32 %v228, 7
      %v230 = vsub.s32 %v227, %v229
      %v231 = vrot.slane %v173, %v230
      %v232 = vcombine.high %v231, %v231
      %v234 = vunpack.c.l.s4 1966171168
      %v235 = vunpack.c.0.s8 %v234
      %v236 = vlaneseq
      %v237 = vshrl.u32 %v236, 7
      %v238 = vsub.s32 %v235, %v237
      %v239 = vrot.slane %v231, %v238
      %v241 = vunpack.c.l.s4 1966171168
      %v242 = vunpack.c.0.s8 %v241
      %v243 = vlaneseq
      %v244 = vshrl.u32 %v243, 7
      %v245 = vsub.s32 %v242, %v244
      %v246 = vrot.slane %v232, %v245
      %v247 = vcombine.high %v239, %v239
      %v248 = vcombine.high %v246, %v246
      %v249 = vlaneseq
      %v250 = vshrl.u32 %v249, 7
      %v251 = vsub.s32 0, %v250
      %v252 = vrot.slane %v199, %v251
      %v253 = vlaneseq
      %v254 = vshrl.u32 %v253, 7
      %v255 = vsub.s32 0, %v254
      %v256 = vrot.slane %v213, %v255
      %v257 = vlaneseq
      %v258 = vshrl.u32 %v257, 7
      %v259 = vsub.s32 0, %v258
      %v260 = vrot.slane %v221, %v259
      %v261 = vlaneseq
      %v262 = vshrl.u32 %v261, 7
      %v263 = vsub.s32 0, %v262
      %v264 = vrot.slane %v223, %v263
      %v265 = vlaneseq
      %v266 = vshrl.u32 %v265, 7
      %v267 = vsub.s32 0, %v266
      %v268 = vrot.slane %v206, %v267
      %v269 = vlaneseq
      %v270 = vshrl.u32 %v269, 7
      %v271 = vsub.s32 0, %v270
      %v272 = vrot.slane %v220, %v271
      %v273 = vlaneseq
      %v274 = vshrl.u32 %v273, 7
      %v275 = vsub.s32 0, %v274
      %v276 = vrot.slane %v222, %v275
      %v277 = vlaneseq
      %v278 = vshrl.u32 %v277, 7
      %v279 = vsub.s32 0, %v278
      %v280 = vrot.slane %v224, %v279
      %v281 = vlaneseq
      %v282 = vshrl.u32 %v281, 7
      %v283 = vsub.s32 0, %v282
      %v284 = vrot.slane %v239, %v283
      %v285 = vlaneseq
      %v286 = vshrl.u32 %v285, 7
      %v287 = vsub.s32 0, %v286
      %v288 = vrot.slane %v246, %v287
      %v289 = vlaneseq
      %v290 = vshrl.u32 %v289, 7
      %v291 = vsub.s32 0, %v290
      %v292 = vrot.slane %v247, %v291
      %v293 = vlaneseq
      %v294 = vshrl.u32 %v293, 7
      %v295 = vsub.s32 0, %v294
      %v296 = vrot.slane %v248, %v295
      %v309 = vmul.f32 %v252, %v171
      %v310 = vmul.f32 %v256, %v171
      %v311 = vmul.f32 %v260, %v171
      %v312 = vmul.f32 %v264, %v171
      %v313 = vmul.f32 %v268, %v171
      %v314 = vmul.f32 %v272, %v171
      %v315 = vmul.f32 %v276, %v171
      %v316 = vmul.f32 %v280, %v171
      %v317 = vmul.f32 %v284, %v171
      %v318 = vmul.f32 %v288, %v171
      %v319 = vmul.f32 %v292, %v171
      %v320 = vmul.f32 %v296, %v171
      %v323 = vunpack.c.l.s4 1983009808
      %v324 = vunpack.c.0.s8 %v323
      %v325 = vlaneseq
      %v326 = vshrl.u32 %v325, 7
      %v327 = vsub.s32 %v324, %v326
      %v328 = vrot.slane %v171, %v327
      %v329 = vcombine.high %v328, %v328
      %332 = vrot.lane.b32.xlu0 %v328, 127
      %v333 = vpop.permute.xlu0 %332
      %334 = vrot.lane.b32.xlu0 %v329, 127
      %v335 = vpop.permute.xlu0 %334
      %v336 = vlaneseq
      %v337 = vand.u32 %v336, 127
      %vm338 = vcmp.lt.s32.totalorder %v337, 127
      %v339 = vsel %vm338, %v333, %v335
      %s340 = scalar_lea.vmem %s1, 16
      %v341 = vld [vmem:[%s340] sm:$0xff]
      %v342 = vld [vmem:[%s340 + $0x8] sm:$0xf]
      %v345 = vcombine.high %v341, %v341
      %v347 = vunpack.c.l.s4 1966171168
      %v348 = vunpack.c.0.s8 %v347
      %v349 = vlaneseq
      %v350 = vshrl.u32 %v349, 7
      %v351 = vsub.s32 %v348, %v350
      %v352 = vrot.slane %v341, %v351
      %v354 = vunpack.c.l.s4 1966171168
      %v355 = vunpack.c.0.s8 %v354
      %v356 = vlaneseq
      %v357 = vshrl.u32 %v356, 7
      %v358 = vsub.s32 %v355, %v357
      %v359 = vrot.slane %v345, %v358
      %v360 = vcombine.high %v352, %v352
      %v361 = vcombine.high %v359, %v359
      %v363 = vunpack.c.l.s4 1966171168
      %v364 = vunpack.c.0.s8 %v363
      %v365 = vlaneseq
      %v366 = vshrl.u32 %v365, 7
      %v367 = vsub.s32 %v364, %v366
      %v368 = vrot.slane %v352, %v367
      %v370 = vunpack.c.l.s4 1966171168
      %v371 = vunpack.c.0.s8 %v370
      %v372 = vlaneseq
      %v373 = vshrl.u32 %v372, 7
      %v374 = vsub.s32 %v371, %v373
      %v375 = vrot.slane %v359, %v374
      %v377 = vunpack.c.l.s4 1966171168
      %v378 = vunpack.c.0.s8 %v377
      %v379 = vlaneseq
      %v380 = vshrl.u32 %v379, 7
      %v381 = vsub.s32 %v378, %v380
      %v382 = vrot.slane %v360, %v381
      %v384 = vunpack.c.l.s4 1966171168
      %v385 = vunpack.c.0.s8 %v384
      %v386 = vlaneseq
      %v387 = vshrl.u32 %v386, 7
      %v388 = vsub.s32 %v385, %v387
      %v389 = vrot.slane %v361, %v388
      %v390 = vcombine.high %v368, %v368
      %v391 = vcombine.high %v375, %v375
      %v392 = vcombine.high %v382, %v382
      %v393 = vcombine.high %v389, %v389
      %v395 = vunpack.c.l.s4 1966171168
      %v396 = vunpack.c.0.s8 %v395
      %v397 = vlaneseq
      %v398 = vshrl.u32 %v397, 7
      %v399 = vsub.s32 %v396, %v398
      %v400 = vrot.slane %v342, %v399
      %v401 = vcombine.high %v400, %v400
      %v403 = vunpack.c.l.s4 1966171168
      %v404 = vunpack.c.0.s8 %v403
      %v405 = vlaneseq
      %v406 = vshrl.u32 %v405, 7
      %v407 = vsub.s32 %v404, %v406
      %v408 = vrot.slane %v400, %v407
      %v410 = vunpack.c.l.s4 1966171168
      %v411 = vunpack.c.0.s8 %v410
      %v412 = vlaneseq
      %v413 = vshrl.u32 %v412, 7
      %v414 = vsub.s32 %v411, %v413
      %v415 = vrot.slane %v401, %v414
      %v416 = vcombine.high %v408, %v408
      %v417 = vcombine.high %v415, %v415
      %v418 = vlaneseq
      %v419 = vshrl.u32 %v418, 7
      %v420 = vsub.s32 0, %v419
      %v421 = vrot.slane %v368, %v420
      %v422 = vlaneseq
      %v423 = vshrl.u32 %v422, 7
      %v424 = vsub.s32 0, %v423
      %v425 = vrot.slane %v382, %v424
      %v426 = vlaneseq
      %v427 = vshrl.u32 %v426, 7
      %v428 = vsub.s32 0, %v427
      %v429 = vrot.slane %v390, %v428
      %v430 = vlaneseq
      %v431 = vshrl.u32 %v430, 7
      %v432 = vsub.s32 0, %v431
      %v433 = vrot.slane %v392, %v432
      %v434 = vlaneseq
      %v435 = vshrl.u32 %v434, 7
      %v436 = vsub.s32 0, %v435
      %v437 = vrot.slane %v375, %v436
      %v438 = vlaneseq
      %v439 = vshrl.u32 %v438, 7
      %v440 = vsub.s32 0, %v439
      %v441 = vrot.slane %v389, %v440
      %v442 = vlaneseq
      %v443 = vshrl.u32 %v442, 7
      %v444 = vsub.s32 0, %v443
      %v445 = vrot.slane %v391, %v444
      %v446 = vlaneseq
      %v447 = vshrl.u32 %v446, 7
      %v448 = vsub.s32 0, %v447
      %v449 = vrot.slane %v393, %v448
      %v450 = vlaneseq
      %v451 = vshrl.u32 %v450, 7
      %v452 = vsub.s32 0, %v451
      %v453 = vrot.slane %v408, %v452
      %v454 = vlaneseq
      %v455 = vshrl.u32 %v454, 7
      %v456 = vsub.s32 0, %v455
      %v457 = vrot.slane %v415, %v456
      %v458 = vlaneseq
      %v459 = vshrl.u32 %v458, 7
      %v460 = vsub.s32 0, %v459
      %v461 = vrot.slane %v416, %v460
      %v462 = vlaneseq
      %v463 = vshrl.u32 %v462, 7
      %v464 = vsub.s32 0, %v463
      %v465 = vrot.slane %v417, %v464
      %v478 = vmul.f32 %v421, %v339
      %v479 = vmul.f32 %v425, %v339
      %v480 = vmul.f32 %v429, %v339
      %v481 = vmul.f32 %v433, %v339
      %v482 = vmul.f32 %v437, %v339
      %v483 = vmul.f32 %v441, %v339
      %v484 = vmul.f32 %v445, %v339
      %v485 = vmul.f32 %v449, %v339
      %v486 = vmul.f32 %v453, %v339
      %v487 = vmul.f32 %v457, %v339
      %v488 = vmul.f32 %v461, %v339
      %v489 = vmul.f32 %v465, %v339
      %v490 = vadd.f32 %v309, %v478
      %v491 = vadd.f32 %v310, %v479
      %v492 = vadd.f32 %v311, %v480
      %v493 = vadd.f32 %v312, %v481
      %v494 = vadd.f32 %v313, %v482
      %v495 = vadd.f32 %v314, %v483
      %v496 = vadd.f32 %v315, %v484
      %v497 = vadd.f32 %v316, %v485
      %v498 = vadd.f32 %v317, %v486
      %v499 = vadd.f32 %v318, %v487
      %v500 = vadd.f32 %v319, %v488
      %v501 = vadd.f32 %v320, %v489
      %502 = vrot.lane.b32.xlu0 %v328, 126
      %v503 = vpop.permute.xlu0 %502
      %504 = vrot.lane.b32.xlu0 %v329, 126
      %v505 = vpop.permute.xlu0 %504
      %vm506 = vcmp.lt.s32.totalorder %v337, 126
      %v507 = vsel %vm506, %v503, %v505
      %s508 = scalar_lea.vmem %s1, 32
      %v509 = vld [vmem:[%s508] sm:$0xff]
      %v510 = vld [vmem:[%s508 + $0x8] sm:$0xf]
      %v513 = vcombine.high %v509, %v509
      %v515 = vunpack.c.l.s4 1966171168
      %v516 = vunpack.c.0.s8 %v515
      %v517 = vlaneseq
      %v518 = vshrl.u32 %v517, 7
      %v519 = vsub.s32 %v516, %v518
      %v520 = vrot.slane %v509, %v519
      %v522 = vunpack.c.l.s4 1966171168
      %v523 = vunpack.c.0.s8 %v522
      %v524 = vlaneseq
      %v525 = vshrl.u32 %v524, 7
      %v526 = vsub.s32 %v523, %v525
      %v527 = vrot.slane %v513, %v526
      %v528 = vcombine.high %v520, %v520
      %v529 = vcombine.high %v527, %v527
      %v531 = vunpack.c.l.s4 1966171168
      %v532 = vunpack.c.0.s8 %v531
      %v533 = vlaneseq
      %v534 = vshrl.u32 %v533, 7
      %v535 = vsub.s32 %v532, %v534
      %v536 = vrot.slane %v520, %v535
      %v538 = vunpack.c.l.s4 1966171168
      %v539 = vunpack.c.0.s8 %v538
      %v540 = vlaneseq
      %v541 = vshrl.u32 %v540, 7
      %v542 = vsub.s32 %v539, %v541
      %v543 = vrot.slane %v527, %v542
      %v545 = vunpack.c.l.s4 1966171168
      %v546 = vunpack.c.0.s8 %v545
      %v547 = vlaneseq
      %v548 = vshrl.u32 %v547, 7
      %v549 = vsub.s32 %v546, %v548
      %v550 = vrot.slane %v528, %v549
      %v552 = vunpack.c.l.s4 1966171168
      %v553 = vunpack.c.0.s8 %v552
      %v554 = vlaneseq
      %v555 = vshrl.u32 %v554, 7
      %v556 = vsub.s32 %v553, %v555
      %v557 = vrot.slane %v529, %v556
      %v558 = vcombine.high %v536, %v536
      %v559 = vcombine.high %v543, %v543
      %v560 = vcombine.high %v550, %v550
      %v561 = vcombine.high %v557, %v557
      %v563 = vunpack.c.l.s4 1966171168
      %v564 = vunpack.c.0.s8 %v563
      %v565 = vlaneseq
      %v566 = vshrl.u32 %v565, 7
      %v567 = vsub.s32 %v564, %v566
      %v568 = vrot.slane %v510, %v567
      %v569 = vcombine.high %v568, %v568
      %v571 = vunpack.c.l.s4 1966171168
      %v572 = vunpack.c.0.s8 %v571
      %v573 = vlaneseq
      %v574 = vshrl.u32 %v573, 7
      %v575 = vsub.s32 %v572, %v574
      %v576 = vrot.slane %v568, %v575
      %v578 = vunpack.c.l.s4 1966171168
      %v579 = vunpack.c.0.s8 %v578
      %v580 = vlaneseq
      %v581 = vshrl.u32 %v580, 7
      %v582 = vsub.s32 %v579, %v581
      %v583 = vrot.slane %v569, %v582
      %v584 = vcombine.high %v576, %v576
      %v585 = vcombine.high %v583, %v583
      %v586 = vlaneseq
      %v587 = vshrl.u32 %v586, 7
      %v588 = vsub.s32 0, %v587
      %v589 = vrot.slane %v536, %v588
      %v590 = vlaneseq
      %v591 = vshrl.u32 %v590, 7
      %v592 = vsub.s32 0, %v591
      %v593 = vrot.slane %v550, %v592
      %v594 = vlaneseq
      %v595 = vshrl.u32 %v594, 7
      %v596 = vsub.s32 0, %v595
      %v597 = vrot.slane %v558, %v596
      %v598 = vlaneseq
      %v599 = vshrl.u32 %v598, 7
      %v600 = vsub.s32 0, %v599
      %v601 = vrot.slane %v560, %v600
      %v602 = vlaneseq
      %v603 = vshrl.u32 %v602, 7
      %v604 = vsub.s32 0, %v603
      %v605 = vrot.slane %v543, %v604
      %v606 = vlaneseq
      %v607 = vshrl.u32 %v606, 7
      %v608 = vsub.s32 0, %v607
      %v609 = vrot.slane %v557, %v608
      %v610 = vlaneseq
      %v611 = vshrl.u32 %v610, 7
      %v612 = vsub.s32 0, %v611
      %v613 = vrot.slane %v559, %v612
      %v614 = vlaneseq
      %v615 = vshrl.u32 %v614, 7
      %v616 = vsub.s32 0, %v615
      %v617 = vrot.slane %v561, %v616
      %v618 = vlaneseq
      %v619 = vshrl.u32 %v618, 7
      %v620 = vsub.s32 0, %v619
      %v621 = vrot.slane %v576, %v620
      %v622 = vlaneseq
      %v623 = vshrl.u32 %v622, 7
      %v624 = vsub.s32 0, %v623
      %v625 = vrot.slane %v583, %v624
      %v626 = vlaneseq
      %v627 = vshrl.u32 %v626, 7
      %v628 = vsub.s32 0, %v627
      %v629 = vrot.slane %v584, %v628
      %v630 = vlaneseq
      %v631 = vshrl.u32 %v630, 7
      %v632 = vsub.s32 0, %v631
      %v633 = vrot.slane %v585, %v632
      %v646 = vmul.f32 %v589, %v507
      %v647 = vmul.f32 %v593, %v507
      %v648 = vmul.f32 %v597, %v507
      %v649 = vmul.f32 %v601, %v507
      %v650 = vmul.f32 %v605, %v507
      %v651 = vmul.f32 %v609, %v507
      %v652 = vmul.f32 %v613, %v507
      %v653 = vmul.f32 %v617, %v507
      %v654 = vmul.f32 %v621, %v507
      %v655 = vmul.f32 %v625, %v507
      %v656 = vmul.f32 %v629, %v507
      %v657 = vmul.f32 %v633, %v507
      %v658 = vadd.f32 %v490, %v646
      %v659 = vadd.f32 %v491, %v647
      %v660 = vadd.f32 %v492, %v648
      %v661 = vadd.f32 %v493, %v649
      %v662 = vadd.f32 %v494, %v650
      %v663 = vadd.f32 %v495, %v651
      %v664 = vadd.f32 %v496, %v652
      %v665 = vadd.f32 %v497, %v653
      %v666 = vadd.f32 %v498, %v654
      %v667 = vadd.f32 %v499, %v655
      %v668 = vadd.f32 %v500, %v656
      %v669 = vadd.f32 %v501, %v657
      %670 = vrot.lane.b32.xlu0 %v328, 125
      %v671 = vpop.permute.xlu0 %670
      %672 = vrot.lane.b32.xlu0 %v329, 125
      %v673 = vpop.permute.xlu0 %672
      %vm674 = vcmp.lt.s32.totalorder %v337, 125
      %v675 = vsel %vm674, %v671, %v673
      %s676 = scalar_lea.vmem %s1, 48
      %v677 = vld [vmem:[%s676] sm:$0xff]
      %v678 = vld [vmem:[%s676 + $0x8] sm:$0xf]
      %v681 = vcombine.high %v677, %v677
      %v683 = vunpack.c.l.s4 1966171168
      %v684 = vunpack.c.0.s8 %v683
      %v685 = vlaneseq
      %v686 = vshrl.u32 %v685, 7
      %v687 = vsub.s32 %v684, %v686
      %v688 = vrot.slane %v677, %v687
      %v690 = vunpack.c.l.s4 1966171168
      %v691 = vunpack.c.0.s8 %v690
      %v692 = vlaneseq
      %v693 = vshrl.u32 %v692, 7
      %v694 = vsub.s32 %v691, %v693
      %v695 = vrot.slane %v681, %v694
      %v696 = vcombine.high %v688, %v688
      %v697 = vcombine.high %v695, %v695
      %v699 = vunpack.c.l.s4 1966171168
      %v700 = vunpack.c.0.s8 %v699
      %v701 = vlaneseq
      %v702 = vshrl.u32 %v701, 7
      %v703 = vsub.s32 %v700, %v702
      %v704 = vrot.slane %v688, %v703
      %v706 = vunpack.c.l.s4 1966171168
      %v707 = vunpack.c.0.s8 %v706
      %v708 = vlaneseq
      %v709 = vshrl.u32 %v708, 7
      %v710 = vsub.s32 %v707, %v709
      %v711 = vrot.slane %v695, %v710
      %v713 = vunpack.c.l.s4 1966171168
      %v714 = vunpack.c.0.s8 %v713
      %v715 = vlaneseq
      %v716 = vshrl.u32 %v715, 7
      %v717 = vsub.s32 %v714, %v716
      %v718 = vrot.slane %v696, %v717
      %v720 = vunpack.c.l.s4 1966171168
      %v721 = vunpack.c.0.s8 %v720
      %v722 = vlaneseq
      %v723 = vshrl.u32 %v722, 7
      %v724 = vsub.s32 %v721, %v723
      %v725 = vrot.slane %v697, %v724
      %v726 = vcombine.high %v704, %v704
      %v727 = vcombine.high %v711, %v711
      %v728 = vcombine.high %v718, %v718
      %v729 = vcombine.high %v725, %v725
      %v731 = vunpack.c.l.s4 1966171168
      %v732 = vunpack.c.0.s8 %v731
      %v733 = vlaneseq
      %v734 = vshrl.u32 %v733, 7
      %v735 = vsub.s32 %v732, %v734
      %v736 = vrot.slane %v678, %v735
      %v737 = vcombine.high %v736, %v736
      %v739 = vunpack.c.l.s4 1966171168
      %v740 = vunpack.c.0.s8 %v739
      %v741 = vlaneseq
      %v742 = vshrl.u32 %v741, 7
      %v743 = vsub.s32 %v740, %v742
      %v744 = vrot.slane %v736, %v743
      %v746 = vunpack.c.l.s4 1966171168
      %v747 = vunpack.c.0.s8 %v746
      %v748 = vlaneseq
      %v749 = vshrl.u32 %v748, 7
      %v750 = vsub.s32 %v747, %v749
      %v751 = vrot.slane %v737, %v750
      %v752 = vcombine.high %v744, %v744
      %v753 = vcombine.high %v751, %v751
      %v754 = vlaneseq
      %v755 = vshrl.u32 %v754, 7
      %v756 = vsub.s32 0, %v755
      %v757 = vrot.slane %v704, %v756
      %v758 = vlaneseq
      %v759 = vshrl.u32 %v758, 7
      %v760 = vsub.s32 0, %v759
      %v761 = vrot.slane %v718, %v760
      %v762 = vlaneseq
      %v763 = vshrl.u32 %v762, 7
      %v764 = vsub.s32 0, %v763
      %v765 = vrot.slane %v726, %v764
      %v766 = vlaneseq
      %v767 = vshrl.u32 %v766, 7
      %v768 = vsub.s32 0, %v767
      %v769 = vrot.slane %v728, %v768
      %v770 = vlaneseq
      %v771 = vshrl.u32 %v770, 7
      %v772 = vsub.s32 0, %v771
      %v773 = vrot.slane %v711, %v772
      %v774 = vlaneseq
      %v775 = vshrl.u32 %v774, 7
      %v776 = vsub.s32 0, %v775
      %v777 = vrot.slane %v725, %v776
      %v778 = vlaneseq
      %v779 = vshrl.u32 %v778, 7
      %v780 = vsub.s32 0, %v779
      %v781 = vrot.slane %v727, %v780
      %v782 = vlaneseq
      %v783 = vshrl.u32 %v782, 7
      %v784 = vsub.s32 0, %v783
      %v785 = vrot.slane %v729, %v784
      %v786 = vlaneseq
      %v787 = vshrl.u32 %v786, 7
      %v788 = vsub.s32 0, %v787
      %v789 = vrot.slane %v744, %v788
      %v790 = vlaneseq
      %v791 = vshrl.u32 %v790, 7
      %v792 = vsub.s32 0, %v791
      %v793 = vrot.slane %v751, %v792
      %v794 = vlaneseq
      %v795 = vshrl.u32 %v794, 7
      %v796 = vsub.s32 0, %v795
      %v797 = vrot.slane %v752, %v796
      %v798 = vlaneseq
      %v799 = vshrl.u32 %v798, 7
      %v800 = vsub.s32 0, %v799
      %v801 = vrot.slane %v753, %v800
      %v814 = vmul.f32 %v757, %v675
      %v815 = vmul.f32 %v761, %v675
      %v816 = vmul.f32 %v765, %v675
      %v817 = vmul.f32 %v769, %v675
      %v818 = vmul.f32 %v773, %v675
      %v819 = vmul.f32 %v777, %v675
      %v820 = vmul.f32 %v781, %v675
      %v821 = vmul.f32 %v785, %v675
      %v822 = vmul.f32 %v789, %v675
      %v823 = vmul.f32 %v793, %v675
      %v824 = vmul.f32 %v797, %v675
      %v825 = vmul.f32 %v801, %v675
      %v826 = vadd.f32 %v658, %v814
      %v827 = vadd.f32 %v659, %v815
      %v828 = vadd.f32 %v660, %v816
      %v829 = vadd.f32 %v661, %v817
      %v830 = vadd.f32 %v662, %v818
      %v831 = vadd.f32 %v663, %v819
      %v832 = vadd.f32 %v664, %v820
      %v833 = vadd.f32 %v665, %v821
      %v834 = vadd.f32 %v666, %v822
      %v835 = vadd.f32 %v667, %v823
      %v836 = vadd.f32 %v668, %v824
      %v837 = vadd.f32 %v669, %v825
      %838 = vrot.lane.b32.xlu0 %v328, 124
      %v839 = vpop.permute.xlu0 %838
      %840 = vrot.lane.b32.xlu0 %v329, 124
      %v841 = vpop.permute.xlu0 %840
      %vm842 = vcmp.lt.s32.totalorder %v337, 124
      %v843 = vsel %vm842, %v839, %v841
      %s844 = scalar_lea.vmem %s1, 64
      %v845 = vld [vmem:[%s844] sm:$0xff]
      %v846 = vld [vmem:[%s844 + $0x8] sm:$0xf]
      %v849 = vcombine.high %v845, %v845
      %v851 = vunpack.c.l.s4 1966171168
      %v852 = vunpack.c.0.s8 %v851
      %v853 = vlaneseq
      %v854 = vshrl.u32 %v853, 7
      %v855 = vsub.s32 %v852, %v854
      %v856 = vrot.slane %v845, %v855
      %v858 = vunpack.c.l.s4 1966171168
      %v859 = vunpack.c.0.s8 %v858
      %v860 = vlaneseq
      %v861 = vshrl.u32 %v860, 7
      %v862 = vsub.s32 %v859, %v861
      %v863 = vrot.slane %v849, %v862
      %v864 = vcombine.high %v856, %v856
      %v865 = vcombine.high %v863, %v863
      %v867 = vunpack.c.l.s4 1966171168
      %v868 = vunpack.c.0.s8 %v867
      %v869 = vlaneseq
      %v870 = vshrl.u32 %v869, 7
      %v871 = vsub.s32 %v868, %v870
      %v872 = vrot.slane %v856, %v871
      %v874 = vunpack.c.l.s4 1966171168
      %v875 = vunpack.c.0.s8 %v874
      %v876 = vlaneseq
      %v877 = vshrl.u32 %v876, 7
      %v878 = vsub.s32 %v875, %v877
      %v879 = vrot.slane %v863, %v878
      %v881 = vunpack.c.l.s4 1966171168
      %v882 = vunpack.c.0.s8 %v881
      %v883 = vlaneseq
      %v884 = vshrl.u32 %v883, 7
      %v885 = vsub.s32 %v882, %v884
      %v886 = vrot.slane %v864, %v885
      %v888 = vunpack.c.l.s4 1966171168
      %v889 = vunpack.c.0.s8 %v888
      %v890 = vlaneseq
      %v891 = vshrl.u32 %v890, 7
      %v892 = vsub.s32 %v889, %v891
      %v893 = vrot.slane %v865, %v892
      %v894 = vcombine.high %v872, %v872
      %v895 = vcombine.high %v879, %v879
      %v896 = vcombine.high %v886, %v886
      %v897 = vcombine.high %v893, %v893
      %v899 = vunpack.c.l.s4 1966171168
      %v900 = vunpack.c.0.s8 %v899
      %v901 = vlaneseq
      %v902 = vshrl.u32 %v901, 7
      %v903 = vsub.s32 %v900, %v902
      %v904 = vrot.slane %v846, %v903
      %v905 = vcombine.high %v904, %v904
      %v907 = vunpack.c.l.s4 1966171168
      %v908 = vunpack.c.0.s8 %v907
      %v909 = vlaneseq
      %v910 = vshrl.u32 %v909, 7
      %v911 = vsub.s32 %v908, %v910
      %v912 = vrot.slane %v904, %v911
      %v914 = vunpack.c.l.s4 1966171168
      %v915 = vunpack.c.0.s8 %v914
      %v916 = vlaneseq
      %v917 = vshrl.u32 %v916, 7
      %v918 = vsub.s32 %v915, %v917
      %v919 = vrot.slane %v905, %v918
      %v920 = vcombine.high %v912, %v912
      %v921 = vcombine.high %v919, %v919
      %v922 = vlaneseq
      %v923 = vshrl.u32 %v922, 7
      %v924 = vsub.s32 0, %v923
      %v925 = vrot.slane %v872, %v924
      %v926 = vlaneseq
      %v927 = vshrl.u32 %v926, 7
      %v928 = vsub.s32 0, %v927
      %v929 = vrot.slane %v886, %v928
      %v930 = vlaneseq
      %v931 = vshrl.u32 %v930, 7
      %v932 = vsub.s32 0, %v931
      %v933 = vrot.slane %v894, %v932
      %v934 = vlaneseq
      %v935 = vshrl.u32 %v934, 7
      %v936 = vsub.s32 0, %v935
      %v937 = vrot.slane %v896, %v936
      %v938 = vlaneseq
      %v939 = vshrl.u32 %v938, 7
      %v940 = vsub.s32 0, %v939
      %v941 = vrot.slane %v879, %v940
      %v942 = vlaneseq
      %v943 = vshrl.u32 %v942, 7
      %v944 = vsub.s32 0, %v943
      %v945 = vrot.slane %v893, %v944
      %v946 = vlaneseq
      %v947 = vshrl.u32 %v946, 7
      %v948 = vsub.s32 0, %v947
      %v949 = vrot.slane %v895, %v948
      %v950 = vlaneseq
      %v951 = vshrl.u32 %v950, 7
      %v952 = vsub.s32 0, %v951
      %v953 = vrot.slane %v897, %v952
      %v954 = vlaneseq
      %v955 = vshrl.u32 %v954, 7
      %v956 = vsub.s32 0, %v955
      %v957 = vrot.slane %v912, %v956
      %v958 = vlaneseq
      %v959 = vshrl.u32 %v958, 7
      %v960 = vsub.s32 0, %v959
      %v961 = vrot.slane %v919, %v960
      %v962 = vlaneseq
      %v963 = vshrl.u32 %v962, 7
      %v964 = vsub.s32 0, %v963
      %v965 = vrot.slane %v920, %v964
      %v966 = vlaneseq
      %v967 = vshrl.u32 %v966, 7
      %v968 = vsub.s32 0, %v967
      %v969 = vrot.slane %v921, %v968
      %v982 = vmul.f32 %v925, %v843
      %v983 = vmul.f32 %v929, %v843
      %v984 = vmul.f32 %v933, %v843
      %v985 = vmul.f32 %v937, %v843
      %v986 = vmul.f32 %v941, %v843
      %v987 = vmul.f32 %v945, %v843
      %v988 = vmul.f32 %v949, %v843
      %v989 = vmul.f32 %v953, %v843
      %v990 = vmul.f32 %v957, %v843
      %v991 = vmul.f32 %v961, %v843
      %v992 = vmul.f32 %v965, %v843
      %v993 = vmul.f32 %v969, %v843
      %v994 = vadd.f32 %v826, %v982
      %v995 = vadd.f32 %v827, %v983
      %v996 = vadd.f32 %v828, %v984
      %v997 = vadd.f32 %v829, %v985
      %v998 = vadd.f32 %v830, %v986
      %v999 = vadd.f32 %v831, %v987
      %v1000 = vadd.f32 %v832, %v988
      %v1001 = vadd.f32 %v833, %v989
      %v1002 = vadd.f32 %v834, %v990
      %v1003 = vadd.f32 %v835, %v991
      %v1004 = vadd.f32 %v836, %v992
      %v1005 = vadd.f32 %v837, %v993
      %1006 = vrot.lane.b32.xlu0 %v328, 123
      %v1007 = vpop.permute.xlu0 %1006
      %1008 = vrot.lane.b32.xlu0 %v329, 123
      %v1009 = vpop.permute.xlu0 %1008
      %vm1010 = vcmp.lt.s32.totalorder %v337, 123
      %v1011 = vsel %vm1010, %v1007, %v1009
      %s1012 = scalar_lea.vmem %s1, 80
      %v1013 = vld [vmem:[%s1012] sm:$0xff]
      %v1014 = vld [vmem:[%s1012 + $0x8] sm:$0xf]
      %v1017 = vcombine.high %v1013, %v1013
      %v1019 = vunpack.c.l.s4 1966171168
      %v1020 = vunpack.c.0.s8 %v1019
      %v1021 = vlaneseq
      %v1022 = vshrl.u32 %v1021, 7
      %v1023 = vsub.s32 %v1020, %v1022
      %v1024 = vrot.slane %v1013, %v1023
      %v1026 = vunpack.c.l.s4 1966171168
      %v1027 = vunpack.c.0.s8 %v1026
      %v1028 = vlaneseq
      %v1029 = vshrl.u32 %v1028, 7
      %v1030 = vsub.s32 %v1027, %v1029
      %v1031 = vrot.slane %v1017, %v1030
      %v1032 = vcombine.high %v1024, %v1024
      %v1033 = vcombine.high %v1031, %v1031
      %v1035 = vunpack.c.l.s4 1966171168
      %v1036 = vunpack.c.0.s8 %v1035
      %v1037 = vlaneseq
      %v1038 = vshrl.u32 %v1037, 7
      %v1039 = vsub.s32 %v1036, %v1038
      %v1040 = vrot.slane %v1024, %v1039
      %v1042 = vunpack.c.l.s4 1966171168
      %v1043 = vunpack.c.0.s8 %v1042
      %v1044 = vlaneseq
      %v1045 = vshrl.u32 %v1044, 7
      %v1046 = vsub.s32 %v1043, %v1045
      %v1047 = vrot.slane %v1031, %v1046
      %v1049 = vunpack.c.l.s4 1966171168
      %v1050 = vunpack.c.0.s8 %v1049
      %v1051 = vlaneseq
      %v1052 = vshrl.u32 %v1051, 7
      %v1053 = vsub.s32 %v1050, %v1052
      %v1054 = vrot.slane %v1032, %v1053
      %v1056 = vunpack.c.l.s4 1966171168
      %v1057 = vunpack.c.0.s8 %v1056
      %v1058 = vlaneseq
      %v1059 = vshrl.u32 %v1058, 7
      %v1060 = vsub.s32 %v1057, %v1059
      %v1061 = vrot.slane %v1033, %v1060
      %v1062 = vcombine.high %v1040, %v1040
      %v1063 = vcombine.high %v1047, %v1047
      %v1064 = vcombine.high %v1054, %v1054
      %v1065 = vcombine.high %v1061, %v1061
      %v1067 = vunpack.c.l.s4 1966171168
      %v1068 = vunpack.c.0.s8 %v1067
      %v1069 = vlaneseq
      %v1070 = vshrl.u32 %v1069, 7
      %v1071 = vsub.s32 %v1068, %v1070
      %v1072 = vrot.slane %v1014, %v1071
      %v1073 = vcombine.high %v1072, %v1072
      %v1075 = vunpack.c.l.s4 1966171168
      %v1076 = vunpack.c.0.s8 %v1075
      %v1077 = vlaneseq
      %v1078 = vshrl.u32 %v1077, 7
      %v1079 = vsub.s32 %v1076, %v1078
      %v1080 = vrot.slane %v1072, %v1079
      %v1082 = vunpack.c.l.s4 1966171168
      %v1083 = vunpack.c.0.s8 %v1082
      %v1084 = vlaneseq
      %v1085 = vshrl.u32 %v1084, 7
      %v1086 = vsub.s32 %v1083, %v1085
      %v1087 = vrot.slane %v1073, %v1086
      %v1088 = vcombine.high %v1080, %v1080
      %v1089 = vcombine.high %v1087, %v1087
      %v1090 = vlaneseq
      %v1091 = vshrl.u32 %v1090, 7
      %v1092 = vsub.s32 0, %v1091
      %v1093 = vrot.slane %v1040, %v1092
      %v1094 = vlaneseq
      %v1095 = vshrl.u32 %v1094, 7
      %v1096 = vsub.s32 0, %v1095
      %v1097 = vrot.slane %v1054, %v1096
      %v1098 = vlaneseq
      %v1099 = vshrl.u32 %v1098, 7
      %v1100 = vsub.s32 0, %v1099
      %v1101 = vrot.slane %v1062, %v1100
      %v1102 = vlaneseq
      %v1103 = vshrl.u32 %v1102, 7
      %v1104 = vsub.s32 0, %v1103
      %v1105 = vrot.slane %v1064, %v1104
      %v1106 = vlaneseq
      %v1107 = vshrl.u32 %v1106, 7
      %v1108 = vsub.s32 0, %v1107
      %v1109 = vrot.slane %v1047, %v1108
      %v1110 = vlaneseq
      %v1111 = vshrl.u32 %v1110, 7
      %v1112 = vsub.s32 0, %v1111
      %v1113 = vrot.slane %v1061, %v1112
      %v1114 = vlaneseq
      %v1115 = vshrl.u32 %v1114, 7
      %v1116 = vsub.s32 0, %v1115
      %v1117 = vrot.slane %v1063, %v1116
      %v1118 = vlaneseq
      %v1119 = vshrl.u32 %v1118, 7
      %v1120 = vsub.s32 0, %v1119
      %v1121 = vrot.slane %v1065, %v1120
      %v1122 = vlaneseq
      %v1123 = vshrl.u32 %v1122, 7
      %v1124 = vsub.s32 0, %v1123
      %v1125 = vrot.slane %v1080, %v1124
      %v1126 = vlaneseq
      %v1127 = vshrl.u32 %v1126, 7
      %v1128 = vsub.s32 0, %v1127
      %v1129 = vrot.slane %v1087, %v1128
      %v1130 = vlaneseq
      %v1131 = vshrl.u32 %v1130, 7
      %v1132 = vsub.s32 0, %v1131
      %v1133 = vrot.slane %v1088, %v1132
      %v1134 = vlaneseq
      %v1135 = vshrl.u32 %v1134, 7
      %v1136 = vsub.s32 0, %v1135
      %v1137 = vrot.slane %v1089, %v1136
      %v1150 = vmul.f32 %v1093, %v1011
      %v1151 = vmul.f32 %v1097, %v1011
      %v1152 = vmul.f32 %v1101, %v1011
      %v1153 = vmul.f32 %v1105, %v1011
      %v1154 = vmul.f32 %v1109, %v1011
      %v1155 = vmul.f32 %v1113, %v1011
      %v1156 = vmul.f32 %v1117, %v1011
      %v1157 = vmul.f32 %v1121, %v1011
      %v1158 = vmul.f32 %v1125, %v1011
      %v1159 = vmul.f32 %v1129, %v1011
      %v1160 = vmul.f32 %v1133, %v1011
      %v1161 = vmul.f32 %v1137, %v1011
      %v1162 = vadd.f32 %v994, %v1150
      %v1163 = vadd.f32 %v995, %v1151
      %v1164 = vadd.f32 %v996, %v1152
      %v1165 = vadd.f32 %v997, %v1153
      %v1166 = vadd.f32 %v998, %v1154
      %v1167 = vadd.f32 %v999, %v1155
      %v1168 = vadd.f32 %v1000, %v1156
      %v1169 = vadd.f32 %v1001, %v1157
      %v1170 = vadd.f32 %v1002, %v1158
      %v1171 = vadd.f32 %v1003, %v1159
      %v1172 = vadd.f32 %v1004, %v1160
      %v1173 = vadd.f32 %v1005, %v1161
      %1174 = vrot.lane.b32.xlu0 %v328, 122
      %v1175 = vpop.permute.xlu0 %1174
      %1176 = vrot.lane.b32.xlu0 %v329, 122
      %v1177 = vpop.permute.xlu0 %1176
      %vm1178 = vcmp.lt.s32.totalorder %v337, 122
      %v1179 = vsel %vm1178, %v1175, %v1177
      %s1180 = scalar_lea.vmem %s1, 96
      %v1181 = vld [vmem:[%s1180] sm:$0xff]
      %v1182 = vld [vmem:[%s1180 + $0x8] sm:$0xf]
      %v1185 = vcombine.high %v1181, %v1181
      %v1187 = vunpack.c.l.s4 1966171168
      %v1188 = vunpack.c.0.s8 %v1187
      %v1189 = vlaneseq
      %v1190 = vshrl.u32 %v1189, 7
      %v1191 = vsub.s32 %v1188, %v1190
      %v1192 = vrot.slane %v1181, %v1191
      %v1194 = vunpack.c.l.s4 1966171168
      %v1195 = vunpack.c.0.s8 %v1194
      %v1196 = vlaneseq
      %v1197 = vshrl.u32 %v1196, 7
      %v1198 = vsub.s32 %v1195, %v1197
      %v1199 = vrot.slane %v1185, %v1198
      %v1200 = vcombine.high %v1192, %v1192
      %v1201 = vcombine.high %v1199, %v1199
      %v1203 = vunpack.c.l.s4 1966171168
      %v1204 = vunpack.c.0.s8 %v1203
      %v1205 = vlaneseq
      %v1206 = vshrl.u32 %v1205, 7
      %v1207 = vsub.s32 %v1204, %v1206
      %v1208 = vrot.slane %v1192, %v1207
      %v1210 = vunpack.c.l.s4 1966171168
      %v1211 = vunpack.c.0.s8 %v1210
      %v1212 = vlaneseq
      %v1213 = vshrl.u32 %v1212, 7
      %v1214 = vsub.s32 %v1211, %v1213
      %v1215 = vrot.slane %v1199, %v1214
      %v1217 = vunpack.c.l.s4 1966171168
      %v1218 = vunpack.c.0.s8 %v1217
      %v1219 = vlaneseq
      %v1220 = vshrl.u32 %v1219, 7
      %v1221 = vsub.s32 %v1218, %v1220
      %v1222 = vrot.slane %v1200, %v1221
      %v1224 = vunpack.c.l.s4 1966171168
      %v1225 = vunpack.c.0.s8 %v1224
      %v1226 = vlaneseq
      %v1227 = vshrl.u32 %v1226, 7
      %v1228 = vsub.s32 %v1225, %v1227
      %v1229 = vrot.slane %v1201, %v1228
      %v1230 = vcombine.high %v1208, %v1208
      %v1231 = vcombine.high %v1215, %v1215
      %v1232 = vcombine.high %v1222, %v1222
      %v1233 = vcombine.high %v1229, %v1229
      %v1235 = vunpack.c.l.s4 1966171168
      %v1236 = vunpack.c.0.s8 %v1235
      %v1237 = vlaneseq
      %v1238 = vshrl.u32 %v1237, 7
      %v1239 = vsub.s32 %v1236, %v1238
      %v1240 = vrot.slane %v1182, %v1239
      %v1241 = vcombine.high %v1240, %v1240
      %v1243 = vunpack.c.l.s4 1966171168
      %v1244 = vunpack.c.0.s8 %v1243
      %v1245 = vlaneseq
      %v1246 = vshrl.u32 %v1245, 7
      %v1247 = vsub.s32 %v1244, %v1246
      %v1248 = vrot.slane %v1240, %v1247
      %v1250 = vunpack.c.l.s4 1966171168
      %v1251 = vunpack.c.0.s8 %v1250
      %v1252 = vlaneseq
      %v1253 = vshrl.u32 %v1252, 7
      %v1254 = vsub.s32 %v1251, %v1253
      %v1255 = vrot.slane %v1241, %v1254
      %v1256 = vcombine.high %v1248, %v1248
      %v1257 = vcombine.high %v1255, %v1255
      %v1258 = vlaneseq
      %v1259 = vshrl.u32 %v1258, 7
      %v1260 = vsub.s32 0, %v1259
      %v1261 = vrot.slane %v1208, %v1260
      %v1262 = vlaneseq
      %v1263 = vshrl.u32 %v1262, 7
      %v1264 = vsub.s32 0, %v1263
      %v1265 = vrot.slane %v1222, %v1264
      %v1266 = vlaneseq
      %v1267 = vshrl.u32 %v1266, 7
      %v1268 = vsub.s32 0, %v1267
      %v1269 = vrot.slane %v1230, %v1268
      %v1270 = vlaneseq
      %v1271 = vshrl.u32 %v1270, 7
      %v1272 = vsub.s32 0, %v1271
      %v1273 = vrot.slane %v1232, %v1272
      %v1274 = vlaneseq
      %v1275 = vshrl.u32 %v1274, 7
      %v1276 = vsub.s32 0, %v1275
      %v1277 = vrot.slane %v1215, %v1276
      %v1278 = vlaneseq
      %v1279 = vshrl.u32 %v1278, 7
      %v1280 = vsub.s32 0, %v1279
      %v1281 = vrot.slane %v1229, %v1280
      %v1282 = vlaneseq
      %v1283 = vshrl.u32 %v1282, 7
      %v1284 = vsub.s32 0, %v1283
      %v1285 = vrot.slane %v1231, %v1284
      %v1286 = vlaneseq
      %v1287 = vshrl.u32 %v1286, 7
      %v1288 = vsub.s32 0, %v1287
      %v1289 = vrot.slane %v1233, %v1288
      %v1290 = vlaneseq
      %v1291 = vshrl.u32 %v1290, 7
      %v1292 = vsub.s32 0, %v1291
      %v1293 = vrot.slane %v1248, %v1292
      %v1294 = vlaneseq
      %v1295 = vshrl.u32 %v1294, 7
      %v1296 = vsub.s32 0, %v1295
      %v1297 = vrot.slane %v1255, %v1296
      %v1298 = vlaneseq
      %v1299 = vshrl.u32 %v1298, 7
      %v1300 = vsub.s32 0, %v1299
      %v1301 = vrot.slane %v1256, %v1300
      %v1302 = vlaneseq
      %v1303 = vshrl.u32 %v1302, 7
      %v1304 = vsub.s32 0, %v1303
      %v1305 = vrot.slane %v1257, %v1304
      %v1318 = vmul.f32 %v1261, %v1179
      %v1319 = vmul.f32 %v1265, %v1179
      %v1320 = vmul.f32 %v1269, %v1179
      %v1321 = vmul.f32 %v1273, %v1179
      %v1322 = vmul.f32 %v1277, %v1179
      %v1323 = vmul.f32 %v1281, %v1179
      %v1324 = vmul.f32 %v1285, %v1179
      %v1325 = vmul.f32 %v1289, %v1179
      %v1326 = vmul.f32 %v1293, %v1179
      %v1327 = vmul.f32 %v1297, %v1179
      %v1328 = vmul.f32 %v1301, %v1179
      %v1329 = vmul.f32 %v1305, %v1179
      %v1330 = vadd.f32 %v1162, %v1318
      %v1331 = vadd.f32 %v1163, %v1319
      %v1332 = vadd.f32 %v1164, %v1320
      %v1333 = vadd.f32 %v1165, %v1321
      %v1334 = vadd.f32 %v1166, %v1322
      %v1335 = vadd.f32 %v1167, %v1323
      %v1336 = vadd.f32 %v1168, %v1324
      %v1337 = vadd.f32 %v1169, %v1325
      %v1338 = vadd.f32 %v1170, %v1326
      %v1339 = vadd.f32 %v1171, %v1327
      %v1340 = vadd.f32 %v1172, %v1328
      %v1341 = vadd.f32 %v1173, %v1329
      %1342 = vrot.lane.b32.xlu0 %v328, 121
      %v1343 = vpop.permute.xlu0 %1342
      %1344 = vrot.lane.b32.xlu0 %v329, 121
      %v1345 = vpop.permute.xlu0 %1344
      %vm1346 = vcmp.lt.s32.totalorder %v337, 121
      %v1347 = vsel %vm1346, %v1343, %v1345
      %s1348 = scalar_lea.vmem %s1, 112
      %v1349 = vld [vmem:[%s1348] sm:$0xff]
      %v1350 = vld [vmem:[%s1348 + $0x8] sm:$0xf]
      %v1353 = vcombine.high %v1349, %v1349
      %v1355 = vunpack.c.l.s4 1966171168
      %v1356 = vunpack.c.0.s8 %v1355
      %v1357 = vlaneseq
      %v1358 = vshrl.u32 %v1357, 7
      %v1359 = vsub.s32 %v1356, %v1358
      %v1360 = vrot.slane %v1349, %v1359
      %v1362 = vunpack.c.l.s4 1966171168
      %v1363 = vunpack.c.0.s8 %v1362
      %v1364 = vlaneseq
      %v1365 = vshrl.u32 %v1364, 7
      %v1366 = vsub.s32 %v1363, %v1365
      %v1367 = vrot.slane %v1353, %v1366
      %v1368 = vcombine.high %v1360, %v1360
      %v1369 = vcombine.high %v1367, %v1367
      %v1371 = vunpack.c.l.s4 1966171168
      %v1372 = vunpack.c.0.s8 %v1371
      %v1373 = vlaneseq
      %v1374 = vshrl.u32 %v1373, 7
      %v1375 = vsub.s32 %v1372, %v1374
      %v1376 = vrot.slane %v1360, %v1375
      %v1378 = vunpack.c.l.s4 1966171168
      %v1379 = vunpack.c.0.s8 %v1378
      %v1380 = vlaneseq
      %v1381 = vshrl.u32 %v1380, 7
      %v1382 = vsub.s32 %v1379, %v1381
      %v1383 = vrot.slane %v1367, %v1382
      %v1385 = vunpack.c.l.s4 1966171168
      %v1386 = vunpack.c.0.s8 %v1385
      %v1387 = vlaneseq
      %v1388 = vshrl.u32 %v1387, 7
      %v1389 = vsub.s32 %v1386, %v1388
      %v1390 = vrot.slane %v1368, %v1389
      %v1392 = vunpack.c.l.s4 1966171168
      %v1393 = vunpack.c.0.s8 %v1392
      %v1394 = vlaneseq
      %v1395 = vshrl.u32 %v1394, 7
      %v1396 = vsub.s32 %v1393, %v1395
      %v1397 = vrot.slane %v1369, %v1396
      %v1398 = vcombine.high %v1376, %v1376
      %v1399 = vcombine.high %v1383, %v1383
      %v1400 = vcombine.high %v1390, %v1390
      %v1401 = vcombine.high %v1397, %v1397
      %v1403 = vunpack.c.l.s4 1966171168
      %v1404 = vunpack.c.0.s8 %v1403
      %v1405 = vlaneseq
      %v1406 = vshrl.u32 %v1405, 7
      %v1407 = vsub.s32 %v1404, %v1406
      %v1408 = vrot.slane %v1350, %v1407
      %v1409 = vcombine.high %v1408, %v1408
      %v1411 = vunpack.c.l.s4 1966171168
      %v1412 = vunpack.c.0.s8 %v1411
      %v1413 = vlaneseq
      %v1414 = vshrl.u32 %v1413, 7
      %v1415 = vsub.s32 %v1412, %v1414
      %v1416 = vrot.slane %v1408, %v1415
      %v1418 = vunpack.c.l.s4 1966171168
      %v1419 = vunpack.c.0.s8 %v1418
      %v1420 = vlaneseq
      %v1421 = vshrl.u32 %v1420, 7
      %v1422 = vsub.s32 %v1419, %v1421
      %v1423 = vrot.slane %v1409, %v1422
      %v1424 = vcombine.high %v1416, %v1416
      %v1425 = vcombine.high %v1423, %v1423
      %v1426 = vlaneseq
      %v1427 = vshrl.u32 %v1426, 7
      %v1428 = vsub.s32 0, %v1427
      %v1429 = vrot.slane %v1376, %v1428
      %v1430 = vlaneseq
      %v1431 = vshrl.u32 %v1430, 7
      %v1432 = vsub.s32 0, %v1431
      %v1433 = vrot.slane %v1390, %v1432
      %v1434 = vlaneseq
      %v1435 = vshrl.u32 %v1434, 7
      %v1436 = vsub.s32 0, %v1435
      %v1437 = vrot.slane %v1398, %v1436
      %v1438 = vlaneseq
      %v1439 = vshrl.u32 %v1438, 7
      %v1440 = vsub.s32 0, %v1439
      %v1441 = vrot.slane %v1400, %v1440
      %v1442 = vlaneseq
      %v1443 = vshrl.u32 %v1442, 7
      %v1444 = vsub.s32 0, %v1443
      %v1445 = vrot.slane %v1383, %v1444
      %v1446 = vlaneseq
      %v1447 = vshrl.u32 %v1446, 7
      %v1448 = vsub.s32 0, %v1447
      %v1449 = vrot.slane %v1397, %v1448
      %v1450 = vlaneseq
      %v1451 = vshrl.u32 %v1450, 7
      %v1452 = vsub.s32 0, %v1451
      %v1453 = vrot.slane %v1399, %v1452
      %v1454 = vlaneseq
      %v1455 = vshrl.u32 %v1454, 7
      %v1456 = vsub.s32 0, %v1455
      %v1457 = vrot.slane %v1401, %v1456
      %v1458 = vlaneseq
      %v1459 = vshrl.u32 %v1458, 7
      %v1460 = vsub.s32 0, %v1459
      %v1461 = vrot.slane %v1416, %v1460
      %v1462 = vlaneseq
      %v1463 = vshrl.u32 %v1462, 7
      %v1464 = vsub.s32 0, %v1463
      %v1465 = vrot.slane %v1423, %v1464
      %v1466 = vlaneseq
      %v1467 = vshrl.u32 %v1466, 7
      %v1468 = vsub.s32 0, %v1467
      %v1469 = vrot.slane %v1424, %v1468
      %v1470 = vlaneseq
      %v1471 = vshrl.u32 %v1470, 7
      %v1472 = vsub.s32 0, %v1471
      %v1473 = vrot.slane %v1425, %v1472
      %v1486 = vmul.f32 %v1429, %v1347
      %v1487 = vmul.f32 %v1433, %v1347
      %v1488 = vmul.f32 %v1437, %v1347
      %v1489 = vmul.f32 %v1441, %v1347
      %v1490 = vmul.f32 %v1445, %v1347
      %v1491 = vmul.f32 %v1449, %v1347
      %v1492 = vmul.f32 %v1453, %v1347
      %v1493 = vmul.f32 %v1457, %v1347
      %v1494 = vmul.f32 %v1461, %v1347
      %v1495 = vmul.f32 %v1465, %v1347
      %v1496 = vmul.f32 %v1469, %v1347
      %v1497 = vmul.f32 %v1473, %v1347
      %v1498 = vadd.f32 %v1330, %v1486
      %v1499 = vadd.f32 %v1331, %v1487
      %v1500 = vadd.f32 %v1332, %v1488
      %v1501 = vadd.f32 %v1333, %v1489
      %v1502 = vadd.f32 %v1334, %v1490
      %v1503 = vadd.f32 %v1335, %v1491
      %v1504 = vadd.f32 %v1336, %v1492
      %v1505 = vadd.f32 %v1337, %v1493
      %v1506 = vadd.f32 %v1338, %v1494
      %v1507 = vadd.f32 %v1339, %v1495
      %v1508 = vadd.f32 %v1340, %v1496
      %v1509 = vadd.f32 %v1341, %v1497
      %1510 = vrot.lane.b32.xlu0 %v328, 120
      %v1511 = vpop.permute.xlu0 %1510
      %1512 = vrot.lane.b32.xlu0 %v329, 120
      %v1513 = vpop.permute.xlu0 %1512
      %vm1514 = vcmp.lt.s32.totalorder %v337, 120
      %v1515 = vsel %vm1514, %v1511, %v1513
      %s1516 = scalar_lea.vmem %s1, 128
      %v1517 = vld [vmem:[%s1516] sm:$0xff]
      %v1518 = vld [vmem:[%s1516 + $0x8] sm:$0xf]
      %v1521 = vcombine.high %v1517, %v1517
      %v1523 = vunpack.c.l.s4 1966171168
      %v1524 = vunpack.c.0.s8 %v1523
      %v1525 = vlaneseq
      %v1526 = vshrl.u32 %v1525, 7
      %v1527 = vsub.s32 %v1524, %v1526
      %v1528 = vrot.slane %v1517, %v1527
      %v1530 = vunpack.c.l.s4 1966171168
      %v1531 = vunpack.c.0.s8 %v1530
      %v1532 = vlaneseq
      %v1533 = vshrl.u32 %v1532, 7
      %v1534 = vsub.s32 %v1531, %v1533
      %v1535 = vrot.slane %v1521, %v1534
      %v1536 = vcombine.high %v1528, %v1528
      %v1537 = vcombine.high %v1535, %v1535
      %v1539 = vunpack.c.l.s4 1966171168
      %v1540 = vunpack.c.0.s8 %v1539
      %v1541 = vlaneseq
      %v1542 = vshrl.u32 %v1541, 7
      %v1543 = vsub.s32 %v1540, %v1542
      %v1544 = vrot.slane %v1528, %v1543
      %v1546 = vunpack.c.l.s4 1966171168
      %v1547 = vunpack.c.0.s8 %v1546
      %v1548 = vlaneseq
      %v1549 = vshrl.u32 %v1548, 7
      %v1550 = vsub.s32 %v1547, %v1549
      %v1551 = vrot.slane %v1535, %v1550
      %v1553 = vunpack.c.l.s4 1966171168
      %v1554 = vunpack.c.0.s8 %v1553
      %v1555 = vlaneseq
      %v1556 = vshrl.u32 %v1555, 7
      %v1557 = vsub.s32 %v1554, %v1556
      %v1558 = vrot.slane %v1536, %v1557
      %v1560 = vunpack.c.l.s4 1966171168
      %v1561 = vunpack.c.0.s8 %v1560
      %v1562 = vlaneseq
      %v1563 = vshrl.u32 %v1562, 7
      %v1564 = vsub.s32 %v1561, %v1563
      %v1565 = vrot.slane %v1537, %v1564
      %v1566 = vcombine.high %v1544, %v1544
      %v1567 = vcombine.high %v1551, %v1551
      %v1568 = vcombine.high %v1558, %v1558
      %v1569 = vcombine.high %v1565, %v1565
      %v1571 = vunpack.c.l.s4 1966171168
      %v1572 = vunpack.c.0.s8 %v1571
      %v1573 = vlaneseq
      %v1574 = vshrl.u32 %v1573, 7
      %v1575 = vsub.s32 %v1572, %v1574
      %v1576 = vrot.slane %v1518, %v1575
      %v1577 = vcombine.high %v1576, %v1576
      %v1579 = vunpack.c.l.s4 1966171168
      %v1580 = vunpack.c.0.s8 %v1579
      %v1581 = vlaneseq
      %v1582 = vshrl.u32 %v1581, 7
      %v1583 = vsub.s32 %v1580, %v1582
      %v1584 = vrot.slane %v1576, %v1583
      %v1586 = vunpack.c.l.s4 1966171168
      %v1587 = vunpack.c.0.s8 %v1586
      %v1588 = vlaneseq
      %v1589 = vshrl.u32 %v1588, 7
      %v1590 = vsub.s32 %v1587, %v1589
      %v1591 = vrot.slane %v1577, %v1590
      %v1592 = vcombine.high %v1584, %v1584
      %v1593 = vcombine.high %v1591, %v1591
      %v1594 = vlaneseq
      %v1595 = vshrl.u32 %v1594, 7
      %v1596 = vsub.s32 0, %v1595
      %v1597 = vrot.slane %v1544, %v1596
      %v1598 = vlaneseq
      %v1599 = vshrl.u32 %v1598, 7
      %v1600 = vsub.s32 0, %v1599
      %v1601 = vrot.slane %v1558, %v1600
      %v1602 = vlaneseq
      %v1603 = vshrl.u32 %v1602, 7
      %v1604 = vsub.s32 0, %v1603
      %v1605 = vrot.slane %v1566, %v1604
      %v1606 = vlaneseq
      %v1607 = vshrl.u32 %v1606, 7
      %v1608 = vsub.s32 0, %v1607
      %v1609 = vrot.slane %v1568, %v1608
      %v1610 = vlaneseq
      %v1611 = vshrl.u32 %v1610, 7
      %v1612 = vsub.s32 0, %v1611
      %v1613 = vrot.slane %v1551, %v1612
      %v1614 = vlaneseq
      %v1615 = vshrl.u32 %v1614, 7
      %v1616 = vsub.s32 0, %v1615
      %v1617 = vrot.slane %v1565, %v1616
      %v1618 = vlaneseq
      %v1619 = vshrl.u32 %v1618, 7
      %v1620 = vsub.s32 0, %v1619
      %v1621 = vrot.slane %v1567, %v1620
      %v1622 = vlaneseq
      %v1623 = vshrl.u32 %v1622, 7
      %v1624 = vsub.s32 0, %v1623
      %v1625 = vrot.slane %v1569, %v1624
      %v1626 = vlaneseq
      %v1627 = vshrl.u32 %v1626, 7
      %v1628 = vsub.s32 0, %v1627
      %v1629 = vrot.slane %v1584, %v1628
      %v1630 = vlaneseq
      %v1631 = vshrl.u32 %v1630, 7
      %v1632 = vsub.s32 0, %v1631
      %v1633 = vrot.slane %v1591, %v1632
      %v1634 = vlaneseq
      %v1635 = vshrl.u32 %v1634, 7
      %v1636 = vsub.s32 0, %v1635
      %v1637 = vrot.slane %v1592, %v1636
      %v1638 = vlaneseq
      %v1639 = vshrl.u32 %v1638, 7
      %v1640 = vsub.s32 0, %v1639
      %v1641 = vrot.slane %v1593, %v1640
      %v1654 = vmul.f32 %v1597, %v1515
      %v1655 = vmul.f32 %v1601, %v1515
      %v1656 = vmul.f32 %v1605, %v1515
      %v1657 = vmul.f32 %v1609, %v1515
      %v1658 = vmul.f32 %v1613, %v1515
      %v1659 = vmul.f32 %v1617, %v1515
      %v1660 = vmul.f32 %v1621, %v1515
      %v1661 = vmul.f32 %v1625, %v1515
      %v1662 = vmul.f32 %v1629, %v1515
      %v1663 = vmul.f32 %v1633, %v1515
      %v1664 = vmul.f32 %v1637, %v1515
      %v1665 = vmul.f32 %v1641, %v1515
      %v1666 = vadd.f32 %v1498, %v1654
      %v1667 = vadd.f32 %v1499, %v1655
      %v1668 = vadd.f32 %v1500, %v1656
      %v1669 = vadd.f32 %v1501, %v1657
      %v1670 = vadd.f32 %v1502, %v1658
      %v1671 = vadd.f32 %v1503, %v1659
      %v1672 = vadd.f32 %v1504, %v1660
      %v1673 = vadd.f32 %v1505, %v1661
      %v1674 = vadd.f32 %v1506, %v1662
      %v1675 = vadd.f32 %v1507, %v1663
      %v1676 = vadd.f32 %v1508, %v1664
      %v1677 = vadd.f32 %v1509, %v1665
      %1678 = vrot.lane.b32.xlu0 %v328, 119
      %v1679 = vpop.permute.xlu0 %1678
      %1680 = vrot.lane.b32.xlu0 %v329, 119
      %v1681 = vpop.permute.xlu0 %1680
      %vm1682 = vcmp.lt.s32.totalorder %v337, 119
      %v1683 = vsel %vm1682, %v1679, %v1681
      %s1684 = scalar_lea.vmem %s1, 144
      %v1685 = vld [vmem:[%s1684] sm:$0xff]
      %v1686 = vld [vmem:[%s1684 + $0x8] sm:$0xf]
      %v1689 = vcombine.high %v1685, %v1685
      %v1691 = vunpack.c.l.s4 1966171168
      %v1692 = vunpack.c.0.s8 %v1691
      %v1693 = vlaneseq
      %v1694 = vshrl.u32 %v1693, 7
      %v1695 = vsub.s32 %v1692, %v1694
      %v1696 = vrot.slane %v1685, %v1695
      %v1698 = vunpack.c.l.s4 1966171168
      %v1699 = vunpack.c.0.s8 %v1698
      %v1700 = vlaneseq
      %v1701 = vshrl.u32 %v1700, 7
      %v1702 = vsub.s32 %v1699, %v1701
      %v1703 = vrot.slane %v1689, %v1702
      %v1704 = vcombine.high %v1696, %v1696
      %v1705 = vcombine.high %v1703, %v1703
      %v1707 = vunpack.c.l.s4 1966171168
      %v1708 = vunpack.c.0.s8 %v1707
      %v1709 = vlaneseq
      %v1710 = vshrl.u32 %v1709, 7
      %v1711 = vsub.s32 %v1708, %v1710
      %v1712 = vrot.slane %v1696, %v1711
      %v1714 = vunpack.c.l.s4 1966171168
      %v1715 = vunpack.c.0.s8 %v1714
      %v1716 = vlaneseq
      %v1717 = vshrl.u32 %v1716, 7
      %v1718 = vsub.s32 %v1715, %v1717
      %v1719 = vrot.slane %v1703, %v1718
      %v1721 = vunpack.c.l.s4 1966171168
      %v1722 = vunpack.c.0.s8 %v1721
      %v1723 = vlaneseq
      %v1724 = vshrl.u32 %v1723, 7
      %v1725 = vsub.s32 %v1722, %v1724
      %v1726 = vrot.slane %v1704, %v1725
      %v1728 = vunpack.c.l.s4 1966171168
      %v1729 = vunpack.c.0.s8 %v1728
      %v1730 = vlaneseq
      %v1731 = vshrl.u32 %v1730, 7
      %v1732 = vsub.s32 %v1729, %v1731
      %v1733 = vrot.slane %v1705, %v1732
      %v1734 = vcombine.high %v1712, %v1712
      %v1735 = vcombine.high %v1719, %v1719
      %v1736 = vcombine.high %v1726, %v1726
      %v1737 = vcombine.high %v1733, %v1733
      %v1739 = vunpack.c.l.s4 1966171168
      %v1740 = vunpack.c.0.s8 %v1739
      %v1741 = vlaneseq
      %v1742 = vshrl.u32 %v1741, 7
      %v1743 = vsub.s32 %v1740, %v1742
      %v1744 = vrot.slane %v1686, %v1743
      %v1745 = vcombine.high %v1744, %v1744
      %v1747 = vunpack.c.l.s4 1966171168
      %v1748 = vunpack.c.0.s8 %v1747
      %v1749 = vlaneseq
      %v1750 = vshrl.u32 %v1749, 7
      %v1751 = vsub.s32 %v1748, %v1750
      %v1752 = vrot.slane %v1744, %v1751
      %v1754 = vunpack.c.l.s4 1966171168
      %v1755 = vunpack.c.0.s8 %v1754
      %v1756 = vlaneseq
      %v1757 = vshrl.u32 %v1756, 7
      %v1758 = vsub.s32 %v1755, %v1757
      %v1759 = vrot.slane %v1745, %v1758
      %v1760 = vcombine.high %v1752, %v1752
      %v1761 = vcombine.high %v1759, %v1759
      %v1762 = vlaneseq
      %v1763 = vshrl.u32 %v1762, 7
      %v1764 = vsub.s32 0, %v1763
      %v1765 = vrot.slane %v1712, %v1764
      %v1766 = vlaneseq
      %v1767 = vshrl.u32 %v1766, 7
      %v1768 = vsub.s32 0, %v1767
      %v1769 = vrot.slane %v1726, %v1768
      %v1770 = vlaneseq
      %v1771 = vshrl.u32 %v1770, 7
      %v1772 = vsub.s32 0, %v1771
      %v1773 = vrot.slane %v1734, %v1772
      %v1774 = vlaneseq
      %v1775 = vshrl.u32 %v1774, 7
      %v1776 = vsub.s32 0, %v1775
      %v1777 = vrot.slane %v1736, %v1776
      %v1778 = vlaneseq
      %v1779 = vshrl.u32 %v1778, 7
      %v1780 = vsub.s32 0, %v1779
      %v1781 = vrot.slane %v1719, %v1780
      %v1782 = vlaneseq
      %v1783 = vshrl.u32 %v1782, 7
      %v1784 = vsub.s32 0, %v1783
      %v1785 = vrot.slane %v1733, %v1784
      %v1786 = vlaneseq
      %v1787 = vshrl.u32 %v1786, 7
      %v1788 = vsub.s32 0, %v1787
      %v1789 = vrot.slane %v1735, %v1788
      %v1790 = vlaneseq
      %v1791 = vshrl.u32 %v1790, 7
      %v1792 = vsub.s32 0, %v1791
      %v1793 = vrot.slane %v1737, %v1792
      %v1794 = vlaneseq
      %v1795 = vshrl.u32 %v1794, 7
      %v1796 = vsub.s32 0, %v1795
      %v1797 = vrot.slane %v1752, %v1796
      %v1798 = vlaneseq
      %v1799 = vshrl.u32 %v1798, 7
      %v1800 = vsub.s32 0, %v1799
      %v1801 = vrot.slane %v1759, %v1800
      %v1802 = vlaneseq
      %v1803 = vshrl.u32 %v1802, 7
      %v1804 = vsub.s32 0, %v1803
      %v1805 = vrot.slane %v1760, %v1804
      %v1806 = vlaneseq
      %v1807 = vshrl.u32 %v1806, 7
      %v1808 = vsub.s32 0, %v1807
      %v1809 = vrot.slane %v1761, %v1808
      %v1822 = vmul.f32 %v1765, %v1683
      %v1823 = vmul.f32 %v1769, %v1683
      %v1824 = vmul.f32 %v1773, %v1683
      %v1825 = vmul.f32 %v1777, %v1683
      %v1826 = vmul.f32 %v1781, %v1683
      %v1827 = vmul.f32 %v1785, %v1683
      %v1828 = vmul.f32 %v1789, %v1683
      %v1829 = vmul.f32 %v1793, %v1683
      %v1830 = vmul.f32 %v1797, %v1683
      %v1831 = vmul.f32 %v1801, %v1683
      %v1832 = vmul.f32 %v1805, %v1683
      %v1833 = vmul.f32 %v1809, %v1683
      %v1834 = vadd.f32 %v1666, %v1822
      %v1835 = vadd.f32 %v1667, %v1823
      %v1836 = vadd.f32 %v1668, %v1824
      %v1837 = vadd.f32 %v1669, %v1825
      %v1838 = vadd.f32 %v1670, %v1826
      %v1839 = vadd.f32 %v1671, %v1827
      %v1840 = vadd.f32 %v1672, %v1828
      %v1841 = vadd.f32 %v1673, %v1829
      %v1842 = vadd.f32 %v1674, %v1830
      %v1843 = vadd.f32 %v1675, %v1831
      %v1844 = vadd.f32 %v1676, %v1832
      %v1845 = vadd.f32 %v1677, %v1833
      %1846 = vrot.lane.b32.xlu0 %v328, 118
      %v1847 = vpop.permute.xlu0 %1846
      %1848 = vrot.lane.b32.xlu0 %v329, 118
      %v1849 = vpop.permute.xlu0 %1848
      %vm1850 = vcmp.lt.s32.totalorder %v337, 118
      %v1851 = vsel %vm1850, %v1847, %v1849
      %s1852 = scalar_lea.vmem %s1, 160
      %v1853 = vld [vmem:[%s1852] sm:$0xff]
      %v1854 = vld [vmem:[%s1852 + $0x8] sm:$0xf]
      %v1857 = vcombine.high %v1853, %v1853
      %v1859 = vunpack.c.l.s4 1966171168
      %v1860 = vunpack.c.0.s8 %v1859
      %v1861 = vlaneseq
      %v1862 = vshrl.u32 %v1861, 7
      %v1863 = vsub.s32 %v1860, %v1862
      %v1864 = vrot.slane %v1853, %v1863
      %v1866 = vunpack.c.l.s4 1966171168
      %v1867 = vunpack.c.0.s8 %v1866
      %v1868 = vlaneseq
      %v1869 = vshrl.u32 %v1868, 7
      %v1870 = vsub.s32 %v1867, %v1869
      %v1871 = vrot.slane %v1857, %v1870
      %v1872 = vcombine.high %v1864, %v1864
      %v1873 = vcombine.high %v1871, %v1871
      %v1875 = vunpack.c.l.s4 1966171168
      %v1876 = vunpack.c.0.s8 %v1875
      %v1877 = vlaneseq
      %v1878 = vshrl.u32 %v1877, 7
      %v1879 = vsub.s32 %v1876, %v1878
      %v1880 = vrot.slane %v1864, %v1879
      %v1882 = vunpack.c.l.s4 1966171168
      %v1883 = vunpack.c.0.s8 %v1882
      %v1884 = vlaneseq
      %v1885 = vshrl.u32 %v1884, 7
      %v1886 = vsub.s32 %v1883, %v1885
      %v1887 = vrot.slane %v1871, %v1886
      %v1889 = vunpack.c.l.s4 1966171168
      %v1890 = vunpack.c.0.s8 %v1889
      %v1891 = vlaneseq
      %v1892 = vshrl.u32 %v1891, 7
      %v1893 = vsub.s32 %v1890, %v1892
      %v1894 = vrot.slane %v1872, %v1893
      %v1896 = vunpack.c.l.s4 1966171168
      %v1897 = vunpack.c.0.s8 %v1896
      %v1898 = vlaneseq
      %v1899 = vshrl.u32 %v1898, 7
      %v1900 = vsub.s32 %v1897, %v1899
      %v1901 = vrot.slane %v1873, %v1900
      %v1902 = vcombine.high %v1880, %v1880
      %v1903 = vcombine.high %v1887, %v1887
      %v1904 = vcombine.high %v1894, %v1894
      %v1905 = vcombine.high %v1901, %v1901
      %v1907 = vunpack.c.l.s4 1966171168
      %v1908 = vunpack.c.0.s8 %v1907
      %v1909 = vlaneseq
      %v1910 = vshrl.u32 %v1909, 7
      %v1911 = vsub.s32 %v1908, %v1910
      %v1912 = vrot.slane %v1854, %v1911
      %v1913 = vcombine.high %v1912, %v1912
      %v1915 = vunpack.c.l.s4 1966171168
      %v1916 = vunpack.c.0.s8 %v1915
      %v1917 = vlaneseq
      %v1918 = vshrl.u32 %v1917, 7
      %v1919 = vsub.s32 %v1916, %v1918
      %v1920 = vrot.slane %v1912, %v1919
      %v1922 = vunpack.c.l.s4 1966171168
      %v1923 = vunpack.c.0.s8 %v1922
      %v1924 = vlaneseq
      %v1925 = vshrl.u32 %v1924, 7
      %v1926 = vsub.s32 %v1923, %v1925
      %v1927 = vrot.slane %v1913, %v1926
      %v1928 = vcombine.high %v1920, %v1920
      %v1929 = vcombine.high %v1927, %v1927
      %v1930 = vlaneseq
      %v1931 = vshrl.u32 %v1930, 7
      %v1932 = vsub.s32 0, %v1931
      %v1933 = vrot.slane %v1880, %v1932
      %v1934 = vlaneseq
      %v1935 = vshrl.u32 %v1934, 7
      %v1936 = vsub.s32 0, %v1935
      %v1937 = vrot.slane %v1894, %v1936
      %v1938 = vlaneseq
      %v1939 = vshrl.u32 %v1938, 7
      %v1940 = vsub.s32 0, %v1939
      %v1941 = vrot.slane %v1902, %v1940
      %v1942 = vlaneseq
      %v1943 = vshrl.u32 %v1942, 7
      %v1944 = vsub.s32 0, %v1943
      %v1945 = vrot.slane %v1904, %v1944
      %v1946 = vlaneseq
      %v1947 = vshrl.u32 %v1946, 7
      %v1948 = vsub.s32 0, %v1947
      %v1949 = vrot.slane %v1887, %v1948
      %v1950 = vlaneseq
      %v1951 = vshrl.u32 %v1950, 7
      %v1952 = vsub.s32 0, %v1951
      %v1953 = vrot.slane %v1901, %v1952
      %v1954 = vlaneseq
      %v1955 = vshrl.u32 %v1954, 7
      %v1956 = vsub.s32 0, %v1955
      %v1957 = vrot.slane %v1903, %v1956
      %v1958 = vlaneseq
      %v1959 = vshrl.u32 %v1958, 7
      %v1960 = vsub.s32 0, %v1959
      %v1961 = vrot.slane %v1905, %v1960
      %v1962 = vlaneseq
      %v1963 = vshrl.u32 %v1962, 7
      %v1964 = vsub.s32 0, %v1963
      %v1965 = vrot.slane %v1920, %v1964
      %v1966 = vlaneseq
      %v1967 = vshrl.u32 %v1966, 7
      %v1968 = vsub.s32 0, %v1967
      %v1969 = vrot.slane %v1927, %v1968
      %v1970 = vlaneseq
      %v1971 = vshrl.u32 %v1970, 7
      %v1972 = vsub.s32 0, %v1971
      %v1973 = vrot.slane %v1928, %v1972
      %v1974 = vlaneseq
      %v1975 = vshrl.u32 %v1974, 7
      %v1976 = vsub.s32 0, %v1975
      %v1977 = vrot.slane %v1929, %v1976
      %v1990 = vmul.f32 %v1933, %v1851
      %v1991 = vmul.f32 %v1937, %v1851
      %v1992 = vmul.f32 %v1941, %v1851
      %v1993 = vmul.f32 %v1945, %v1851
      %v1994 = vmul.f32 %v1949, %v1851
      %v1995 = vmul.f32 %v1953, %v1851
      %v1996 = vmul.f32 %v1957, %v1851
      %v1997 = vmul.f32 %v1961, %v1851
      %v1998 = vmul.f32 %v1965, %v1851
      %v1999 = vmul.f32 %v1969, %v1851
      %v2000 = vmul.f32 %v1973, %v1851
      %v2001 = vmul.f32 %v1977, %v1851
      %v2002 = vadd.f32 %v1834, %v1990
      %v2003 = vadd.f32 %v1835, %v1991
      %v2004 = vadd.f32 %v1836, %v1992
      %v2005 = vadd.f32 %v1837, %v1993
      %v2006 = vadd.f32 %v1838, %v1994
      %v2007 = vadd.f32 %v1839, %v1995
      %v2008 = vadd.f32 %v1840, %v1996
      %v2009 = vadd.f32 %v1841, %v1997
      %v2010 = vadd.f32 %v1842, %v1998
      %v2011 = vadd.f32 %v1843, %v1999
      %v2012 = vadd.f32 %v1844, %v2000
      %v2013 = vadd.f32 %v1845, %v2001
      %2014 = vrot.lane.b32.xlu0 %v328, 117
      %v2015 = vpop.permute.xlu0 %2014
      %2016 = vrot.lane.b32.xlu0 %v329, 117
      %v2017 = vpop.permute.xlu0 %2016
      %vm2018 = vcmp.lt.s32.totalorder %v337, 117
      %v2019 = vsel %vm2018, %v2015, %v2017
      %s2020 = scalar_lea.vmem %s1, 176
      %v2021 = vld [vmem:[%s2020] sm:$0xff]
      %v2022 = vld [vmem:[%s2020 + $0x8] sm:$0xf]
      %v2025 = vcombine.high %v2021, %v2021
      %v2027 = vunpack.c.l.s4 1966171168
      %v2028 = vunpack.c.0.s8 %v2027
      %v2029 = vlaneseq
      %v2030 = vshrl.u32 %v2029, 7
      %v2031 = vsub.s32 %v2028, %v2030
      %v2032 = vrot.slane %v2021, %v2031
      %v2034 = vunpack.c.l.s4 1966171168
      %v2035 = vunpack.c.0.s8 %v2034
      %v2036 = vlaneseq
      %v2037 = vshrl.u32 %v2036, 7
      %v2038 = vsub.s32 %v2035, %v2037
      %v2039 = vrot.slane %v2025, %v2038
      %v2040 = vcombine.high %v2032, %v2032
      %v2041 = vcombine.high %v2039, %v2039
      %v2043 = vunpack.c.l.s4 1966171168
      %v2044 = vunpack.c.0.s8 %v2043
      %v2045 = vlaneseq
      %v2046 = vshrl.u32 %v2045, 7
      %v2047 = vsub.s32 %v2044, %v2046
      %v2048 = vrot.slane %v2032, %v2047
      %v2050 = vunpack.c.l.s4 1966171168
      %v2051 = vunpack.c.0.s8 %v2050
      %v2052 = vlaneseq
      %v2053 = vshrl.u32 %v2052, 7
      %v2054 = vsub.s32 %v2051, %v2053
      %v2055 = vrot.slane %v2039, %v2054
      %v2057 = vunpack.c.l.s4 1966171168
      %v2058 = vunpack.c.0.s8 %v2057
      %v2059 = vlaneseq
      %v2060 = vshrl.u32 %v2059, 7
      %v2061 = vsub.s32 %v2058, %v2060
      %v2062 = vrot.slane %v2040, %v2061
      %v2064 = vunpack.c.l.s4 1966171168
      %v2065 = vunpack.c.0.s8 %v2064
      %v2066 = vlaneseq
      %v2067 = vshrl.u32 %v2066, 7
      %v2068 = vsub.s32 %v2065, %v2067
      %v2069 = vrot.slane %v2041, %v2068
      %v2070 = vcombine.high %v2048, %v2048
      %v2071 = vcombine.high %v2055, %v2055
      %v2072 = vcombine.high %v2062, %v2062
      %v2073 = vcombine.high %v2069, %v2069
      %v2075 = vunpack.c.l.s4 1966171168
      %v2076 = vunpack.c.0.s8 %v2075
      %v2077 = vlaneseq
      %v2078 = vshrl.u32 %v2077, 7
      %v2079 = vsub.s32 %v2076, %v2078
      %v2080 = vrot.slane %v2022, %v2079
      %v2081 = vcombine.high %v2080, %v2080
      %v2083 = vunpack.c.l.s4 1966171168
      %v2084 = vunpack.c.0.s8 %v2083
      %v2085 = vlaneseq
      %v2086 = vshrl.u32 %v2085, 7
      %v2087 = vsub.s32 %v2084, %v2086
      %v2088 = vrot.slane %v2080, %v2087
      %v2090 = vunpack.c.l.s4 1966171168
      %v2091 = vunpack.c.0.s8 %v2090
      %v2092 = vlaneseq
      %v2093 = vshrl.u32 %v2092, 7
      %v2094 = vsub.s32 %v2091, %v2093
      %v2095 = vrot.slane %v2081, %v2094
      %v2096 = vcombine.high %v2088, %v2088
      %v2097 = vcombine.high %v2095, %v2095
      %v2098 = vlaneseq
      %v2099 = vshrl.u32 %v2098, 7
      %v2100 = vsub.s32 0, %v2099
      %v2101 = vrot.slane %v2048, %v2100
      %v2102 = vlaneseq
      %v2103 = vshrl.u32 %v2102, 7
      %v2104 = vsub.s32 0, %v2103
      %v2105 = vrot.slane %v2062, %v2104
      %v2106 = vlaneseq
      %v2107 = vshrl.u32 %v2106, 7
      %v2108 = vsub.s32 0, %v2107
      %v2109 = vrot.slane %v2070, %v2108
      %v2110 = vlaneseq
      %v2111 = vshrl.u32 %v2110, 7
      %v2112 = vsub.s32 0, %v2111
      %v2113 = vrot.slane %v2072, %v2112
      %v2114 = vlaneseq
      %v2115 = vshrl.u32 %v2114, 7
      %v2116 = vsub.s32 0, %v2115
      %v2117 = vrot.slane %v2055, %v2116
      %v2118 = vlaneseq
      %v2119 = vshrl.u32 %v2118, 7
      %v2120 = vsub.s32 0, %v2119
      %v2121 = vrot.slane %v2069, %v2120
      %v2122 = vlaneseq
      %v2123 = vshrl.u32 %v2122, 7
      %v2124 = vsub.s32 0, %v2123
      %v2125 = vrot.slane %v2071, %v2124
      %v2126 = vlaneseq
      %v2127 = vshrl.u32 %v2126, 7
      %v2128 = vsub.s32 0, %v2127
      %v2129 = vrot.slane %v2073, %v2128
      %v2130 = vlaneseq
      %v2131 = vshrl.u32 %v2130, 7
      %v2132 = vsub.s32 0, %v2131
      %v2133 = vrot.slane %v2088, %v2132
      %v2134 = vlaneseq
      %v2135 = vshrl.u32 %v2134, 7
      %v2136 = vsub.s32 0, %v2135
      %v2137 = vrot.slane %v2095, %v2136
      %v2138 = vlaneseq
      %v2139 = vshrl.u32 %v2138, 7
      %v2140 = vsub.s32 0, %v2139
      %v2141 = vrot.slane %v2096, %v2140
      %v2142 = vlaneseq
      %v2143 = vshrl.u32 %v2142, 7
      %v2144 = vsub.s32 0, %v2143
      %v2145 = vrot.slane %v2097, %v2144
      %v2158 = vmul.f32 %v2101, %v2019
      %v2159 = vmul.f32 %v2105, %v2019
      %v2160 = vmul.f32 %v2109, %v2019
      %v2161 = vmul.f32 %v2113, %v2019
      %v2162 = vmul.f32 %v2117, %v2019
      %v2163 = vmul.f32 %v2121, %v2019
      %v2164 = vmul.f32 %v2125, %v2019
      %v2165 = vmul.f32 %v2129, %v2019
      %v2166 = vmul.f32 %v2133, %v2019
      %v2167 = vmul.f32 %v2137, %v2019
      %v2168 = vmul.f32 %v2141, %v2019
      %v2169 = vmul.f32 %v2145, %v2019
      %v2170 = vadd.f32 %v2002, %v2158
      %v2171 = vadd.f32 %v2003, %v2159
      %v2172 = vadd.f32 %v2004, %v2160
      %v2173 = vadd.f32 %v2005, %v2161
      %v2174 = vadd.f32 %v2006, %v2162
      %v2175 = vadd.f32 %v2007, %v2163
      %v2176 = vadd.f32 %v2008, %v2164
      %v2177 = vadd.f32 %v2009, %v2165
      %v2178 = vadd.f32 %v2010, %v2166
      %v2179 = vadd.f32 %v2011, %v2167
      %v2180 = vadd.f32 %v2012, %v2168
      %v2181 = vadd.f32 %v2013, %v2169
      %2182 = vrot.lane.b32.xlu0 %v328, 116
      %v2183 = vpop.permute.xlu0 %2182
      %2184 = vrot.lane.b32.xlu0 %v329, 116
      %v2185 = vpop.permute.xlu0 %2184
      %vm2186 = vcmp.lt.s32.totalorder %v337, 116
      %v2187 = vsel %vm2186, %v2183, %v2185
      %s2188 = scalar_lea.vmem %s1, 192
      %v2189 = vld [vmem:[%s2188] sm:$0xff]
      %v2190 = vld [vmem:[%s2188 + $0x8] sm:$0xf]
      %v2193 = vcombine.high %v2189, %v2189
      %v2195 = vunpack.c.l.s4 1966171168
      %v2196 = vunpack.c.0.s8 %v2195
      %v2197 = vlaneseq
      %v2198 = vshrl.u32 %v2197, 7
      %v2199 = vsub.s32 %v2196, %v2198
      %v2200 = vrot.slane %v2189, %v2199
      %v2202 = vunpack.c.l.s4 1966171168
      %v2203 = vunpack.c.0.s8 %v2202
      %v2204 = vlaneseq
      %v2205 = vshrl.u32 %v2204, 7
      %v2206 = vsub.s32 %v2203, %v2205
      %v2207 = vrot.slane %v2193, %v2206
      %v2208 = vcombine.high %v2200, %v2200
      %v2209 = vcombine.high %v2207, %v2207
      %v2211 = vunpack.c.l.s4 1966171168
      %v2212 = vunpack.c.0.s8 %v2211
      %v2213 = vlaneseq
      %v2214 = vshrl.u32 %v2213, 7
      %v2215 = vsub.s32 %v2212, %v2214
      %v2216 = vrot.slane %v2200, %v2215
      %v2218 = vunpack.c.l.s4 1966171168
      %v2219 = vunpack.c.0.s8 %v2218
      %v2220 = vlaneseq
      %v2221 = vshrl.u32 %v2220, 7
      %v2222 = vsub.s32 %v2219, %v2221
      %v2223 = vrot.slane %v2207, %v2222
      %v2225 = vunpack.c.l.s4 1966171168
      %v2226 = vunpack.c.0.s8 %v2225
      %v2227 = vlaneseq
      %v2228 = vshrl.u32 %v2227, 7
      %v2229 = vsub.s32 %v2226, %v2228
      %v2230 = vrot.slane %v2208, %v2229
      %v2232 = vunpack.c.l.s4 1966171168
      %v2233 = vunpack.c.0.s8 %v2232
      %v2234 = vlaneseq
      %v2235 = vshrl.u32 %v2234, 7
      %v2236 = vsub.s32 %v2233, %v2235
      %v2237 = vrot.slane %v2209, %v2236
      %v2238 = vcombine.high %v2216, %v2216
      %v2239 = vcombine.high %v2223, %v2223
      %v2240 = vcombine.high %v2230, %v2230
      %v2241 = vcombine.high %v2237, %v2237
      %v2243 = vunpack.c.l.s4 1966171168
      %v2244 = vunpack.c.0.s8 %v2243
      %v2245 = vlaneseq
      %v2246 = vshrl.u32 %v2245, 7
      %v2247 = vsub.s32 %v2244, %v2246
      %v2248 = vrot.slane %v2190, %v2247
      %v2249 = vcombine.high %v2248, %v2248
      %v2251 = vunpack.c.l.s4 1966171168
      %v2252 = vunpack.c.0.s8 %v2251
      %v2253 = vlaneseq
      %v2254 = vshrl.u32 %v2253, 7
      %v2255 = vsub.s32 %v2252, %v2254
      %v2256 = vrot.slane %v2248, %v2255
      %v2258 = vunpack.c.l.s4 1966171168
      %v2259 = vunpack.c.0.s8 %v2258
      %v2260 = vlaneseq
      %v2261 = vshrl.u32 %v2260, 7
      %v2262 = vsub.s32 %v2259, %v2261
      %v2263 = vrot.slane %v2249, %v2262
      %v2264 = vcombine.high %v2256, %v2256
      %v2265 = vcombine.high %v2263, %v2263
      %v2266 = vlaneseq
      %v2267 = vshrl.u32 %v2266, 7
      %v2268 = vsub.s32 0, %v2267
      %v2269 = vrot.slane %v2216, %v2268
      %v2270 = vlaneseq
      %v2271 = vshrl.u32 %v2270, 7
      %v2272 = vsub.s32 0, %v2271
      %v2273 = vrot.slane %v2230, %v2272
      %v2274 = vlaneseq
      %v2275 = vshrl.u32 %v2274, 7
      %v2276 = vsub.s32 0, %v2275
      %v2277 = vrot.slane %v2238, %v2276
      %v2278 = vlaneseq
      %v2279 = vshrl.u32 %v2278, 7
      %v2280 = vsub.s32 0, %v2279
      %v2281 = vrot.slane %v2240, %v2280
      %v2282 = vlaneseq
      %v2283 = vshrl.u32 %v2282, 7
      %v2284 = vsub.s32 0, %v2283
      %v2285 = vrot.slane %v2223, %v2284
      %v2286 = vlaneseq
      %v2287 = vshrl.u32 %v2286, 7
      %v2288 = vsub.s32 0, %v2287
      %v2289 = vrot.slane %v2237, %v2288
      %v2290 = vlaneseq
      %v2291 = vshrl.u32 %v2290, 7
      %v2292 = vsub.s32 0, %v2291
      %v2293 = vrot.slane %v2239, %v2292
      %v2294 = vlaneseq
      %v2295 = vshrl.u32 %v2294, 7
      %v2296 = vsub.s32 0, %v2295
      %v2297 = vrot.slane %v2241, %v2296
      %v2298 = vlaneseq
      %v2299 = vshrl.u32 %v2298, 7
      %v2300 = vsub.s32 0, %v2299
      %v2301 = vrot.slane %v2256, %v2300
      %v2302 = vlaneseq
      %v2303 = vshrl.u32 %v2302, 7
      %v2304 = vsub.s32 0, %v2303
      %v2305 = vrot.slane %v2263, %v2304
      %v2306 = vlaneseq
      %v2307 = vshrl.u32 %v2306, 7
      %v2308 = vsub.s32 0, %v2307
      %v2309 = vrot.slane %v2264, %v2308
      %v2310 = vlaneseq
      %v2311 = vshrl.u32 %v2310, 7
      %v2312 = vsub.s32 0, %v2311
      %v2313 = vrot.slane %v2265, %v2312
      %v2326 = vmul.f32 %v2269, %v2187
      %v2327 = vmul.f32 %v2273, %v2187
      %v2328 = vmul.f32 %v2277, %v2187
      %v2329 = vmul.f32 %v2281, %v2187
      %v2330 = vmul.f32 %v2285, %v2187
      %v2331 = vmul.f32 %v2289, %v2187
      %v2332 = vmul.f32 %v2293, %v2187
      %v2333 = vmul.f32 %v2297, %v2187
      %v2334 = vmul.f32 %v2301, %v2187
      %v2335 = vmul.f32 %v2305, %v2187
      %v2336 = vmul.f32 %v2309, %v2187
      %v2337 = vmul.f32 %v2313, %v2187
      %v2338 = vadd.f32 %v2170, %v2326
      %v2339 = vadd.f32 %v2171, %v2327
      %v2340 = vadd.f32 %v2172, %v2328
      %v2341 = vadd.f32 %v2173, %v2329
      %v2342 = vadd.f32 %v2174, %v2330
      %v2343 = vadd.f32 %v2175, %v2331
      %v2344 = vadd.f32 %v2176, %v2332
      %v2345 = vadd.f32 %v2177, %v2333
      %v2346 = vadd.f32 %v2178, %v2334
      %v2347 = vadd.f32 %v2179, %v2335
      %v2348 = vadd.f32 %v2180, %v2336
      %v2349 = vadd.f32 %v2181, %v2337
      %2350 = vrot.lane.b32.xlu0 %v328, 115
      %v2351 = vpop.permute.xlu0 %2350
      %2352 = vrot.lane.b32.xlu0 %v329, 115
      %v2353 = vpop.permute.xlu0 %2352
      %vm2354 = vcmp.lt.s32.totalorder %v337, 115
      %v2355 = vsel %vm2354, %v2351, %v2353
      %s2356 = scalar_lea.vmem %s1, 208
      %v2357 = vld [vmem:[%s2356] sm:$0xff]
      %v2358 = vld [vmem:[%s2356 + $0x8] sm:$0xf]
      %v2361 = vcombine.high %v2357, %v2357
      %v2363 = vunpack.c.l.s4 1966171168
      %v2364 = vunpack.c.0.s8 %v2363
      %v2365 = vlaneseq
      %v2366 = vshrl.u32 %v2365, 7
      %v2367 = vsub.s32 %v2364, %v2366
      %v2368 = vrot.slane %v2357, %v2367
      %v2370 = vunpack.c.l.s4 1966171168
      %v2371 = vunpack.c.0.s8 %v2370
      %v2372 = vlaneseq
      %v2373 = vshrl.u32 %v2372, 7
      %v2374 = vsub.s32 %v2371, %v2373
      %v2375 = vrot.slane %v2361, %v2374
      %v2376 = vcombine.high %v2368, %v2368
      %v2377 = vcombine.high %v2375, %v2375
      %v2379 = vunpack.c.l.s4 1966171168
      %v2380 = vunpack.c.0.s8 %v2379
      %v2381 = vlaneseq
      %v2382 = vshrl.u32 %v2381, 7
      %v2383 = vsub.s32 %v2380, %v2382
      %v2384 = vrot.slane %v2368, %v2383
      %v2386 = vunpack.c.l.s4 1966171168
      %v2387 = vunpack.c.0.s8 %v2386
      %v2388 = vlaneseq
      %v2389 = vshrl.u32 %v2388, 7
      %v2390 = vsub.s32 %v2387, %v2389
      %v2391 = vrot.slane %v2375, %v2390
      %v2393 = vunpack.c.l.s4 1966171168
      %v2394 = vunpack.c.0.s8 %v2393
      %v2395 = vlaneseq
      %v2396 = vshrl.u32 %v2395, 7
      %v2397 = vsub.s32 %v2394, %v2396
      %v2398 = vrot.slane %v2376, %v2397
      %v2400 = vunpack.c.l.s4 1966171168
      %v2401 = vunpack.c.0.s8 %v2400
      %v2402 = vlaneseq
      %v2403 = vshrl.u32 %v2402, 7
      %v2404 = vsub.s32 %v2401, %v2403
      %v2405 = vrot.slane %v2377, %v2404
      %v2406 = vcombine.high %v2384, %v2384
      %v2407 = vcombine.high %v2391, %v2391
      %v2408 = vcombine.high %v2398, %v2398
      %v2409 = vcombine.high %v2405, %v2405
      %v2411 = vunpack.c.l.s4 1966171168
      %v2412 = vunpack.c.0.s8 %v2411
      %v2413 = vlaneseq
      %v2414 = vshrl.u32 %v2413, 7
      %v2415 = vsub.s32 %v2412, %v2414
      %v2416 = vrot.slane %v2358, %v2415
      %v2417 = vcombine.high %v2416, %v2416
      %v2419 = vunpack.c.l.s4 1966171168
      %v2420 = vunpack.c.0.s8 %v2419
      %v2421 = vlaneseq
      %v2422 = vshrl.u32 %v2421, 7
      %v2423 = vsub.s32 %v2420, %v2422
      %v2424 = vrot.slane %v2416, %v2423
      %v2426 = vunpack.c.l.s4 1966171168
      %v2427 = vunpack.c.0.s8 %v2426
      %v2428 = vlaneseq
      %v2429 = vshrl.u32 %v2428, 7
      %v2430 = vsub.s32 %v2427, %v2429
      %v2431 = vrot.slane %v2417, %v2430
      %v2432 = vcombine.high %v2424, %v2424
      %v2433 = vcombine.high %v2431, %v2431
      %v2434 = vlaneseq
      %v2435 = vshrl.u32 %v2434, 7
      %v2436 = vsub.s32 0, %v2435
      %v2437 = vrot.slane %v2384, %v2436
      %v2438 = vlaneseq
      %v2439 = vshrl.u32 %v2438, 7
      %v2440 = vsub.s32 0, %v2439
      %v2441 = vrot.slane %v2398, %v2440
      %v2442 = vlaneseq
      %v2443 = vshrl.u32 %v2442, 7
      %v2444 = vsub.s32 0, %v2443
      %v2445 = vrot.slane %v2406, %v2444
      %v2446 = vlaneseq
      %v2447 = vshrl.u32 %v2446, 7
      %v2448 = vsub.s32 0, %v2447
      %v2449 = vrot.slane %v2408, %v2448
      %v2450 = vlaneseq
      %v2451 = vshrl.u32 %v2450, 7
      %v2452 = vsub.s32 0, %v2451
      %v2453 = vrot.slane %v2391, %v2452
      %v2454 = vlaneseq
      %v2455 = vshrl.u32 %v2454, 7
      %v2456 = vsub.s32 0, %v2455
      %v2457 = vrot.slane %v2405, %v2456
      %v2458 = vlaneseq
      %v2459 = vshrl.u32 %v2458, 7
      %v2460 = vsub.s32 0, %v2459
      %v2461 = vrot.slane %v2407, %v2460
      %v2462 = vlaneseq
      %v2463 = vshrl.u32 %v2462, 7
      %v2464 = vsub.s32 0, %v2463
      %v2465 = vrot.slane %v2409, %v2464
      %v2466 = vlaneseq
      %v2467 = vshrl.u32 %v2466, 7
      %v2468 = vsub.s32 0, %v2467
      %v2469 = vrot.slane %v2424, %v2468
      %v2470 = vlaneseq
      %v2471 = vshrl.u32 %v2470, 7
      %v2472 = vsub.s32 0, %v2471
      %v2473 = vrot.slane %v2431, %v2472
      %v2474 = vlaneseq
      %v2475 = vshrl.u32 %v2474, 7
      %v2476 = vsub.s32 0, %v2475
      %v2477 = vrot.slane %v2432, %v2476
      %v2478 = vlaneseq
      %v2479 = vshrl.u32 %v2478, 7
      %v2480 = vsub.s32 0, %v2479
      %v2481 = vrot.slane %v2433, %v2480
      %v2494 = vmul.f32 %v2437, %v2355
      %v2495 = vmul.f32 %v2441, %v2355
      %v2496 = vmul.f32 %v2445, %v2355
      %v2497 = vmul.f32 %v2449, %v2355
      %v2498 = vmul.f32 %v2453, %v2355
      %v2499 = vmul.f32 %v2457, %v2355
      %v2500 = vmul.f32 %v2461, %v2355
      %v2501 = vmul.f32 %v2465, %v2355
      %v2502 = vmul.f32 %v2469, %v2355
      %v2503 = vmul.f32 %v2473, %v2355
      %v2504 = vmul.f32 %v2477, %v2355
      %v2505 = vmul.f32 %v2481, %v2355
      %v2506 = vadd.f32 %v2338, %v2494
      %v2507 = vadd.f32 %v2339, %v2495
      %v2508 = vadd.f32 %v2340, %v2496
      %v2509 = vadd.f32 %v2341, %v2497
      %v2510 = vadd.f32 %v2342, %v2498
      %v2511 = vadd.f32 %v2343, %v2499
      %v2512 = vadd.f32 %v2344, %v2500
      %v2513 = vadd.f32 %v2345, %v2501
      %v2514 = vadd.f32 %v2346, %v2502
      %v2515 = vadd.f32 %v2347, %v2503
      %v2516 = vadd.f32 %v2348, %v2504
      %v2517 = vadd.f32 %v2349, %v2505
      %2518 = vrot.lane.b32.xlu0 %v328, 114
      %v2519 = vpop.permute.xlu0 %2518
      %2520 = vrot.lane.b32.xlu0 %v329, 114
      %v2521 = vpop.permute.xlu0 %2520
      %vm2522 = vcmp.lt.s32.totalorder %v337, 114
      %v2523 = vsel %vm2522, %v2519, %v2521
      %s2524 = scalar_lea.vmem %s1, 224
      %v2525 = vld [vmem:[%s2524] sm:$0xff]
      %v2526 = vld [vmem:[%s2524 + $0x8] sm:$0xf]
      %v2529 = vcombine.high %v2525, %v2525
      %v2531 = vunpack.c.l.s4 1966171168
      %v2532 = vunpack.c.0.s8 %v2531
      %v2533 = vlaneseq
      %v2534 = vshrl.u32 %v2533, 7
      %v2535 = vsub.s32 %v2532, %v2534
      %v2536 = vrot.slane %v2525, %v2535
      %v2538 = vunpack.c.l.s4 1966171168
      %v2539 = vunpack.c.0.s8 %v2538
      %v2540 = vlaneseq
      %v2541 = vshrl.u32 %v2540, 7
      %v2542 = vsub.s32 %v2539, %v2541
      %v2543 = vrot.slane %v2529, %v2542
      %v2544 = vcombine.high %v2536, %v2536
      %v2545 = vcombine.high %v2543, %v2543
      %v2547 = vunpack.c.l.s4 1966171168
      %v2548 = vunpack.c.0.s8 %v2547
      %v2549 = vlaneseq
      %v2550 = vshrl.u32 %v2549, 7
      %v2551 = vsub.s32 %v2548, %v2550
      %v2552 = vrot.slane %v2536, %v2551
      %v2554 = vunpack.c.l.s4 1966171168
      %v2555 = vunpack.c.0.s8 %v2554
      %v2556 = vlaneseq
      %v2557 = vshrl.u32 %v2556, 7
      %v2558 = vsub.s32 %v2555, %v2557
      %v2559 = vrot.slane %v2543, %v2558
      %v2561 = vunpack.c.l.s4 1966171168
      %v2562 = vunpack.c.0.s8 %v2561
      %v2563 = vlaneseq
      %v2564 = vshrl.u32 %v2563, 7
      %v2565 = vsub.s32 %v2562, %v2564
      %v2566 = vrot.slane %v2544, %v2565
      %v2568 = vunpack.c.l.s4 1966171168
      %v2569 = vunpack.c.0.s8 %v2568
      %v2570 = vlaneseq
      %v2571 = vshrl.u32 %v2570, 7
      %v2572 = vsub.s32 %v2569, %v2571
      %v2573 = vrot.slane %v2545, %v2572
      %v2574 = vcombine.high %v2552, %v2552
      %v2575 = vcombine.high %v2559, %v2559
      %v2576 = vcombine.high %v2566, %v2566
      %v2577 = vcombine.high %v2573, %v2573
      %v2579 = vunpack.c.l.s4 1966171168
      %v2580 = vunpack.c.0.s8 %v2579
      %v2581 = vlaneseq
      %v2582 = vshrl.u32 %v2581, 7
      %v2583 = vsub.s32 %v2580, %v2582
      %v2584 = vrot.slane %v2526, %v2583
      %v2585 = vcombine.high %v2584, %v2584
      %v2587 = vunpack.c.l.s4 1966171168
      %v2588 = vunpack.c.0.s8 %v2587
      %v2589 = vlaneseq
      %v2590 = vshrl.u32 %v2589, 7
      %v2591 = vsub.s32 %v2588, %v2590
      %v2592 = vrot.slane %v2584, %v2591
      %v2594 = vunpack.c.l.s4 1966171168
      %v2595 = vunpack.c.0.s8 %v2594
      %v2596 = vlaneseq
      %v2597 = vshrl.u32 %v2596, 7
      %v2598 = vsub.s32 %v2595, %v2597
      %v2599 = vrot.slane %v2585, %v2598
      %v2600 = vcombine.high %v2592, %v2592
      %v2601 = vcombine.high %v2599, %v2599
      %v2602 = vlaneseq
      %v2603 = vshrl.u32 %v2602, 7
      %v2604 = vsub.s32 0, %v2603
      %v2605 = vrot.slane %v2552, %v2604
      %v2606 = vlaneseq
      %v2607 = vshrl.u32 %v2606, 7
      %v2608 = vsub.s32 0, %v2607
      %v2609 = vrot.slane %v2566, %v2608
      %v2610 = vlaneseq
      %v2611 = vshrl.u32 %v2610, 7
      %v2612 = vsub.s32 0, %v2611
      %v2613 = vrot.slane %v2574, %v2612
      %v2614 = vlaneseq
      %v2615 = vshrl.u32 %v2614, 7
      %v2616 = vsub.s32 0, %v2615
      %v2617 = vrot.slane %v2576, %v2616
      %v2618 = vlaneseq
      %v2619 = vshrl.u32 %v2618, 7
      %v2620 = vsub.s32 0, %v2619
      %v2621 = vrot.slane %v2559, %v2620
      %v2622 = vlaneseq
      %v2623 = vshrl.u32 %v2622, 7
      %v2624 = vsub.s32 0, %v2623
      %v2625 = vrot.slane %v2573, %v2624
      %v2626 = vlaneseq
      %v2627 = vshrl.u32 %v2626, 7
      %v2628 = vsub.s32 0, %v2627
      %v2629 = vrot.slane %v2575, %v2628
      %v2630 = vlaneseq
      %v2631 = vshrl.u32 %v2630, 7
      %v2632 = vsub.s32 0, %v2631
      %v2633 = vrot.slane %v2577, %v2632
      %v2634 = vlaneseq
      %v2635 = vshrl.u32 %v2634, 7
      %v2636 = vsub.s32 0, %v2635
      %v2637 = vrot.slane %v2592, %v2636
      %v2638 = vlaneseq
      %v2639 = vshrl.u32 %v2638, 7
      %v2640 = vsub.s32 0, %v2639
      %v2641 = vrot.slane %v2599, %v2640
      %v2642 = vlaneseq
      %v2643 = vshrl.u32 %v2642, 7
      %v2644 = vsub.s32 0, %v2643
      %v2645 = vrot.slane %v2600, %v2644
      %v2646 = vlaneseq
      %v2647 = vshrl.u32 %v2646, 7
      %v2648 = vsub.s32 0, %v2647
      %v2649 = vrot.slane %v2601, %v2648
      %v2662 = vmul.f32 %v2605, %v2523
      %v2663 = vmul.f32 %v2609, %v2523
      %v2664 = vmul.f32 %v2613, %v2523
      %v2665 = vmul.f32 %v2617, %v2523
      %v2666 = vmul.f32 %v2621, %v2523
      %v2667 = vmul.f32 %v2625, %v2523
      %v2668 = vmul.f32 %v2629, %v2523
      %v2669 = vmul.f32 %v2633, %v2523
      %v2670 = vmul.f32 %v2637, %v2523
      %v2671 = vmul.f32 %v2641, %v2523
      %v2672 = vmul.f32 %v2645, %v2523
      %v2673 = vmul.f32 %v2649, %v2523
      %v2674 = vadd.f32 %v2506, %v2662
      %v2675 = vadd.f32 %v2507, %v2663
      %v2676 = vadd.f32 %v2508, %v2664
      %v2677 = vadd.f32 %v2509, %v2665
      %v2678 = vadd.f32 %v2510, %v2666
      %v2679 = vadd.f32 %v2511, %v2667
      %v2680 = vadd.f32 %v2512, %v2668
      %v2681 = vadd.f32 %v2513, %v2669
      %v2682 = vadd.f32 %v2514, %v2670
      %v2683 = vadd.f32 %v2515, %v2671
      %v2684 = vadd.f32 %v2516, %v2672
      %v2685 = vadd.f32 %v2517, %v2673
      %2686 = vrot.lane.b32.xlu0 %v328, 113
      %v2687 = vpop.permute.xlu0 %2686
      %2688 = vrot.lane.b32.xlu0 %v329, 113
      %v2689 = vpop.permute.xlu0 %2688
      %vm2690 = vcmp.lt.s32.totalorder %v337, 113
      %v2691 = vsel %vm2690, %v2687, %v2689
      %s2692 = scalar_lea.vmem %s1, 240
      %v2693 = vld [vmem:[%s2692] sm:$0xff]
      %v2694 = vld [vmem:[%s2692 + $0x8] sm:$0xf]
      %v2697 = vcombine.high %v2693, %v2693
      %v2699 = vunpack.c.l.s4 1966171168
      %v2700 = vunpack.c.0.s8 %v2699
      %v2701 = vlaneseq
      %v2702 = vshrl.u32 %v2701, 7
      %v2703 = vsub.s32 %v2700, %v2702
      %v2704 = vrot.slane %v2693, %v2703
      %v2706 = vunpack.c.l.s4 1966171168
      %v2707 = vunpack.c.0.s8 %v2706
      %v2708 = vlaneseq
      %v2709 = vshrl.u32 %v2708, 7
      %v2710 = vsub.s32 %v2707, %v2709
      %v2711 = vrot.slane %v2697, %v2710
      %v2712 = vcombine.high %v2704, %v2704
      %v2713 = vcombine.high %v2711, %v2711
      %v2715 = vunpack.c.l.s4 1966171168
      %v2716 = vunpack.c.0.s8 %v2715
      %v2717 = vlaneseq
      %v2718 = vshrl.u32 %v2717, 7
      %v2719 = vsub.s32 %v2716, %v2718
      %v2720 = vrot.slane %v2704, %v2719
      %v2722 = vunpack.c.l.s4 1966171168
      %v2723 = vunpack.c.0.s8 %v2722
      %v2724 = vlaneseq
      %v2725 = vshrl.u32 %v2724, 7
      %v2726 = vsub.s32 %v2723, %v2725
      %v2727 = vrot.slane %v2711, %v2726
      %v2729 = vunpack.c.l.s4 1966171168
      %v2730 = vunpack.c.0.s8 %v2729
      %v2731 = vlaneseq
      %v2732 = vshrl.u32 %v2731, 7
      %v2733 = vsub.s32 %v2730, %v2732
      %v2734 = vrot.slane %v2712, %v2733
      %v2736 = vunpack.c.l.s4 1966171168
      %v2737 = vunpack.c.0.s8 %v2736
      %v2738 = vlaneseq
      %v2739 = vshrl.u32 %v2738, 7
      %v2740 = vsub.s32 %v2737, %v2739
      %v2741 = vrot.slane %v2713, %v2740
      %v2742 = vcombine.high %v2720, %v2720
      %v2743 = vcombine.high %v2727, %v2727
      %v2744 = vcombine.high %v2734, %v2734
      %v2745 = vcombine.high %v2741, %v2741
      %v2747 = vunpack.c.l.s4 1966171168
      %v2748 = vunpack.c.0.s8 %v2747
      %v2749 = vlaneseq
      %v2750 = vshrl.u32 %v2749, 7
      %v2751 = vsub.s32 %v2748, %v2750
      %v2752 = vrot.slane %v2694, %v2751
      %v2753 = vcombine.high %v2752, %v2752
      %v2755 = vunpack.c.l.s4 1966171168
      %v2756 = vunpack.c.0.s8 %v2755
      %v2757 = vlaneseq
      %v2758 = vshrl.u32 %v2757, 7
      %v2759 = vsub.s32 %v2756, %v2758
      %v2760 = vrot.slane %v2752, %v2759
      %v2762 = vunpack.c.l.s4 1966171168
      %v2763 = vunpack.c.0.s8 %v2762
      %v2764 = vlaneseq
      %v2765 = vshrl.u32 %v2764, 7
      %v2766 = vsub.s32 %v2763, %v2765
      %v2767 = vrot.slane %v2753, %v2766
      %v2768 = vcombine.high %v2760, %v2760
      %v2769 = vcombine.high %v2767, %v2767
      %v2770 = vlaneseq
      %v2771 = vshrl.u32 %v2770, 7
      %v2772 = vsub.s32 0, %v2771
      %v2773 = vrot.slane %v2720, %v2772
      %v2774 = vlaneseq
      %v2775 = vshrl.u32 %v2774, 7
      %v2776 = vsub.s32 0, %v2775
      %v2777 = vrot.slane %v2734, %v2776
      %v2778 = vlaneseq
      %v2779 = vshrl.u32 %v2778, 7
      %v2780 = vsub.s32 0, %v2779
      %v2781 = vrot.slane %v2742, %v2780
      %v2782 = vlaneseq
      %v2783 = vshrl.u32 %v2782, 7
      %v2784 = vsub.s32 0, %v2783
      %v2785 = vrot.slane %v2744, %v2784
      %v2786 = vlaneseq
      %v2787 = vshrl.u32 %v2786, 7
      %v2788 = vsub.s32 0, %v2787
      %v2789 = vrot.slane %v2727, %v2788
      %v2790 = vlaneseq
      %v2791 = vshrl.u32 %v2790, 7
      %v2792 = vsub.s32 0, %v2791
      %v2793 = vrot.slane %v2741, %v2792
      %v2794 = vlaneseq
      %v2795 = vshrl.u32 %v2794, 7
      %v2796 = vsub.s32 0, %v2795
      %v2797 = vrot.slane %v2743, %v2796
      %v2798 = vlaneseq
      %v2799 = vshrl.u32 %v2798, 7
      %v2800 = vsub.s32 0, %v2799
      %v2801 = vrot.slane %v2745, %v2800
      %v2802 = vlaneseq
      %v2803 = vshrl.u32 %v2802, 7
      %v2804 = vsub.s32 0, %v2803
      %v2805 = vrot.slane %v2760, %v2804
      %v2806 = vlaneseq
      %v2807 = vshrl.u32 %v2806, 7
      %v2808 = vsub.s32 0, %v2807
      %v2809 = vrot.slane %v2767, %v2808
      %v2810 = vlaneseq
      %v2811 = vshrl.u32 %v2810, 7
      %v2812 = vsub.s32 0, %v2811
      %v2813 = vrot.slane %v2768, %v2812
      %v2814 = vlaneseq
      %v2815 = vshrl.u32 %v2814, 7
      %v2816 = vsub.s32 0, %v2815
      %v2817 = vrot.slane %v2769, %v2816
      %v2830 = vmul.f32 %v2773, %v2691
      %v2831 = vmul.f32 %v2777, %v2691
      %v2832 = vmul.f32 %v2781, %v2691
      %v2833 = vmul.f32 %v2785, %v2691
      %v2834 = vmul.f32 %v2789, %v2691
      %v2835 = vmul.f32 %v2793, %v2691
      %v2836 = vmul.f32 %v2797, %v2691
      %v2837 = vmul.f32 %v2801, %v2691
      %v2838 = vmul.f32 %v2805, %v2691
      %v2839 = vmul.f32 %v2809, %v2691
      %v2840 = vmul.f32 %v2813, %v2691
      %v2841 = vmul.f32 %v2817, %v2691
      %v2842 = vadd.f32 %v2674, %v2830
      %v2843 = vadd.f32 %v2675, %v2831
      %v2844 = vadd.f32 %v2676, %v2832
      %v2845 = vadd.f32 %v2677, %v2833
      %v2846 = vadd.f32 %v2678, %v2834
      %v2847 = vadd.f32 %v2679, %v2835
      %v2848 = vadd.f32 %v2680, %v2836
      %v2849 = vadd.f32 %v2681, %v2837
      %v2850 = vadd.f32 %v2682, %v2838
      %v2851 = vadd.f32 %v2683, %v2839
      %v2852 = vadd.f32 %v2684, %v2840
      %v2853 = vadd.f32 %v2685, %v2841
      %2854 = vrot.lane.b32.xlu0 %v328, 112
      %v2855 = vpop.permute.xlu0 %2854
      %2856 = vrot.lane.b32.xlu0 %v329, 112
      %v2857 = vpop.permute.xlu0 %2856
      %vm2858 = vcmp.lt.s32.totalorder %v337, 112
      %v2859 = vsel %vm2858, %v2855, %v2857
      %s2860 = scalar_lea.vmem %s1, 256
      %v2861 = vld [vmem:[%s2860] sm:$0xff]
      %v2862 = vld [vmem:[%s2860 + $0x8] sm:$0xf]
      %v2865 = vcombine.high %v2861, %v2861
      %v2867 = vunpack.c.l.s4 1966171168
      %v2868 = vunpack.c.0.s8 %v2867
      %v2869 = vlaneseq
      %v2870 = vshrl.u32 %v2869, 7
      %v2871 = vsub.s32 %v2868, %v2870
      %v2872 = vrot.slane %v2861, %v2871
      %v2874 = vunpack.c.l.s4 1966171168
      %v2875 = vunpack.c.0.s8 %v2874
      %v2876 = vlaneseq
      %v2877 = vshrl.u32 %v2876, 7
      %v2878 = vsub.s32 %v2875, %v2877
      %v2879 = vrot.slane %v2865, %v2878
      %v2880 = vcombine.high %v2872, %v2872
      %v2881 = vcombine.high %v2879, %v2879
      %v2883 = vunpack.c.l.s4 1966171168
      %v2884 = vunpack.c.0.s8 %v2883
      %v2885 = vlaneseq
      %v2886 = vshrl.u32 %v2885, 7
      %v2887 = vsub.s32 %v2884, %v2886
      %v2888 = vrot.slane %v2872, %v2887
      %v2890 = vunpack.c.l.s4 1966171168
      %v2891 = vunpack.c.0.s8 %v2890
      %v2892 = vlaneseq
      %v2893 = vshrl.u32 %v2892, 7
      %v2894 = vsub.s32 %v2891, %v2893
      %v2895 = vrot.slane %v2879, %v2894
      %v2897 = vunpack.c.l.s4 1966171168
      %v2898 = vunpack.c.0.s8 %v2897
      %v2899 = vlaneseq
      %v2900 = vshrl.u32 %v2899, 7
      %v2901 = vsub.s32 %v2898, %v2900
      %v2902 = vrot.slane %v2880, %v2901
      %v2904 = vunpack.c.l.s4 1966171168
      %v2905 = vunpack.c.0.s8 %v2904
      %v2906 = vlaneseq
      %v2907 = vshrl.u32 %v2906, 7
      %v2908 = vsub.s32 %v2905, %v2907
      %v2909 = vrot.slane %v2881, %v2908
      %v2910 = vcombine.high %v2888, %v2888
      %v2911 = vcombine.high %v2895, %v2895
      %v2912 = vcombine.high %v2902, %v2902
      %v2913 = vcombine.high %v2909, %v2909
      %v2915 = vunpack.c.l.s4 1966171168
      %v2916 = vunpack.c.0.s8 %v2915
      %v2917 = vlaneseq
      %v2918 = vshrl.u32 %v2917, 7
      %v2919 = vsub.s32 %v2916, %v2918
      %v2920 = vrot.slane %v2862, %v2919
      %v2921 = vcombine.high %v2920, %v2920
      %v2923 = vunpack.c.l.s4 1966171168
      %v2924 = vunpack.c.0.s8 %v2923
      %v2925 = vlaneseq
      %v2926 = vshrl.u32 %v2925, 7
      %v2927 = vsub.s32 %v2924, %v2926
      %v2928 = vrot.slane %v2920, %v2927
      %v2930 = vunpack.c.l.s4 1966171168
      %v2931 = vunpack.c.0.s8 %v2930
      %v2932 = vlaneseq
      %v2933 = vshrl.u32 %v2932, 7
      %v2934 = vsub.s32 %v2931, %v2933
      %v2935 = vrot.slane %v2921, %v2934
      %v2936 = vcombine.high %v2928, %v2928
      %v2937 = vcombine.high %v2935, %v2935
      %v2938 = vlaneseq
      %v2939 = vshrl.u32 %v2938, 7
      %v2940 = vsub.s32 0, %v2939
      %v2941 = vrot.slane %v2888, %v2940
      %v2942 = vlaneseq
      %v2943 = vshrl.u32 %v2942, 7
      %v2944 = vsub.s32 0, %v2943
      %v2945 = vrot.slane %v2902, %v2944
      %v2946 = vlaneseq
      %v2947 = vshrl.u32 %v2946, 7
      %v2948 = vsub.s32 0, %v2947
      %v2949 = vrot.slane %v2910, %v2948
      %v2950 = vlaneseq
      %v2951 = vshrl.u32 %v2950, 7
      %v2952 = vsub.s32 0, %v2951
      %v2953 = vrot.slane %v2912, %v2952
      %v2954 = vlaneseq
      %v2955 = vshrl.u32 %v2954, 7
      %v2956 = vsub.s32 0, %v2955
      %v2957 = vrot.slane %v2895, %v2956
      %v2958 = vlaneseq
      %v2959 = vshrl.u32 %v2958, 7
      %v2960 = vsub.s32 0, %v2959
      %v2961 = vrot.slane %v2909, %v2960
      %v2962 = vlaneseq
      %v2963 = vshrl.u32 %v2962, 7
      %v2964 = vsub.s32 0, %v2963
      %v2965 = vrot.slane %v2911, %v2964
      %v2966 = vlaneseq
      %v2967 = vshrl.u32 %v2966, 7
      %v2968 = vsub.s32 0, %v2967
      %v2969 = vrot.slane %v2913, %v2968
      %v2970 = vlaneseq
      %v2971 = vshrl.u32 %v2970, 7
      %v2972 = vsub.s32 0, %v2971
      %v2973 = vrot.slane %v2928, %v2972
      %v2974 = vlaneseq
      %v2975 = vshrl.u32 %v2974, 7
      %v2976 = vsub.s32 0, %v2975
      %v2977 = vrot.slane %v2935, %v2976
      %v2978 = vlaneseq
      %v2979 = vshrl.u32 %v2978, 7
      %v2980 = vsub.s32 0, %v2979
      %v2981 = vrot.slane %v2936, %v2980
      %v2982 = vlaneseq
      %v2983 = vshrl.u32 %v2982, 7
      %v2984 = vsub.s32 0, %v2983
      %v2985 = vrot.slane %v2937, %v2984
      %v2998 = vmul.f32 %v2941, %v2859
      %v2999 = vmul.f32 %v2945, %v2859
      %v3000 = vmul.f32 %v2949, %v2859
      %v3001 = vmul.f32 %v2953, %v2859
      %v3002 = vmul.f32 %v2957, %v2859
      %v3003 = vmul.f32 %v2961, %v2859
      %v3004 = vmul.f32 %v2965, %v2859
      %v3005 = vmul.f32 %v2969, %v2859
      %v3006 = vmul.f32 %v2973, %v2859
      %v3007 = vmul.f32 %v2977, %v2859
      %v3008 = vmul.f32 %v2981, %v2859
      %v3009 = vmul.f32 %v2985, %v2859
      %v3010 = vadd.f32 %v2842, %v2998
      %v3011 = vadd.f32 %v2843, %v2999
      %v3012 = vadd.f32 %v2844, %v3000
      %v3013 = vadd.f32 %v2845, %v3001
      %v3014 = vadd.f32 %v2846, %v3002
      %v3015 = vadd.f32 %v2847, %v3003
      %v3016 = vadd.f32 %v2848, %v3004
      %v3017 = vadd.f32 %v2849, %v3005
      %v3018 = vadd.f32 %v2850, %v3006
      %v3019 = vadd.f32 %v2851, %v3007
      %v3020 = vadd.f32 %v2852, %v3008
      %v3021 = vadd.f32 %v2853, %v3009
      %v3022 = vld [vmem:[%s2] sm:$0xff]
      %v3023 = vld [vmem:[%s2 + $0x8] sm:$0xf]
      %v3026 = vcombine.high %v3022, %v3022
      %v3028 = vunpack.c.l.s4 1966171168
      %v3029 = vunpack.c.0.s8 %v3028
      %v3030 = vlaneseq
      %v3031 = vshrl.u32 %v3030, 7
      %v3032 = vsub.s32 %v3029, %v3031
      %v3033 = vrot.slane %v3022, %v3032
      %v3035 = vunpack.c.l.s4 1966171168
      %v3036 = vunpack.c.0.s8 %v3035
      %v3037 = vlaneseq
      %v3038 = vshrl.u32 %v3037, 7
      %v3039 = vsub.s32 %v3036, %v3038
      %v3040 = vrot.slane %v3026, %v3039
      %v3041 = vcombine.high %v3033, %v3033
      %v3042 = vcombine.high %v3040, %v3040
      %v3044 = vunpack.c.l.s4 1966171168
      %v3045 = vunpack.c.0.s8 %v3044
      %v3046 = vlaneseq
      %v3047 = vshrl.u32 %v3046, 7
      %v3048 = vsub.s32 %v3045, %v3047
      %v3049 = vrot.slane %v3033, %v3048
      %v3051 = vunpack.c.l.s4 1966171168
      %v3052 = vunpack.c.0.s8 %v3051
      %v3053 = vlaneseq
      %v3054 = vshrl.u32 %v3053, 7
      %v3055 = vsub.s32 %v3052, %v3054
      %v3056 = vrot.slane %v3040, %v3055
      %v3058 = vunpack.c.l.s4 1966171168
      %v3059 = vunpack.c.0.s8 %v3058
      %v3060 = vlaneseq
      %v3061 = vshrl.u32 %v3060, 7
      %v3062 = vsub.s32 %v3059, %v3061
      %v3063 = vrot.slane %v3041, %v3062
      %v3065 = vunpack.c.l.s4 1966171168
      %v3066 = vunpack.c.0.s8 %v3065
      %v3067 = vlaneseq
      %v3068 = vshrl.u32 %v3067, 7
      %v3069 = vsub.s32 %v3066, %v3068
      %v3070 = vrot.slane %v3042, %v3069
      %v3071 = vcombine.high %v3049, %v3049
      %v3072 = vcombine.high %v3056, %v3056
      %v3073 = vcombine.high %v3063, %v3063
      %v3074 = vcombine.high %v3070, %v3070
      %v3076 = vunpack.c.l.s4 1966171168
      %v3077 = vunpack.c.0.s8 %v3076
      %v3078 = vlaneseq
      %v3079 = vshrl.u32 %v3078, 7
      %v3080 = vsub.s32 %v3077, %v3079
      %v3081 = vrot.slane %v3023, %v3080
      %v3082 = vcombine.high %v3081, %v3081
      %v3084 = vunpack.c.l.s4 1966171168
      %v3085 = vunpack.c.0.s8 %v3084
      %v3086 = vlaneseq
      %v3087 = vshrl.u32 %v3086, 7
      %v3088 = vsub.s32 %v3085, %v3087
      %v3089 = vrot.slane %v3081, %v3088
      %v3091 = vunpack.c.l.s4 1966171168
      %v3092 = vunpack.c.0.s8 %v3091
      %v3093 = vlaneseq
      %v3094 = vshrl.u32 %v3093, 7
      %v3095 = vsub.s32 %v3092, %v3094
      %v3096 = vrot.slane %v3082, %v3095
      %v3097 = vcombine.high %v3089, %v3089
      %v3098 = vcombine.high %v3096, %v3096
      %v3099 = vlaneseq
      %v3100 = vshrl.u32 %v3099, 7
      %v3101 = vsub.s32 0, %v3100
      %v3102 = vrot.slane %v3049, %v3101
      %v3103 = vlaneseq
      %v3104 = vshrl.u32 %v3103, 7
      %v3105 = vsub.s32 0, %v3104
      %v3106 = vrot.slane %v3063, %v3105
      %v3107 = vlaneseq
      %v3108 = vshrl.u32 %v3107, 7
      %v3109 = vsub.s32 0, %v3108
      %v3110 = vrot.slane %v3071, %v3109
      %v3111 = vlaneseq
      %v3112 = vshrl.u32 %v3111, 7
      %v3113 = vsub.s32 0, %v3112
      %v3114 = vrot.slane %v3073, %v3113
      %v3115 = vlaneseq
      %v3116 = vshrl.u32 %v3115, 7
      %v3117 = vsub.s32 0, %v3116
      %v3118 = vrot.slane %v3056, %v3117
      %v3119 = vlaneseq
      %v3120 = vshrl.u32 %v3119, 7
      %v3121 = vsub.s32 0, %v3120
      %v3122 = vrot.slane %v3070, %v3121
      %v3123 = vlaneseq
      %v3124 = vshrl.u32 %v3123, 7
      %v3125 = vsub.s32 0, %v3124
      %v3126 = vrot.slane %v3072, %v3125
      %v3127 = vlaneseq
      %v3128 = vshrl.u32 %v3127, 7
      %v3129 = vsub.s32 0, %v3128
      %v3130 = vrot.slane %v3074, %v3129
      %v3131 = vlaneseq
      %v3132 = vshrl.u32 %v3131, 7
      %v3133 = vsub.s32 0, %v3132
      %v3134 = vrot.slane %v3089, %v3133
      %v3135 = vlaneseq
      %v3136 = vshrl.u32 %v3135, 7
      %v3137 = vsub.s32 0, %v3136
      %v3138 = vrot.slane %v3096, %v3137
      %v3139 = vlaneseq
      %v3140 = vshrl.u32 %v3139, 7
      %v3141 = vsub.s32 0, %v3140
      %v3142 = vrot.slane %v3097, %v3141
      %v3143 = vlaneseq
      %v3144 = vshrl.u32 %v3143, 7
      %v3145 = vsub.s32 0, %v3144
      %v3146 = vrot.slane %v3098, %v3145
      %v3159 = vadd.f32 %v3010, %v3102
      %v3160 = vadd.f32 %v3011, %v3106
      %v3161 = vadd.f32 %v3012, %v3110
      %v3162 = vadd.f32 %v3013, %v3114
      %v3163 = vadd.f32 %v3014, %v3118
      %v3164 = vadd.f32 %v3015, %v3122
      %v3165 = vadd.f32 %v3016, %v3126
      %v3166 = vadd.f32 %v3017, %v3130
      %v3167 = vadd.f32 %v3018, %v3134
      %v3168 = vadd.f32 %v3019, %v3138
      %v3169 = vadd.f32 %v3020, %v3142
      %v3170 = vadd.f32 %v3021, %v3146
      %v3171 = vmax.f32 %v3159, 0.0
      %v3172 = vmax.f32 %v3160, 0.0
      %v3173 = vmax.f32 %v3161, 0.0
      %v3174 = vmax.f32 %v3162, 0.0
      %v3175 = vmax.f32 %v3163, 0.0
      %v3176 = vmax.f32 %v3164, 0.0
      %v3177 = vmax.f32 %v3165, 0.0
      %v3178 = vmax.f32 %v3166, 0.0
      %v3179 = vmax.f32 %v3167, 0.0
      %v3180 = vmax.f32 %v3168, 0.0
      %v3181 = vmax.f32 %v3169, 0.0
      %v3182 = vmax.f32 %v3170, 0.0
      %3183 = vst [vmem:[%s170] sm:$0x3] %v3171
      %3184 = vst [vmem:[%s170 + $0x2] sm:$0x3] %v3172
      %3185 = vst [vmem:[%s170 + $0x4] sm:$0x3] %v3173
      %3186 = vst [vmem:[%s170 + $0x6] sm:$0x3] %v3174
      %3187 = vst [vmem:[%s170 + $0x8] sm:$0x3] %v3175
      %3188 = vst [vmem:[%s170 + $0xa] sm:$0x3] %v3176
      %3189 = vst [vmem:[%s170 + $0xc] sm:$0x3] %v3177
      %3190 = vst [vmem:[%s170 + $0xe] sm:$0x3] %v3178
      %3191 = vst [vmem:[%s170 + $0x10] sm:$0x3] %v3179
      %3192 = vst [vmem:[%s170 + $0x12] sm:$0x3] %v3180
      %3193 = vst [vmem:[%s170 + $0x14] sm:$0x3] %v3181
      %3194 = vst [vmem:[%s170 + $0x16] sm:$0x3] %v3182
      %p3195 = scmp.lt.s32.totalorder %s14, 3
      %s3196 = scalar_select %p3195, %s14, 3
      %s3197 = smul.addr %s3196, 3
      %s3198 = smul.addr %s3197, 8
      %s3199 = scalar_lea.vmem %s3, %s3198
      // Predicated region
      $region33: #{xmodel_forward.2} parent=31 // pred_check
        %p3200 = pneg %p100
      $region34: #{xmodel_forward.2} parent=31 // pred_check_branch
        %3202 = sbr.rel (%p3200) target = $region36
      $region35: #{xmodel_forward.2} parent=31 // pred_region
        _
      $region36: #{xmodel_forward.2} parent=31 // pred_fallthru
        _
    $region32: #{xmodel_forward.2} parent=5 // pred_fallthru
      _
    %p3203 = scmp.le.s32.totalorder 2, %s9
    // Predicated region
    $region37: #{xmodel_forward.2} parent=5 // pred_check
      %p3204 = pneg %p3203
    $region38: #{xmodel_forward.2} parent=5 // pred_check_branch
      %3206 = sbr.rel (%p3204) target = $region40
    $region39: #{xmodel_forward.2} parent=5 // pred_region
      %s3207 = ssub.s32 %s9, 2
      // Predicated region
      $region41: #{xmodel_forward.2} parent=39 // pred_check
        %p3208 = pneg %p106
      $region42: #{xmodel_forward.2} parent=39 // pred_check_branch
        %3210 = sbr.rel (%p3208) target = $region44
      $region43: #{xmodel_forward.2} parent=39 // pred_region
        %p3211 = scmp.lt.s32.totalorder %s15, 3
        %s3212 = scalar_select %p3211, %s15, 3
        %s3213 = smul.addr %s3212, 3
        %s3214 = smul.addr %s3213, 8
        %s3215 = scalar_lea.vmem %s3, %s3214
      $region44: #{xmodel_forward.2} parent=39 // pred_fallthru
        _
    $region40: #{xmodel_forward.2} parent=5 // pred_fallthru
      _
  $region6: #{xmodel_forward.2} parent=0 // loop_footer
    %s13 = sadd.s32 1, %s9
  $region7: #{xmodel_forward.2} parent=0 // loop_footer_branch
    %8 = sbr.rel target = $region3
  $region8: #{xmodel_forward.2} parent=0 // loop_exit
    _

// kernel: xmodel_forward.3
$region0: #{xmodel_forward.3}
  #allocation0 [shape = 'u32[]', space=smem, size = 0x4, offset = 0x4, fixed_abs, tag = 'smem constant byte address 0x4 - core index']
  #allocation1 [shape = 'u32[144,128]{1,0:T(1,128)}', space=vmem, size = 0x12000, scoped, tag = 'internal scratch']
  #allocation2 [shape = 'f32[96,128]{1,0:T(8,128)}', space=vmem, size = 0xc000, scoped, tag = 'scratch operand']
  %s0 = inlined_call_operand.vmem [shape: f32[96,128], index: 0, kind: input, shape index: {}]
  %s1 = inlined_call_operand.hbm [shape: f32[96,128], index: 1, kind: input, shape index: {}]
  %s2 = inlined_call_operand.hbm [shape: f32[96,96], index: 2, kind: input, shape index: {}]
  %s3 = inlined_call_operand.hbm [shape: f32[2,12], index: 3, kind: input, shape index: {}]
  %s4 = inlined_call_operand.vmem [shape: f32[3,12,48,128], index: 4, kind: input, shape index: {}]
  %s5 = inlined_call_operand.vmem [shape: f32[3,48,128], index: 5, kind: input, shape index: {}]
  %s6 = inlined_call_operand.vmem [shape: bf16[3,128,128], index: 6, kind: input, shape index: {}]
  %s7 = inlined_call_operand.vmem [shape: bf16[3,128,256], index: 7, kind: input, shape index: {}]
  %s8 = inlined_call_operand.hbm [shape: bf16[3,2,64,128], index: 8, kind: input, shape index: {}]
  %s9 = inlined_call_operand.hbm [shape: bf16[3,128,128], index: 9, kind: input, shape index: {}]
  %s10 = inlined_call_operand.hbm [shape: bf16[3,128,128], index: 10, kind: input, shape index: {}]
  %s11 = inlined_call_operand.hbm [shape: f32[3,1,256], index: 11, kind: input, shape index: {}]
  %s12 = inlined_call_operand.hbm [shape: f32[3,8,128], index: 12, kind: input, shape index: {}]
  %s13 = inlined_call_operand.hbm [shape: f32[1,128], index: 13, kind: input, shape index: {}]
  %s14 = inlined_call_operand.hbm [shape: f32[1,128], index: 14, kind: input, shape index: {}]
  %s15 = inlined_call_operand.vmem [shape: bf16[128,64], index: 15, kind: input, shape index: {}]
  %s16 = inlined_call_operand.hbm [shape: f32[1,64], index: 16, kind: input, shape index: {}]
  %s17 = inlined_call_operand.vmem [shape: bf16[64,32], index: 17, kind: input, shape index: {}]
  %s18 = inlined_call_operand.hbm [shape: f32[1,32], index: 18, kind: input, shape index: {}]
  %s19 = inlined_call_operand.vmem [shape: bf16[32,10], index: 19, kind: input, shape index: {}]
  %s20 = inlined_call_operand.hbm [shape: f32[1,10], index: 20, kind: input, shape index: {}]
  %s21 = inlined_call_operand.hbm [shape: f32[2,10], index: 21, kind: output, shape index: {}]
  %s22 = sld [smem:[#allocation0]]
  $region177: #{xmodel_forward.3} parent=0
    _
  %s24 = ssub.s32 1, %s22
  %s25 = scalar_select 0, %s24, %s22
  $region1: #{xmodel_forward.3} parent=0
    #allocation3 [shape = 'u8[49152]{0}', space=vmem, size = 0xc000, scoped, tag = 'input window, operand 1, single buffered']
    #allocation4 [shape = 's32[2]{0}', space=sflag, size = 0x8, scoped, tag = 'scoped memory for xmodel_forward.3']
    #allocation5 [shape = 's32[2]{0}', space=sflag, size = 0x8, scoped, tag = 'scoped memory for xmodel_forward.3']
    #allocation6 [shape = 'u8[49152]{0}', space=vmem, size = 0xc000, scoped, tag = 'input window, operand 2, single buffered']
    #allocation7 [shape = 's32[1]{0}', space=sflag, size = 0x4, scoped, tag = 'scoped memory for xmodel_forward.3']
    #allocation8 [shape = 'u8[1024]{0}', space=vmem, size = 0x400, scoped, tag = 'input window, operand 3, single buffered']
    #allocation9 [shape = 'u8[65536]{0}', space=vmem, size = 0x10000, scoped, tag = 'input window, operand 8']
    #allocation10 [shape = 's32[2]{0}', space=sflag, size = 0x8, scoped, tag = 'scoped memory for xmodel_forward.3']
    #allocation11 [shape = 'u8[65536]{0}', space=vmem, size = 0x10000, scoped, tag = 'input window, operand 9']
    #allocation12 [shape = 'u8[65536]{0}', space=vmem, size = 0x10000, scoped, tag = 'input window, operand 10']
    #allocation13 [shape = 's32[2]{0}', space=sflag, size = 0x8, scoped, tag = 'scoped memory for xmodel_forward.3']
    #allocation14 [shape = 'u8[2048]{0}', space=vmem, size = 0x800, scoped, tag = 'input window, operand 11']
    #allocation15 [shape = 'u8[8192]{0}', space=vmem, size = 0x2000, scoped, tag = 'input window, operand 12']
    #allocation16 [shape = 's32[2]{0}', space=sflag, size = 0x8, scoped, tag = 'scoped memory for xmodel_forward.3']
    #allocation17 [shape = 'u8[512]{0}', space=vmem, size = 0x400, scoped, tag = 'input window, operand 13, single buffered']
    #allocation18 [shape = 'u8[512]{0}', space=vmem, size = 0x400, scoped, tag = 'input window, operand 14, single buffered']
    #allocation19 [shape = 's32[1]{0}', space=sflag, size = 0x4, scoped, tag = 'scoped memory for xmodel_forward.3']
    #allocation20 [shape = 'u8[512]{0}', space=vmem, size = 0x400, scoped, tag = 'input window, operand 16, single buffered']
    #allocation21 [shape = 'u8[512]{0}', space=vmem, size = 0x400, scoped, tag = 'input window, operand 18, single buffered']
    #allocation22 [shape = 's32[1]{0}', space=sflag, size = 0x4, scoped, tag = 'scoped memory for xmodel_forward.3']
    #allocation23 [shape = 'u8[512]{0}', space=vmem, size = 0x400, scoped, tag = 'input window, operand 20, single buffered']
    #allocation24 [shape = 'u8[1024]{0}', space=vmem, size = 0x400, scoped, tag = 'output window, operand 0, single buffered']
    %26 = vsyncpa [#allocation4], 0
    %27 = vsyncpa [#allocation7], 0
    %28 = vsyncpa [#allocation10], 0
    %s29 = scalar_lea.sflag [#allocation10], 1
    %30 = vsyncpa %s29, 0
    %31 = vsyncpa [#allocation13], 0
    %s32 = scalar_lea.sflag [#allocation13], 1
    %33 = vsyncpa %s32, 0
    %34 = vsyncpa [#allocation16], 0
    %s35 = scalar_lea.sflag [#allocation16], 1
    %36 = vsyncpa %s35, 0
    %37 = vsyncpa [#allocation19], 0
    %38 = vsyncpa [#allocation22], 0
    %39 = vsyncpa [#allocation5], 0
    loop: start=0, step=1, limit=5
    $region2: #{xmodel_forward.3} parent=1 // loop_pre_header
      _
    $region3: #{xmodel_forward.3} parent=1 // loop_header
      %s41 = sphi 0, %s45
      %p42 = scmp.ge.s32.totalorder %s41, 5
      %s49 = sphi 0, %s49
      %s51 = sphi 0, %s49
      %s52 = sphi 0, %s51
      %s66 = sphi 0, %s52
      %s70 = sphi 0, %s70
      %s72 = sphi 0, %s70
      %s73 = sphi 0, %s72
      %s87 = sphi 0, %s73
      %s91 = sphi 0, %s91
      %s93 = sphi 0, %s91
      %s94 = sphi 0, %s93
      %s108 = sphi 0, %s94
      %s112 = sphi 0, %s112
      %s114 = sphi 0, %s112
      %s115 = sphi 0, %s114
      %s129 = sphi 0, %s115
      %s135 = sphi 0, %s137
      %s138 = sphi 0, %s135
      %s139 = sphi 0, %s138
      %s155 = sphi 0, %s139
      %s161 = sphi 0, %s163
      %s164 = sphi 0, %s161
      %s165 = sphi 0, %s164
      %s181 = sphi 0, %s165
      %s187 = sphi 0, %s189
      %s190 = sphi 0, %s187
      %s191 = sphi 0, %s190
      %s207 = sphi 0, %s191
      %s213 = sphi 0, %s215
      %s216 = sphi 0, %s213
      %s217 = sphi 0, %s216
      %s233 = sphi 0, %s217
      %s239 = sphi 0, %s241
      %s242 = sphi 0, %s239
      %s243 = sphi 0, %s242
      %s259 = sphi 0, %s243
      %s265 = sphi 0, %s267
      %s268 = sphi 0, %s265
      %s269 = sphi 0, %s268
      %s285 = sphi 0, %s269
      %s291 = sphi 0, %s293
      %s294 = sphi 0, %s291
      %s295 = sphi 0, %s294
      %s311 = sphi 0, %s295
      %s317 = sphi 0, %s319
      %s320 = sphi 0, %s317
      %s321 = sphi 0, %s320
      %s337 = sphi 0, %s321
      %s343 = sphi 0, %s345
      %s346 = sphi 0, %s343
      %s347 = sphi 0, %s346
      %s363 = sphi 0, %s347
      %s367 = sphi 0, %s367
      %s369 = sphi 0, %s367
      %s370 = sphi 0, %s369
      %s384 = sphi 0, %s370
      %s388 = sphi 0, %s388
      %s390 = sphi 0, %s388
      %s391 = sphi 0, %s390
      %s405 = sphi 0, %s391
      %s409 = sphi 0, %s409
      %s411 = sphi 0, %s409
      %s412 = sphi 0, %s411
      %s426 = sphi 0, %s412
      %s430 = sphi 0, %s430
      %s432 = sphi 0, %s430
      %s433 = sphi 0, %s432
      %s447 = sphi 0, %s433
      %s451 = sphi 0, %s451
      %s453 = sphi 0, %s451
      %s454 = sphi 0, %s453
      %s468 = sphi 0, %s454
      %s472 = sphi 0, %s472
      %s474 = sphi 0, %s472
      %s475 = sphi 0, %s474
      %s489 = sphi 0, %s475
      %s493 = sphi 0, %s493
      %s495 = sphi 0, %s493
      %s496 = sphi 0, %s495
      %s510 = sphi 0, %s496
      %s514 = sphi 0, %s514
      %s516 = sphi 0, %s514
      %s517 = sphi 0, %s516
      %s531 = sphi 0, %s517
      %s535 = sphi 0, %s535
      %s537 = sphi 0, %s535
      %s538 = sphi 0, %s537
      %s552 = sphi 0, %s538
    $region4: #{xmodel_forward.3} parent=1 // loop_header_branch
      %44 = sbr.rel (%p42) target = $region8
    $region5: #{xmodel_forward.3} parent=1 // loop_body
      %s46 = ssub.s32 %s41, 1
      %s47 = ssub.s32 %s41, 2
      %s48 = sadd.s32 %s41, 1
      %s50 = sadd.s32 %s49, 1
      %p53 = scmp.eq.s32.totalorder %s41, 2
      %p54 = scmp.ne.s32.totalorder %s49, %s51
      %p55 = scmp.eq.s32.totalorder %s41, 0
      %p56 = por %p54, %p55
      %p57 = scmp.ne.s32.totalorder %s49, %s51
      %p58 = scmp.eq.s32.totalorder %s46, 2
      %p59 = por %p57, %p58
      %p60 = scmp.ne.s32.totalorder %s51, %s52
      %p61 = scmp.eq.s32.totalorder %s46, 0
      %p62 = por %p60, %p61
      %p63 = scmp.ne.s32.totalorder %s51, %s52
      %p64 = scmp.eq.s32.totalorder %s47, 2
      %p65 = por %p63, %p64
      %p67 = scmp.ne.s32.totalorder %s52, %s66
      %p68 = scmp.eq.s32.totalorder %s47, 0
      %p69 = por %p67, %p68
      %s71 = sadd.s32 %s70, 1
      %p74 = scmp.eq.s32.totalorder %s41, 2
      %p75 = scmp.ne.s32.totalorder %s70, %s72
      %p76 = scmp.eq.s32.totalorder %s41, 0
      %p77 = por %p75, %p76
      %p78 = scmp.ne.s32.totalorder %s70, %s72
      %p79 = scmp.eq.s32.totalorder %s46, 2
      %p80 = por %p78, %p79
      %p81 = scmp.ne.s32.totalorder %s72, %s73
      %p82 = scmp.eq.s32.totalorder %s46, 0
      %p83 = por %p81, %p82
      %p84 = scmp.ne.s32.totalorder %s72, %s73
      %p85 = scmp.eq.s32.totalorder %s47, 2
      %p86 = por %p84, %p85
      %p88 = scmp.ne.s32.totalorder %s73, %s87
      %p89 = scmp.eq.s32.totalorder %s47, 0
      %p90 = por %p88, %p89
      %s92 = sadd.s32 %s91, 1
      %p95 = scmp.eq.s32.totalorder %s41, 2
      %p96 = scmp.ne.s32.totalorder %s91, %s93
      %p97 = scmp.eq.s32.totalorder %s41, 0
      %p98 = por %p96, %p97
      %p99 = scmp.ne.s32.totalorder %s91, %s93
      %p100 = scmp.eq.s32.totalorder %s46, 2
      %p101 = por %p99, %p100
      %p102 = scmp.ne.s32.totalorder %s93, %s94
      %p103 = scmp.eq.s32.totalorder %s46, 0
      %p104 = por %p102, %p103
      %p105 = scmp.ne.s32.totalorder %s93, %s94
      %p106 = scmp.eq.s32.totalorder %s47, 2
      %p107 = por %p105, %p106
      %p109 = scmp.ne.s32.totalorder %s94, %s108
      %p110 = scmp.eq.s32.totalorder %s47, 0
      %p111 = por %p109, %p110
      %s113 = sadd.s32 %s112, 1
      %p116 = scmp.eq.s32.totalorder %s41, 2
      %p117 = scmp.ne.s32.totalorder %s112, %s114
      %p118 = scmp.eq.s32.totalorder %s41, 0
      %p119 = por %p117, %p118
      %p120 = scmp.ne.s32.totalorder %s112, %s114
      %p121 = scmp.eq.s32.totalorder %s46, 2
      %p122 = por %p120, %p121
      %p123 = scmp.ne.s32.totalorder %s114, %s115
      %p124 = scmp.eq.s32.totalorder %s46, 0
      %p125 = por %p123, %p124
      %p126 = scmp.ne.s32.totalorder %s114, %s115
      %p127 = scmp.eq.s32.totalorder %s47, 2
      %p128 = por %p126, %p127
      %p130 = scmp.ne.s32.totalorder %s115, %s129
      %p131 = scmp.eq.s32.totalorder %s47, 0
      %p132 = por %p130, %p131
      %s133 = ssub.s32 %s41, %s48
      %p134 = scmp.eq.s32.totalorder %s133, 0
      %s136 = sadd.s32 %s135, 1
      %s137 = scalar_select %p134, %s135, %s136
      %p140 = pneg %p134
      %p141 = scmp.eq.s32.totalorder %s41, 2
      %p142 = por %p140, %p141
      %p143 = scmp.ne.s32.totalorder %s135, %s138
      %p144 = scmp.eq.s32.totalorder %s41, 0
      %p145 = por %p143, %p144
      %p146 = scmp.ne.s32.totalorder %s135, %s138
      %p147 = scmp.eq.s32.totalorder %s46, 2
      %p148 = por %p146, %p147
      %p149 = scmp.ne.s32.totalorder %s138, %s139
      %p150 = scmp.eq.s32.totalorder %s46, 0
      %p151 = por %p149, %p150
      %p152 = scmp.ne.s32.totalorder %s138, %s139
      %p153 = scmp.eq.s32.totalorder %s47, 2
      %p154 = por %p152, %p153
      %p156 = scmp.ne.s32.totalorder %s139, %s155
      %p157 = scmp.eq.s32.totalorder %s47, 0
      %p158 = por %p156, %p157
      %s159 = ssub.s32 %s41, %s48
      %p160 = scmp.eq.s32.totalorder %s159, 0
      %s162 = sadd.s32 %s161, 1
      %s163 = scalar_select %p160, %s161, %s162
      %p166 = pneg %p160
      %p167 = scmp.eq.s32.totalorder %s41, 2
      %p168 = por %p166, %p167
      %p169 = scmp.ne.s32.totalorder %s161, %s164
      %p170 = scmp.eq.s32.totalorder %s41, 0
      %p171 = por %p169, %p170
      %p172 = scmp.ne.s32.totalorder %s161, %s164
      %p173 = scmp.eq.s32.totalorder %s46, 2
      %p174 = por %p172, %p173
      %p175 = scmp.ne.s32.totalorder %s164, %s165
      %p176 = scmp.eq.s32.totalorder %s46, 0
      %p177 = por %p175, %p176
      %p178 = scmp.ne.s32.totalorder %s164, %s165
      %p179 = scmp.eq.s32.totalorder %s47, 2
      %p180 = por %p178, %p179
      %p182 = scmp.ne.s32.totalorder %s165, %s181
      %p183 = scmp.eq.s32.totalorder %s47, 0
      %p184 = por %p182, %p183
      %s185 = ssub.s32 %s41, %s48
      %p186 = scmp.eq.s32.totalorder %s185, 0
      %s188 = sadd.s32 %s187, 1
      %s189 = scalar_select %p186, %s187, %s188
      %p192 = pneg %p186
      %p193 = scmp.eq.s32.totalorder %s41, 2
      %p194 = por %p192, %p193
      %p195 = scmp.ne.s32.totalorder %s187, %s190
      %p196 = scmp.eq.s32.totalorder %s41, 0
      %p197 = por %p195, %p196
      %p198 = scmp.ne.s32.totalorder %s187, %s190
      %p199 = scmp.eq.s32.totalorder %s46, 2
      %p200 = por %p198, %p199
      %p201 = scmp.ne.s32.totalorder %s190, %s191
      %p202 = scmp.eq.s32.totalorder %s46, 0
      %p203 = por %p201, %p202
      %p204 = scmp.ne.s32.totalorder %s190, %s191
      %p205 = scmp.eq.s32.totalorder %s47, 2
      %p206 = por %p204, %p205
      %p208 = scmp.ne.s32.totalorder %s191, %s207
      %p209 = scmp.eq.s32.totalorder %s47, 0
      %p210 = por %p208, %p209
      %s211 = ssub.s32 %s41, %s48
      %p212 = scmp.eq.s32.totalorder %s211, 0
      %s214 = sadd.s32 %s213, 1
      %s215 = scalar_select %p212, %s213, %s214
      %p218 = pneg %p212
      %p219 = scmp.eq.s32.totalorder %s41, 2
      %p220 = por %p218, %p219
      %p221 = scmp.ne.s32.totalorder %s213, %s216
      %p222 = scmp.eq.s32.totalorder %s41, 0
      %p223 = por %p221, %p222
      %p224 = scmp.ne.s32.totalorder %s213, %s216
      %p225 = scmp.eq.s32.totalorder %s46, 2
      %p226 = por %p224, %p225
      %p227 = scmp.ne.s32.totalorder %s216, %s217
      %p228 = scmp.eq.s32.totalorder %s46, 0
      %p229 = por %p227, %p228
      %p230 = scmp.ne.s32.totalorder %s216, %s217
      %p231 = scmp.eq.s32.totalorder %s47, 2
      %p232 = por %p230, %p231
      %p234 = scmp.ne.s32.totalorder %s217, %s233
      %p235 = scmp.eq.s32.totalorder %s47, 0
      %p236 = por %p234, %p235
      %s237 = ssub.s32 %s41, %s48
      %p238 = scmp.eq.s32.totalorder %s237, 0
      %s240 = sadd.s32 %s239, 1
      %s241 = scalar_select %p238, %s239, %s240
      %p244 = pneg %p238
      %p245 = scmp.eq.s32.totalorder %s41, 2
      %p246 = por %p244, %p245
      %p247 = scmp.ne.s32.totalorder %s239, %s242
      %p248 = scmp.eq.s32.totalorder %s41, 0
      %p249 = por %p247, %p248
      %p250 = scmp.ne.s32.totalorder %s239, %s242
      %p251 = scmp.eq.s32.totalorder %s46, 2
      %p252 = por %p250, %p251
      %p253 = scmp.ne.s32.totalorder %s242, %s243
      %p254 = scmp.eq.s32.totalorder %s46, 0
      %p255 = por %p253, %p254
      %p256 = scmp.ne.s32.totalorder %s242, %s243
      %p257 = scmp.eq.s32.totalorder %s47, 2
      %p258 = por %p256, %p257
      %p260 = scmp.ne.s32.totalorder %s243, %s259
      %p261 = scmp.eq.s32.totalorder %s47, 0
      %p262 = por %p260, %p261
      %s263 = ssub.s32 %s41, %s48
      %p264 = scmp.eq.s32.totalorder %s263, 0
      %s266 = sadd.s32 %s265, 1
      %s267 = scalar_select %p264, %s265, %s266
      %p270 = pneg %p264
      %p271 = scmp.eq.s32.totalorder %s41, 2
      %p272 = por %p270, %p271
      %p273 = scmp.ne.s32.totalorder %s265, %s268
      %p274 = scmp.eq.s32.totalorder %s41, 0
      %p275 = por %p273, %p274
      %p276 = scmp.ne.s32.totalorder %s265, %s268
      %p277 = scmp.eq.s32.totalorder %s46, 2
      %p278 = por %p276, %p277
      %p279 = scmp.ne.s32.totalorder %s268, %s269
      %p280 = scmp.eq.s32.totalorder %s46, 0
      %p281 = por %p279, %p280
      %p282 = scmp.ne.s32.totalorder %s268, %s269
      %p283 = scmp.eq.s32.totalorder %s47, 2
      %p284 = por %p282, %p283
      %p286 = scmp.ne.s32.totalorder %s269, %s285
      %p287 = scmp.eq.s32.totalorder %s47, 0
      %p288 = por %p286, %p287
      %s289 = ssub.s32 %s41, %s48
      %p290 = scmp.eq.s32.totalorder %s289, 0
      %s292 = sadd.s32 %s291, 1
      %s293 = scalar_select %p290, %s291, %s292
      %p296 = pneg %p290
      %p297 = scmp.eq.s32.totalorder %s41, 2
      %p298 = por %p296, %p297
      %p299 = scmp.ne.s32.totalorder %s291, %s294
      %p300 = scmp.eq.s32.totalorder %s41, 0
      %p301 = por %p299, %p300
      %p302 = scmp.ne.s32.totalorder %s291, %s294
      %p303 = scmp.eq.s32.totalorder %s46, 2
      %p304 = por %p302, %p303
      %p305 = scmp.ne.s32.totalorder %s294, %s295
      %p306 = scmp.eq.s32.totalorder %s46, 0
      %p307 = por %p305, %p306
      %p308 = scmp.ne.s32.totalorder %s294, %s295
      %p309 = scmp.eq.s32.totalorder %s47, 2
      %p310 = por %p308, %p309
      %p312 = scmp.ne.s32.totalorder %s295, %s311
      %p313 = scmp.eq.s32.totalorder %s47, 0
      %p314 = por %p312, %p313
      %s315 = ssub.s32 %s41, %s48
      %p316 = scmp.eq.s32.totalorder %s315, 0
      %s318 = sadd.s32 %s317, 1
      %s319 = scalar_select %p316, %s317, %s318
      %p322 = pneg %p316
      %p323 = scmp.eq.s32.totalorder %s41, 2
      %p324 = por %p322, %p323
      %p325 = scmp.ne.s32.totalorder %s317, %s320
      %p326 = scmp.eq.s32.totalorder %s41, 0
      %p327 = por %p325, %p326
      %p328 = scmp.ne.s32.totalorder %s317, %s320
      %p329 = scmp.eq.s32.totalorder %s46, 2
      %p330 = por %p328, %p329
      %p331 = scmp.ne.s32.totalorder %s320, %s321
      %p332 = scmp.eq.s32.totalorder %s46, 0
      %p333 = por %p331, %p332
      %p334 = scmp.ne.s32.totalorder %s320, %s321
      %p335 = scmp.eq.s32.totalorder %s47, 2
      %p336 = por %p334, %p335
      %p338 = scmp.ne.s32.totalorder %s321, %s337
      %p339 = scmp.eq.s32.totalorder %s47, 0
      %p340 = por %p338, %p339
      %s341 = ssub.s32 %s41, %s48
      %p342 = scmp.eq.s32.totalorder %s341, 0
      %s344 = sadd.s32 %s343, 1
      %s345 = scalar_select %p342, %s343, %s344
      %p348 = pneg %p342
      %p349 = scmp.eq.s32.totalorder %s41, 2
      %p350 = por %p348, %p349
      %p351 = scmp.ne.s32.totalorder %s343, %s346
      %p352 = scmp.eq.s32.totalorder %s41, 0
      %p353 = por %p351, %p352
      %p354 = scmp.ne.s32.totalorder %s343, %s346
      %p355 = scmp.eq.s32.totalorder %s46, 2
      %p356 = por %p354, %p355
      %p357 = scmp.ne.s32.totalorder %s346, %s347
      %p358 = scmp.eq.s32.totalorder %s46, 0
      %p359 = por %p357, %p358
      %p360 = scmp.ne.s32.totalorder %s346, %s347
      %p361 = scmp.eq.s32.totalorder %s47, 2
      %p362 = por %p360, %p361
      %p364 = scmp.ne.s32.totalorder %s347, %s363
      %p365 = scmp.eq.s32.totalorder %s47, 0
      %p366 = por %p364, %p365
      %s368 = sadd.s32 %s367, 1
      %p371 = scmp.eq.s32.totalorder %s41, 2
      %p372 = scmp.ne.s32.totalorder %s367, %s369
      %p373 = scmp.eq.s32.totalorder %s41, 0
      %p374 = por %p372, %p373
      %p375 = scmp.ne.s32.totalorder %s367, %s369
      %p376 = scmp.eq.s32.totalorder %s46, 2
      %p377 = por %p375, %p376
      %p378 = scmp.ne.s32.totalorder %s369, %s370
      %p379 = scmp.eq.s32.totalorder %s46, 0
      %p380 = por %p378, %p379
      %p381 = scmp.ne.s32.totalorder %s369, %s370
      %p382 = scmp.eq.s32.totalorder %s47, 2
      %p383 = por %p381, %p382
      %p385 = scmp.ne.s32.totalorder %s370, %s384
      %p386 = scmp.eq.s32.totalorder %s47, 0
      %p387 = por %p385, %p386
      %s389 = sadd.s32 %s388, 1
      %p392 = scmp.eq.s32.totalorder %s41, 2
      %p393 = scmp.ne.s32.totalorder %s388, %s390
      %p394 = scmp.eq.s32.totalorder %s41, 0
      %p395 = por %p393, %p394
      %p396 = scmp.ne.s32.totalorder %s388, %s390
      %p397 = scmp.eq.s32.totalorder %s46, 2
      %p398 = por %p396, %p397
      %p399 = scmp.ne.s32.totalorder %s390, %s391
      %p400 = scmp.eq.s32.totalorder %s46, 0
      %p401 = por %p399, %p400
      %p402 = scmp.ne.s32.totalorder %s390, %s391
      %p403 = scmp.eq.s32.totalorder %s47, 2
      %p404 = por %p402, %p403
      %p406 = scmp.ne.s32.totalorder %s391, %s405
      %p407 = scmp.eq.s32.totalorder %s47, 0
      %p408 = por %p406, %p407
      %s410 = sadd.s32 %s409, 1
      %p413 = scmp.eq.s32.totalorder %s41, 2
      %p414 = scmp.ne.s32.totalorder %s409, %s411
      %p415 = scmp.eq.s32.totalorder %s41, 0
      %p416 = por %p414, %p415
      %p417 = scmp.ne.s32.totalorder %s409, %s411
      %p418 = scmp.eq.s32.totalorder %s46, 2
      %p419 = por %p417, %p418
      %p420 = scmp.ne.s32.totalorder %s411, %s412
      %p421 = scmp.eq.s32.totalorder %s46, 0
      %p422 = por %p420, %p421
      %p423 = scmp.ne.s32.totalorder %s411, %s412
      %p424 = scmp.eq.s32.totalorder %s47, 2
      %p425 = por %p423, %p424
      %p427 = scmp.ne.s32.totalorder %s412, %s426
      %p428 = scmp.eq.s32.totalorder %s47, 0
      %p429 = por %p427, %p428
      %s431 = sadd.s32 %s430, 1
      %p434 = scmp.eq.s32.totalorder %s41, 2
      %p435 = scmp.ne.s32.totalorder %s430, %s432
      %p436 = scmp.eq.s32.totalorder %s41, 0
      %p437 = por %p435, %p436
      %p438 = scmp.ne.s32.totalorder %s430, %s432
      %p439 = scmp.eq.s32.totalorder %s46, 2
      %p440 = por %p438, %p439
      %p441 = scmp.ne.s32.totalorder %s432, %s433
      %p442 = scmp.eq.s32.totalorder %s46, 0
      %p443 = por %p441, %p442
      %p444 = scmp.ne.s32.totalorder %s432, %s433
      %p445 = scmp.eq.s32.totalorder %s47, 2
      %p446 = por %p444, %p445
      %p448 = scmp.ne.s32.totalorder %s433, %s447
      %p449 = scmp.eq.s32.totalorder %s47, 0
      %p450 = por %p448, %p449
      %s452 = sadd.s32 %s451, 1
      %p455 = scmp.eq.s32.totalorder %s41, 2
      %p456 = scmp.ne.s32.totalorder %s451, %s453
      %p457 = scmp.eq.s32.totalorder %s41, 0
      %p458 = por %p456, %p457
      %p459 = scmp.ne.s32.totalorder %s451, %s453
      %p460 = scmp.eq.s32.totalorder %s46, 2
      %p461 = por %p459, %p460
      %p462 = scmp.ne.s32.totalorder %s453, %s454
      %p463 = scmp.eq.s32.totalorder %s46, 0
      %p464 = por %p462, %p463
      %p465 = scmp.ne.s32.totalorder %s453, %s454
      %p466 = scmp.eq.s32.totalorder %s47, 2
      %p467 = por %p465, %p466
      %p469 = scmp.ne.s32.totalorder %s454, %s468
      %p470 = scmp.eq.s32.totalorder %s47, 0
      %p471 = por %p469, %p470
      %s473 = sadd.s32 %s472, 1
      %p476 = scmp.eq.s32.totalorder %s41, 2
      %p477 = scmp.ne.s32.totalorder %s472, %s474
      %p478 = scmp.eq.s32.totalorder %s41, 0
      %p479 = por %p477, %p478
      %p480 = scmp.ne.s32.totalorder %s472, %s474
      %p481 = scmp.eq.s32.totalorder %s46, 2
      %p482 = por %p480, %p481
      %p483 = scmp.ne.s32.totalorder %s474, %s475
      %p484 = scmp.eq.s32.totalorder %s46, 0
      %p485 = por %p483, %p484
      %p486 = scmp.ne.s32.totalorder %s474, %s475
      %p487 = scmp.eq.s32.totalorder %s47, 2
      %p488 = por %p486, %p487
      %p490 = scmp.ne.s32.totalorder %s475, %s489
      %p491 = scmp.eq.s32.totalorder %s47, 0
      %p492 = por %p490, %p491
      %s494 = sadd.s32 %s493, 1
      %p497 = scmp.eq.s32.totalorder %s41, 2
      %p498 = scmp.ne.s32.totalorder %s493, %s495
      %p499 = scmp.eq.s32.totalorder %s41, 0
      %p500 = por %p498, %p499
      %p501 = scmp.ne.s32.totalorder %s493, %s495
      %p502 = scmp.eq.s32.totalorder %s46, 2
      %p503 = por %p501, %p502
      %p504 = scmp.ne.s32.totalorder %s495, %s496
      %p505 = scmp.eq.s32.totalorder %s46, 0
      %p506 = por %p504, %p505
      %p507 = scmp.ne.s32.totalorder %s495, %s496
      %p508 = scmp.eq.s32.totalorder %s47, 2
      %p509 = por %p507, %p508
      %p511 = scmp.ne.s32.totalorder %s496, %s510
      %p512 = scmp.eq.s32.totalorder %s47, 0
      %p513 = por %p511, %p512
      %s515 = sadd.s32 %s514, 1
      %p518 = scmp.eq.s32.totalorder %s41, 2
      %p519 = scmp.ne.s32.totalorder %s514, %s516
      %p520 = scmp.eq.s32.totalorder %s41, 0
      %p521 = por %p519, %p520
      %p522 = scmp.ne.s32.totalorder %s514, %s516
      %p523 = scmp.eq.s32.totalorder %s46, 2
      %p524 = por %p522, %p523
      %p525 = scmp.ne.s32.totalorder %s516, %s517
      %p526 = scmp.eq.s32.totalorder %s46, 0
      %p527 = por %p525, %p526
      %p528 = scmp.ne.s32.totalorder %s516, %s517
      %p529 = scmp.eq.s32.totalorder %s47, 2
      %p530 = por %p528, %p529
      %p532 = scmp.ne.s32.totalorder %s517, %s531
      %p533 = scmp.eq.s32.totalorder %s47, 0
      %p534 = por %p532, %p533
      %s536 = sadd.s32 %s535, 1
      %p539 = scmp.eq.s32.totalorder %s41, 2
      %p540 = scmp.ne.s32.totalorder %s535, %s537
      %p541 = scmp.eq.s32.totalorder %s41, 0
      %p542 = por %p540, %p541
      %p543 = scmp.ne.s32.totalorder %s535, %s537
      %p544 = scmp.eq.s32.totalorder %s46, 2
      %p545 = por %p543, %p544
      %p546 = scmp.ne.s32.totalorder %s537, %s538
      %p547 = scmp.eq.s32.totalorder %s46, 0
      %p548 = por %p546, %p547
      %p549 = scmp.ne.s32.totalorder %s537, %s538
      %p550 = scmp.eq.s32.totalorder %s47, 2
      %p551 = por %p549, %p550
      %p553 = scmp.ne.s32.totalorder %s538, %s552
      %p554 = scmp.eq.s32.totalorder %s47, 0
      %p555 = por %p553, %p554
      %p556 = scmp.le.s32.totalorder 1, %s41
      %p557 = scmp.lt.s32.totalorder %s41, 4
      %p558 = pnand %p556, %p557
      %p559 = pneg %p558
      // Predicated region
      $region9: #{xmodel_forward.3} parent=5 // pred_check
        _
      $region10: #{xmodel_forward.3} parent=5 // pred_check_branch
        %561 = sbr.rel (%p558) target = $region12
      $region11: #{xmodel_forward.3} parent=5 // pred_region
        %s562 = ssub.s32 %s41, 1
        // Predicated region
        $region13: #{xmodel_forward.3} parent=11 // pred_check
          %p563 = pneg %p62
        $region14: #{xmodel_forward.3} parent=11 // pred_check_branch
          %565 = sbr.rel (%p563) target = $region16
        $region15: #{xmodel_forward.3} parent=11 // pred_region
          _
        $region16: #{xmodel_forward.3} parent=11 // pred_fallthru
          _
        // Predicated region
        $region17: #{xmodel_forward.3} parent=11 // pred_check
          %p566 = pneg %p83
        $region18: #{xmodel_forward.3} parent=11 // pred_check_branch
          %568 = sbr.rel (%p566) target = $region20
        $region19: #{xmodel_forward.3} parent=11 // pred_region
          %s570 = ssub.s32 1536, 1536
          %571 = vsyncadd [#allocation4], %s570
          %s572 = sshll.u32 [#allocation3], 4
          %s573 = int_to_ptr.vmem [resolvable:$true] %s572
          %578 = dma.hbm_to_vmem [thread:$0]  %s1, 1536, %s573, [#allocation4], 128, 128, 8
        $region20: #{xmodel_forward.3} parent=11 // pred_fallthru
          _
        // Predicated region
        $region21: #{xmodel_forward.3} parent=11 // pred_check
          %p579 = pneg %p104
        $region22: #{xmodel_forward.3} parent=11 // pred_check_branch
          %581 = sbr.rel (%p579) target = $region24
        $region23: #{xmodel_forward.3} parent=11 // pred_region
          %s583 = ssub.s32 1536, 1536
          %584 = vsyncadd [#allocation7], %s583
          %s585 = sshll.u32 [#allocation6], 4
          %s586 = int_to_ptr.vmem [resolvable:$true] %s585
          %591 = dma.hbm_to_vmem [thread:$0]  %s2, 1536, %s586, [#allocation7], 128, 128, 8
        $region24: #{xmodel_forward.3} parent=11 // pred_fallthru
          _
        // Predicated region
        $region25: #{xmodel_forward.3} parent=11 // pred_check
          %p592 = pneg %p125
        $region26: #{xmodel_forward.3} parent=11 // pred_check_branch
          %594 = sbr.rel (%p592) target = $region28
        $region27: #{xmodel_forward.3} parent=11 // pred_region
          %s596 = ssub.s32 32, 32
          %597 = vsyncadd [#allocation7], %s596
          %s599 = sshll.u32 [#allocation8], 4
          %s600 = int_to_ptr.vmem [resolvable:$true] %s599
          %602 = dma.hbm_to_vmem [thread:$0]  %s3, 32, %s600, [#allocation7]
        $region28: #{xmodel_forward.3} parent=11 // pred_fallthru
          _
        // Predicated region
        $region29: #{xmodel_forward.3} parent=11 // pred_check
          %p603 = pneg %p380
        $region30: #{xmodel_forward.3} parent=11 // pred_check_branch
          %605 = sbr.rel (%p603) target = $region32
        $region31: #{xmodel_forward.3} parent=11 // pred_region
          %s607 = ssub.s32 16, 16
          %608 = vsyncadd [#allocation16], %s607
          %s610 = sshll.u32 [#allocation17], 4
          %s611 = int_to_ptr.vmem [resolvable:$true] %s610
          %613 = dma.hbm_to_vmem [thread:$0]  %s13, 16, %s611, [#allocation16]
        $region32: #{xmodel_forward.3} parent=11 // pred_fallthru
          _
        // Predicated region
        $region33: #{xmodel_forward.3} parent=11 // pred_check
          %p614 = pneg %p401
        $region34: #{xmodel_forward.3} parent=11 // pred_check_branch
          %616 = sbr.rel (%p614) target = $region36
        $region35: #{xmodel_forward.3} parent=11 // pred_region
          %s618 = ssub.s32 16, 16
          %619 = vsyncadd [#allocation19], %s618
          %s621 = sshll.u32 [#allocation18], 4
          %s622 = int_to_ptr.vmem [resolvable:$true] %s621
          %624 = dma.hbm_to_vmem [thread:$0]  %s14, 16, %s622, [#allocation19]
        $region36: #{xmodel_forward.3} parent=11 // pred_fallthru
          _
        // Predicated region
        $region37: #{xmodel_forward.3} parent=11 // pred_check
          %p625 = pneg %p422
        $region38: #{xmodel_forward.3} parent=11 // pred_check_branch
          %627 = sbr.rel (%p625) target = $region40
        $region39: #{xmodel_forward.3} parent=11 // pred_region
          _
        $region40: #{xmodel_forward.3} parent=11 // pred_fallthru
          _
        // Predicated region
        $region41: #{xmodel_forward.3} parent=11 // pred_check
          %p628 = pneg %p443
        $region42: #{xmodel_forward.3} parent=11 // pred_check_branch
          %630 = sbr.rel (%p628) target = $region44
        $region43: #{xmodel_forward.3} parent=11 // pred_region
          %s632 = ssub.s32 16, 16
          %633 = vsyncadd [#allocation19], %s632
          %s635 = sshll.u32 [#allocation20], 4
          %s636 = int_to_ptr.vmem [resolvable:$true] %s635
          %638 = dma.hbm_to_vmem [thread:$0]  %s16, 16, %s636, [#allocation19]
        $region44: #{xmodel_forward.3} parent=11 // pred_fallthru
          _
        // Predicated region
        $region45: #{xmodel_forward.3} parent=11 // pred_check
          %p639 = pneg %p464
        $region46: #{xmodel_forward.3} parent=11 // pred_check_branch
          %641 = sbr.rel (%p639) target = $region48
        $region47: #{xmodel_forward.3} parent=11 // pred_region
          _
        $region48: #{xmodel_forward.3} parent=11 // pred_fallthru
          _
        // Predicated region
        $region49: #{xmodel_forward.3} parent=11 // pred_check
          %p642 = pneg %p485
        $region50: #{xmodel_forward.3} parent=11 // pred_check_branch
          %644 = sbr.rel (%p642) target = $region52
        $region51: #{xmodel_forward.3} parent=11 // pred_region
          %s646 = ssub.s32 16, 16
          %647 = vsyncadd [#allocation22], %s646
          %s649 = sshll.u32 [#allocation21], 4
          %s650 = int_to_ptr.vmem [resolvable:$true] %s649
          %652 = dma.hbm_to_vmem [thread:$0]  %s18, 16, %s650, [#allocation22]
        $region52: #{xmodel_forward.3} parent=11 // pred_fallthru
          _
        // Predicated region
        $region53: #{xmodel_forward.3} parent=11 // pred_check
          %p653 = pneg %p506
        $region54: #{xmodel_forward.3} parent=11 // pred_check_branch
          %655 = sbr.rel (%p653) target = $region56
        $region55: #{xmodel_forward.3} parent=11 // pred_region
          _
        $region56: #{xmodel_forward.3} parent=11 // pred_fallthru
          _
        // Predicated region
        $region57: #{xmodel_forward.3} parent=11 // pred_check
          %p656 = pneg %p527
        $region58: #{xmodel_forward.3} parent=11 // pred_check_branch
          %658 = sbr.rel (%p656) target = $region60
        $region59: #{xmodel_forward.3} parent=11 // pred_region
          %s660 = ssub.s32 16, 16
          %661 = vsyncadd [#allocation22], %s660
          %s663 = sshll.u32 [#allocation23], 4
          %s664 = int_to_ptr.vmem [resolvable:$true] %s663
          %666 = dma.hbm_to_vmem [thread:$0]  %s20, 16, %s664, [#allocation22]
        $region60: #{xmodel_forward.3} parent=11 // pred_fallthru
          _
      $region12: #{xmodel_forward.3} parent=5 // pred_fallthru
        _
      %p667 = scmp.lt.s32.totalorder %s41, 3
      // Predicated region
      $region61: #{xmodel_forward.3} parent=5 // pred_check
        %p668 = pneg %p667
      $region62: #{xmodel_forward.3} parent=5 // pred_check_branch
        %670 = sbr.rel (%p668) target = $region64
      $region63: #{xmodel_forward.3} parent=5 // pred_region
        // Predicated region
        $region65: #{xmodel_forward.3} parent=63 // pred_check
          %p671 = pneg %p145
        $region66: #{xmodel_forward.3} parent=63 // pred_check_branch
          %673 = sbr.rel (%p671) target = $region68
        $region67: #{xmodel_forward.3} parent=63 // pred_region
          %p674 = scmp.lt.s32.totalorder %s41, 2
          %s675 = scalar_select %p674, %s41, 2
          %s676 = smul.addr %s675, 72
          %s677 = smul.addr %s676, 8
          %s678 = scalar_lea.vmem %s4, %s677
        $region68: #{xmodel_forward.3} parent=63 // pred_fallthru
          _
        // Predicated region
        $region69: #{xmodel_forward.3} parent=63 // pred_check
          %p679 = pneg %p171
        $region70: #{xmodel_forward.3} parent=63 // pred_check_branch
          %681 = sbr.rel (%p679) target = $region72
        $region71: #{xmodel_forward.3} parent=63 // pred_region
          %p682 = scmp.lt.s32.totalorder %s41, 2
          %s683 = scalar_select %p682, %s41, 2
          %s684 = smul.addr %s683, 6
          %s685 = smul.addr %s684, 8
          %s686 = scalar_lea.vmem %s5, %s685
        $region72: #{xmodel_forward.3} parent=63 // pred_fallthru
          _
        // Predicated region
        $region73: #{xmodel_forward.3} parent=63 // pred_check
          %p687 = pneg %p197
        $region74: #{xmodel_forward.3} parent=63 // pred_check_branch
          %689 = sbr.rel (%p687) target = $region76
        $region75: #{xmodel_forward.3} parent=63 // pred_region
          %p690 = scmp.lt.s32.totalorder %s41, 2
          %s691 = scalar_select %p690, %s41, 2
          %s692 = smul.addr %s691, 16
          %s693 = smul.addr %s692, 4
          %s694 = scalar_lea.vmem %s6, %s693
        $region76: #{xmodel_forward.3} parent=63 // pred_fallthru
          _
        // Predicated region
        $region77: #{xmodel_forward.3} parent=63 // pred_check
          %p695 = pneg %p223
        $region78: #{xmodel_forward.3} parent=63 // pred_check_branch
          %697 = sbr.rel (%p695) target = $region80
        $region79: #{xmodel_forward.3} parent=63 // pred_region
          %p698 = scmp.lt.s32.totalorder %s41, 2
          %s699 = scalar_select %p698, %s41, 2
          %s700 = smul.addr %s699, 32
          %s701 = smul.addr %s700, 4
          %s702 = scalar_lea.vmem %s7, %s701
        $region80: #{xmodel_forward.3} parent=63 // pred_fallthru
          _
        // Predicated region
        $region81: #{xmodel_forward.3} parent=63 // pred_check
          %p703 = pneg %p249
        $region82: #{xmodel_forward.3} parent=63 // pred_check_branch
          %705 = sbr.rel (%p703) target = $region84
        $region83: #{xmodel_forward.3} parent=63 // pred_region
          %s706 = sand.u32 %s41, 1
          %s707 = scalar_lea.sflag [#allocation10], %s706
          %s708 = sand.u32 %s239, 1
          %s709 = smul.addr %s708, 64
          %s710 = scalar_lea.vmem [#allocation9], %s709
          %s712 = ssub.s32 1024, 1024
          %713 = vsyncadd %s707, %s712
          %s714 = smul.addr %s41, 16
          %s715 = smul.addr %s714, 64
          %s716 = scalar_lea.hbm %s8, %s715
          %s717 = sshll.u32 %s710, 4
          %s718 = int_to_ptr.vmem [resolvable:$true] %s717
          %723 = dma.hbm_to_vmem [thread:$0]  %s716, 1024, %s718, %s707, 64, 64, 4
        $region84: #{xmodel_forward.3} parent=63 // pred_fallthru
          _
        // Predicated region
        $region85: #{xmodel_forward.3} parent=63 // pred_check
          %p724 = pneg %p275
        $region86: #{xmodel_forward.3} parent=63 // pred_check_branch
          %726 = sbr.rel (%p724) target = $region88
        $region87: #{xmodel_forward.3} parent=63 // pred_region
          %s727 = sand.u32 %s41, 1
          %s728 = scalar_lea.sflag [#allocation10], %s727
          %s729 = sand.u32 %s265, 1
          %s730 = smul.addr %s729, 64
          %s731 = scalar_lea.vmem [#allocation11], %s730
          %s733 = ssub.s32 1024, 1024
          %734 = vsyncadd %s728, %s733
          %s735 = smul.addr %s41, 16
          %s736 = smul.addr %s735, 64
          %s737 = scalar_lea.hbm %s9, %s736
          %s738 = sshll.u32 %s731, 4
          %s739 = int_to_ptr.vmem [resolvable:$true] %s738
          %744 = dma.hbm_to_vmem [thread:$0]  %s737, 1024, %s739, %s728, 64, 64, 4
        $region88: #{xmodel_forward.3} parent=63 // pred_fallthru
          _
        // Predicated region
        $region89: #{xmodel_forward.3} parent=63 // pred_check
          %p745 = pneg %p301
        $region90: #{xmodel_forward.3} parent=63 // pred_check_branch
          %747 = sbr.rel (%p745) target = $region92
        $region91: #{xmodel_forward.3} parent=63 // pred_region
          %s748 = sand.u32 %s41, 1
          %s749 = scalar_lea.sflag [#allocation13], %s748
          %s750 = sand.u32 %s291, 1
          %s751 = smul.addr %s750, 64
          %s752 = scalar_lea.vmem [#allocation12], %s751
          %s754 = ssub.s32 1024, 1024
          %755 = vsyncadd %s749, %s754
          %s756 = smul.addr %s41, 16
          %s757 = smul.addr %s756, 64
          %s758 = scalar_lea.hbm %s10, %s757
          %s759 = sshll.u32 %s752, 4
          %s760 = int_to_ptr.vmem [resolvable:$true] %s759
          %765 = dma.hbm_to_vmem [thread:$0]  %s758, 1024, %s760, %s749, 64, 64, 4
        $region92: #{xmodel_forward.3} parent=63 // pred_fallthru
          _
        // Predicated region
        $region93: #{xmodel_forward.3} parent=63 // pred_check
          %p766 = pneg %p327
        $region94: #{xmodel_forward.3} parent=63 // pred_check_branch
          %768 = sbr.rel (%p766) target = $region96
        $region95: #{xmodel_forward.3} parent=63 // pred_region
          %s769 = sand.u32 %s41, 1
          %s770 = scalar_lea.sflag [#allocation13], %s769
          %s771 = sand.u32 %s317, 1
          %s772 = smul.addr %s771, 2
          %s773 = scalar_lea.vmem [#allocation14], %s772
          %s775 = ssub.s32 32, 32
          %776 = vsyncadd %s770, %s775
          %s777 = smul.addr %s41, 2
          %s778 = smul.addr %s777, 16
          %s779 = scalar_lea.hbm %s11, %s778
          %s781 = sshll.u32 %s773, 4
          %s782 = int_to_ptr.vmem [resolvable:$true] %s781
          %784 = dma.hbm_to_vmem [thread:$0]  %s779, 32, %s782, %s770
        $region96: #{xmodel_forward.3} parent=63 // pred_fallthru
          _
        // Predicated region
        $region97: #{xmodel_forward.3} parent=63 // pred_check
          %p785 = pneg %p353
        $region98: #{xmodel_forward.3} parent=63 // pred_check_branch
          %787 = sbr.rel (%p785) target = $region100
        $region99: #{xmodel_forward.3} parent=63 // pred_region
          %s788 = sand.u32 %s41, 1
          %s789 = scalar_lea.sflag [#allocation16], %s788
          %s790 = sand.u32 %s343, 1
          %s791 = smul.addr %s790, 8
          %s792 = scalar_lea.vmem [#allocation15], %s791
          %s794 = ssub.s32 128, 128
          %795 = vsyncadd %s789, %s794
          %s796 = smul.addr %s41, 128
          %s797 = scalar_lea.hbm %s12, %s796
          %s799 = sshll.u32 %s792, 4
          %s800 = int_to_ptr.vmem [resolvable:$true] %s799
          %802 = dma.hbm_to_vmem [thread:$0]  %s797, 128, %s800, %s789
        $region100: #{xmodel_forward.3} parent=63 // pred_fallthru
          _
      $region64: #{xmodel_forward.3} parent=5 // pred_fallthru
        _
      %p803 = scmp.le.s32.totalorder 1, %s41
      %p804 = scmp.lt.s32.totalorder %s41, 4
      %p805 = pnand %p803, %p804
      %p806 = pneg %p805
      // Predicated region
      $region101: #{xmodel_forward.3} parent=5 // pred_check
        _
      $region102: #{xmodel_forward.3} parent=5 // pred_check_branch
        %808 = sbr.rel (%p805) target = $region104
      $region103: #{xmodel_forward.3} parent=5 // pred_region
        %s809 = ssub.s32 %s41, 1
        // Predicated region
        $region105: #{xmodel_forward.3} parent=103 // pred_check
          %p810 = pneg %p83
        $region106: #{xmodel_forward.3} parent=103 // pred_check_branch
          %812 = sbr.rel (%p810) target = $region108
        $region107: #{xmodel_forward.3} parent=103 // pred_region
          %813 = dma.done [#allocation4], 1536
        $region108: #{xmodel_forward.3} parent=103 // pred_fallthru
          _
        // Predicated region
        $region109: #{xmodel_forward.3} parent=103 // pred_check
          %p814 = pneg %p104
        $region110: #{xmodel_forward.3} parent=103 // pred_check_branch
          %816 = sbr.rel (%p814) target = $region112
        $region111: #{xmodel_forward.3} parent=103 // pred_region
          %817 = dma.done [#allocation7], 1536
        $region112: #{xmodel_forward.3} parent=103 // pred_fallthru
          _
        // Predicated region
        $region113: #{xmodel_forward.3} parent=103 // pred_check
          %p818 = pneg %p125
        $region114: #{xmodel_forward.3} parent=103 // pred_check_branch
          %820 = sbr.rel (%p818) target = $region116
        $region115: #{xmodel_forward.3} parent=103 // pred_region
          %821 = dma.done [#allocation7], 32
        $region116: #{xmodel_forward.3} parent=103 // pred_fallthru
          _
        %s822 = sand.u32 %s46, 1
        %s823 = scalar_lea.sflag [#allocation10], %s822
        %s824 = sand.u32 %s242, 1
        %s825 = smul.addr %s824, 64
        %s826 = scalar_lea.vmem [#allocation9], %s825
        // Predicated region
        $region117: #{xmodel_forward.3} parent=103 // pred_check
          %p827 = pneg %p255
        $region118: #{xmodel_forward.3} parent=103 // pred_check_branch
          %829 = sbr.rel (%p827) target = $region120
        $region119: #{xmodel_forward.3} parent=103 // pred_region
          %830 = dma.done %s823, 1024
        $region120: #{xmodel_forward.3} parent=103 // pred_fallthru
          _
        %s831 = sand.u32 %s46, 1
        %s832 = scalar_lea.sflag [#allocation10], %s831
        %s833 = sand.u32 %s268, 1
        %s834 = smul.addr %s833, 64
        %s835 = scalar_lea.vmem [#allocation11], %s834
        // Predicated region
        $region121: #{xmodel_forward.3} parent=103 // pred_check
          %p836 = pneg %p281
        $region122: #{xmodel_forward.3} parent=103 // pred_check_branch
          %838 = sbr.rel (%p836) target = $region124
        $region123: #{xmodel_forward.3} parent=103 // pred_region
          %839 = dma.done %s832, 1024
        $region124: #{xmodel_forward.3} parent=103 // pred_fallthru
          _
        %s840 = sand.u32 %s46, 1
        %s841 = scalar_lea.sflag [#allocation13], %s840
        %s842 = sand.u32 %s294, 1
        %s843 = smul.addr %s842, 64
        %s844 = scalar_lea.vmem [#allocation12], %s843
        // Predicated region
        $region125: #{xmodel_forward.3} parent=103 // pred_check
          %p845 = pneg %p307
        $region126: #{xmodel_forward.3} parent=103 // pred_check_branch
          %847 = sbr.rel (%p845) target = $region128
        $region127: #{xmodel_forward.3} parent=103 // pred_region
          %848 = dma.done %s841, 1024
        $region128: #{xmodel_forward.3} parent=103 // pred_fallthru
          _
        %s849 = sand.u32 %s46, 1
        %s850 = scalar_lea.sflag [#allocation13], %s849
        %s851 = sand.u32 %s320, 1
        %s852 = smul.addr %s851, 2
        %s853 = scalar_lea.vmem [#allocation14], %s852
        // Predicated region
        $region129: #{xmodel_forward.3} parent=103 // pred_check
          %p854 = pneg %p333
        $region130: #{xmodel_forward.3} parent=103 // pred_check_branch
          %856 = sbr.rel (%p854) target = $region132
        $region131: #{xmodel_forward.3} parent=103 // pred_region
          %857 = dma.done %s850, 32
        $region132: #{xmodel_forward.3} parent=103 // pred_fallthru
          _
        %s858 = sand.u32 %s46, 1
        %s859 = scalar_lea.sflag [#allocation16], %s858
        %s860 = sand.u32 %s346, 1
        %s861 = smul.addr %s860, 8
        %s862 = scalar_lea.vmem [#allocation15], %s861
        // Predicated region
        $region133: #{xmodel_forward.3} parent=103 // pred_check
          %p863 = pneg %p359
        $region134: #{xmodel_forward.3} parent=103 // pred_check_branch
          %865 = sbr.rel (%p863) target = $region136
        $region135: #{xmodel_forward.3} parent=103 // pred_region
          %866 = dma.done %s859, 128
        $region136: #{xmodel_forward.3} parent=103 // pred_fallthru
          _
        // Predicated region
        $region137: #{xmodel_forward.3} parent=103 // pred_check
          %p867 = pneg %p380
        $region138: #{xmodel_forward.3} parent=103 // pred_check_branch
          %869 = sbr.rel (%p867) target = $region140
        $region139: #{xmodel_forward.3} parent=103 // pred_region
          %870 = dma.done [#allocation16], 16
        $region140: #{xmodel_forward.3} parent=103 // pred_fallthru
          _
        // Predicated region
        $region141: #{xmodel_forward.3} parent=103 // pred_check
          %p871 = pneg %p401
        $region142: #{xmodel_forward.3} parent=103 // pred_check_branch
          %873 = sbr.rel (%p871) target = $region144
        $region143: #{xmodel_forward.3} parent=103 // pred_region
          %874 = dma.done [#allocation19], 16
        $region144: #{xmodel_forward.3} parent=103 // pred_fallthru
          _
        // Predicated region
        $region145: #{xmodel_forward.3} parent=103 // pred_check
          %p875 = pneg %p443
        $region146: #{xmodel_forward.3} parent=103 // pred_check_branch
          %877 = sbr.rel (%p875) target = $region148
        $region147: #{xmodel_forward.3} parent=103 // pred_region
          %878 = dma.done [#allocation19], 16
        $region148: #{xmodel_forward.3} parent=103 // pred_fallthru
          _
        // Predicated region
        $region149: #{xmodel_forward.3} parent=103 // pred_check
          %p879 = pneg %p485
        $region150: #{xmodel_forward.3} parent=103 // pred_check_branch
          %881 = sbr.rel (%p879) target = $region152
        $region151: #{xmodel_forward.3} parent=103 // pred_region
          %882 = dma.done [#allocation22], 16
        $region152: #{xmodel_forward.3} parent=103 // pred_fallthru
          _
        // Predicated region
        $region153: #{xmodel_forward.3} parent=103 // pred_check
          %p883 = pneg %p527
        $region154: #{xmodel_forward.3} parent=103 // pred_check_branch
          %885 = sbr.rel (%p883) target = $region156
        $region155: #{xmodel_forward.3} parent=103 // pred_region
          %886 = dma.done [#allocation22], 16
        $region156: #{xmodel_forward.3} parent=103 // pred_fallthru
          _
        %p887 = pneg %p62
        %p888 = pneg %p59
        %p889 = pneg %p83
        %p890 = pneg %p80
        %p891 = pneg %p104
        %p892 = pneg %p101
        %p893 = pneg %p125
        %p894 = pneg %p122
        %p895 = scmp.lt.s32.totalorder %s46, 2
        %s896 = scalar_select %p895, %s46, 2
        %s897 = smul.addr %s896, 72
        %s898 = smul.addr %s897, 8
        %s899 = scalar_lea.vmem %s4, %s898
        %p900 = pneg %p151
        %p901 = pneg %p148
        %p902 = scmp.lt.s32.totalorder %s46, 2
        %s903 = scalar_select %p902, %s46, 2
        %s904 = smul.addr %s903, 6
        %s905 = smul.addr %s904, 8
        %s906 = scalar_lea.vmem %s5, %s905
        %p907 = pneg %p177
        %p908 = pneg %p174
        %p909 = scmp.lt.s32.totalorder %s46, 2
        %s910 = scalar_select %p909, %s46, 2
        %s911 = smul.addr %s910, 16
        %s912 = smul.addr %s911, 4
        %s913 = scalar_lea.vmem %s6, %s912
        %p914 = pneg %p203
        %p915 = pneg %p200
        %p916 = scmp.lt.s32.totalorder %s46, 2
        %s917 = scalar_select %p916, %s46, 2
        %s918 = smul.addr %s917, 32
        %s919 = smul.addr %s918, 4
        %s920 = scalar_lea.vmem %s7, %s919
        %p921 = pneg %p229
        %p922 = pneg %p226
        %s923 = sand.u32 %s46, 1
        %s924 = scalar_lea.sflag [#allocation10], %s923
        %s925 = sand.u32 %s242, 1
        %s926 = smul.addr %s925, 64
        %s927 = scalar_lea.vmem [#allocation9], %s926
        %p928 = pneg %p255
        %p929 = pneg %p252
        %s930 = sand.u32 %s46, 1
        %s931 = scalar_lea.sflag [#allocation10], %s930
        %s932 = sand.u32 %s268, 1
        %s933 = smul.addr %s932, 64
        %s934 = scalar_lea.vmem [#allocation11], %s933
        %p935 = pneg %p281
        %p936 = pneg %p278
        %s937 = sand.u32 %s46, 1
        %s938 = scalar_lea.sflag [#allocation13], %s937
        %s939 = sand.u32 %s294, 1
        %s940 = smul.addr %s939, 64
        %s941 = scalar_lea.vmem [#allocation12], %s940
        %p942 = pneg %p307
        %p943 = pneg %p304
        %s944 = sand.u32 %s46, 1
        %s945 = scalar_lea.sflag [#allocation13], %s944
        %s946 = sand.u32 %s320, 1
        %s947 = smul.addr %s946, 2
        %s948 = scalar_lea.vmem [#allocation14], %s947
        %p949 = pneg %p333
        %p950 = pneg %p330
        %s951 = sand.u32 %s46, 1
        %s952 = scalar_lea.sflag [#allocation16], %s951
        %s953 = sand.u32 %s346, 1
        %s954 = smul.addr %s953, 8
        %s955 = scalar_lea.vmem [#allocation15], %s954
        %p956 = pneg %p359
        %p957 = pneg %p356
        %p958 = pneg %p380
        %p959 = pneg %p377
        %p960 = pneg %p401
        %p961 = pneg %p398
        %p962 = pneg %p422
        %p963 = pneg %p419
        %p964 = pneg %p443
        %p965 = pneg %p440
        %p966 = pneg %p464
        %p967 = pneg %p461
        %p968 = pneg %p485
        %p969 = pneg %p482
        %p970 = pneg %p506
        %p971 = pneg %p503
        %p972 = pneg %p527
        %p973 = pneg %p524
        %p974 = pneg %p548
        %p975 = pneg %p545
        %p976 = scmp.lt.s32.totalorder %s46, 2
        %s977 = scalar_select %p976, %s46, 2
        %s978 = smul.addr %s977, 72
        %s979 = smul.addr %s978, 8
        %s980 = scalar_lea.vmem %s4, %s979
        %p981 = scmp.lt.s32.totalorder %s46, 2
        %s982 = scalar_select %p981, %s46, 2
        %s983 = smul.addr %s982, 6
        %s984 = smul.addr %s983, 8
        %s985 = scalar_lea.vmem %s5, %s984
        %p986 = scmp.lt.s32.totalorder %s46, 2
        %s987 = scalar_select %p986, %s46, 2
        %s988 = smul.addr %s987, 16
        %s989 = smul.addr %s988, 4
        %s990 = scalar_lea.vmem %s6, %s989
        %p991 = scmp.lt.s32.totalorder %s46, 2
        %s992 = scalar_select %p991, %s46, 2
        %s993 = smul.addr %s992, 32
        %s994 = smul.addr %s993, 4
        %s995 = scalar_lea.vmem %s7, %s994
        %p997 = scmp.eq.s32.totalorder %s46, 0
        // Predicated region
        $region157: #{xmodel_forward.3} parent=103 // pred_check
          %p998 = pneg %p997
        $region158: #{xmodel_forward.3} parent=103 // pred_check_branch
          %1000 = sbr.rel (%p998) target = $region160
        $region159: #{xmodel_forward.3} parent=103 // pred_region
          %v1001 = vld [vmem:[%s0] sm:$0xff]
          %v1002 = vld [vmem:[%s0 + $0x8] sm:$0xff]
          %v1003 = vld [vmem:[%s0 + $0x10] sm:$0xff]
          %v1004 = vld [vmem:[%s0 + $0x18] sm:$0xff]
          %v1005 = vld [vmem:[%s0 + $0x20] sm:$0xff]
          %v1006 = vld [vmem:[%s0 + $0x28] sm:$0xff]
          %v1007 = vld [vmem:[%s0 + $0x30] sm:$0xff]
          %v1008 = vld [vmem:[%s0 + $0x38] sm:$0xff]
          %v1009 = vld [vmem:[%s0 + $0x40] sm:$0xff]
          %v1010 = vld [vmem:[%s0 + $0x48] sm:$0xff]
          %v1011 = vld [vmem:[%s0 + $0x50] sm:$0xff]
          %v1012 = vld [vmem:[%s0 + $0x58] sm:$0xff]
          %1013 = vst [vmem:[#allocation2] sm:$0xff] %v1001
          %1014 = vst [vmem:[#allocation2 + $0x8] sm:$0xff] %v1002
          %1015 = vst [vmem:[#allocation2 + $0x10] sm:$0xff] %v1003
          %1016 = vst [vmem:[#allocation2 + $0x18] sm:$0xff] %v1004
          %1017 = vst [vmem:[#allocation2 + $0x20] sm:$0xff] %v1005
          %1018 = vst [vmem:[#allocation2 + $0x28] sm:$0xff] %v1006
          %1019 = vst [vmem:[#allocation2 + $0x30] sm:$0xff] %v1007
          %1020 = vst [vmem:[#allocation2 + $0x38] sm:$0xff] %v1008
          %1021 = vst [vmem:[#allocation2 + $0x40] sm:$0xff] %v1009
          %1022 = vst [vmem:[#allocation2 + $0x48] sm:$0xff] %v1010
          %1023 = vst [vmem:[#allocation2 + $0x50] sm:$0xff] %v1011
          %1024 = vst [vmem:[#allocation2 + $0x58] sm:$0xff] %v1012
        $region160: #{xmodel_forward.3} parent=103 // pred_fallthru
          _
        %v1025 = vld [vmem:[#allocation2] sm:$0xff]
        %v1026 = vld [vmem:[#allocation2 + $0x8] sm:$0xff]
        %v1027 = vld [vmem:[#allocation2 + $0x10] sm:$0xff]
        %v1028 = vld [vmem:[#allocation2 + $0x18] sm:$0xff]
        %v1029 = vld [vmem:[#allocation2 + $0x20] sm:$0xff]
        %v1030 = vld [vmem:[#allocation2 + $0x28] sm:$0xff]
        %v1031 = vld [vmem:[#allocation2 + $0x30] sm:$0xff]
        %v1032 = vld [vmem:[#allocation2 + $0x38] sm:$0xff]
        %v1033 = vld [vmem:[#allocation2 + $0x40] sm:$0xff]
        %v1034 = vld [vmem:[#allocation2 + $0x48] sm:$0xff]
        %v1035 = vld [vmem:[#allocation2 + $0x50] sm:$0xff]
        %v1036 = vld [vmem:[#allocation2 + $0x58] sm:$0xff]
        %v1037 = vld [vmem:[#allocation8] sm:$0x3]
        %v1038 = vld [vmem:[%s985] sm:$0xff]
        %v1039 = vld [vmem:[%s985 + $0x8] sm:$0xff]
        %v1040 = vld [vmem:[%s985 + $0x10] sm:$0xff]
        %v1041 = vld [vmem:[%s985 + $0x18] sm:$0xff]
        %v1042 = vld [vmem:[%s985 + $0x20] sm:$0xff]
        %v1043 = vld [vmem:[%s985 + $0x28] sm:$0xff]
        %v1044 = vld [vmem:[%s980] sm:$0xff]
        %v1045 = vld [vmem:[%s980 + $0x8] sm:$0xff]
        %v1046 = vld [vmem:[%s980 + $0x10] sm:$0xff]
        %v1047 = vld [vmem:[%s980 + $0x18] sm:$0xff]
        %v1048 = vld [vmem:[%s980 + $0x20] sm:$0xff]
        %v1049 = vld [vmem:[%s980 + $0x28] sm:$0xff]
        %s1051 = vtos %v1037
        %v1052 = vstv %s1051
        %v1054 = vmul.f32 %v1052, %v1044
        %v1055 = vmul.f32 %v1052, %v1045
        %v1056 = vmul.f32 %v1052, %v1046
        %v1057 = vmul.f32 %v1052, %v1047
        %v1058 = vmul.f32 %v1052, %v1048
        %v1059 = vmul.f32 %v1052, %v1049
        %v1060 = vadd.f32 %v1038, %v1054
        %v1061 = vadd.f32 %v1039, %v1055
        %v1062 = vadd.f32 %v1040, %v1056
        %v1063 = vadd.f32 %v1041, %v1057
        %v1064 = vadd.f32 %v1042, %v1058
        %v1065 = vadd.f32 %v1043, %v1059
        %v1066 = vrot.slane %v1037, 1
        %s1067 = vtos %v1066
        %v1068 = vstv %s1067
        %v1070 = vmul.f32 %v1068, %v1044
        %v1071 = vmul.f32 %v1068, %v1045
        %v1072 = vmul.f32 %v1068, %v1046
        %v1073 = vmul.f32 %v1068, %v1047
        %v1074 = vmul.f32 %v1068, %v1048
        %v1075 = vmul.f32 %v1068, %v1049
        %v1076 = vadd.f32 %v1038, %v1070
        %v1077 = vadd.f32 %v1039, %v1071
        %v1078 = vadd.f32 %v1040, %v1072
        %v1079 = vadd.f32 %v1041, %v1073
        %v1080 = vadd.f32 %v1042, %v1074
        %v1081 = vadd.f32 %v1043, %v1075
        %s1082 = scalar_lea.vmem %s980, 48
        %v1083 = vld [vmem:[%s1082] sm:$0xff]
        %v1084 = vld [vmem:[%s1082 + $0x8] sm:$0xff]
        %v1085 = vld [vmem:[%s1082 + $0x10] sm:$0xff]
        %v1086 = vld [vmem:[%s1082 + $0x18] sm:$0xff]
        %v1087 = vld [vmem:[%s1082 + $0x20] sm:$0xff]
        %v1088 = vld [vmem:[%s1082 + $0x28] sm:$0xff]
        %1089 = vrot.lane.b32.xlu0 %v1037, 127
        %v1090 = vpop.permute.xlu0 %1089
        %s1091 = vtos %v1090
        %v1092 = vstv %s1091
        %v1094 = vmul.f32 %v1092, %v1083
        %v1095 = vmul.f32 %v1092, %v1084
        %v1096 = vmul.f32 %v1092, %v1085
        %v1097 = vmul.f32 %v1092, %v1086
        %v1098 = vmul.f32 %v1092, %v1087
        %v1099 = vmul.f32 %v1092, %v1088
        %v1100 = vadd.f32 %v1060, %v1094
        %v1101 = vadd.f32 %v1061, %v1095
        %v1102 = vadd.f32 %v1062, %v1096
        %v1103 = vadd.f32 %v1063, %v1097
        %v1104 = vadd.f32 %v1064, %v1098
        %v1105 = vadd.f32 %v1065, %v1099
        %1106 = vrot.lane.b32.xlu0 %v1066, 127
        %v1107 = vpop.permute.xlu0 %1106
        %s1108 = vtos %v1107
        %v1109 = vstv %s1108
        %v1111 = vmul.f32 %v1109, %v1083
        %v1112 = vmul.f32 %v1109, %v1084
        %v1113 = vmul.f32 %v1109, %v1085
        %v1114 = vmul.f32 %v1109, %v1086
        %v1115 = vmul.f32 %v1109, %v1087
        %v1116 = vmul.f32 %v1109, %v1088
        %v1117 = vadd.f32 %v1076, %v1111
        %v1118 = vadd.f32 %v1077, %v1112
        %v1119 = vadd.f32 %v1078, %v1113
        %v1120 = vadd.f32 %v1079, %v1114
        %v1121 = vadd.f32 %v1080, %v1115
        %v1122 = vadd.f32 %v1081, %v1116
        %s1123 = scalar_lea.vmem %s980, 96
        %v1124 = vld [vmem:[%s1123] sm:$0xff]
        %v1125 = vld [vmem:[%s1123 + $0x8] sm:$0xff]
        %v1126 = vld [vmem:[%s1123 + $0x10] sm:$0xff]
        %v1127 = vld [vmem:[%s1123 + $0x18] sm:$0xff]
        %v1128 = vld [vmem:[%s1123 + $0x20] sm:$0xff]
        %v1129 = vld [vmem:[%s1123 + $0x28] sm:$0xff]
        %1130 = vrot.lane.b32.xlu0 %v1037, 126
        %v1131 = vpop.permute.xlu0 %1130
        %s1132 = vtos %v1131
        %v1133 = vstv %s1132
        %v1135 = vmul.f32 %v1133, %v1124
        %v1136 = vmul.f32 %v1133, %v1125
        %v1137 = vmul.f32 %v1133, %v1126
        %v1138 = vmul.f32 %v1133, %v1127
        %v1139 = vmul.f32 %v1133, %v1128
        %v1140 = vmul.f32 %v1133, %v1129
        %v1141 = vadd.f32 %v1100, %v1135
        %v1142 = vadd.f32 %v1101, %v1136
        %v1143 = vadd.f32 %v1102, %v1137
        %v1144 = vadd.f32 %v1103, %v1138
        %v1145 = vadd.f32 %v1104, %v1139
        %v1146 = vadd.f32 %v1105, %v1140
        %1147 = vrot.lane.b32.xlu0 %v1066, 126
        %v1148 = vpop.permute.xlu0 %1147
        %s1149 = vtos %v1148
        %v1150 = vstv %s1149
        %v1152 = vmul.f32 %v1150, %v1124
        %v1153 = vmul.f32 %v1150, %v1125
        %v1154 = vmul.f32 %v1150, %v1126
        %v1155 = vmul.f32 %v1150, %v1127
        %v1156 = vmul.f32 %v1150, %v1128
        %v1157 = vmul.f32 %v1150, %v1129
        %v1158 = vadd.f32 %v1117, %v1152
        %v1159 = vadd.f32 %v1118, %v1153
        %v1160 = vadd.f32 %v1119, %v1154
        %v1161 = vadd.f32 %v1120, %v1155
        %v1162 = vadd.f32 %v1121, %v1156
        %v1163 = vadd.f32 %v1122, %v1157
        %s1164 = scalar_lea.vmem %s980, 144
        %v1165 = vld [vmem:[%s1164] sm:$0xff]
        %v1166 = vld [vmem:[%s1164 + $0x8] sm:$0xff]
        %v1167 = vld [vmem:[%s1164 + $0x10] sm:$0xff]
        %v1168 = vld [vmem:[%s1164 + $0x18] sm:$0xff]
        %v1169 = vld [vmem:[%s1164 + $0x20] sm:$0xff]
        %v1170 = vld [vmem:[%s1164 + $0x28] sm:$0xff]
        %1171 = vrot.lane.b32.xlu0 %v1037, 125
        %v1172 = vpop.permute.xlu0 %1171
        %s1173 = vtos %v1172
        %v1174 = vstv %s1173
        %v1176 = vmul.f32 %v1174, %v1165
        %v1177 = vmul.f32 %v1174, %v1166
        %v1178 = vmul.f32 %v1174, %v1167
        %v1179 = vmul.f32 %v1174, %v1168
        %v1180 = vmul.f32 %v1174, %v1169
        %v1181 = vmul.f32 %v1174, %v1170
        %v1182 = vadd.f32 %v1141, %v1176
        %v1183 = vadd.f32 %v1142, %v1177
        %v1184 = vadd.f32 %v1143, %v1178
        %v1185 = vadd.f32 %v1144, %v1179
        %v1186 = vadd.f32 %v1145, %v1180
        %v1187 = vadd.f32 %v1146, %v1181
        %1188 = vrot.lane.b32.xlu0 %v1066, 125
        %v1189 = vpop.permute.xlu0 %1188
        %s1190 = vtos %v1189
        %v1191 = vstv %s1190
        %v1193 = vmul.f32 %v1191, %v1165
        %v1194 = vmul.f32 %v1191, %v1166
        %v1195 = vmul.f32 %v1191, %v1167
        %v1196 = vmul.f32 %v1191, %v1168
        %v1197 = vmul.f32 %v1191, %v1169
        %v1198 = vmul.f32 %v1191, %v1170
        %v1199 = vadd.f32 %v1158, %v1193
        %v1200 = vadd.f32 %v1159, %v1194
        %v1201 = vadd.f32 %v1160, %v1195
        %v1202 = vadd.f32 %v1161, %v1196
        %v1203 = vadd.f32 %v1162, %v1197
        %v1204 = vadd.f32 %v1163, %v1198
        %s1205 = scalar_lea.vmem %s980, 192
        %v1206 = vld [vmem:[%s1205] sm:$0xff]
        %v1207 = vld [vmem:[%s1205 + $0x8] sm:$0xff]
        %v1208 = vld [vmem:[%s1205 + $0x10] sm:$0xff]
        %v1209 = vld [vmem:[%s1205 + $0x18] sm:$0xff]
        %v1210 = vld [vmem:[%s1205 + $0x20] sm:$0xff]
        %v1211 = vld [vmem:[%s1205 + $0x28] sm:$0xff]
        %1212 = vrot.lane.b32.xlu0 %v1037, 124
        %v1213 = vpop.permute.xlu0 %1212
        %s1214 = vtos %v1213
        %v1215 = vstv %s1214
        %v1217 = vmul.f32 %v1215, %v1206
        %v1218 = vmul.f32 %v1215, %v1207
        %v1219 = vmul.f32 %v1215, %v1208
        %v1220 = vmul.f32 %v1215, %v1209
        %v1221 = vmul.f32 %v1215, %v1210
        %v1222 = vmul.f32 %v1215, %v1211
        %v1223 = vadd.f32 %v1182, %v1217
        %v1224 = vadd.f32 %v1183, %v1218
        %v1225 = vadd.f32 %v1184, %v1219
        %v1226 = vadd.f32 %v1185, %v1220
        %v1227 = vadd.f32 %v1186, %v1221
        %v1228 = vadd.f32 %v1187, %v1222
        %1229 = vrot.lane.b32.xlu0 %v1066, 124
        %v1230 = vpop.permute.xlu0 %1229
        %s1231 = vtos %v1230
        %v1232 = vstv %s1231
        %v1234 = vmul.f32 %v1232, %v1206
        %v1235 = vmul.f32 %v1232, %v1207
        %v1236 = vmul.f32 %v1232, %v1208
        %v1237 = vmul.f32 %v1232, %v1209
        %v1238 = vmul.f32 %v1232, %v1210
        %v1239 = vmul.f32 %v1232, %v1211
        %v1240 = vadd.f32 %v1199, %v1234
        %v1241 = vadd.f32 %v1200, %v1235
        %v1242 = vadd.f32 %v1201, %v1236
        %v1243 = vadd.f32 %v1202, %v1237
        %v1244 = vadd.f32 %v1203, %v1238
        %v1245 = vadd.f32 %v1204, %v1239
        %s1246 = scalar_lea.vmem %s980, 240
        %v1247 = vld [vmem:[%s1246] sm:$0xff]
        %v1248 = vld [vmem:[%s1246 + $0x8] sm:$0xff]
        %v1249 = vld [vmem:[%s1246 + $0x10] sm:$0xff]
        %v1250 = vld [vmem:[%s1246 + $0x18] sm:$0xff]
        %v1251 = vld [vmem:[%s1246 + $0x20] sm:$0xff]
        %v1252 = vld [vmem:[%s1246 + $0x28] sm:$0xff]
        %1253 = vrot.lane.b32.xlu0 %v1037, 123
        %v1254 = vpop.permute.xlu0 %1253
        %s1255 = vtos %v1254
        %v1256 = vstv %s1255
        %v1258 = vmul.f32 %v1256, %v1247
        %v1259 = vmul.f32 %v1256, %v1248
        %v1260 = vmul.f32 %v1256, %v1249
        %v1261 = vmul.f32 %v1256, %v1250
        %v1262 = vmul.f32 %v1256, %v1251
        %v1263 = vmul.f32 %v1256, %v1252
        %v1264 = vadd.f32 %v1223, %v1258
        %v1265 = vadd.f32 %v1224, %v1259
        %v1266 = vadd.f32 %v1225, %v1260
        %v1267 = vadd.f32 %v1226, %v1261
        %v1268 = vadd.f32 %v1227, %v1262
        %v1269 = vadd.f32 %v1228, %v1263
        %1270 = vrot.lane.b32.xlu0 %v1066, 123
        %v1271 = vpop.permute.xlu0 %1270
        %s1272 = vtos %v1271
        %v1273 = vstv %s1272
        %v1275 = vmul.f32 %v1273, %v1247
        %v1276 = vmul.f32 %v1273, %v1248
        %v1277 = vmul.f32 %v1273, %v1249
        %v1278 = vmul.f32 %v1273, %v1250
        %v1279 = vmul.f32 %v1273, %v1251
        %v1280 = vmul.f32 %v1273, %v1252
        %v1281 = vadd.f32 %v1240, %v1275
        %v1282 = vadd.f32 %v1241, %v1276
        %v1283 = vadd.f32 %v1242, %v1277
        %v1284 = vadd.f32 %v1243, %v1278
        %v1285 = vadd.f32 %v1244, %v1279
        %v1286 = vadd.f32 %v1245, %v1280
        %s1287 = scalar_lea.vmem %s980, 288
        %v1288 = vld [vmem:[%s1287] sm:$0xff]
        %v1289 = vld [vmem:[%s1287 + $0x8] sm:$0xff]
        %v1290 = vld [vmem:[%s1287 + $0x10] sm:$0xff]
        %v1291 = vld [vmem:[%s1287 + $0x18] sm:$0xff]
        %v1292 = vld [vmem:[%s1287 + $0x20] sm:$0xff]
        %v1293 = vld [vmem:[%s1287 + $0x28] sm:$0xff]
        %1294 = vrot.lane.b32.xlu0 %v1037, 122
        %v1295 = vpop.permute.xlu0 %1294
        %s1296 = vtos %v1295
        %v1297 = vstv %s1296
        %v1299 = vmul.f32 %v1297, %v1288
        %v1300 = vmul.f32 %v1297, %v1289
        %v1301 = vmul.f32 %v1297, %v1290
        %v1302 = vmul.f32 %v1297, %v1291
        %v1303 = vmul.f32 %v1297, %v1292
        %v1304 = vmul.f32 %v1297, %v1293
        %v1305 = vadd.f32 %v1264, %v1299
        %v1306 = vadd.f32 %v1265, %v1300
        %v1307 = vadd.f32 %v1266, %v1301
        %v1308 = vadd.f32 %v1267, %v1302
        %v1309 = vadd.f32 %v1268, %v1303
        %v1310 = vadd.f32 %v1269, %v1304
        %1311 = vrot.lane.b32.xlu0 %v1066, 122
        %v1312 = vpop.permute.xlu0 %1311
        %s1313 = vtos %v1312
        %v1314 = vstv %s1313
        %v1316 = vmul.f32 %v1314, %v1288
        %v1317 = vmul.f32 %v1314, %v1289
        %v1318 = vmul.f32 %v1314, %v1290
        %v1319 = vmul.f32 %v1314, %v1291
        %v1320 = vmul.f32 %v1314, %v1292
        %v1321 = vmul.f32 %v1314, %v1293
        %v1322 = vadd.f32 %v1281, %v1316
        %v1323 = vadd.f32 %v1282, %v1317
        %v1324 = vadd.f32 %v1283, %v1318
        %v1325 = vadd.f32 %v1284, %v1319
        %v1326 = vadd.f32 %v1285, %v1320
        %v1327 = vadd.f32 %v1286, %v1321
        %s1328 = scalar_lea.vmem %s980, 336
        %v1329 = vld [vmem:[%s1328] sm:$0xff]
        %v1330 = vld [vmem:[%s1328 + $0x8] sm:$0xff]
        %v1331 = vld [vmem:[%s1328 + $0x10] sm:$0xff]
        %v1332 = vld [vmem:[%s1328 + $0x18] sm:$0xff]
        %v1333 = vld [vmem:[%s1328 + $0x20] sm:$0xff]
        %v1334 = vld [vmem:[%s1328 + $0x28] sm:$0xff]
        %1335 = vrot.lane.b32.xlu0 %v1037, 121
        %v1336 = vpop.permute.xlu0 %1335
        %s1337 = vtos %v1336
        %v1338 = vstv %s1337
        %v1340 = vmul.f32 %v1338, %v1329
        %v1341 = vmul.f32 %v1338, %v1330
        %v1342 = vmul.f32 %v1338, %v1331
        %v1343 = vmul.f32 %v1338, %v1332
        %v1344 = vmul.f32 %v1338, %v1333
        %v1345 = vmul.f32 %v1338, %v1334
        %v1346 = vadd.f32 %v1305, %v1340
        %v1347 = vadd.f32 %v1306, %v1341
        %v1348 = vadd.f32 %v1307, %v1342
        %v1349 = vadd.f32 %v1308, %v1343
        %v1350 = vadd.f32 %v1309, %v1344
        %v1351 = vadd.f32 %v1310, %v1345
        %1352 = vrot.lane.b32.xlu0 %v1066, 121
        %v1353 = vpop.permute.xlu0 %1352
        %s1354 = vtos %v1353
        %v1355 = vstv %s1354
        %v1357 = vmul.f32 %v1355, %v1329
        %v1358 = vmul.f32 %v1355, %v1330
        %v1359 = vmul.f32 %v1355, %v1331
        %v1360 = vmul.f32 %v1355, %v1332
        %v1361 = vmul.f32 %v1355, %v1333
        %v1362 = vmul.f32 %v1355, %v1334
        %v1363 = vadd.f32 %v1322, %v1357
        %v1364 = vadd.f32 %v1323, %v1358
        %v1365 = vadd.f32 %v1324, %v1359
        %v1366 = vadd.f32 %v1325, %v1360
        %v1367 = vadd.f32 %v1326, %v1361
        %v1368 = vadd.f32 %v1327, %v1362
        %s1369 = scalar_lea.vmem %s980, 384
        %v1370 = vld [vmem:[%s1369] sm:$0xff]
        %v1371 = vld [vmem:[%s1369 + $0x8] sm:$0xff]
        %v1372 = vld [vmem:[%s1369 + $0x10] sm:$0xff]
        %v1373 = vld [vmem:[%s1369 + $0x18] sm:$0xff]
        %v1374 = vld [vmem:[%s1369 + $0x20] sm:$0xff]
        %v1375 = vld [vmem:[%s1369 + $0x28] sm:$0xff]
        %1376 = vrot.lane.b32.xlu0 %v1037, 120
        %v1377 = vpop.permute.xlu0 %1376
        %s1378 = vtos %v1377
        %v1379 = vstv %s1378
        %v1381 = vmul.f32 %v1379, %v1370
        %v1382 = vmul.f32 %v1379, %v1371
        %v1383 = vmul.f32 %v1379, %v1372
        %v1384 = vmul.f32 %v1379, %v1373
        %v1385 = vmul.f32 %v1379, %v1374
        %v1386 = vmul.f32 %v1379, %v1375
        %v1387 = vadd.f32 %v1346, %v1381
        %v1388 = vadd.f32 %v1347, %v1382
        %v1389 = vadd.f32 %v1348, %v1383
        %v1390 = vadd.f32 %v1349, %v1384
        %v1391 = vadd.f32 %v1350, %v1385
        %v1392 = vadd.f32 %v1351, %v1386
        %1393 = vrot.lane.b32.xlu0 %v1066, 120
        %v1394 = vpop.permute.xlu0 %1393
        %s1395 = vtos %v1394
        %v1396 = vstv %s1395
        %v1398 = vmul.f32 %v1396, %v1370
        %v1399 = vmul.f32 %v1396, %v1371
        %v1400 = vmul.f32 %v1396, %v1372
        %v1401 = vmul.f32 %v1396, %v1373
        %v1402 = vmul.f32 %v1396, %v1374
        %v1403 = vmul.f32 %v1396, %v1375
        %v1404 = vadd.f32 %v1363, %v1398
        %v1405 = vadd.f32 %v1364, %v1399
        %v1406 = vadd.f32 %v1365, %v1400
        %v1407 = vadd.f32 %v1366, %v1401
        %v1408 = vadd.f32 %v1367, %v1402
        %v1409 = vadd.f32 %v1368, %v1403
        %s1410 = scalar_lea.vmem %s980, 432
        %v1411 = vld [vmem:[%s1410] sm:$0xff]
        %v1412 = vld [vmem:[%s1410 + $0x8] sm:$0xff]
        %v1413 = vld [vmem:[%s1410 + $0x10] sm:$0xff]
        %v1414 = vld [vmem:[%s1410 + $0x18] sm:$0xff]
        %v1415 = vld [vmem:[%s1410 + $0x20] sm:$0xff]
        %v1416 = vld [vmem:[%s1410 + $0x28] sm:$0xff]
        %1417 = vrot.lane.b32.xlu0 %v1037, 119
        %v1418 = vpop.permute.xlu0 %1417
        %s1419 = vtos %v1418
        %v1420 = vstv %s1419
        %v1422 = vmul.f32 %v1420, %v1411
        %v1423 = vmul.f32 %v1420, %v1412
        %v1424 = vmul.f32 %v1420, %v1413
        %v1425 = vmul.f32 %v1420, %v1414
        %v1426 = vmul.f32 %v1420, %v1415
        %v1427 = vmul.f32 %v1420, %v1416
        %v1428 = vadd.f32 %v1387, %v1422
        %v1429 = vadd.f32 %v1388, %v1423
        %v1430 = vadd.f32 %v1389, %v1424
        %v1431 = vadd.f32 %v1390, %v1425
        %v1432 = vadd.f32 %v1391, %v1426
        %v1433 = vadd.f32 %v1392, %v1427
        %1434 = vrot.lane.b32.xlu0 %v1066, 119
        %v1435 = vpop.permute.xlu0 %1434
        %s1436 = vtos %v1435
        %v1437 = vstv %s1436
        %v1439 = vmul.f32 %v1437, %v1411
        %v1440 = vmul.f32 %v1437, %v1412
        %v1441 = vmul.f32 %v1437, %v1413
        %v1442 = vmul.f32 %v1437, %v1414
        %v1443 = vmul.f32 %v1437, %v1415
        %v1444 = vmul.f32 %v1437, %v1416
        %v1445 = vadd.f32 %v1404, %v1439
        %v1446 = vadd.f32 %v1405, %v1440
        %v1447 = vadd.f32 %v1406, %v1441
        %v1448 = vadd.f32 %v1407, %v1442
        %v1449 = vadd.f32 %v1408, %v1443
        %v1450 = vadd.f32 %v1409, %v1444
        %s1451 = scalar_lea.vmem %s980, 480
        %v1452 = vld [vmem:[%s1451] sm:$0xff]
        %v1453 = vld [vmem:[%s1451 + $0x8] sm:$0xff]
        %v1454 = vld [vmem:[%s1451 + $0x10] sm:$0xff]
        %v1455 = vld [vmem:[%s1451 + $0x18] sm:$0xff]
        %v1456 = vld [vmem:[%s1451 + $0x20] sm:$0xff]
        %v1457 = vld [vmem:[%s1451 + $0x28] sm:$0xff]
        %1458 = vrot.lane.b32.xlu0 %v1037, 118
        %v1459 = vpop.permute.xlu0 %1458
        %s1460 = vtos %v1459
        %v1461 = vstv %s1460
        %v1463 = vmul.f32 %v1461, %v1452
        %v1464 = vmul.f32 %v1461, %v1453
        %v1465 = vmul.f32 %v1461, %v1454
        %v1466 = vmul.f32 %v1461, %v1455
        %v1467 = vmul.f32 %v1461, %v1456
        %v1468 = vmul.f32 %v1461, %v1457
        %v1469 = vadd.f32 %v1428, %v1463
        %v1470 = vadd.f32 %v1429, %v1464
        %v1471 = vadd.f32 %v1430, %v1465
        %v1472 = vadd.f32 %v1431, %v1466
        %v1473 = vadd.f32 %v1432, %v1467
        %v1474 = vadd.f32 %v1433, %v1468
        %1475 = vrot.lane.b32.xlu0 %v1066, 118
        %v1476 = vpop.permute.xlu0 %1475
        %s1477 = vtos %v1476
        %v1478 = vstv %s1477
        %v1480 = vmul.f32 %v1478, %v1452
        %v1481 = vmul.f32 %v1478, %v1453
        %v1482 = vmul.f32 %v1478, %v1454
        %v1483 = vmul.f32 %v1478, %v1455
        %v1484 = vmul.f32 %v1478, %v1456
        %v1485 = vmul.f32 %v1478, %v1457
        %v1486 = vadd.f32 %v1445, %v1480
        %v1487 = vadd.f32 %v1446, %v1481
        %v1488 = vadd.f32 %v1447, %v1482
        %v1489 = vadd.f32 %v1448, %v1483
        %v1490 = vadd.f32 %v1449, %v1484
        %v1491 = vadd.f32 %v1450, %v1485
        %s1492 = scalar_lea.vmem %s980, 528
        %v1493 = vld [vmem:[%s1492] sm:$0xff]
        %v1494 = vld [vmem:[%s1492 + $0x8] sm:$0xff]
        %v1495 = vld [vmem:[%s1492 + $0x10] sm:$0xff]
        %v1496 = vld [vmem:[%s1492 + $0x18] sm:$0xff]
        %v1497 = vld [vmem:[%s1492 + $0x20] sm:$0xff]
        %v1498 = vld [vmem:[%s1492 + $0x28] sm:$0xff]
        %1499 = vrot.lane.b32.xlu0 %v1037, 117
        %v1500 = vpop.permute.xlu0 %1499
        %s1501 = vtos %v1500
        %v1502 = vstv %s1501
        %v1504 = vmul.f32 %v1502, %v1493
        %v1505 = vmul.f32 %v1502, %v1494
        %v1506 = vmul.f32 %v1502, %v1495
        %v1507 = vmul.f32 %v1502, %v1496
        %v1508 = vmul.f32 %v1502, %v1497
        %v1509 = vmul.f32 %v1502, %v1498
        %v1510 = vadd.f32 %v1469, %v1504
        %v1511 = vadd.f32 %v1470, %v1505
        %v1512 = vadd.f32 %v1471, %v1506
        %v1513 = vadd.f32 %v1472, %v1507
        %v1514 = vadd.f32 %v1473, %v1508
        %v1515 = vadd.f32 %v1474, %v1509
        %1516 = vrot.lane.b32.xlu0 %v1066, 117
        %v1517 = vpop.permute.xlu0 %1516
        %s1518 = vtos %v1517
        %v1519 = vstv %s1518
        %v1521 = vmul.f32 %v1519, %v1493
        %v1522 = vmul.f32 %v1519, %v1494
        %v1523 = vmul.f32 %v1519, %v1495
        %v1524 = vmul.f32 %v1519, %v1496
        %v1525 = vmul.f32 %v1519, %v1497
        %v1526 = vmul.f32 %v1519, %v1498
        %v1527 = vadd.f32 %v1486, %v1521
        %v1528 = vadd.f32 %v1487, %v1522
        %v1529 = vadd.f32 %v1488, %v1523
        %v1530 = vadd.f32 %v1489, %v1524
        %v1531 = vadd.f32 %v1490, %v1525
        %v1532 = vadd.f32 %v1491, %v1526
        %v1533 = vmax.f32 %v1510, 0.0
        %v1534 = vmax.f32 %v1511, 0.0
        %v1535 = vmax.f32 %v1512, 0.0
        %v1536 = vmax.f32 %v1513, 0.0
        %v1537 = vmax.f32 %v1514, 0.0
        %v1538 = vmax.f32 %v1515, 0.0
        %v1539 = vmax.f32 %v1527, 0.0
        %v1540 = vmax.f32 %v1528, 0.0
        %v1541 = vmax.f32 %v1529, 0.0
        %v1542 = vmax.f32 %v1530, 0.0
        %v1543 = vmax.f32 %v1531, 0.0
        %v1544 = vmax.f32 %v1532, 0.0
        %v1545 = vld [vmem:[%s862] sm:$0xff]
        %v1546 = vld [vmem:[#allocation3] sm:$0xff]
        %v1547 = vld [vmem:[#allocation3 + $0x8] sm:$0xff]
        %v1548 = vld [vmem:[#allocation3 + $0x10] sm:$0xff]
        %v1549 = vld [vmem:[#allocation3 + $0x18] sm:$0xff]
        %v1550 = vld [vmem:[#allocation3 + $0x20] sm:$0xff]
        %v1551 = vld [vmem:[#allocation3 + $0x28] sm:$0xff]
        %v1552 = vld [vmem:[#allocation3 + $0x30] sm:$0xff]
        %v1553 = vld [vmem:[#allocation3 + $0x38] sm:$0xff]
        %v1554 = vld [vmem:[#allocation3 + $0x40] sm:$0xff]
        %v1555 = vld [vmem:[#allocation3 + $0x48] sm:$0xff]
        %v1556 = vld [vmem:[#allocation3 + $0x50] sm:$0xff]
        %v1557 = vld [vmem:[#allocation3 + $0x58] sm:$0xff]
        %v1558 = vadd.f32 %v1025, %v1546
        %v1559 = vadd.f32 %v1026, %v1547
        %v1560 = vadd.f32 %v1027, %v1548
        %v1561 = vadd.f32 %v1028, %v1549
        %v1562 = vadd.f32 %v1029, %v1550
        %v1563 = vadd.f32 %v1030, %v1551
        %v1564 = vadd.f32 %v1031, %v1552
        %v1565 = vadd.f32 %v1032, %v1553
        %v1566 = vadd.f32 %v1033, %v1554
        %v1567 = vadd.f32 %v1034, %v1555
        %v1568 = vadd.f32 %v1035, %v1556
        %v1569 = vadd.f32 %v1036, %v1557
        %v1570 = vpack.c.bf16 %v1559, %v1558
        %v1571 = vpack.c.bf16 %v1561, %v1560
        %v1572 = vpack.c.bf16 %v1563, %v1562
        %v1573 = vpack.c.bf16 %v1565, %v1564
        %v1574 = vpack.c.bf16 %v1567, %v1566
        %v1575 = vpack.c.bf16 %v1569, %v1568
        %v1576 = vld [vmem:[%s995] sm:$0xff]
        %v1577 = vld [vmem:[%s995 + $0x8] sm:$0xff]
        %v1578 = vld [vmem:[%s995 + $0x10] sm:$0xff]
        %v1579 = vld [vmem:[%s995 + $0x18] sm:$0xff]
        %v1580 = vld [vmem:[%s995 + $0x20] sm:$0xff]
        %v1581 = vld [vmem:[%s995 + $0x28] sm:$0xff]
        %v1582 = vld [vmem:[%s995 + $0x30] sm:$0xff]
        %v1583 = vld [vmem:[%s995 + $0x38] sm:$0xff]
        %v1584 = vld [vmem:[%s995 + $0x40] sm:$0xff]
        %v1585 = vld [vmem:[%s995 + $0x48] sm:$0xff]
        %v1586 = vld [vmem:[%s995 + $0x50] sm:$0xff]
        %v1587 = vld [vmem:[%s995 + $0x58] sm:$0xff]
        %v1588 = vld [vmem:[%s995 + $0x60] sm:$0xff]
        %v1589 = vld [vmem:[%s995 + $0x68] sm:$0xff]
        %v1590 = vld [vmem:[%s995 + $0x70] sm:$0xff]
        %v1591 = vld [vmem:[%s995 + $0x78] sm:$0xff]
        %v1592 = vld [vmem:[%s853] sm:$0x3]
        %v1594 = vlaneseq
        %v1595 = vshrl.u32 %v1594, 7
        %v1596 = vsub.s32 0, %v1595
        %v1597 = vrot.slane %v1592, %v1596
        %v1598 = vlaneseq
        %v1599 = vshrl.u32 %v1598, 7
        %v1600 = vsub.s32 1, %v1599
        %v1601 = vrot.slane %v1592, %v1600
        %v1620 = vunpack.c.l.b16 %v1576
        %v1621 = vunpack.c.h.b16 %v1576
        %v1622 = vunpack.c.l.b16 %v1577
        %v1623 = vunpack.c.h.b16 %v1577
        %v1624 = vunpack.c.l.b16 %v1578
        %v1625 = vunpack.c.h.b16 %v1578
        %v1626 = vunpack.c.l.b16 %v1579
        %v1627 = vunpack.c.h.b16 %v1579
        %v1628 = vunpack.c.l.b16 %v1580
        %v1629 = vunpack.c.h.b16 %v1580
        %v1630 = vunpack.c.l.b16 %v1581
        %v1631 = vunpack.c.h.b16 %v1581
        %v1632 = vunpack.c.l.b16 %v1582
        %v1633 = vunpack.c.h.b16 %v1582
        %v1634 = vunpack.c.l.b16 %v1583
        %v1635 = vunpack.c.h.b16 %v1583
        %v1636 = vunpack.c.l.b16 %v1584
        %v1637 = vunpack.c.h.b16 %v1584
        %v1638 = vunpack.c.l.b16 %v1585
        %v1639 = vunpack.c.h.b16 %v1585
        %v1640 = vunpack.c.l.b16 %v1586
        %v1641 = vunpack.c.h.b16 %v1586
        %v1642 = vunpack.c.l.b16 %v1587
        %v1643 = vunpack.c.h.b16 %v1587
        %v1644 = vunpack.c.l.b16 %v1588
        %v1645 = vunpack.c.h.b16 %v1588
        %v1646 = vunpack.c.l.b16 %v1589
        %v1647 = vunpack.c.h.b16 %v1589
        %v1648 = vunpack.c.l.b16 %v1590
        %v1649 = vunpack.c.h.b16 %v1590
        %v1650 = vunpack.c.l.b16 %v1591
        %v1651 = vunpack.c.h.b16 %v1591
        %v1652 = vpack.c.b16 %v1622, %v1620
        %v1653 = vpack.c.b16 %v1623, %v1621
        %v1654 = vpack.c.b16 %v1626, %v1624
        %v1655 = vpack.c.b16 %v1627, %v1625
        %v1656 = vpack.c.b16 %v1630, %v1628
        %v1657 = vpack.c.b16 %v1631, %v1629
        %v1658 = vpack.c.b16 %v1634, %v1632
        %v1659 = vpack.c.b16 %v1635, %v1633
        %v1660 = vpack.c.b16 %v1638, %v1636
        %v1661 = vpack.c.b16 %v1639, %v1637
        %v1662 = vpack.c.b16 %v1642, %v1640
        %v1663 = vpack.c.b16 %v1643, %v1641
        %v1664 = vpack.c.b16 %v1646, %v1644
        %v1665 = vpack.c.b16 %v1647, %v1645
        %v1666 = vpack.c.b16 %v1650, %v1648
        %v1667 = vpack.c.b16 %v1651, %v1649
        %1684 = vmatprep.subr.bf16.mxu0 %v1653
        %1685 = vmatpush1.bf16.msra.mxu0 %v1652
        %1686 = vmatprep.subr.bf16.mxu0 %v1655
        %1687 = vmatpush1.bf16.msra.mxu0 %v1654
        %1688 = vmatprep.subr.bf16.mxu0 %v1657
        %1689 = vmatpush1.bf16.msra.mxu0 %v1656
        %1690 = vmatprep.subr.bf16.mxu0 %v1659
        %1691 = vmatpush1.bf16.msra.mxu0 %v1658
        %1692 = vmatprep.subr.bf16.mxu0 %v1661
        %1693 = vmatpush1.bf16.msra.mxu0 %v1660
        %1694 = vmatprep.subr.bf16.mxu0 %v1663
        %1695 = vmatpush1.bf16.msra.mxu0 %v1662
        %1696 = vmatprep.subr.bf16.mxu0 %v1665
        %1697 = vmatpush1.bf16.msra.mxu0 %v1664
        %1698 = vmatprep.subr.bf16.mxu0 %v1667
        %1699 = vmatpush1.bf16.msra.mxu0 %v1666
        %1700 = vmatprep.subr.bf16.mxu0 0
        %1701 = vmatpush1.bf16.msra.mxu0 0
        %1702 = vmatprep.subr.bf16.mxu0 0
        %1703 = vmatpush1.bf16.msra.mxu0 0
        %1704 = vmatprep.subr.bf16.mxu0 0
        %1705 = vmatpush1.bf16.msra.mxu0 0
        %1706 = vmatprep.subr.bf16.mxu0 0
        %1707 = vmatpush1.bf16.msra.mxu0 0
        %1708 = vmatprep.subr.bf16.mxu0 0
        %1709 = vmatpush1.bf16.msra.mxu0 0
        %1710 = vmatprep.subr.bf16.mxu0 0
        %1711 = vmatpush1.bf16.msra.mxu0 0
        %1712 = vmatprep.subr.bf16.mxu0 0
        %1713 = vmatpush1.bf16.msra.mxu0 0
        %1714 = vmatprep.subr.bf16.mxu0 0
        %1715 = vmatpush1.bf16.msra.mxu0 0
        %1716 = vmatprep.mubr.bf16.mxu0 0
        %1717 = vmatmul.mubr.bf16.gmra.mrb[0].mxu0 %v1570
        %v1718 = vpop.f32.mrb[0].mxu0
        %v1719 = vadd.f32 %v1597, %v1718
        %v1720 = vpop.f32.mrb[0].mxu0
        %v1721 = vadd.f32 %v1601, %v1720
        %v1722 = vpop.f32.mrb[0].mxu0
        %v1723 = vadd.f32 %v1597, %v1722
        %v1724 = vpop.f32.mrb[0].mxu0
        %v1725 = vadd.f32 %v1601, %v1724
        %1726 = vmatprep.mubr.bf16.mxu0 0
        %1727 = vmatmul.mubr.bf16.gmra.mrb[0].mxu0 %v1571
        %v1728 = vpop.f32.mrb[0].mxu0
        %v1729 = vadd.f32 %v1597, %v1728
        %v1730 = vpop.f32.mrb[0].mxu0
        %v1731 = vadd.f32 %v1601, %v1730
        %v1732 = vpop.f32.mrb[0].mxu0
        %v1733 = vadd.f32 %v1597, %v1732
        %v1734 = vpop.f32.mrb[0].mxu0
        %v1735 = vadd.f32 %v1601, %v1734
        %1736 = vmatprep.mubr.bf16.mxu0 0
        %1737 = vmatmul.mubr.bf16.gmra.mrb[0].mxu0 %v1572
        %v1738 = vpop.f32.mrb[0].mxu0
        %v1739 = vadd.f32 %v1597, %v1738
        %v1740 = vpop.f32.mrb[0].mxu0
        %v1741 = vadd.f32 %v1601, %v1740
        %v1742 = vpop.f32.mrb[0].mxu0
        %v1743 = vadd.f32 %v1597, %v1742
        %v1744 = vpop.f32.mrb[0].mxu0
        %v1745 = vadd.f32 %v1601, %v1744
        %1746 = vmatprep.mubr.bf16.mxu0 0
        %1747 = vmatmul.mubr.bf16.gmra.mrb[0].mxu0 %v1573
        %v1748 = vpop.f32.mrb[0].mxu0
        %v1749 = vadd.f32 %v1597, %v1748
        %v1750 = vpop.f32.mrb[0].mxu0
        %v1751 = vadd.f32 %v1601, %v1750
        %v1752 = vpop.f32.mrb[0].mxu0
        %v1753 = vadd.f32 %v1597, %v1752
        %v1754 = vpop.f32.mrb[0].mxu0
        %v1755 = vadd.f32 %v1601, %v1754
        %1756 = vmatprep.mubr.bf16.mxu0 0
        %1757 = vmatmul.mubr.bf16.gmra.mrb[0].mxu0 %v1574
        %v1758 = vpop.f32.mrb[0].mxu0
        %v1759 = vadd.f32 %v1597, %v1758
        %v1760 = vpop.f32.mrb[0].mxu0
        %v1761 = vadd.f32 %v1601, %v1760
        %v1762 = vpop.f32.mrb[0].mxu0
        %v1763 = vadd.f32 %v1597, %v1762
        %v1764 = vpop.f32.mrb[0].mxu0
        %v1765 = vadd.f32 %v1601, %v1764
        %1766 = vmatprep.mubr.bf16.mxu0 0
        %1767 = vmatmul.mubr.bf16.gmra.mrb[0].mxu0 %v1575
        %v1768 = vpop.f32.mrb[0].mxu0
        %v1769 = vadd.f32 %v1597, %v1768
        %v1770 = vpop.f32.mrb[0].mxu0
        %v1771 = vadd.f32 %v1601, %v1770
        %v1772 = vpop.f32.mrb[0].mxu0
        %v1773 = vadd.f32 %v1597, %v1772
        %v1774 = vpop.f32.mrb[0].mxu0
        %v1775 = vadd.f32 %v1601, %v1774
        %1776 = vdwg.mxu0
        %v1777 = vpack.c.bf16 %v1723, %v1719
        %v1778 = vpack.c.bf16 %v1725, %v1721
        %v1779 = vpack.c.bf16 %v1733, %v1729
        %v1780 = vpack.c.bf16 %v1735, %v1731
        %v1781 = vpack.c.bf16 %v1743, %v1739
        %v1782 = vpack.c.bf16 %v1745, %v1741
        %v1783 = vpack.c.bf16 %v1753, %v1749
        %v1784 = vpack.c.bf16 %v1755, %v1751
        %v1785 = vpack.c.bf16 %v1763, %v1759
        %v1786 = vpack.c.bf16 %v1765, %v1761
        %v1787 = vpack.c.bf16 %v1773, %v1769
        %v1788 = vpack.c.bf16 %v1775, %v1771
        %v1789 = vpack.c.bf16 %v1534, %v1533
        %v1790 = vpack.c.bf16 %v1536, %v1535
        %v1791 = vpack.c.bf16 %v1538, %v1537
        %v1792 = vpack.c.bf16 %v1540, %v1539
        %v1793 = vpack.c.bf16 %v1542, %v1541
        %v1794 = vpack.c.bf16 %v1544, %v1543
        %v1795 = vld [vmem:[%s990] sm:$0xf]
        %v1796 = vld [vmem:[%s990 + $0x4] sm:$0xf]
        %v1797 = vld [vmem:[%s990 + $0x8] sm:$0xf]
        %v1798 = vld [vmem:[%s990 + $0xc] sm:$0xf]
        %v1799 = vld [vmem:[%s990 + $0x10] sm:$0xf]
        %v1800 = vld [vmem:[%s990 + $0x14] sm:$0xf]
        %v1801 = vld [vmem:[%s990 + $0x18] sm:$0xf]
        %v1802 = vld [vmem:[%s990 + $0x1c] sm:$0xf]
        %v1803 = vld [vmem:[%s990 + $0x20] sm:$0xf]
        %v1804 = vld [vmem:[%s990 + $0x24] sm:$0xf]
        %v1805 = vld [vmem:[%s990 + $0x28] sm:$0xf]
        %v1806 = vld [vmem:[%s990 + $0x2c] sm:$0xf]
        %v1807 = vld [vmem:[%s990 + $0x30] sm:$0xf]
        %v1808 = vld [vmem:[%s990 + $0x34] sm:$0xf]
        %v1809 = vld [vmem:[%s990 + $0x38] sm:$0xf]
        %v1810 = vld [vmem:[%s990 + $0x3c] sm:$0xf]
        %v1811 = vlaneseq
        %v1812 = vshrl.u32 %v1811, 7
        %v1813 = vsub.s32 0, %v1812
        %v1814 = vrot.slane %v1545, %v1813
        %v1831 = vunpack.c.l.b16 %v1795
        %v1832 = vunpack.c.l.b16 %v1796
        %v1833 = vunpack.c.l.b16 %v1797
        %v1834 = vunpack.c.l.b16 %v1798
        %v1835 = vunpack.c.l.b16 %v1799
        %v1836 = vunpack.c.l.b16 %v1800
        %v1837 = vunpack.c.l.b16 %v1801
        %v1838 = vunpack.c.l.b16 %v1802
        %v1839 = vunpack.c.l.b16 %v1803
        %v1840 = vunpack.c.l.b16 %v1804
        %v1841 = vunpack.c.l.b16 %v1805
        %v1842 = vunpack.c.l.b16 %v1806
        %v1843 = vunpack.c.l.b16 %v1807
        %v1844 = vunpack.c.l.b16 %v1808
        %v1845 = vunpack.c.l.b16 %v1809
        %v1846 = vunpack.c.l.b16 %v1810
        %v1847 = vpack.c.b16 %v1832, %v1831
        %v1848 = vpack.c.b16 %v1834, %v1833
        %v1849 = vpack.c.b16 %v1836, %v1835
        %v1850 = vpack.c.b16 %v1838, %v1837
        %v1851 = vpack.c.b16 %v1840, %v1839
        %v1852 = vpack.c.b16 %v1842, %v1841
        %v1853 = vpack.c.b16 %v1844, %v1843
        %v1854 = vpack.c.b16 %v1846, %v1845
        %1863 = vmatprep.subr.bf16.mxu0 0
        %1864 = vmatpush1.bf16.msra.mxu0 %v1847
        %1865 = vmatprep.subr.bf16.mxu0 0
        %1866 = vmatpush1.bf16.msra.mxu0 %v1848
        %1867 = vmatprep.subr.bf16.mxu0 0
        %1868 = vmatpush1.bf16.msra.mxu0 %v1849
        %1869 = vmatprep.subr.bf16.mxu0 0
        %1870 = vmatpush1.bf16.msra.mxu0 %v1850
        %1871 = vmatprep.subr.bf16.mxu0 0
        %1872 = vmatpush1.bf16.msra.mxu0 %v1851
        %1873 = vmatprep.subr.bf16.mxu0 0
        %1874 = vmatpush1.bf16.msra.mxu0 %v1852
        %1875 = vmatprep.subr.bf16.mxu0 0
        %1876 = vmatpush1.bf16.msra.mxu0 %v1853
        %1877 = vmatprep.subr.bf16.mxu0 0
        %1878 = vmatpush1.bf16.msra.mxu0 %v1854
        %1879 = vmatprep.subr.bf16.mxu0 0
        %1880 = vmatpush1.bf16.msra.mxu0 0
        %1881 = vmatprep.subr.bf16.mxu0 0
        %1882 = vmatpush1.bf16.msra.mxu0 0
        %1883 = vmatprep.subr.bf16.mxu0 0
        %1884 = vmatpush1.bf16.msra.mxu0 0
        %1885 = vmatprep.subr.bf16.mxu0 0
        %1886 = vmatpush1.bf16.msra.mxu0 0
        %1887 = vmatprep.subr.bf16.mxu0 0
        %1888 = vmatpush1.bf16.msra.mxu0 0
        %1889 = vmatprep.subr.bf16.mxu0 0
        %1890 = vmatpush1.bf16.msra.mxu0 0
        %1891 = vmatprep.subr.bf16.mxu0 0
        %1892 = vmatpush1.bf16.msra.mxu0 0
        %1893 = vmatprep.subr.bf16.mxu0 0
        %1894 = vmatpush1.bf16.msra.mxu0 0
        %1895 = vmatprep.mubr.bf16.mxu0 0
        %1896 = vmatmul.mubr.bf16.gmra.mrb[0].mxu0 %v1789
        %v1897 = vpop.f32.mrb[0].mxu0
        %v1898 = vadd.f32 %v1814, %v1897
        %v1899 = vpop.f32.mrb[0].mxu0
        %v1900 = vpop.f32.mrb[0].mxu0
        %v1901 = vadd.f32 %v1814, %v1900
        %v1902 = vpop.f32.mrb[0].mxu0
        %1903 = vmatprep.mubr.bf16.mxu0 0
        %1904 = vmatmul.mubr.bf16.gmra.mrb[0].mxu0 %v1790
        %v1905 = vpop.f32.mrb[0].mxu0
        %v1906 = vadd.f32 %v1814, %v1905
        %v1907 = vpop.f32.mrb[0].mxu0
        %v1908 = vpop.f32.mrb[0].mxu0
        %v1909 = vadd.f32 %v1814, %v1908
        %v1910 = vpop.f32.mrb[0].mxu0
        %1911 = vmatprep.mubr.bf16.mxu0 0
        %1912 = vmatmul.mubr.bf16.gmra.mrb[0].mxu0 %v1791
        %v1913 = vpop.f32.mrb[0].mxu0
        %v1914 = vadd.f32 %v1814, %v1913
        %v1915 = vpop.f32.mrb[0].mxu0
        %v1916 = vpop.f32.mrb[0].mxu0
        %v1917 = vadd.f32 %v1814, %v1916
        %v1918 = vpop.f32.mrb[0].mxu0
        %1919 = vmatprep.mubr.bf16.mxu0 0
        %1920 = vmatmul.mubr.bf16.gmra.mrb[0].mxu0 %v1792
        %v1921 = vpop.f32.mrb[0].mxu0
        %v1922 = vadd.f32 %v1814, %v1921
        %v1923 = vpop.f32.mrb[0].mxu0
        %v1924 = vpop.f32.mrb[0].mxu0
        %v1925 = vadd.f32 %v1814, %v1924
        %v1926 = vpop.f32.mrb[0].mxu0
        %1927 = vmatprep.mubr.bf16.mxu0 0
        %1928 = vmatmul.mubr.bf16.gmra.mrb[0].mxu0 %v1793
        %v1929 = vpop.f32.mrb[0].mxu0
        %v1930 = vadd.f32 %v1814, %v1929
        %v1931 = vpop.f32.mrb[0].mxu0
        %v1932 = vpop.f32.mrb[0].mxu0
        %v1933 = vadd.f32 %v1814, %v1932
        %v1934 = vpop.f32.mrb[0].mxu0
        %1935 = vmatprep.mubr.bf16.mxu0 0
        %1936 = vmatmul.mubr.bf16.gmra.mrb[0].mxu0 %v1794
        %v1937 = vpop.f32.mrb[0].mxu0
        %v1938 = vadd.f32 %v1814, %v1937
        %v1939 = vpop.f32.mrb[0].mxu0
        %v1940 = vpop.f32.mrb[0].mxu0
        %v1941 = vadd.f32 %v1814, %v1940
        %v1942 = vpop.f32.mrb[0].mxu0
        %1943 = vdwg.mxu0
        %v1944 = vld [vmem:[#allocation6] sm:$0xff]
        %v1945 = vld [vmem:[#allocation6 + $0x8] sm:$0xff]
        %v1946 = vld [vmem:[#allocation6 + $0x10] sm:$0xff]
        %v1947 = vld [vmem:[#allocation6 + $0x18] sm:$0xff]
        %v1948 = vld [vmem:[#allocation6 + $0x20] sm:$0xff]
        %v1949 = vld [vmem:[#allocation6 + $0x28] sm:$0xff]
        %v1950 = vld [vmem:[#allocation6 + $0x30] sm:$0xff]
        %v1951 = vld [vmem:[#allocation6 + $0x38] sm:$0xff]
        %v1952 = vld [vmem:[#allocation6 + $0x40] sm:$0xff]
        %v1953 = vld [vmem:[#allocation6 + $0x48] sm:$0xff]
        %v1954 = vld [vmem:[#allocation6 + $0x50] sm:$0xff]
        %v1955 = vld [vmem:[#allocation6 + $0x58] sm:$0xff]
        %v1956 = vpack.c.bf16 %v1901, %v1898
        %v1957 = vpack.c.bf16 %v1909, %v1906
        %v1958 = vpack.c.bf16 %v1917, %v1914
        %v1959 = vpack.c.bf16 %v1925, %v1922
        %v1960 = vpack.c.bf16 %v1933, %v1930
        %v1961 = vpack.c.bf16 %v1941, %v1938
        %vm1962 = vcmask 523264
        %v1964 = vsel %vm1962, %v1956, 0
        %v1967 = vsel %vm1962, %v1957, 0
        %v1970 = vsel %vm1962, %v1958, 0
        %v1973 = vsel %vm1962, %v1959, 0
        %v1976 = vsel %vm1962, %v1960, 0
        %v1979 = vsel %vm1962, %v1961, 0
        %v1982 = vsel %vm1962, %v1777, 0
        %v1985 = vsel %vm1962, %v1779, 0
        %v1988 = vsel %vm1962, %v1781, 0
        %v1991 = vsel %vm1962, %v1783, 0
        %v1994 = vsel %vm1962, %v1785, 0
        %v1997 = vsel %vm1962, %v1787, 0
        %1999 = vmatprep.subr.bf16.mxu0 0
        %2000 = vmatpush1.bf16.xpose.msra.mxu0 %v1982
        %2001 = vmatprep.subr.bf16.mxu0 0
        %2002 = vmatpush1.bf16.xpose.msra.mxu0 %v1985
        %2003 = vmatprep.subr.bf16.mxu0 0
        %2004 = vmatpush1.bf16.xpose.msra.mxu0 %v1988
        %2005 = vmatprep.subr.bf16.mxu0 0
        %2006 = vmatpush1.bf16.xpose.msra.mxu0 %v1991
        %2007 = vmatprep.subr.bf16.mxu0 0
        %2008 = vmatpush1.bf16.xpose.msra.mxu0 %v1994
        %2009 = vmatprep.subr.bf16.mxu0 0
        %2010 = vmatpush1.bf16.xpose.msra.mxu0 %v1997
        %2011 = vmatprep.subr.bf16.mxu0 0
        %2012 = vmatpush1.bf16.xpose.msra.mxu0 0
        %2013 = vmatprep.subr.bf16.mxu0 0
        %2014 = vmatpush1.bf16.xpose.msra.mxu0 0
        %2015 = vmatprep.subr.bf16.mxu0 0
        %2016 = vmatpush1.bf16.xpose.msra.mxu0 0
        %2017 = vmatprep.subr.bf16.mxu0 0
        %2018 = vmatpush1.bf16.xpose.msra.mxu0 0
        %2019 = vmatprep.subr.bf16.mxu0 0
        %2020 = vmatpush1.bf16.xpose.msra.mxu0 0
        %2021 = vmatprep.subr.bf16.mxu0 0
        %2022 = vmatpush1.bf16.xpose.msra.mxu0 0
        %2023 = vmatprep.subr.bf16.mxu0 0
        %2024 = vmatpush1.bf16.xpose.msra.mxu0 0
        %2025 = vmatprep.subr.bf16.mxu0 0
        %2026 = vmatpush1.bf16.xpose.msra.mxu0 0
        %2027 = vmatprep.subr.bf16.mxu0 0
        %2028 = vmatpush1.bf16.xpose.msra.mxu0 0
        %2029 = vmatprep.subr.bf16.mxu0 0
        %2030 = vmatpush1.bf16.xpose.msra.mxu0 0
        %2031 = vmatprep.mubr.bf16.mxu0 0
        %2032 = vmatmul.mubr.bf16.gmra.mrb[0].mxu0 %v1964
        %v2033 = vpop.f32.mrb[0].mxu0
        %v2034 = vadd.f32 0.0, %v2033
        %v2035 = vpop.f32.mrb[0].mxu0
        %v2036 = vpop.f32.mrb[0].mxu0
        %v2037 = vadd.f32 0.0, %v2036
        %v2038 = vpop.f32.mrb[0].mxu0
        %2039 = vmatprep.mubr.bf16.mxu0 0
        %2040 = vmatmul.mubr.bf16.gmra.mrb[0].mxu0 %v1967
        %v2041 = vpop.f32.mrb[0].mxu0
        %v2042 = vadd.f32 0.0, %v2041
        %v2043 = vpop.f32.mrb[0].mxu0
        %v2044 = vpop.f32.mrb[0].mxu0
        %v2045 = vadd.f32 0.0, %v2044
        %v2046 = vpop.f32.mrb[0].mxu0
        %2047 = vmatprep.mubr.bf16.mxu0 0
        %2048 = vmatmul.mubr.bf16.gmra.mrb[0].mxu0 %v1970
        %v2049 = vpop.f32.mrb[0].mxu0
        %v2050 = vadd.f32 0.0, %v2049
        %v2051 = vpop.f32.mrb[0].mxu0
        %v2052 = vpop.f32.mrb[0].mxu0
        %v2053 = vadd.f32 0.0, %v2052
        %v2054 = vpop.f32.mrb[0].mxu0
        %2055 = vmatprep.mubr.bf16.mxu0 0
        %2056 = vmatmul.mubr.bf16.gmra.mrb[0].mxu0 %v1973
        %v2057 = vpop.f32.mrb[0].mxu0
        %v2058 = vadd.f32 0.0, %v2057
        %v2059 = vpop.f32.mrb[0].mxu0
        %v2060 = vpop.f32.mrb[0].mxu0
        %v2061 = vadd.f32 0.0, %v2060
        %v2062 = vpop.f32.mrb[0].mxu0
        %2063 = vmatprep.mubr.bf16.mxu0 0
        %2064 = vmatmul.mubr.bf16.gmra.mrb[0].mxu0 %v1976
        %v2065 = vpop.f32.mrb[0].mxu0
        %v2066 = vadd.f32 0.0, %v2065
        %v2067 = vpop.f32.mrb[0].mxu0
        %v2068 = vpop.f32.mrb[0].mxu0
        %v2069 = vadd.f32 0.0, %v2068
        %v2070 = vpop.f32.mrb[0].mxu0
        %2071 = vmatprep.mubr.bf16.mxu0 0
        %2072 = vmatmul.mubr.bf16.gmra.mrb[0].mxu0 %v1979
        %v2073 = vpop.f32.mrb[0].mxu0
        %v2074 = vadd.f32 0.0, %v2073
        %v2075 = vpop.f32.mrb[0].mxu0
        %v2076 = vpop.f32.mrb[0].mxu0
        %v2077 = vadd.f32 0.0, %v2076
        %v2078 = vpop.f32.mrb[0].mxu0
        %2079 = vdwg.mxu0
        %v2080 = vmul.f32 %v2034, 0.125
        %v2081 = vmul.f32 %v2037, 0.125
        %v2082 = vmul.f32 %v2042, 0.125
        %v2083 = vmul.f32 %v2045, 0.125
        %v2084 = vmul.f32 %v2050, 0.125
        %v2085 = vmul.f32 %v2053, 0.125
        %v2086 = vmul.f32 %v2058, 0.125
        %v2087 = vmul.f32 %v2061, 0.125
        %v2088 = vmul.f32 %v2066, 0.125
        %v2089 = vmul.f32 %v2069, 0.125
        %v2090 = vmul.f32 %v2074, 0.125
        %v2091 = vmul.f32 %v2077, 0.125
        %v2092 = vadd.f32 %v2080, %v1944
        %v2093 = vadd.f32 %v2081, %v1945
        %v2094 = vadd.f32 %v2082, %v1946
        %v2095 = vadd.f32 %v2083, %v1947
        %v2096 = vadd.f32 %v2084, %v1948
        %v2097 = vadd.f32 %v2085, %v1949
        %v2098 = vadd.f32 %v2086, %v1950
        %v2099 = vadd.f32 %v2087, %v1951
        %v2100 = vadd.f32 %v2088, %v1952
        %v2101 = vadd.f32 %v2089, %v1953
        %v2102 = vadd.f32 %v2090, %v1954
        %v2103 = vadd.f32 %v2091, %v1955
        %vm2104 = vcmask 785408
        %v2105 = vsel %vm2104, %v2092, -inf
        %2106 = vmax.xlane.f32.xlu0 %v2105
        %v2107 = vpop.xlane.xlu0 %2106
        %v2108 = vsel %vm2104, %v2093, -inf
        %2109 = vmax.xlane.f32.xlu0 %v2108
        %v2110 = vpop.xlane.xlu0 %2109
        %v2111 = vsel %vm2104, %v2094, -inf
        %2112 = vmax.xlane.f32.xlu0 %v2111
        %v2113 = vpop.xlane.xlu0 %2112
        %v2114 = vsel %vm2104, %v2095, -inf
        %2115 = vmax.xlane.f32.xlu0 %v2114
        %v2116 = vpop.xlane.xlu0 %2115
        %v2117 = vsel %vm2104, %v2096, -inf
        %2118 = vmax.xlane.f32.xlu0 %v2117
        %v2119 = vpop.xlane.xlu0 %2118
        %v2120 = vsel %vm2104, %v2097, -inf
        %2121 = vmax.xlane.f32.xlu0 %v2120
        %v2122 = vpop.xlane.xlu0 %2121
        %v2123 = vsel %vm2104, %v2098, -inf
        %2124 = vmax.xlane.f32.xlu0 %v2123
        %v2125 = vpop.xlane.xlu0 %2124
        %v2126 = vsel %vm2104, %v2099, -inf
        %2127 = vmax.xlane.f32.xlu0 %v2126
        %v2128 = vpop.xlane.xlu0 %2127
        %v2129 = vsel %vm2104, %v2100, -inf
        %2130 = vmax.xlane.f32.xlu0 %v2129
        %v2131 = vpop.xlane.xlu0 %2130
        %v2132 = vsel %vm2104, %v2101, -inf
        %2133 = vmax.xlane.f32.xlu0 %v2132
        %v2134 = vpop.xlane.xlu0 %2133
        %v2135 = vsel %vm2104, %v2102, -inf
        %2136 = vmax.xlane.f32.xlu0 %v2135
        %v2137 = vpop.xlane.xlu0 %2136
        %v2138 = vsel %vm2104, %v2103, -inf
        %2139 = vmax.xlane.f32.xlu0 %v2138
        %v2140 = vpop.xlane.xlu0 %2139
        %v2141 = vsub.f32 %v2092, %v2107
        %v2142 = vsub.f32 %v2093, %v2110
        %v2143 = vsub.f32 %v2094, %v2113
        %v2144 = vsub.f32 %v2095, %v2116
        %v2145 = vsub.f32 %v2096, %v2119
        %v2146 = vsub.f32 %v2097, %v2122
        %v2147 = vsub.f32 %v2098, %v2125
        %v2148 = vsub.f32 %v2099, %v2128
        %v2149 = vsub.f32 %v2100, %v2131
        %v2150 = vsub.f32 %v2101, %v2134
        %v2151 = vsub.f32 %v2102, %v2137
        %v2152 = vsub.f32 %v2103, %v2140
        %v2153 = vmul.f32 %v2141, 1.442695
        %v2154 = vpow.pop %v2153
        %v2155 = vmul.f32 %v2142, 1.442695
        %v2156 = vpow.pop %v2155
        %v2157 = vmul.f32 %v2143, 1.442695
        %v2158 = vpow.pop %v2157
        %v2159 = vmul.f32 %v2144, 1.442695
        %v2160 = vpow.pop %v2159
        %v2161 = vmul.f32 %v2145, 1.442695
        %v2162 = vpow.pop %v2161
        %v2163 = vmul.f32 %v2146, 1.442695
        %v2164 = vpow.pop %v2163
        %v2165 = vmul.f32 %v2147, 1.442695
        %v2166 = vpow.pop %v2165
        %v2167 = vmul.f32 %v2148, 1.442695
        %v2168 = vpow.pop %v2167
        %v2169 = vmul.f32 %v2149, 1.442695
        %v2170 = vpow.pop %v2169
        %v2171 = vmul.f32 %v2150, 1.442695
        %v2172 = vpow.pop %v2171
        %v2173 = vmul.f32 %v2151, 1.442695
        %v2174 = vpow.pop %v2173
        %v2175 = vmul.f32 %v2152, 1.442695
        %v2176 = vpow.pop %v2175
        %v2177 = vsel %vm2104, %v2154, 0.0
        %2178 = vadd.xlane.f32.xlu0 %v2177
        %v2179 = vpop.xlane.xlu0 %2178
        %v2180 = vsel %vm2104, %v2156, 0.0
        %2181 = vadd.xlane.f32.xlu0 %v2180
        %v2182 = vpop.xlane.xlu0 %2181
        %v2183 = vsel %vm2104, %v2158, 0.0
        %2184 = vadd.xlane.f32.xlu0 %v2183
        %v2185 = vpop.xlane.xlu0 %2184
        %v2186 = vsel %vm2104, %v2160, 0.0
        %2187 = vadd.xlane.f32.xlu0 %v2186
        %v2188 = vpop.xlane.xlu0 %2187
        %v2189 = vsel %vm2104, %v2162, 0.0
        %2190 = vadd.xlane.f32.xlu0 %v2189
        %v2191 = vpop.xlane.xlu0 %2190
        %v2192 = vsel %vm2104, %v2164, 0.0
        %2193 = vadd.xlane.f32.xlu0 %v2192
        %v2194 = vpop.xlane.xlu0 %2193
        %v2195 = vsel %vm2104, %v2166, 0.0
        %2196 = vadd.xlane.f32.xlu0 %v2195
        %v2197 = vpop.xlane.xlu0 %2196
        %v2198 = vsel %vm2104, %v2168, 0.0
        %2199 = vadd.xlane.f32.xlu0 %v2198
        %v2200 = vpop.xlane.xlu0 %2199
        %v2201 = vsel %vm2104, %v2170, 0.0
        %2202 = vadd.xlane.f32.xlu0 %v2201
        %v2203 = vpop.xlane.xlu0 %2202
        %v2204 = vsel %vm2104, %v2172, 0.0
        %2205 = vadd.xlane.f32.xlu0 %v2204
        %v2206 = vpop.xlane.xlu0 %2205
        %v2207 = vsel %vm2104, %v2174, 0.0
        %2208 = vadd.xlane.f32.xlu0 %v2207
        %v2209 = vpop.xlane.xlu0 %2208
        %v2210 = vsel %vm2104, %v2176, 0.0
        %2211 = vadd.xlane.f32.xlu0 %v2210
        %v2212 = vpop.xlane.xlu0 %2211
        %v2213 = vrcp.pop %v2179
        %v2214 = vrcp.pop %v2182
        %v2215 = vrcp.pop %v2185
        %v2216 = vrcp.pop %v2188
        %v2217 = vrcp.pop %v2191
        %v2218 = vrcp.pop %v2194
        %v2219 = vrcp.pop %v2197
        %v2220 = vrcp.pop %v2200
        %v2221 = vrcp.pop %v2203
        %v2222 = vrcp.pop %v2206
        %v2223 = vrcp.pop %v2209
        %v2224 = vrcp.pop %v2212
        %v2225 = vmul.f32 %v2154, %v2213
        %v2226 = vmul.f32 %v2156, %v2214
        %v2227 = vmul.f32 %v2158, %v2215
        %v2228 = vmul.f32 %v2160, %v2216
        %v2229 = vmul.f32 %v2162, %v2217
        %v2230 = vmul.f32 %v2164, %v2218
        %v2231 = vmul.f32 %v2166, %v2219
        %v2232 = vmul.f32 %v2168, %v2220
        %v2233 = vmul.f32 %v2170, %v2221
        %v2234 = vmul.f32 %v2172, %v2222
        %v2235 = vmul.f32 %v2174, %v2223
        %v2236 = vmul.f32 %v2176, %v2224
        %v2237 = vpack.c.bf16 %v2226, %v2225
        %v2238 = vpack.c.bf16 %v2228, %v2227
        %v2239 = vpack.c.bf16 %v2230, %v2229
        %v2240 = vpack.c.bf16 %v2232, %v2231
        %v2241 = vpack.c.bf16 %v2234, %v2233
        %v2242 = vpack.c.bf16 %v2236, %v2235
        %v2244 = vsel %vm2104, %v2237, 0
        %v2247 = vsel %vm2104, %v2238, 0
        %v2250 = vsel %vm2104, %v2239, 0
        %v2253 = vsel %vm2104, %v2240, 0
        %v2256 = vsel %vm2104, %v2241, 0
        %v2259 = vsel %vm2104, %v2242, 0
        %2261 = vmatprep.subr.bf16.mxu0 0
        %2262 = vmatpush1.bf16.msra.mxu0 %v1778
        %2263 = vmatprep.subr.bf16.mxu0 0
        %2264 = vmatpush1.bf16.msra.mxu0 %v1780
        %2265 = vmatprep.subr.bf16.mxu0 0
        %2266 = vmatpush1.bf16.msra.mxu0 %v1782
        %2267 = vmatprep.subr.bf16.mxu0 0
        %2268 = vmatpush1.bf16.msra.mxu0 %v1784
        %2269 = vmatprep.subr.bf16.mxu0 0
        %2270 = vmatpush1.bf16.msra.mxu0 %v1786
        %2271 = vmatprep.subr.bf16.mxu0 0
        %2272 = vmatpush1.bf16.msra.mxu0 %v1788
        %2273 = vmatprep.subr.bf16.mxu0 0
        %2274 = vmatpush1.bf16.msra.mxu0 0
        %2275 = vmatprep.subr.bf16.mxu0 0
        %2276 = vmatpush1.bf16.msra.mxu0 0
        %2277 = vmatprep.subr.bf16.mxu0 0
        %2278 = vmatpush1.bf16.msra.mxu0 0
        %2279 = vmatprep.subr.bf16.mxu0 0
        %2280 = vmatpush1.bf16.msra.mxu0 0
        %2281 = vmatprep.subr.bf16.mxu0 0
        %2282 = vmatpush1.bf16.msra.mxu0 0
        %2283 = vmatprep.subr.bf16.mxu0 0
        %2284 = vmatpush1.bf16.msra.mxu0 0
        %2285 = vmatprep.subr.bf16.mxu0 0
        %2286 = vmatpush1.bf16.msra.mxu0 0
        %2287 = vmatprep.subr.bf16.mxu0 0
        %2288 = vmatpush1.bf16.msra.mxu0 0
        %2289 = vmatprep.subr.bf16.mxu0 0
        %2290 = vmatpush1.bf16.msra.mxu0 0
        %2291 = vmatprep.subr.bf16.mxu0 0
        %2292 = vmatpush1.bf16.msra.mxu0 0
        %2293 = vmatprep.mubr.bf16.mxu0 0
        %2294 = vmatmul.mubr.bf16.gmra.mrb[0].mxu0 %v2244
        %v2295 = vpop.f32.mrb[0].mxu0
        %v2296 = vadd.f32 0.0, %v2295
        %v2297 = vpop.f32.mrb[0].mxu0
        %v2298 = vpop.f32.mrb[0].mxu0
        %v2299 = vadd.f32 0.0, %v2298
        %v2300 = vpop.f32.mrb[0].mxu0
        %2301 = vmatprep.mubr.bf16.mxu0 0
        %2302 = vmatmul.mubr.bf16.gmra.mrb[0].mxu0 %v2247
        %v2303 = vpop.f32.mrb[0].mxu0
        %v2304 = vadd.f32 0.0, %v2303
        %v2305 = vpop.f32.mrb[0].mxu0
        %v2306 = vpop.f32.mrb[0].mxu0
        %v2307 = vadd.f32 0.0, %v2306
        %v2308 = vpop.f32.mrb[0].mxu0
        %2309 = vmatprep.mubr.bf16.mxu0 0
        %2310 = vmatmul.mubr.bf16.gmra.mrb[0].mxu0 %v2250
        %v2311 = vpop.f32.mrb[0].mxu0
        %v2312 = vadd.f32 0.0, %v2311
        %v2313 = vpop.f32.mrb[0].mxu0
        %v2314 = vpop.f32.mrb[0].mxu0
        %v2315 = vadd.f32 0.0, %v2314
        %v2316 = vpop.f32.mrb[0].mxu0
        %2317 = vmatprep.mubr.bf16.mxu0 0
        %2318 = vmatmul.mubr.bf16.gmra.mrb[0].mxu0 %v2253
        %v2319 = vpop.f32.mrb[0].mxu0
        %v2320 = vadd.f32 0.0, %v2319
        %v2321 = vpop.f32.mrb[0].mxu0
        %v2322 = vpop.f32.mrb[0].mxu0
        %v2323 = vadd.f32 0.0, %v2322
        %v2324 = vpop.f32.mrb[0].mxu0
        %2325 = vmatprep.mubr.bf16.mxu0 0
        %2326 = vmatmul.mubr.bf16.gmra.mrb[0].mxu0 %v2256
        %v2327 = vpop.f32.mrb[0].mxu0
        %v2328 = vadd.f32 0.0, %v2327
        %v2329 = vpop.f32.mrb[0].mxu0
        %v2330 = vpop.f32.mrb[0].mxu0
        %v2331 = vadd.f32 0.0, %v2330
        %v2332 = vpop.f32.mrb[0].mxu0
        %2333 = vmatprep.mubr.bf16.mxu0 0
        %2334 = vmatmul.mubr.bf16.gmra.mrb[0].mxu0 %v2259
        %v2335 = vpop.f32.mrb[0].mxu0
        %v2336 = vadd.f32 0.0, %v2335
        %v2337 = vpop.f32.mrb[0].mxu0
        %v2338 = vpop.f32.mrb[0].mxu0
        %v2339 = vadd.f32 0.0, %v2338
        %v2340 = vpop.f32.mrb[0].mxu0
        %2341 = vdwg.mxu0
        %v2342 = vpack.c.bf16 %v2299, %v2296
        %v2343 = vpack.c.bf16 %v2307, %v2304
        %v2344 = vpack.c.bf16 %v2315, %v2312
        %v2345 = vpack.c.bf16 %v2323, %v2320
        %v2346 = vpack.c.bf16 %v2331, %v2328
        %v2347 = vpack.c.bf16 %v2339, %v2336
        %v2348 = vld [vmem:[%s826] sm:$0xf]
        %v2349 = vld [vmem:[%s826 + $0x4] sm:$0xf]
        %v2350 = vld [vmem:[%s826 + $0x8] sm:$0xf]
        %v2351 = vld [vmem:[%s826 + $0xc] sm:$0xf]
        %v2352 = vld [vmem:[%s826 + $0x10] sm:$0xf]
        %v2353 = vld [vmem:[%s826 + $0x14] sm:$0xf]
        %v2354 = vld [vmem:[%s826 + $0x18] sm:$0xf]
        %v2355 = vld [vmem:[%s826 + $0x1c] sm:$0xf]
        %2362 = vrot.lane.b32.xlu0 %v1956, 64
        %v2363 = vpop.permute.xlu0 %2362
        %2364 = vrot.lane.b32.xlu0 %v1957, 64
        %v2365 = vpop.permute.xlu0 %2364
        %2366 = vrot.lane.b32.xlu0 %v1958, 64
        %v2367 = vpop.permute.xlu0 %2366
        %2368 = vrot.lane.b32.xlu0 %v1959, 64
        %v2369 = vpop.permute.xlu0 %2368
        %2370 = vrot.lane.b32.xlu0 %v1960, 64
        %v2371 = vpop.permute.xlu0 %2370
        %2372 = vrot.lane.b32.xlu0 %v1961, 64
        %v2373 = vpop.permute.xlu0 %2372
        %2380 = vrot.lane.b32.xlu0 %v1777, 64
        %v2381 = vpop.permute.xlu0 %2380
        %2382 = vrot.lane.b32.xlu0 %v1779, 64
        %v2383 = vpop.permute.xlu0 %2382
        %2384 = vrot.lane.b32.xlu0 %v1781, 64
        %v2385 = vpop.permute.xlu0 %2384
        %2386 = vrot.lane.b32.xlu0 %v1783, 64
        %v2387 = vpop.permute.xlu0 %2386
        %2388 = vrot.lane.b32.xlu0 %v1785, 64
        %v2389 = vpop.permute.xlu0 %2388
        %2390 = vrot.lane.b32.xlu0 %v1787, 64
        %v2391 = vpop.permute.xlu0 %2390
        %v2393 = vsel %vm1962, %v2363, 0
        %v2396 = vsel %vm1962, %v2365, 0
        %v2399 = vsel %vm1962, %v2367, 0
        %v2402 = vsel %vm1962, %v2369, 0
        %v2405 = vsel %vm1962, %v2371, 0
        %v2408 = vsel %vm1962, %v2373, 0
        %v2411 = vsel %vm1962, %v2381, 0
        %v2414 = vsel %vm1962, %v2383, 0
        %v2417 = vsel %vm1962, %v2385, 0
        %v2420 = vsel %vm1962, %v2387, 0
        %v2423 = vsel %vm1962, %v2389, 0
        %v2426 = vsel %vm1962, %v2391, 0
        %2428 = vmatprep.subr.bf16.mxu0 0
        %2429 = vmatpush1.bf16.xpose.msra.mxu0 %v2411
        %2430 = vmatprep.subr.bf16.mxu0 0
        %2431 = vmatpush1.bf16.xpose.msra.mxu0 %v2414
        %2432 = vmatprep.subr.bf16.mxu0 0
        %2433 = vmatpush1.bf16.xpose.msra.mxu0 %v2417
        %2434 = vmatprep.subr.bf16.mxu0 0
        %2435 = vmatpush1.bf16.xpose.msra.mxu0 %v2420
        %2436 = vmatprep.subr.bf16.mxu0 0
        %2437 = vmatpush1.bf16.xpose.msra.mxu0 %v2423
        %2438 = vmatprep.subr.bf16.mxu0 0
        %2439 = vmatpush1.bf16.xpose.msra.mxu0 %v2426
        %2440 = vmatprep.subr.bf16.mxu0 0
        %2441 = vmatpush1.bf16.xpose.msra.mxu0 0
        %2442 = vmatprep.subr.bf16.mxu0 0
        %2443 = vmatpush1.bf16.xpose.msra.mxu0 0
        %2444 = vmatprep.subr.bf16.mxu0 0
        %2445 = vmatpush1.bf16.xpose.msra.mxu0 0
        %2446 = vmatprep.subr.bf16.mxu0 0
        %2447 = vmatpush1.bf16.xpose.msra.mxu0 0
        %2448 = vmatprep.subr.bf16.mxu0 0
        %2449 = vmatpush1.bf16.xpose.msra.mxu0 0
        %2450 = vmatprep.subr.bf16.mxu0 0
        %2451 = vmatpush1.bf16.xpose.msra.mxu0 0
        %2452 = vmatprep.subr.bf16.mxu0 0
        %2453 = vmatpush1.bf16.xpose.msra.mxu0 0
        %2454 = vmatprep.subr.bf16.mxu0 0
        %2455 = vmatpush1.bf16.xpose.msra.mxu0 0
        %2456 = vmatprep.subr.bf16.mxu0 0
        %2457 = vmatpush1.bf16.xpose.msra.mxu0 0
        %2458 = vmatprep.subr.bf16.mxu0 0
        %2459 = vmatpush1.bf16.xpose.msra.mxu0 0
        %2460 = vmatprep.mubr.bf16.mxu0 0
        %2461 = vmatmul.mubr.bf16.gmra.mrb[0].mxu0 %v2393
        %v2462 = vpop.f32.mrb[0].mxu0
        %v2463 = vadd.f32 0.0, %v2462
        %v2464 = vpop.f32.mrb[0].mxu0
        %v2465 = vpop.f32.mrb[0].mxu0
        %v2466 = vadd.f32 0.0, %v2465
        %v2467 = vpop.f32.mrb[0].mxu0
        %2468 = vmatprep.mubr.bf16.mxu0 0
        %2469 = vmatmul.mubr.bf16.gmra.mrb[0].mxu0 %v2396
        %v2470 = vpop.f32.mrb[0].mxu0
        %v2471 = vadd.f32 0.0, %v2470
        %v2472 = vpop.f32.mrb[0].mxu0
        %v2473 = vpop.f32.mrb[0].mxu0
        %v2474 = vadd.f32 0.0, %v2473
        %v2475 = vpop.f32.mrb[0].mxu0
        %2476 = vmatprep.mubr.bf16.mxu0 0
        %2477 = vmatmul.mubr.bf16.gmra.mrb[0].mxu0 %v2399
        %v2478 = vpop.f32.mrb[0].mxu0
        %v2479 = vadd.f32 0.0, %v2478
        %v2480 = vpop.f32.mrb[0].mxu0
        %v2481 = vpop.f32.mrb[0].mxu0
        %v2482 = vadd.f32 0.0, %v2481
        %v2483 = vpop.f32.mrb[0].mxu0
        %2484 = vmatprep.mubr.bf16.mxu0 0
        %2485 = vmatmul.mubr.bf16.gmra.mrb[0].mxu0 %v2402
        %v2486 = vpop.f32.mrb[0].mxu0
        %v2487 = vadd.f32 0.0, %v2486
        %v2488 = vpop.f32.mrb[0].mxu0
        %v2489 = vpop.f32.mrb[0].mxu0
        %v2490 = vadd.f32 0.0, %v2489
        %v2491 = vpop.f32.mrb[0].mxu0
        %2492 = vmatprep.mubr.bf16.mxu0 0
        %2493 = vmatmul.mubr.bf16.gmra.mrb[0].mxu0 %v2405
        %v2494 = vpop.f32.mrb[0].mxu0
        %v2495 = vadd.f32 0.0, %v2494
        %v2496 = vpop.f32.mrb[0].mxu0
        %v2497 = vpop.f32.mrb[0].mxu0
        %v2498 = vadd.f32 0.0, %v2497
        %v2499 = vpop.f32.mrb[0].mxu0
        %2500 = vmatprep.mubr.bf16.mxu0 0
        %2501 = vmatmul.mubr.bf16.gmra.mrb[0].mxu0 %v2408
        %v2502 = vpop.f32.mrb[0].mxu0
        %v2503 = vadd.f32 0.0, %v2502
        %v2504 = vpop.f32.mrb[0].mxu0
        %v2505 = vpop.f32.mrb[0].mxu0
        %v2506 = vadd.f32 0.0, %v2505
        %v2507 = vpop.f32.mrb[0].mxu0
        %2508 = vdwg.mxu0
        %v2509 = vmul.f32 %v2463, 0.125
        %v2510 = vmul.f32 %v2466, 0.125
        %v2511 = vmul.f32 %v2471, 0.125
        %v2512 = vmul.f32 %v2474, 0.125
        %v2513 = vmul.f32 %v2479, 0.125
        %v2514 = vmul.f32 %v2482, 0.125
        %v2515 = vmul.f32 %v2487, 0.125
        %v2516 = vmul.f32 %v2490, 0.125
        %v2517 = vmul.f32 %v2495, 0.125
        %v2518 = vmul.f32 %v2498, 0.125
        %v2519 = vmul.f32 %v2503, 0.125
        %v2520 = vmul.f32 %v2506, 0.125
        %v2521 = vadd.f32 %v2509, %v1944
        %v2522 = vadd.f32 %v2510, %v1945
        %v2523 = vadd.f32 %v2511, %v1946
        %v2524 = vadd.f32 %v2512, %v1947
        %v2525 = vadd.f32 %v2513, %v1948
        %v2526 = vadd.f32 %v2514, %v1949
        %v2527 = vadd.f32 %v2515, %v1950
        %v2528 = vadd.f32 %v2516, %v1951
        %v2529 = vadd.f32 %v2517, %v1952
        %v2530 = vadd.f32 %v2518, %v1953
        %v2531 = vadd.f32 %v2519, %v1954
        %v2532 = vadd.f32 %v2520, %v1955
        %v2533 = vsel %vm2104, %v2521, -inf
        %2534 = vmax.xlane.f32.xlu0 %v2533
        %v2535 = vpop.xlane.xlu0 %2534
        %v2536 = vsel %vm2104, %v2522, -inf
        %2537 = vmax.xlane.f32.xlu0 %v2536
        %v2538 = vpop.xlane.xlu0 %2537
        %v2539 = vsel %vm2104, %v2523, -inf
        %2540 = vmax.xlane.f32.xlu0 %v2539
        %v2541 = vpop.xlane.xlu0 %2540
        %v2542 = vsel %vm2104, %v2524, -inf
        %2543 = vmax.xlane.f32.xlu0 %v2542
        %v2544 = vpop.xlane.xlu0 %2543
        %v2545 = vsel %vm2104, %v2525, -inf
        %2546 = vmax.xlane.f32.xlu0 %v2545
        %v2547 = vpop.xlane.xlu0 %2546
        %v2548 = vsel %vm2104, %v2526, -inf
        %2549 = vmax.xlane.f32.xlu0 %v2548
        %v2550 = vpop.xlane.xlu0 %2549
        %v2551 = vsel %vm2104, %v2527, -inf
        %2552 = vmax.xlane.f32.xlu0 %v2551
        %v2553 = vpop.xlane.xlu0 %2552
        %v2554 = vsel %vm2104, %v2528, -inf
        %2555 = vmax.xlane.f32.xlu0 %v2554
        %v2556 = vpop.xlane.xlu0 %2555
        %v2557 = vsel %vm2104, %v2529, -inf
        %2558 = vmax.xlane.f32.xlu0 %v2557
        %v2559 = vpop.xlane.xlu0 %2558
        %v2560 = vsel %vm2104, %v2530, -inf
        %2561 = vmax.xlane.f32.xlu0 %v2560
        %v2562 = vpop.xlane.xlu0 %2561
        %v2563 = vsel %vm2104, %v2531, -inf
        %2564 = vmax.xlane.f32.xlu0 %v2563
        %v2565 = vpop.xlane.xlu0 %2564
        %v2566 = vsel %vm2104, %v2532, -inf
        %2567 = vmax.xlane.f32.xlu0 %v2566
        %v2568 = vpop.xlane.xlu0 %2567
        %v2569 = vsub.f32 %v2521, %v2535
        %v2570 = vsub.f32 %v2522, %v2538
        %v2571 = vsub.f32 %v2523, %v2541
        %v2572 = vsub.f32 %v2524, %v2544
        %v2573 = vsub.f32 %v2525, %v2547
        %v2574 = vsub.f32 %v2526, %v2550
        %v2575 = vsub.f32 %v2527, %v2553
        %v2576 = vsub.f32 %v2528, %v2556
        %v2577 = vsub.f32 %v2529, %v2559
        %v2578 = vsub.f32 %v2530, %v2562
        %v2579 = vsub.f32 %v2531, %v2565
        %v2580 = vsub.f32 %v2532, %v2568
        %v2581 = vmul.f32 %v2569, 1.442695
        %v2582 = vpow.pop %v2581
        %v2583 = vmul.f32 %v2570, 1.442695
        %v2584 = vpow.pop %v2583
        %v2585 = vmul.f32 %v2571, 1.442695
        %v2586 = vpow.pop %v2585
        %v2587 = vmul.f32 %v2572, 1.442695
        %v2588 = vpow.pop %v2587
        %v2589 = vmul.f32 %v2573, 1.442695
        %v2590 = vpow.pop %v2589
        %v2591 = vmul.f32 %v2574, 1.442695
        %v2592 = vpow.pop %v2591
        %v2593 = vmul.f32 %v2575, 1.442695
        %v2594 = vpow.pop %v2593
        %v2595 = vmul.f32 %v2576, 1.442695
        %v2596 = vpow.pop %v2595
        %v2597 = vmul.f32 %v2577, 1.442695
        %v2598 = vpow.pop %v2597
        %v2599 = vmul.f32 %v2578, 1.442695
        %v2600 = vpow.pop %v2599
        %v2601 = vmul.f32 %v2579, 1.442695
        %v2602 = vpow.pop %v2601
        %v2603 = vmul.f32 %v2580, 1.442695
        %v2604 = vpow.pop %v2603
        %v2605 = vsel %vm2104, %v2582, 0.0
        %2606 = vadd.xlane.f32.xlu0 %v2605
        %v2607 = vpop.xlane.xlu0 %2606
        %v2608 = vsel %vm2104, %v2584, 0.0
        %2609 = vadd.xlane.f32.xlu0 %v2608
        %v2610 = vpop.xlane.xlu0 %2609
        %v2611 = vsel %vm2104, %v2586, 0.0
        %2612 = vadd.xlane.f32.xlu0 %v2611
        %v2613 = vpop.xlane.xlu0 %2612
        %v2614 = vsel %vm2104, %v2588, 0.0
        %2615 = vadd.xlane.f32.xlu0 %v2614
        %v2616 = vpop.xlane.xlu0 %2615
        %v2617 = vsel %vm2104, %v2590, 0.0
        %2618 = vadd.xlane.f32.xlu0 %v2617
        %v2619 = vpop.xlane.xlu0 %2618
        %v2620 = vsel %vm2104, %v2592, 0.0
        %2621 = vadd.xlane.f32.xlu0 %v2620
        %v2622 = vpop.xlane.xlu0 %2621
        %v2623 = vsel %vm2104, %v2594, 0.0
        %2624 = vadd.xlane.f32.xlu0 %v2623
        %v2625 = vpop.xlane.xlu0 %2624
        %v2626 = vsel %vm2104, %v2596, 0.0
        %2627 = vadd.xlane.f32.xlu0 %v2626
        %v2628 = vpop.xlane.xlu0 %2627
        %v2629 = vsel %vm2104, %v2598, 0.0
        %2630 = vadd.xlane.f32.xlu0 %v2629
        %v2631 = vpop.xlane.xlu0 %2630
        %v2632 = vsel %vm2104, %v2600, 0.0
        %2633 = vadd.xlane.f32.xlu0 %v2632
        %v2634 = vpop.xlane.xlu0 %2633
        %v2635 = vsel %vm2104, %v2602, 0.0
        %2636 = vadd.xlane.f32.xlu0 %v2635
        %v2637 = vpop.xlane.xlu0 %2636
        %v2638 = vsel %vm2104, %v2604, 0.0
        %2639 = vadd.xlane.f32.xlu0 %v2638
        %v2640 = vpop.xlane.xlu0 %2639
        %v2641 = vrcp.pop %v2607
        %v2642 = vrcp.pop %v2610
        %v2643 = vrcp.pop %v2613
        %v2644 = vrcp.pop %v2616
        %v2645 = vrcp.pop %v2619
        %v2646 = vrcp.pop %v2622
        %v2647 = vrcp.pop %v2625
        %v2648 = vrcp.pop %v2628
        %v2649 = vrcp.pop %v2631
        %v2650 = vrcp.pop %v2634
        %v2651 = vrcp.pop %v2637
        %v2652 = vrcp.pop %v2640
        %v2653 = vmul.f32 %v2582, %v2641
        %v2654 = vmul.f32 %v2584, %v2642
        %v2655 = vmul.f32 %v2586, %v2643
        %v2656 = vmul.f32 %v2588, %v2644
        %v2657 = vmul.f32 %v2590, %v2645
        %v2658 = vmul.f32 %v2592, %v2646
        %v2659 = vmul.f32 %v2594, %v2647
        %v2660 = vmul.f32 %v2596, %v2648
        %v2661 = vmul.f32 %v2598, %v2649
        %v2662 = vmul.f32 %v2600, %v2650
        %v2663 = vmul.f32 %v2602, %v2651
        %v2664 = vmul.f32 %v2604, %v2652
        %v2665 = vpack.c.bf16 %v2654, %v2653
        %v2666 = vpack.c.bf16 %v2656, %v2655
        %v2667 = vpack.c.bf16 %v2658, %v2657
        %v2668 = vpack.c.bf16 %v2660, %v2659
        %v2669 = vpack.c.bf16 %v2662, %v2661
        %v2670 = vpack.c.bf16 %v2664, %v2663
        %2677 = vrot.lane.b32.xlu0 %v1778, 64
        %v2678 = vpop.permute.xlu0 %2677
        %2679 = vrot.lane.b32.xlu0 %v1780, 64
        %v2680 = vpop.permute.xlu0 %2679
        %2681 = vrot.lane.b32.xlu0 %v1782, 64
        %v2682 = vpop.permute.xlu0 %2681
        %2683 = vrot.lane.b32.xlu0 %v1784, 64
        %v2684 = vpop.permute.xlu0 %2683
        %2685 = vrot.lane.b32.xlu0 %v1786, 64
        %v2686 = vpop.permute.xlu0 %2685
        %2687 = vrot.lane.b32.xlu0 %v1788, 64
        %v2688 = vpop.permute.xlu0 %2687
        %v2696 = vsel %vm2104, %v2665, 0
        %v2699 = vsel %vm2104, %v2666, 0
        %v2702 = vsel %vm2104, %v2667, 0
        %v2705 = vsel %vm2104, %v2668, 0
        %v2708 = vsel %vm2104, %v2669, 0
        %v2711 = vsel %vm2104, %v2670, 0
        %2713 = vmatprep.subr.bf16.mxu0 0
        %2714 = vmatpush1.bf16.msra.mxu0 %v2678
        %2715 = vmatprep.subr.bf16.mxu0 0
        %2716 = vmatpush1.bf16.msra.mxu0 %v2680
        %2717 = vmatprep.subr.bf16.mxu0 0
        %2718 = vmatpush1.bf16.msra.mxu0 %v2682
        %2719 = vmatprep.subr.bf16.mxu0 0
        %2720 = vmatpush1.bf16.msra.mxu0 %v2684
        %2721 = vmatprep.subr.bf16.mxu0 0
        %2722 = vmatpush1.bf16.msra.mxu0 %v2686
        %2723 = vmatprep.subr.bf16.mxu0 0
        %2724 = vmatpush1.bf16.msra.mxu0 %v2688
        %2725 = vmatprep.subr.bf16.mxu0 0
        %2726 = vmatpush1.bf16.msra.mxu0 0
        %2727 = vmatprep.subr.bf16.mxu0 0
        %2728 = vmatpush1.bf16.msra.mxu0 0
        %2729 = vmatprep.subr.bf16.mxu0 0
        %2730 = vmatpush1.bf16.msra.mxu0 0
        %2731 = vmatprep.subr.bf16.mxu0 0
        %2732 = vmatpush1.bf16.msra.mxu0 0
        %2733 = vmatprep.subr.bf16.mxu0 0
        %2734 = vmatpush1.bf16.msra.mxu0 0
        %2735 = vmatprep.subr.bf16.mxu0 0
        %2736 = vmatpush1.bf16.msra.mxu0 0
        %2737 = vmatprep.subr.bf16.mxu0 0
        %2738 = vmatpush1.bf16.msra.mxu0 0
        %2739 = vmatprep.subr.bf16.mxu0 0
        %2740 = vmatpush1.bf16.msra.mxu0 0
        %2741 = vmatprep.subr.bf16.mxu0 0
        %2742 = vmatpush1.bf16.msra.mxu0 0
        %2743 = vmatprep.subr.bf16.mxu0 0
        %2744 = vmatpush1.bf16.msra.mxu0 0
        %2745 = vmatprep.mubr.bf16.mxu0 0
        %2746 = vmatmul.mubr.bf16.gmra.mrb[0].mxu0 %v2696
        %v2747 = vpop.f32.mrb[0].mxu0
        %v2748 = vadd.f32 0.0, %v2747
        %v2749 = vpop.f32.mrb[0].mxu0
        %v2750 = vpop.f32.mrb[0].mxu0
        %v2751 = vadd.f32 0.0, %v2750
        %v2752 = vpop.f32.mrb[0].mxu0
        %2753 = vmatprep.mubr.bf16.mxu0 0
        %2754 = vmatmul.mubr.bf16.gmra.mrb[0].mxu0 %v2699
        %v2755 = vpop.f32.mrb[0].mxu0
        %v2756 = vadd.f32 0.0, %v2755
        %v2757 = vpop.f32.mrb[0].mxu0
        %v2758 = vpop.f32.mrb[0].mxu0
        %v2759 = vadd.f32 0.0, %v2758
        %v2760 = vpop.f32.mrb[0].mxu0
        %2761 = vmatprep.mubr.bf16.mxu0 0
        %2762 = vmatmul.mubr.bf16.gmra.mrb[0].mxu0 %v2702
        %v2763 = vpop.f32.mrb[0].mxu0
        %v2764 = vadd.f32 0.0, %v2763
        %v2765 = vpop.f32.mrb[0].mxu0
        %v2766 = vpop.f32.mrb[0].mxu0
        %v2767 = vadd.f32 0.0, %v2766
        %v2768 = vpop.f32.mrb[0].mxu0
        %2769 = vmatprep.mubr.bf16.mxu0 0
        %2770 = vmatmul.mubr.bf16.gmra.mrb[0].mxu0 %v2705
        %v2771 = vpop.f32.mrb[0].mxu0
        %v2772 = vadd.f32 0.0, %v2771
        %v2773 = vpop.f32.mrb[0].mxu0
        %v2774 = vpop.f32.mrb[0].mxu0
        %v2775 = vadd.f32 0.0, %v2774
        %v2776 = vpop.f32.mrb[0].mxu0
        %2777 = vmatprep.mubr.bf16.mxu0 0
        %2778 = vmatmul.mubr.bf16.gmra.mrb[0].mxu0 %v2708
        %v2779 = vpop.f32.mrb[0].mxu0
        %v2780 = vadd.f32 0.0, %v2779
        %v2781 = vpop.f32.mrb[0].mxu0
        %v2782 = vpop.f32.mrb[0].mxu0
        %v2783 = vadd.f32 0.0, %v2782
        %v2784 = vpop.f32.mrb[0].mxu0
        %2785 = vmatprep.mubr.bf16.mxu0 0
        %2786 = vmatmul.mubr.bf16.gmra.mrb[0].mxu0 %v2711
        %v2787 = vpop.f32.mrb[0].mxu0
        %v2788 = vadd.f32 0.0, %v2787
        %v2789 = vpop.f32.mrb[0].mxu0
        %v2790 = vpop.f32.mrb[0].mxu0
        %v2791 = vadd.f32 0.0, %v2790
        %v2792 = vpop.f32.mrb[0].mxu0
        %2793 = vdwg.mxu0
        %v2794 = vpack.c.bf16 %v2751, %v2748
        %v2795 = vpack.c.bf16 %v2759, %v2756
        %v2796 = vpack.c.bf16 %v2767, %v2764
        %v2797 = vpack.c.bf16 %v2775, %v2772
        %v2798 = vpack.c.bf16 %v2783, %v2780
        %v2799 = vpack.c.bf16 %v2791, %v2788
        %s2800 = scalar_lea.vmem %s826, 32 [#allocation9]
        %v2801 = vld [vmem:[%s2800] sm:$0xf]
        %v2802 = vld [vmem:[%s2800 + $0x4] sm:$0xf]
        %v2803 = vld [vmem:[%s2800 + $0x8] sm:$0xf]
        %v2804 = vld [vmem:[%s2800 + $0xc] sm:$0xf]
        %v2805 = vld [vmem:[%s2800 + $0x10] sm:$0xf]
        %v2806 = vld [vmem:[%s2800 + $0x14] sm:$0xf]
        %v2807 = vld [vmem:[%s2800 + $0x18] sm:$0xf]
        %v2808 = vld [vmem:[%s2800 + $0x1c] sm:$0xf]
        %v2817 = vunpack.c.l.b16 %v2801
        %v2818 = vunpack.c.l.b16 %v2802
        %v2819 = vunpack.c.l.b16 %v2803
        %v2820 = vunpack.c.l.b16 %v2804
        %v2821 = vunpack.c.l.b16 %v2805
        %v2822 = vunpack.c.l.b16 %v2806
        %v2823 = vunpack.c.l.b16 %v2807
        %v2824 = vunpack.c.l.b16 %v2808
        %v2825 = vpack.c.b16 %v2818, %v2817
        %v2826 = vpack.c.b16 %v2820, %v2819
        %v2827 = vpack.c.b16 %v2822, %v2821
        %v2828 = vpack.c.b16 %v2824, %v2823
        %v2834 = vsel %vm1962, %v2794, 0
        %v2837 = vsel %vm1962, %v2795, 0
        %v2840 = vsel %vm1962, %v2796, 0
        %v2843 = vsel %vm1962, %v2797, 0
        %v2846 = vsel %vm1962, %v2798, 0
        %v2849 = vsel %vm1962, %v2799, 0
        %2851 = vmatprep.subr.bf16.mxu0 0
        %2852 = vmatpush1.bf16.msra.mxu0 %v2825
        %2853 = vmatprep.subr.bf16.mxu0 0
        %2854 = vmatpush1.bf16.msra.mxu0 %v2826
        %2855 = vmatprep.subr.bf16.mxu0 0
        %2856 = vmatpush1.bf16.msra.mxu0 %v2827
        %2857 = vmatprep.subr.bf16.mxu0 0
        %2858 = vmatpush1.bf16.msra.mxu0 %v2828
        %2859 = vmatprep.subr.bf16.mxu0 0
        %2860 = vmatpush1.bf16.msra.mxu0 0
        %2861 = vmatprep.subr.bf16.mxu0 0
        %2862 = vmatpush1.bf16.msra.mxu0 0
        %2863 = vmatprep.subr.bf16.mxu0 0
        %2864 = vmatpush1.bf16.msra.mxu0 0
        %2865 = vmatprep.subr.bf16.mxu0 0
        %2866 = vmatpush1.bf16.msra.mxu0 0
        %2867 = vmatprep.subr.bf16.mxu0 0
        %2868 = vmatpush1.bf16.msra.mxu0 0
        %2869 = vmatprep.subr.bf16.mxu0 0
        %2870 = vmatpush1.bf16.msra.mxu0 0
        %2871 = vmatprep.subr.bf16.mxu0 0
        %2872 = vmatpush1.bf16.msra.mxu0 0
        %2873 = vmatprep.subr.bf16.mxu0 0
        %2874 = vmatpush1.bf16.msra.mxu0 0
        %2875 = vmatprep.subr.bf16.mxu0 0
        %2876 = vmatpush1.bf16.msra.mxu0 0
        %2877 = vmatprep.subr.bf16.mxu0 0
        %2878 = vmatpush1.bf16.msra.mxu0 0
        %2879 = vmatprep.subr.bf16.mxu0 0
        %2880 = vmatpush1.bf16.msra.mxu0 0
        %2881 = vmatprep.subr.bf16.mxu0 0
        %2882 = vmatpush1.bf16.msra.mxu0 0
        %2883 = vmatprep.mubr.bf16.mxu0 0
        %2884 = vmatmul.mubr.bf16.gmra.mrb[0].mxu0 %v2834
        %v2885 = vpop.f32.mrb[0].mxu0
        %v2886 = vadd.f32 0.0, %v2885
        %v2887 = vpop.f32.mrb[0].mxu0
        %v2888 = vpop.f32.mrb[0].mxu0
        %v2889 = vadd.f32 0.0, %v2888
        %v2890 = vpop.f32.mrb[0].mxu0
        %2891 = vmatprep.mubr.bf16.mxu0 0
        %2892 = vmatmul.mubr.bf16.gmra.mrb[0].mxu0 %v2837
        %v2893 = vpop.f32.mrb[0].mxu0
        %v2894 = vadd.f32 0.0, %v2893
        %v2895 = vpop.f32.mrb[0].mxu0
        %v2896 = vpop.f32.mrb[0].mxu0
        %v2897 = vadd.f32 0.0, %v2896
        %v2898 = vpop.f32.mrb[0].mxu0
        %2899 = vmatprep.mubr.bf16.mxu0 0
        %2900 = vmatmul.mubr.bf16.gmra.mrb[0].mxu0 %v2840
        %v2901 = vpop.f32.mrb[0].mxu0
        %v2902 = vadd.f32 0.0, %v2901
        %v2903 = vpop.f32.mrb[0].mxu0
        %v2904 = vpop.f32.mrb[0].mxu0
        %v2905 = vadd.f32 0.0, %v2904
        %v2906 = vpop.f32.mrb[0].mxu0
        %2907 = vmatprep.mubr.bf16.mxu0 0
        %2908 = vmatmul.mubr.bf16.gmra.mrb[0].mxu0 %v2843
        %v2909 = vpop.f32.mrb[0].mxu0
        %v2910 = vadd.f32 0.0, %v2909
        %v2911 = vpop.f32.mrb[0].mxu0
        %v2912 = vpop.f32.mrb[0].mxu0
        %v2913 = vadd.f32 0.0, %v2912
        %v2914 = vpop.f32.mrb[0].mxu0
        %2915 = vmatprep.mubr.bf16.mxu0 0
        %2916 = vmatmul.mubr.bf16.gmra.mrb[0].mxu0 %v2846
        %v2917 = vpop.f32.mrb[0].mxu0
        %v2918 = vadd.f32 0.0, %v2917
        %v2919 = vpop.f32.mrb[0].mxu0
        %v2920 = vpop.f32.mrb[0].mxu0
        %v2921 = vadd.f32 0.0, %v2920
        %v2922 = vpop.f32.mrb[0].mxu0
        %2923 = vmatprep.mubr.bf16.mxu0 0
        %2924 = vmatmul.mubr.bf16.gmra.mrb[0].mxu0 %v2849
        %v2925 = vpop.f32.mrb[0].mxu0
        %v2926 = vadd.f32 0.0, %v2925
        %v2927 = vpop.f32.mrb[0].mxu0
        %v2928 = vpop.f32.mrb[0].mxu0
        %v2929 = vadd.f32 0.0, %v2928
        %v2930 = vpop.f32.mrb[0].mxu0
        %2931 = vdwg.mxu0
        %v2940 = vunpack.c.l.b16 %v2348
        %v2941 = vunpack.c.l.b16 %v2349
        %v2942 = vunpack.c.l.b16 %v2350
        %v2943 = vunpack.c.l.b16 %v2351
        %v2944 = vunpack.c.l.b16 %v2352
        %v2945 = vunpack.c.l.b16 %v2353
        %v2946 = vunpack.c.l.b16 %v2354
        %v2947 = vunpack.c.l.b16 %v2355
        %v2948 = vpack.c.b16 %v2941, %v2940
        %v2949 = vpack.c.b16 %v2943, %v2942
        %v2950 = vpack.c.b16 %v2945, %v2944
        %v2951 = vpack.c.b16 %v2947, %v2946
        %v2957 = vsel %vm1962, %v2342, 0
        %v2960 = vsel %vm1962, %v2343, 0
        %v2963 = vsel %vm1962, %v2344, 0
        %v2966 = vsel %vm1962, %v2345, 0
        %v2969 = vsel %vm1962, %v2346, 0
        %v2972 = vsel %vm1962, %v2347, 0
        %2974 = vmatprep.subr.bf16.mxu0 0
        %2975 = vmatpush1.bf16.msra.mxu0 %v2948
        %2976 = vmatprep.subr.bf16.mxu0 0
        %2977 = vmatpush1.bf16.msra.mxu0 %v2949
        %2978 = vmatprep.subr.bf16.mxu0 0
        %2979 = vmatpush1.bf16.msra.mxu0 %v2950
        %2980 = vmatprep.subr.bf16.mxu0 0
        %2981 = vmatpush1.bf16.msra.mxu0 %v2951
        %2982 = vmatprep.subr.bf16.mxu0 0
        %2983 = vmatpush1.bf16.msra.mxu0 0
        %2984 = vmatprep.subr.bf16.mxu0 0
        %2985 = vmatpush1.bf16.msra.mxu0 0
        %2986 = vmatprep.subr.bf16.mxu0 0
        %2987 = vmatpush1.bf16.msra.mxu0 0
        %2988 = vmatprep.subr.bf16.mxu0 0
        %2989 = vmatpush1.bf16.msra.mxu0 0
        %2990 = vmatprep.subr.bf16.mxu0 0
        %2991 = vmatpush1.bf16.msra.mxu0 0
        %2992 = vmatprep.subr.bf16.mxu0 0
        %2993 = vmatpush1.bf16.msra.mxu0 0
        %2994 = vmatprep.subr.bf16.mxu0 0
        %2995 = vmatpush1.bf16.msra.mxu0 0
        %2996 = vmatprep.subr.bf16.mxu0 0
        %2997 = vmatpush1.bf16.msra.mxu0 0
        %2998 = vmatprep.subr.bf16.mxu0 0
        %2999 = vmatpush1.bf16.msra.mxu0 0
        %3000 = vmatprep.subr.bf16.mxu0 0
        %3001 = vmatpush1.bf16.msra.mxu0 0
        %3002 = vmatprep.subr.bf16.mxu0 0
        %3003 = vmatpush1.bf16.msra.mxu0 0
        %3004 = vmatprep.subr.bf16.mxu0 0
        %3005 = vmatpush1.bf16.msra.mxu0 0
        %3006 = vmatprep.mubr.bf16.mxu0 0
        %3007 = vmatmul.mubr.bf16.gmra.mrb[0].mxu0 %v2957
        %v3008 = vpop.f32.mrb[0].mxu0
        %v3009 = vadd.f32 %v2886, %v3008
        %v3010 = vpop.f32.mrb[0].mxu0
        %v3011 = vpop.f32.mrb[0].mxu0
        %v3012 = vadd.f32 %v2889, %v3011
        %v3013 = vpop.f32.mrb[0].mxu0
        %3014 = vmatprep.mubr.bf16.mxu0 0
        %3015 = vmatmul.mubr.bf16.gmra.mrb[0].mxu0 %v2960
        %v3016 = vpop.f32.mrb[0].mxu0
        %v3017 = vadd.f32 %v2894, %v3016
        %v3018 = vpop.f32.mrb[0].mxu0
        %v3019 = vpop.f32.mrb[0].mxu0
        %v3020 = vadd.f32 %v2897, %v3019
        %v3021 = vpop.f32.mrb[0].mxu0
        %3022 = vmatprep.mubr.bf16.mxu0 0
        %3023 = vmatmul.mubr.bf16.gmra.mrb[0].mxu0 %v2963
        %v3024 = vpop.f32.mrb[0].mxu0
        %v3025 = vadd.f32 %v2902, %v3024
        %v3026 = vpop.f32.mrb[0].mxu0
        %v3027 = vpop.f32.mrb[0].mxu0
        %v3028 = vadd.f32 %v2905, %v3027
        %v3029 = vpop.f32.mrb[0].mxu0
        %3030 = vmatprep.mubr.bf16.mxu0 0
        %3031 = vmatmul.mubr.bf16.gmra.mrb[0].mxu0 %v2966
        %v3032 = vpop.f32.mrb[0].mxu0
        %v3033 = vadd.f32 %v2910, %v3032
        %v3034 = vpop.f32.mrb[0].mxu0
        %v3035 = vpop.f32.mrb[0].mxu0
        %v3036 = vadd.f32 %v2913, %v3035
        %v3037 = vpop.f32.mrb[0].mxu0
        %3038 = vmatprep.mubr.bf16.mxu0 0
        %3039 = vmatmul.mubr.bf16.gmra.mrb[0].mxu0 %v2969
        %v3040 = vpop.f32.mrb[0].mxu0
        %v3041 = vadd.f32 %v2918, %v3040
        %v3042 = vpop.f32.mrb[0].mxu0
        %v3043 = vpop.f32.mrb[0].mxu0
        %v3044 = vadd.f32 %v2921, %v3043
        %v3045 = vpop.f32.mrb[0].mxu0
        %3046 = vmatprep.mubr.bf16.mxu0 0
        %3047 = vmatmul.mubr.bf16.gmra.mrb[0].mxu0 %v2972
        %v3048 = vpop.f32.mrb[0].mxu0
        %v3049 = vadd.f32 %v2926, %v3048
        %v3050 = vpop.f32.mrb[0].mxu0
        %v3051 = vpop.f32.mrb[0].mxu0
        %v3052 = vadd.f32 %v2929, %v3051
        %v3053 = vpop.f32.mrb[0].mxu0
        %3054 = vdwg.mxu0
        %v3055 = vlaneseq
        %v3056 = vshrl.u32 %v3055, 7
        %v3057 = vsub.s32 1, %v3056
        %v3058 = vrot.slane %v1545, %v3057
        %v3059 = vadd.f32 %v3009, %v3058
        %v3060 = vadd.f32 %v3012, %v3058
        %v3061 = vadd.f32 %v3017, %v3058
        %v3062 = vadd.f32 %v3020, %v3058
        %v3063 = vadd.f32 %v3025, %v3058
        %v3064 = vadd.f32 %v3028, %v3058
        %v3065 = vadd.f32 %v3033, %v3058
        %v3066 = vadd.f32 %v3036, %v3058
        %v3067 = vadd.f32 %v3041, %v3058
        %v3068 = vadd.f32 %v3044, %v3058
        %v3069 = vadd.f32 %v3049, %v3058
        %v3070 = vadd.f32 %v3052, %v3058
        %v3071 = vadd.f32 %v1025, %v3059
        %v3072 = vadd.f32 %v1026, %v3060
        %v3073 = vadd.f32 %v1027, %v3061
        %v3074 = vadd.f32 %v1028, %v3062
        %v3075 = vadd.f32 %v1029, %v3063
        %v3076 = vadd.f32 %v1030, %v3064
        %v3077 = vadd.f32 %v1031, %v3065
        %v3078 = vadd.f32 %v1032, %v3066
        %v3079 = vadd.f32 %v1033, %v3067
        %v3080 = vadd.f32 %v1034, %v3068
        %v3081 = vadd.f32 %v1035, %v3069
        %v3082 = vadd.f32 %v1036, %v3070
        %3083 = vadd.xlane.f32.xlu0 %v3071
        %v3084 = vpop.xlane.xlu0 %3083
        %3085 = vadd.xlane.f32.xlu0 %v3072
        %v3086 = vpop.xlane.xlu0 %3085
        %3087 = vadd.xlane.f32.xlu0 %v3073
        %v3088 = vpop.xlane.xlu0 %3087
        %3089 = vadd.xlane.f32.xlu0 %v3074
        %v3090 = vpop.xlane.xlu0 %3089
        %3091 = vadd.xlane.f32.xlu0 %v3075
        %v3092 = vpop.xlane.xlu0 %3091
        %3093 = vadd.xlane.f32.xlu0 %v3076
        %v3094 = vpop.xlane.xlu0 %3093
        %3095 = vadd.xlane.f32.xlu0 %v3077
        %v3096 = vpop.xlane.xlu0 %3095
        %3097 = vadd.xlane.f32.xlu0 %v3078
        %v3098 = vpop.xlane.xlu0 %3097
        %3099 = vadd.xlane.f32.xlu0 %v3079
        %v3100 = vpop.xlane.xlu0 %3099
        %3101 = vadd.xlane.f32.xlu0 %v3080
        %v3102 = vpop.xlane.xlu0 %3101
        %3103 = vadd.xlane.f32.xlu0 %v3081
        %v3104 = vpop.xlane.xlu0 %3103
        %3105 = vadd.xlane.f32.xlu0 %v3082
        %v3106 = vpop.xlane.xlu0 %3105
        %v3107 = vrcp.pop 128.0
        %v3108 = vmul.f32 %v3084, %v3107
        %v3109 = vmul.f32 %v3086, %v3107
        %v3110 = vmul.f32 %v3088, %v3107
        %v3111 = vmul.f32 %v3090, %v3107
        %v3112 = vmul.f32 %v3092, %v3107
        %v3113 = vmul.f32 %v3094, %v3107
        %v3114 = vmul.f32 %v3096, %v3107
        %v3115 = vmul.f32 %v3098, %v3107
        %v3116 = vmul.f32 %v3100, %v3107
        %v3117 = vmul.f32 %v3102, %v3107
        %v3118 = vmul.f32 %v3104, %v3107
        %v3119 = vmul.f32 %v3106, %v3107
        %v3120 = vsub.f32 %v3071, %v3108
        %v3121 = vsub.f32 %v3072, %v3109
        %v3122 = vsub.f32 %v3073, %v3110
        %v3123 = vsub.f32 %v3074, %v3111
        %v3124 = vsub.f32 %v3075, %v3112
        %v3125 = vsub.f32 %v3076, %v3113
        %v3126 = vsub.f32 %v3077, %v3114
        %v3127 = vsub.f32 %v3078, %v3115
        %v3128 = vsub.f32 %v3079, %v3116
        %v3129 = vsub.f32 %v3080, %v3117
        %v3130 = vsub.f32 %v3081, %v3118
        %v3131 = vsub.f32 %v3082, %v3119
        %v3132 = vmul.f32 %v3120, %v3120
        %v3133 = vmul.f32 %v3121, %v3121
        %v3134 = vmul.f32 %v3122, %v3122
        %v3135 = vmul.f32 %v3123, %v3123
        %v3136 = vmul.f32 %v3124, %v3124
        %v3137 = vmul.f32 %v3125, %v3125
        %v3138 = vmul.f32 %v3126, %v3126
        %v3139 = vmul.f32 %v3127, %v3127
        %v3140 = vmul.f32 %v3128, %v3128
        %v3141 = vmul.f32 %v3129, %v3129
        %v3142 = vmul.f32 %v3130, %v3130
        %v3143 = vmul.f32 %v3131, %v3131
        %3144 = vadd.xlane.f32.xlu0 %v3132
        %v3145 = vpop.xlane.xlu0 %3144
        %3146 = vadd.xlane.f32.xlu0 %v3133
        %v3147 = vpop.xlane.xlu0 %3146
        %3148 = vadd.xlane.f32.xlu0 %v3134
        %v3149 = vpop.xlane.xlu0 %3148
        %3150 = vadd.xlane.f32.xlu0 %v3135
        %v3151 = vpop.xlane.xlu0 %3150
        %3152 = vadd.xlane.f32.xlu0 %v3136
        %v3153 = vpop.xlane.xlu0 %3152
        %3154 = vadd.xlane.f32.xlu0 %v3137
        %v3155 = vpop.xlane.xlu0 %3154
        %3156 = vadd.xlane.f32.xlu0 %v3138
        %v3157 = vpop.xlane.xlu0 %3156
        %3158 = vadd.xlane.f32.xlu0 %v3139
        %v3159 = vpop.xlane.xlu0 %3158
        %3160 = vadd.xlane.f32.xlu0 %v3140
        %v3161 = vpop.xlane.xlu0 %3160
        %3162 = vadd.xlane.f32.xlu0 %v3141
        %v3163 = vpop.xlane.xlu0 %3162
        %3164 = vadd.xlane.f32.xlu0 %v3142
        %v3165 = vpop.xlane.xlu0 %3164
        %3166 = vadd.xlane.f32.xlu0 %v3143
        %v3167 = vpop.xlane.xlu0 %3166
        %v3168 = vmul.f32 %v3145, %v3107
        %v3169 = vmul.f32 %v3147, %v3107
        %v3170 = vmul.f32 %v3149, %v3107
        %v3171 = vmul.f32 %v3151, %v3107
        %v3172 = vmul.f32 %v3153, %v3107
        %v3173 = vmul.f32 %v3155, %v3107
        %v3174 = vmul.f32 %v3157, %v3107
        %v3175 = vmul.f32 %v3159, %v3107
        %v3176 = vmul.f32 %v3161, %v3107
        %v3177 = vmul.f32 %v3163, %v3107
        %v3178 = vmul.f32 %v3165, %v3107
        %v3179 = vmul.f32 %v3167, %v3107
        %v3180 = vadd.f32 %v3168, 1e-05
        %v3181 = vadd.f32 %v3169, 1e-05
        %v3182 = vadd.f32 %v3170, 1e-05
        %v3183 = vadd.f32 %v3171, 1e-05
        %v3184 = vadd.f32 %v3172, 1e-05
        %v3185 = vadd.f32 %v3173, 1e-05
        %v3186 = vadd.f32 %v3174, 1e-05
        %v3187 = vadd.f32 %v3175, 1e-05
        %v3188 = vadd.f32 %v3176, 1e-05
        %v3189 = vadd.f32 %v3177, 1e-05
        %v3190 = vadd.f32 %v3178, 1e-05
        %v3191 = vadd.f32 %v3179, 1e-05
        %v3192 = vrsqrt.pop %v3180
        %v3193 = vrsqrt.pop %v3181
        %v3194 = vrsqrt.pop %v3182
        %v3195 = vrsqrt.pop %v3183
        %v3196 = vrsqrt.pop %v3184
        %v3197 = vrsqrt.pop %v3185
        %v3198 = vrsqrt.pop %v3186
        %v3199 = vrsqrt.pop %v3187
        %v3200 = vrsqrt.pop %v3188
        %v3201 = vrsqrt.pop %v3189
        %v3202 = vrsqrt.pop %v3190
        %v3203 = vrsqrt.pop %v3191
        %v3204 = vmul.f32 %v3120, %v3192
        %v3205 = vmul.f32 %v3121, %v3193
        %v3206 = vmul.f32 %v3122, %v3194
        %v3207 = vmul.f32 %v3123, %v3195
        %v3208 = vmul.f32 %v3124, %v3196
        %v3209 = vmul.f32 %v3125, %v3197
        %v3210 = vmul.f32 %v3126, %v3198
        %v3211 = vmul.f32 %v3127, %v3199
        %v3212 = vmul.f32 %v3128, %v3200
        %v3213 = vmul.f32 %v3129, %v3201
        %v3214 = vmul.f32 %v3130, %v3202
        %v3215 = vmul.f32 %v3131, %v3203
        %v3216 = vlaneseq
        %v3217 = vshrl.u32 %v3216, 7
        %v3218 = vsub.s32 4, %v3217
        %v3219 = vrot.slane %v1545, %v3218
        %v3220 = vmul.f32 %v3204, %v3219
        %v3221 = vmul.f32 %v3205, %v3219
        %v3222 = vmul.f32 %v3206, %v3219
        %v3223 = vmul.f32 %v3207, %v3219
        %v3224 = vmul.f32 %v3208, %v3219
        %v3225 = vmul.f32 %v3209, %v3219
        %v3226 = vmul.f32 %v3210, %v3219
        %v3227 = vmul.f32 %v3211, %v3219
        %v3228 = vmul.f32 %v3212, %v3219
        %v3229 = vmul.f32 %v3213, %v3219
        %v3230 = vmul.f32 %v3214, %v3219
        %v3231 = vmul.f32 %v3215, %v3219
        %v3232 = vlaneseq
        %v3233 = vshrl.u32 %v3232, 7
        %v3234 = vsub.s32 5, %v3233
        %v3235 = vrot.slane %v1545, %v3234
        %v3236 = vadd.f32 %v3220, %v3235
        %v3237 = vadd.f32 %v3221, %v3235
        %v3238 = vadd.f32 %v3222, %v3235
        %v3239 = vadd.f32 %v3223, %v3235
        %v3240 = vadd.f32 %v3224, %v3235
        %v3241 = vadd.f32 %v3225, %v3235
        %v3242 = vadd.f32 %v3226, %v3235
        %v3243 = vadd.f32 %v3227, %v3235
        %v3244 = vadd.f32 %v3228, %v3235
        %v3245 = vadd.f32 %v3229, %v3235
        %v3246 = vadd.f32 %v3230, %v3235
        %v3247 = vadd.f32 %v3231, %v3235
        %v3248 = vpack.c.bf16 %v3237, %v3236
        %v3249 = vpack.c.bf16 %v3239, %v3238
        %v3250 = vpack.c.bf16 %v3241, %v3240
        %v3251 = vpack.c.bf16 %v3243, %v3242
        %v3252 = vpack.c.bf16 %v3245, %v3244
        %v3253 = vpack.c.bf16 %v3247, %v3246
        %v3254 = vld [vmem:[%s835] sm:$0xf]
        %v3255 = vld [vmem:[%s835 + $0x4] sm:$0xf]
        %v3256 = vld [vmem:[%s835 + $0x8] sm:$0xf]
        %v3257 = vld [vmem:[%s835 + $0xc] sm:$0xf]
        %v3258 = vld [vmem:[%s835 + $0x10] sm:$0xf]
        %v3259 = vld [vmem:[%s835 + $0x14] sm:$0xf]
        %v3260 = vld [vmem:[%s835 + $0x18] sm:$0xf]
        %v3261 = vld [vmem:[%s835 + $0x1c] sm:$0xf]
        %v3262 = vld [vmem:[%s835 + $0x20] sm:$0xf]
        %v3263 = vld [vmem:[%s835 + $0x24] sm:$0xf]
        %v3264 = vld [vmem:[%s835 + $0x28] sm:$0xf]
        %v3265 = vld [vmem:[%s835 + $0x2c] sm:$0xf]
        %v3266 = vld [vmem:[%s835 + $0x30] sm:$0xf]
        %v3267 = vld [vmem:[%s835 + $0x34] sm:$0xf]
        %v3268 = vld [vmem:[%s835 + $0x38] sm:$0xf]
        %v3269 = vld [vmem:[%s835 + $0x3c] sm:$0xf]
        %v3270 = vlaneseq
        %v3271 = vshrl.u32 %v3270, 7
        %v3272 = vsub.s32 3, %v3271
        %v3273 = vrot.slane %v1545, %v3272
        %v3290 = vunpack.c.l.b16 %v3254
        %v3291 = vunpack.c.l.b16 %v3255
        %v3292 = vunpack.c.l.b16 %v3256
        %v3293 = vunpack.c.l.b16 %v3257
        %v3294 = vunpack.c.l.b16 %v3258
        %v3295 = vunpack.c.l.b16 %v3259
        %v3296 = vunpack.c.l.b16 %v3260
        %v3297 = vunpack.c.l.b16 %v3261
        %v3298 = vunpack.c.l.b16 %v3262
        %v3299 = vunpack.c.l.b16 %v3263
        %v3300 = vunpack.c.l.b16 %v3264
        %v3301 = vunpack.c.l.b16 %v3265
        %v3302 = vunpack.c.l.b16 %v3266
        %v3303 = vunpack.c.l.b16 %v3267
        %v3304 = vunpack.c.l.b16 %v3268
        %v3305 = vunpack.c.l.b16 %v3269
        %v3306 = vpack.c.b16 %v3291, %v3290
        %v3307 = vpack.c.b16 %v3293, %v3292
        %v3308 = vpack.c.b16 %v3295, %v3294
        %v3309 = vpack.c.b16 %v3297, %v3296
        %v3310 = vpack.c.b16 %v3299, %v3298
        %v3311 = vpack.c.b16 %v3301, %v3300
        %v3312 = vpack.c.b16 %v3303, %v3302
        %v3313 = vpack.c.b16 %v3305, %v3304
        %3322 = vmatprep.subr.bf16.mxu0 0
        %3323 = vmatpush1.bf16.msra.mxu0 %v3306
        %3324 = vmatprep.subr.bf16.mxu0 0
        %3325 = vmatpush1.bf16.msra.mxu0 %v3307
        %3326 = vmatprep.subr.bf16.mxu0 0
        %3327 = vmatpush1.bf16.msra.mxu0 %v3308
        %3328 = vmatprep.subr.bf16.mxu0 0
        %3329 = vmatpush1.bf16.msra.mxu0 %v3309
        %3330 = vmatprep.subr.bf16.mxu0 0
        %3331 = vmatpush1.bf16.msra.mxu0 %v3310
        %3332 = vmatprep.subr.bf16.mxu0 0
        %3333 = vmatpush1.bf16.msra.mxu0 %v3311
        %3334 = vmatprep.subr.bf16.mxu0 0
        %3335 = vmatpush1.bf16.msra.mxu0 %v3312
        %3336 = vmatprep.subr.bf16.mxu0 0
        %3337 = vmatpush1.bf16.msra.mxu0 %v3313
        %3338 = vmatprep.subr.bf16.mxu0 0
        %3339 = vmatpush1.bf16.msra.mxu0 0
        %3340 = vmatprep.subr.bf16.mxu0 0
        %3341 = vmatpush1.bf16.msra.mxu0 0
        %3342 = vmatprep.subr.bf16.mxu0 0
        %3343 = vmatpush1.bf16.msra.mxu0 0
        %3344 = vmatprep.subr.bf16.mxu0 0
        %3345 = vmatpush1.bf16.msra.mxu0 0
        %3346 = vmatprep.subr.bf16.mxu0 0
        %3347 = vmatpush1.bf16.msra.mxu0 0
        %3348 = vmatprep.subr.bf16.mxu0 0
        %3349 = vmatpush1.bf16.msra.mxu0 0
        %3350 = vmatprep.subr.bf16.mxu0 0
        %3351 = vmatpush1.bf16.msra.mxu0 0
        %3352 = vmatprep.subr.bf16.mxu0 0
        %3353 = vmatpush1.bf16.msra.mxu0 0
        %3354 = vmatprep.mubr.bf16.mxu0 0
        %3355 = vmatmul.mubr.bf16.gmra.mrb[0].mxu0 %v3248
        %v3356 = vpop.f32.mrb[0].mxu0
        %v3357 = vadd.f32 %v3273, %v3356
        %v3358 = vpop.f32.mrb[0].mxu0
        %v3359 = vpop.f32.mrb[0].mxu0
        %v3360 = vadd.f32 %v3273, %v3359
        %v3361 = vpop.f32.mrb[0].mxu0
        %3362 = vmatprep.mubr.bf16.mxu0 0
        %3363 = vmatmul.mubr.bf16.gmra.mrb[0].mxu0 %v3249
        %v3364 = vpop.f32.mrb[0].mxu0
        %v3365 = vadd.f32 %v3273, %v3364
        %v3366 = vpop.f32.mrb[0].mxu0
        %v3367 = vpop.f32.mrb[0].mxu0
        %v3368 = vadd.f32 %v3273, %v3367
        %v3369 = vpop.f32.mrb[0].mxu0
        %3370 = vmatprep.mubr.bf16.mxu0 0
        %3371 = vmatmul.mubr.bf16.gmra.mrb[0].mxu0 %v3250
        %v3372 = vpop.f32.mrb[0].mxu0
        %v3373 = vadd.f32 %v3273, %v3372
        %v3374 = vpop.f32.mrb[0].mxu0
        %v3375 = vpop.f32.mrb[0].mxu0
        %v3376 = vadd.f32 %v3273, %v3375
        %v3377 = vpop.f32.mrb[0].mxu0
        %3378 = vmatprep.mubr.bf16.mxu0 0
        %3379 = vmatmul.mubr.bf16.gmra.mrb[0].mxu0 %v3251
        %v3380 = vpop.f32.mrb[0].mxu0
        %v3381 = vadd.f32 %v3273, %v3380
        %v3382 = vpop.f32.mrb[0].mxu0
        %v3383 = vpop.f32.mrb[0].mxu0
        %v3384 = vadd.f32 %v3273, %v3383
        %v3385 = vpop.f32.mrb[0].mxu0
        %3386 = vmatprep.mubr.bf16.mxu0 0
        %3387 = vmatmul.mubr.bf16.gmra.mrb[0].mxu0 %v3252
        %v3388 = vpop.f32.mrb[0].mxu0
        %v3389 = vadd.f32 %v3273, %v3388
        %v3390 = vpop.f32.mrb[0].mxu0
        %v3391 = vpop.f32.mrb[0].mxu0
        %v3392 = vadd.f32 %v3273, %v3391
        %v3393 = vpop.f32.mrb[0].mxu0
        %3394 = vmatprep.mubr.bf16.mxu0 0
        %3395 = vmatmul.mubr.bf16.gmra.mrb[0].mxu0 %v3253
        %v3396 = vpop.f32.mrb[0].mxu0
        %v3397 = vadd.f32 %v3273, %v3396
        %v3398 = vpop.f32.mrb[0].mxu0
        %v3399 = vpop.f32.mrb[0].mxu0
        %v3400 = vadd.f32 %v3273, %v3399
        %v3401 = vpop.f32.mrb[0].mxu0
        %3402 = vdwg.mxu0
        %v3403 = vmax.f32 %v3357, 0.0
        %v3404 = vmax.f32 %v3360, 0.0
        %v3405 = vmax.f32 %v3365, 0.0
        %v3406 = vmax.f32 %v3368, 0.0
        %v3407 = vmax.f32 %v3373, 0.0
        %v3408 = vmax.f32 %v3376, 0.0
        %v3409 = vmax.f32 %v3381, 0.0
        %v3410 = vmax.f32 %v3384, 0.0
        %v3411 = vmax.f32 %v3389, 0.0
        %v3412 = vmax.f32 %v3392, 0.0
        %v3413 = vmax.f32 %v3397, 0.0
        %v3414 = vmax.f32 %v3400, 0.0
        %v3415 = vpack.c.bf16 %v3404, %v3403
        %v3416 = vpack.c.bf16 %v3406, %v3405
        %v3417 = vpack.c.bf16 %v3408, %v3407
        %v3418 = vpack.c.bf16 %v3410, %v3409
        %v3419 = vpack.c.bf16 %v3412, %v3411
        %v3420 = vpack.c.bf16 %v3414, %v3413
        %v3421 = vld [vmem:[%s844] sm:$0xf]
        %v3422 = vld [vmem:[%s844 + $0x4] sm:$0xf]
        %v3423 = vld [vmem:[%s844 + $0x8] sm:$0xf]
        %v3424 = vld [vmem:[%s844 + $0xc] sm:$0xf]
        %v3425 = vld [vmem:[%s844 + $0x10] sm:$0xf]
        %v3426 = vld [vmem:[%s844 + $0x14] sm:$0xf]
        %v3427 = vld [vmem:[%s844 + $0x18] sm:$0xf]
        %v3428 = vld [vmem:[%s844 + $0x1c] sm:$0xf]
        %v3429 = vld [vmem:[%s844 + $0x20] sm:$0xf]
        %v3430 = vld [vmem:[%s844 + $0x24] sm:$0xf]
        %v3431 = vld [vmem:[%s844 + $0x28] sm:$0xf]
        %v3432 = vld [vmem:[%s844 + $0x2c] sm:$0xf]
        %v3433 = vld [vmem:[%s844 + $0x30] sm:$0xf]
        %v3434 = vld [vmem:[%s844 + $0x34] sm:$0xf]
        %v3435 = vld [vmem:[%s844 + $0x38] sm:$0xf]
        %v3436 = vld [vmem:[%s844 + $0x3c] sm:$0xf]
        %v3437 = vlaneseq
        %v3438 = vshrl.u32 %v3437, 7
        %v3439 = vsub.s32 2, %v3438
        %v3440 = vrot.slane %v1545, %v3439
        %v3457 = vunpack.c.l.b16 %v3421
        %v3458 = vunpack.c.l.b16 %v3422
        %v3459 = vunpack.c.l.b16 %v3423
        %v3460 = vunpack.c.l.b16 %v3424
        %v3461 = vunpack.c.l.b16 %v3425
        %v3462 = vunpack.c.l.b16 %v3426
        %v3463 = vunpack.c.l.b16 %v3427
        %v3464 = vunpack.c.l.b16 %v3428
        %v3465 = vunpack.c.l.b16 %v3429
        %v3466 = vunpack.c.l.b16 %v3430
        %v3467 = vunpack.c.l.b16 %v3431
        %v3468 = vunpack.c.l.b16 %v3432
        %v3469 = vunpack.c.l.b16 %v3433
        %v3470 = vunpack.c.l.b16 %v3434
        %v3471 = vunpack.c.l.b16 %v3435
        %v3472 = vunpack.c.l.b16 %v3436
        %v3473 = vpack.c.b16 %v3458, %v3457
        %v3474 = vpack.c.b16 %v3460, %v3459
        %v3475 = vpack.c.b16 %v3462, %v3461
        %v3476 = vpack.c.b16 %v3464, %v3463
        %v3477 = vpack.c.b16 %v3466, %v3465
        %v3478 = vpack.c.b16 %v3468, %v3467
        %v3479 = vpack.c.b16 %v3470, %v3469
        %v3480 = vpack.c.b16 %v3472, %v3471
        %3489 = vmatprep.subr.bf16.mxu0 0
        %3490 = vmatpush1.bf16.msra.mxu0 %v3473
        %3491 = vmatprep.subr.bf16.mxu0 0
        %3492 = vmatpush1.bf16.msra.mxu0 %v3474
        %3493 = vmatprep.subr.bf16.mxu0 0
        %3494 = vmatpush1.bf16.msra.mxu0 %v3475
        %3495 = vmatprep.subr.bf16.mxu0 0
        %3496 = vmatpush1.bf16.msra.mxu0 %v3476
        %3497 = vmatprep.subr.bf16.mxu0 0
        %3498 = vmatpush1.bf16.msra.mxu0 %v3477
        %3499 = vmatprep.subr.bf16.mxu0 0
        %3500 = vmatpush1.bf16.msra.mxu0 %v3478
        %3501 = vmatprep.subr.bf16.mxu0 0
        %3502 = vmatpush1.bf16.msra.mxu0 %v3479
        %3503 = vmatprep.subr.bf16.mxu0 0
        %3504 = vmatpush1.bf16.msra.mxu0 %v3480
        %3505 = vmatprep.subr.bf16.mxu0 0
        %3506 = vmatpush1.bf16.msra.mxu0 0
        %3507 = vmatprep.subr.bf16.mxu0 0
        %3508 = vmatpush1.bf16.msra.mxu0 0
        %3509 = vmatprep.subr.bf16.mxu0 0
        %3510 = vmatpush1.bf16.msra.mxu0 0
        %3511 = vmatprep.subr.bf16.mxu0 0
        %3512 = vmatpush1.bf16.msra.mxu0 0
        %3513 = vmatprep.subr.bf16.mxu0 0
        %3514 = vmatpush1.bf16.msra.mxu0 0
        %3515 = vmatprep.subr.bf16.mxu0 0
        %3516 = vmatpush1.bf16.msra.mxu0 0
        %3517 = vmatprep.subr.bf16.mxu0 0
        %3518 = vmatpush1.bf16.msra.mxu0 0
        %3519 = vmatprep.subr.bf16.mxu0 0
        %3520 = vmatpush1.bf16.msra.mxu0 0
        %3521 = vmatprep.mubr.bf16.mxu0 0
        %3522 = vmatmul.mubr.bf16.gmra.mrb[0].mxu0 %v3415
        %v3523 = vpop.f32.mrb[0].mxu0
        %v3524 = vadd.f32 %v3440, %v3523
        %v3525 = vpop.f32.mrb[0].mxu0
        %v3526 = vpop.f32.mrb[0].mxu0
        %v3527 = vadd.f32 %v3440, %v3526
        %v3528 = vpop.f32.mrb[0].mxu0
        %3529 = vmatprep.mubr.bf16.mxu0 0
        %3530 = vmatmul.mubr.bf16.gmra.mrb[0].mxu0 %v3416
        %v3531 = vpop.f32.mrb[0].mxu0
        %v3532 = vadd.f32 %v3440, %v3531
        %v3533 = vpop.f32.mrb[0].mxu0
        %v3534 = vpop.f32.mrb[0].mxu0
        %v3535 = vadd.f32 %v3440, %v3534
        %v3536 = vpop.f32.mrb[0].mxu0
        %3537 = vmatprep.mubr.bf16.mxu0 0
        %3538 = vmatmul.mubr.bf16.gmra.mrb[0].mxu0 %v3417
        %v3539 = vpop.f32.mrb[0].mxu0
        %v3540 = vadd.f32 %v3440, %v3539
        %v3541 = vpop.f32.mrb[0].mxu0
        %v3542 = vpop.f32.mrb[0].mxu0
        %v3543 = vadd.f32 %v3440, %v3542
        %v3544 = vpop.f32.mrb[0].mxu0
        %3545 = vmatprep.mubr.bf16.mxu0 0
        %3546 = vmatmul.mubr.bf16.gmra.mrb[0].mxu0 %v3418
        %v3547 = vpop.f32.mrb[0].mxu0
        %v3548 = vadd.f32 %v3440, %v3547
        %v3549 = vpop.f32.mrb[0].mxu0
        %v3550 = vpop.f32.mrb[0].mxu0
        %v3551 = vadd.f32 %v3440, %v3550
        %v3552 = vpop.f32.mrb[0].mxu0
        %3553 = vmatprep.mubr.bf16.mxu0 0
        %3554 = vmatmul.mubr.bf16.gmra.mrb[0].mxu0 %v3419
        %v3555 = vpop.f32.mrb[0].mxu0
        %v3556 = vadd.f32 %v3440, %v3555
        %v3557 = vpop.f32.mrb[0].mxu0
        %v3558 = vpop.f32.mrb[0].mxu0
        %v3559 = vadd.f32 %v3440, %v3558
        %v3560 = vpop.f32.mrb[0].mxu0
        %3561 = vmatprep.mubr.bf16.mxu0 0
        %3562 = vmatmul.mubr.bf16.gmra.mrb[0].mxu0 %v3420
        %v3563 = vpop.f32.mrb[0].mxu0
        %v3564 = vadd.f32 %v3440, %v3563
        %v3565 = vpop.f32.mrb[0].mxu0
        %v3566 = vpop.f32.mrb[0].mxu0
        %v3567 = vadd.f32 %v3440, %v3566
        %v3568 = vpop.f32.mrb[0].mxu0
        %3569 = vdwg.mxu0
        %v3570 = vadd.f32 %v3236, %v3524
        %v3571 = vadd.f32 %v3237, %v3527
        %v3572 = vadd.f32 %v3238, %v3532
        %v3573 = vadd.f32 %v3239, %v3535
        %v3574 = vadd.f32 %v3240, %v3540
        %v3575 = vadd.f32 %v3241, %v3543
        %v3576 = vadd.f32 %v3242, %v3548
        %v3577 = vadd.f32 %v3243, %v3551
        %v3578 = vadd.f32 %v3244, %v3556
        %v3579 = vadd.f32 %v3245, %v3559
        %v3580 = vadd.f32 %v3246, %v3564
        %v3581 = vadd.f32 %v3247, %v3567
        %3582 = vadd.xlane.f32.xlu0 %v3570
        %v3583 = vpop.xlane.xlu0 %3582
        %3584 = vadd.xlane.f32.xlu0 %v3571
        %v3585 = vpop.xlane.xlu0 %3584
        %3586 = vadd.xlane.f32.xlu0 %v3572
        %v3587 = vpop.xlane.xlu0 %3586
        %3588 = vadd.xlane.f32.xlu0 %v3573
        %v3589 = vpop.xlane.xlu0 %3588
        %3590 = vadd.xlane.f32.xlu0 %v3574
        %v3591 = vpop.xlane.xlu0 %3590
        %3592 = vadd.xlane.f32.xlu0 %v3575
        %v3593 = vpop.xlane.xlu0 %3592
        %3594 = vadd.xlane.f32.xlu0 %v3576
        %v3595 = vpop.xlane.xlu0 %3594
        %3596 = vadd.xlane.f32.xlu0 %v3577
        %v3597 = vpop.xlane.xlu0 %3596
        %3598 = vadd.xlane.f32.xlu0 %v3578
        %v3599 = vpop.xlane.xlu0 %3598
        %3600 = vadd.xlane.f32.xlu0 %v3579
        %v3601 = vpop.xlane.xlu0 %3600
        %3602 = vadd.xlane.f32.xlu0 %v3580
        %v3603 = vpop.xlane.xlu0 %3602
        %3604 = vadd.xlane.f32.xlu0 %v3581
        %v3605 = vpop.xlane.xlu0 %3604
        %v3606 = vmul.f32 %v3583, %v3107
        %v3607 = vmul.f32 %v3585, %v3107
        %v3608 = vmul.f32 %v3587, %v3107
        %v3609 = vmul.f32 %v3589, %v3107
        %v3610 = vmul.f32 %v3591, %v3107
        %v3611 = vmul.f32 %v3593, %v3107
        %v3612 = vmul.f32 %v3595, %v3107
        %v3613 = vmul.f32 %v3597, %v3107
        %v3614 = vmul.f32 %v3599, %v3107
        %v3615 = vmul.f32 %v3601, %v3107
        %v3616 = vmul.f32 %v3603, %v3107
        %v3617 = vmul.f32 %v3605, %v3107
        %v3618 = vsub.f32 %v3570, %v3606
        %v3619 = vsub.f32 %v3571, %v3607
        %v3620 = vsub.f32 %v3572, %v3608
        %v3621 = vsub.f32 %v3573, %v3609
        %v3622 = vsub.f32 %v3574, %v3610
        %v3623 = vsub.f32 %v3575, %v3611
        %v3624 = vsub.f32 %v3576, %v3612
        %v3625 = vsub.f32 %v3577, %v3613
        %v3626 = vsub.f32 %v3578, %v3614
        %v3627 = vsub.f32 %v3579, %v3615
        %v3628 = vsub.f32 %v3580, %v3616
        %v3629 = vsub.f32 %v3581, %v3617
        %v3630 = vmul.f32 %v3618, %v3618
        %v3631 = vmul.f32 %v3619, %v3619
        %v3632 = vmul.f32 %v3620, %v3620
        %v3633 = vmul.f32 %v3621, %v3621
        %v3634 = vmul.f32 %v3622, %v3622
        %v3635 = vmul.f32 %v3623, %v3623
        %v3636 = vmul.f32 %v3624, %v3624
        %v3637 = vmul.f32 %v3625, %v3625
        %v3638 = vmul.f32 %v3626, %v3626
        %v3639 = vmul.f32 %v3627, %v3627
        %v3640 = vmul.f32 %v3628, %v3628
        %v3641 = vmul.f32 %v3629, %v3629
        %3642 = vadd.xlane.f32.xlu0 %v3630
        %v3643 = vpop.xlane.xlu0 %3642
        %3644 = vadd.xlane.f32.xlu0 %v3631
        %v3645 = vpop.xlane.xlu0 %3644
        %3646 = vadd.xlane.f32.xlu0 %v3632
        %v3647 = vpop.xlane.xlu0 %3646
        %3648 = vadd.xlane.f32.xlu0 %v3633
        %v3649 = vpop.xlane.xlu0 %3648
        %3650 = vadd.xlane.f32.xlu0 %v3634
        %v3651 = vpop.xlane.xlu0 %3650
        %3652 = vadd.xlane.f32.xlu0 %v3635
        %v3653 = vpop.xlane.xlu0 %3652
        %3654 = vadd.xlane.f32.xlu0 %v3636
        %v3655 = vpop.xlane.xlu0 %3654
        %3656 = vadd.xlane.f32.xlu0 %v3637
        %v3657 = vpop.xlane.xlu0 %3656
        %3658 = vadd.xlane.f32.xlu0 %v3638
        %v3659 = vpop.xlane.xlu0 %3658
        %3660 = vadd.xlane.f32.xlu0 %v3639
        %v3661 = vpop.xlane.xlu0 %3660
        %3662 = vadd.xlane.f32.xlu0 %v3640
        %v3663 = vpop.xlane.xlu0 %3662
        %3664 = vadd.xlane.f32.xlu0 %v3641
        %v3665 = vpop.xlane.xlu0 %3664
        %v3666 = vmul.f32 %v3643, %v3107
        %v3667 = vmul.f32 %v3645, %v3107
        %v3668 = vmul.f32 %v3647, %v3107
        %v3669 = vmul.f32 %v3649, %v3107
        %v3670 = vmul.f32 %v3651, %v3107
        %v3671 = vmul.f32 %v3653, %v3107
        %v3672 = vmul.f32 %v3655, %v3107
        %v3673 = vmul.f32 %v3657, %v3107
        %v3674 = vmul.f32 %v3659, %v3107
        %v3675 = vmul.f32 %v3661, %v3107
        %v3676 = vmul.f32 %v3663, %v3107
        %v3677 = vmul.f32 %v3665, %v3107
        %v3678 = vadd.f32 %v3666, 1e-05
        %v3679 = vadd.f32 %v3667, 1e-05
        %v3680 = vadd.f32 %v3668, 1e-05
        %v3681 = vadd.f32 %v3669, 1e-05
        %v3682 = vadd.f32 %v3670, 1e-05
        %v3683 = vadd.f32 %v3671, 1e-05
        %v3684 = vadd.f32 %v3672, 1e-05
        %v3685 = vadd.f32 %v3673, 1e-05
        %v3686 = vadd.f32 %v3674, 1e-05
        %v3687 = vadd.f32 %v3675, 1e-05
        %v3688 = vadd.f32 %v3676, 1e-05
        %v3689 = vadd.f32 %v3677, 1e-05
        %v3690 = vrsqrt.pop %v3678
        %v3691 = vrsqrt.pop %v3679
        %v3692 = vrsqrt.pop %v3680
        %v3693 = vrsqrt.pop %v3681
        %v3694 = vrsqrt.pop %v3682
        %v3695 = vrsqrt.pop %v3683
        %v3696 = vrsqrt.pop %v3684
        %v3697 = vrsqrt.pop %v3685
        %v3698 = vrsqrt.pop %v3686
        %v3699 = vrsqrt.pop %v3687
        %v3700 = vrsqrt.pop %v3688
        %v3701 = vrsqrt.pop %v3689
        %v3702 = vmul.f32 %v3618, %v3690
        %v3703 = vmul.f32 %v3619, %v3691
        %v3704 = vmul.f32 %v3620, %v3692
        %v3705 = vmul.f32 %v3621, %v3693
        %v3706 = vmul.f32 %v3622, %v3694
        %v3707 = vmul.f32 %v3623, %v3695
        %v3708 = vmul.f32 %v3624, %v3696
        %v3709 = vmul.f32 %v3625, %v3697
        %v3710 = vmul.f32 %v3626, %v3698
        %v3711 = vmul.f32 %v3627, %v3699
        %v3712 = vmul.f32 %v3628, %v3700
        %v3713 = vmul.f32 %v3629, %v3701
        %v3714 = vlaneseq
        %v3715 = vshrl.u32 %v3714, 7
        %v3716 = vsub.s32 6, %v3715
        %v3717 = vrot.slane %v1545, %v3716
        %v3718 = vmul.f32 %v3702, %v3717
        %v3719 = vmul.f32 %v3703, %v3717
        %v3720 = vmul.f32 %v3704, %v3717
        %v3721 = vmul.f32 %v3705, %v3717
        %v3722 = vmul.f32 %v3706, %v3717
        %v3723 = vmul.f32 %v3707, %v3717
        %v3724 = vmul.f32 %v3708, %v3717
        %v3725 = vmul.f32 %v3709, %v3717
        %v3726 = vmul.f32 %v3710, %v3717
        %v3727 = vmul.f32 %v3711, %v3717
        %v3728 = vmul.f32 %v3712, %v3717
        %v3729 = vmul.f32 %v3713, %v3717
        %v3730 = vlaneseq
        %v3731 = vshrl.u32 %v3730, 7
        %v3732 = vsub.s32 7, %v3731
        %v3733 = vrot.slane %v1545, %v3732
        %v3734 = vadd.f32 %v3718, %v3733
        %v3735 = vadd.f32 %v3719, %v3733
        %v3736 = vadd.f32 %v3720, %v3733
        %v3737 = vadd.f32 %v3721, %v3733
        %v3738 = vadd.f32 %v3722, %v3733
        %v3739 = vadd.f32 %v3723, %v3733
        %v3740 = vadd.f32 %v3724, %v3733
        %v3741 = vadd.f32 %v3725, %v3733
        %v3742 = vadd.f32 %v3726, %v3733
        %v3743 = vadd.f32 %v3727, %v3733
        %v3744 = vadd.f32 %v3728, %v3733
        %v3745 = vadd.f32 %v3729, %v3733
        %3746 = vst [vmem:[#allocation2] sm:$0xff] %v3734
        %3747 = vst [vmem:[#allocation2 + $0x8] sm:$0xff] %v3735
        %3748 = vst [vmem:[#allocation2 + $0x10] sm:$0xff] %v3736
        %3749 = vst [vmem:[#allocation2 + $0x18] sm:$0xff] %v3737
        %3750 = vst [vmem:[#allocation2 + $0x20] sm:$0xff] %v3738
        %3751 = vst [vmem:[#allocation2 + $0x28] sm:$0xff] %v3739
        %3752 = vst [vmem:[#allocation2 + $0x30] sm:$0xff] %v3740
        %3753 = vst [vmem:[#allocation2 + $0x38] sm:$0xff] %v3741
        %3754 = vst [vmem:[#allocation2 + $0x40] sm:$0xff] %v3742
        %3755 = vst [vmem:[#allocation2 + $0x48] sm:$0xff] %v3743
        %3756 = vst [vmem:[#allocation2 + $0x50] sm:$0xff] %v3744
        %3757 = vst [vmem:[#allocation2 + $0x58] sm:$0xff] %v3745
        %p3758 = scmp.eq.s32.totalorder %s46, 2
        // Predicated region
        $region161: #{xmodel_forward.3} parent=103 // pred_check
          %p3759 = pneg %p3758
        $region162: #{xmodel_forward.3} parent=103 // pred_check_branch
          %3761 = sbr.rel (%p3759) target = $region164
        $region163: #{xmodel_forward.3} parent=103 // pred_region
          %v3762 = vld [vmem:[#allocation17] sm:$0x1]
          %v3763 = vld [vmem:[#allocation18] sm:$0x1]
          %vm3764 = vcmask 1041408
          %v3765 = vsel %vm3764, %v3734, 0.0
          %3766 = vadd.xlane.f32.xlu0 %v3765
          %v3767 = vpop.xlane.xlu0 %3766
          %v3768 = vmul.f32 %v3767, %v3107
          %v3769 = vsub.f32 %v3734, %v3768
          %v3770 = vmul.f32 %v3769, %v3769
          %v3771 = vsel %vm3764, %v3770, 0.0
          %3772 = vadd.xlane.f32.xlu0 %v3771
          %v3773 = vpop.xlane.xlu0 %3772
          %v3774 = vmul.f32 %v3773, %v3107
          %v3775 = vadd.f32 %v3774, 1e-05
          %v3776 = vrsqrt.pop %v3775
          %v3777 = vmul.f32 %v3769, %v3776
          %v3779 = vlaneseq
          %v3780 = vshrl.u32 %v3779, 7
          %v3781 = vsub.s32 0, %v3780
          %v3782 = vrot.slane %v3762, %v3781
          %v3784 = vmul.f32 %v3777, %v3782
          %v3786 = vlaneseq
          %v3787 = vshrl.u32 %v3786, 7
          %v3788 = vsub.s32 0, %v3787
          %v3789 = vrot.slane %v3763, %v3788
          %v3791 = vadd.f32 %v3784, %v3789
          %v3792 = vpack.c.bf16 %v3791, %v3791
          %v3793 = vld [vmem:[%s15] sm:$0xf]
          %v3794 = vld [vmem:[%s15 + $0x4] sm:$0xf]
          %v3795 = vld [vmem:[%s15 + $0x8] sm:$0xf]
          %v3796 = vld [vmem:[%s15 + $0xc] sm:$0xf]
          %v3797 = vld [vmem:[%s15 + $0x10] sm:$0xf]
          %v3798 = vld [vmem:[%s15 + $0x14] sm:$0xf]
          %v3799 = vld [vmem:[%s15 + $0x18] sm:$0xf]
          %v3800 = vld [vmem:[%s15 + $0x1c] sm:$0xf]
          %v3801 = vld [vmem:[%s15 + $0x20] sm:$0xf]
          %v3802 = vld [vmem:[%s15 + $0x24] sm:$0xf]
          %v3803 = vld [vmem:[%s15 + $0x28] sm:$0xf]
          %v3804 = vld [vmem:[%s15 + $0x2c] sm:$0xf]
          %v3805 = vld [vmem:[%s15 + $0x30] sm:$0xf]
          %v3806 = vld [vmem:[%s15 + $0x34] sm:$0xf]
          %v3807 = vld [vmem:[%s15 + $0x38] sm:$0xf]
          %v3808 = vld [vmem:[%s15 + $0x3c] sm:$0xf]
          %v3809 = vld [vmem:[#allocation20] sm:$0x1]
          %v3811 = vlaneseq
          %v3812 = vshrl.u32 %v3811, 7
          %v3813 = vsub.s32 0, %v3812
          %v3814 = vrot.slane %v3809, %v3813
          %v3832 = vunpack.c.l.b16 %v3793
          %v3833 = vunpack.c.l.b16 %v3794
          %v3834 = vunpack.c.l.b16 %v3795
          %v3835 = vunpack.c.l.b16 %v3796
          %v3836 = vunpack.c.l.b16 %v3797
          %v3837 = vunpack.c.l.b16 %v3798
          %v3838 = vunpack.c.l.b16 %v3799
          %v3839 = vunpack.c.l.b16 %v3800
          %v3840 = vunpack.c.l.b16 %v3801
          %v3841 = vunpack.c.l.b16 %v3802
          %v3842 = vunpack.c.l.b16 %v3803
          %v3843 = vunpack.c.l.b16 %v3804
          %v3844 = vunpack.c.l.b16 %v3805
          %v3845 = vunpack.c.l.b16 %v3806
          %v3846 = vunpack.c.l.b16 %v3807
          %v3847 = vunpack.c.l.b16 %v3808
          %v3848 = vpack.c.b16 %v3833, %v3832
          %v3849 = vpack.c.b16 %v3835, %v3834
          %v3850 = vpack.c.b16 %v3837, %v3836
          %v3851 = vpack.c.b16 %v3839, %v3838
          %v3852 = vpack.c.b16 %v3841, %v3840
          %v3853 = vpack.c.b16 %v3843, %v3842
          %v3854 = vpack.c.b16 %v3845, %v3844
          %v3855 = vpack.c.b16 %v3847, %v3846
          %3864 = vmatprep.subr.bf16.mxu0 0
          %3865 = vmatpush1.bf16.msra.mxu0 %v3848
          %3866 = vmatprep.subr.bf16.mxu0 0
          %3867 = vmatpush1.bf16.msra.mxu0 %v3849
          %3868 = vmatprep.subr.bf16.mxu0 0
          %3869 = vmatpush1.bf16.msra.mxu0 %v3850
          %3870 = vmatprep.subr.bf16.mxu0 0
          %3871 = vmatpush1.bf16.msra.mxu0 %v3851
          %3872 = vmatprep.subr.bf16.mxu0 0
          %3873 = vmatpush1.bf16.msra.mxu0 %v3852
          %3874 = vmatprep.subr.bf16.mxu0 0
          %3875 = vmatpush1.bf16.msra.mxu0 %v3853
          %3876 = vmatprep.subr.bf16.mxu0 0
          %3877 = vmatpush1.bf16.msra.mxu0 %v3854
          %3878 = vmatprep.subr.bf16.mxu0 0
          %3879 = vmatpush1.bf16.msra.mxu0 %v3855
          %3880 = vmatprep.subr.bf16.mxu0 0
          %3881 = vmatpush1.bf16.msra.mxu0 0
          %3882 = vmatprep.subr.bf16.mxu0 0
          %3883 = vmatpush1.bf16.msra.mxu0 0
          %3884 = vmatprep.subr.bf16.mxu0 0
          %3885 = vmatpush1.bf16.msra.mxu0 0
          %3886 = vmatprep.subr.bf16.mxu0 0
          %3887 = vmatpush1.bf16.msra.mxu0 0
          %3888 = vmatprep.subr.bf16.mxu0 0
          %3889 = vmatpush1.bf16.msra.mxu0 0
          %3890 = vmatprep.subr.bf16.mxu0 0
          %3891 = vmatpush1.bf16.msra.mxu0 0
          %3892 = vmatprep.subr.bf16.mxu0 0
          %3893 = vmatpush1.bf16.msra.mxu0 0
          %3894 = vmatprep.subr.bf16.mxu0 0
          %3895 = vmatpush1.bf16.msra.mxu0 0
          %3896 = vmatprep.mubr.bf16.mxu0 0
          %3897 = vmatmul.mubr.bf16.gmra.mrb[0].mxu0 %v3792
          %v3898 = vpop.f32.mrb[0].mxu0
          %v3899 = vadd.f32 %v3814, %v3898
          %v3900 = vpop.f32.mrb[0].mxu0
          %v3901 = vpop.f32.mrb[0].mxu0
          %v3902 = vpop.f32.mrb[0].mxu0
          %3903 = vdwg.mxu0
          %v3904 = vmax.f32 %v3899, 0.0
          %v3905 = vpack.c.bf16 %v3904, %v3904
          %v3906 = vld [vmem:[%s17] sm:$0xf]
          %v3907 = vld [vmem:[%s17 + $0x4] sm:$0xf]
          %v3908 = vld [vmem:[%s17 + $0x8] sm:$0xf]
          %v3909 = vld [vmem:[%s17 + $0xc] sm:$0xf]
          %v3910 = vld [vmem:[%s17 + $0x10] sm:$0xf]
          %v3911 = vld [vmem:[%s17 + $0x14] sm:$0xf]
          %v3912 = vld [vmem:[%s17 + $0x18] sm:$0xf]
          %v3913 = vld [vmem:[%s17 + $0x1c] sm:$0xf]
          %v3914 = vld [vmem:[#allocation21] sm:$0x1]
          %v3916 = vlaneseq
          %v3917 = vshrl.u32 %v3916, 7
          %v3918 = vsub.s32 0, %v3917
          %v3919 = vrot.slane %v3914, %v3918
          %v3929 = vunpack.c.l.b16 %v3906
          %v3930 = vunpack.c.l.b16 %v3907
          %v3931 = vunpack.c.l.b16 %v3908
          %v3932 = vunpack.c.l.b16 %v3909
          %v3933 = vunpack.c.l.b16 %v3910
          %v3934 = vunpack.c.l.b16 %v3911
          %v3935 = vunpack.c.l.b16 %v3912
          %v3936 = vunpack.c.l.b16 %v3913
          %v3937 = vpack.c.b16 %v3930, %v3929
          %v3938 = vpack.c.b16 %v3932, %v3931
          %v3939 = vpack.c.b16 %v3934, %v3933
          %v3940 = vpack.c.b16 %v3936, %v3935
          %v3946 = vsel %vm1962, %v3905, 0
          %3948 = vmatprep.subr.bf16.mxu0 0
          %3949 = vmatpush1.bf16.msra.mxu0 %v3937
          %3950 = vmatprep.subr.bf16.mxu0 0
          %3951 = vmatpush1.bf16.msra.mxu0 %v3938
          %3952 = vmatprep.subr.bf16.mxu0 0
          %3953 = vmatpush1.bf16.msra.mxu0 %v3939
          %3954 = vmatprep.subr.bf16.mxu0 0
          %3955 = vmatpush1.bf16.msra.mxu0 %v3940
          %3956 = vmatprep.subr.bf16.mxu0 0
          %3957 = vmatpush1.bf16.msra.mxu0 0
          %3958 = vmatprep.subr.bf16.mxu0 0
          %3959 = vmatpush1.bf16.msra.mxu0 0
          %3960 = vmatprep.subr.bf16.mxu0 0
          %3961 = vmatpush1.bf16.msra.mxu0 0
          %3962 = vmatprep.subr.bf16.mxu0 0
          %3963 = vmatpush1.bf16.msra.mxu0 0
          %3964 = vmatprep.subr.bf16.mxu0 0
          %3965 = vmatpush1.bf16.msra.mxu0 0
          %3966 = vmatprep.subr.bf16.mxu0 0
          %3967 = vmatpush1.bf16.msra.mxu0 0
          %3968 = vmatprep.subr.bf16.mxu0 0
          %3969 = vmatpush1.bf16.msra.mxu0 0
          %3970 = vmatprep.subr.bf16.mxu0 0
          %3971 = vmatpush1.bf16.msra.mxu0 0
          %3972 = vmatprep.subr.bf16.mxu0 0
          %3973 = vmatpush1.bf16.msra.mxu0 0
          %3974 = vmatprep.subr.bf16.mxu0 0
          %3975 = vmatpush1.bf16.msra.mxu0 0
          %3976 = vmatprep.subr.bf16.mxu0 0
          %3977 = vmatpush1.bf16.msra.mxu0 0
          %3978 = vmatprep.subr.bf16.mxu0 0
          %3979 = vmatpush1.bf16.msra.mxu0 0
          %3980 = vmatprep.mubr.bf16.mxu0 0
          %3981 = vmatmul.mubr.bf16.gmra.mrb[0].mxu0 %v3946
          %v3982 = vpop.f32.mrb[0].mxu0
          %v3983 = vadd.f32 %v3919, %v3982
          %v3984 = vpop.f32.mrb[0].mxu0
          %v3985 = vpop.f32.mrb[0].mxu0
          %v3986 = vpop.f32.mrb[0].mxu0
          %3987 = vdwg.mxu0
          %v3988 = vmax.f32 %v3983, 0.0
          %v3989 = vpack.c.bf16 %v3988, %v3988
          %v3990 = vld [vmem:[%s19] sm:$0xf]
          %v3991 = vld [vmem:[%s19 + $0x4] sm:$0xf]
          %v3992 = vld [vmem:[%s19 + $0x8] sm:$0xf]
          %v3993 = vld [vmem:[%s19 + $0xc] sm:$0xf]
          %v3994 = vld [vmem:[#allocation23] sm:$0x1]
          %v3996 = vlaneseq
          %v3997 = vshrl.u32 %v3996, 7
          %v3998 = vsub.s32 0, %v3997
          %v3999 = vrot.slane %v3994, %v3998
          %v4005 = vunpack.c.l.b16 %v3990
          %v4006 = vunpack.c.l.b16 %v3991
          %v4007 = vunpack.c.l.b16 %v3992
          %v4008 = vunpack.c.l.b16 %v3993
          %v4009 = vpack.c.b16 %v4006, %v4005
          %v4010 = vpack.c.b16 %v4008, %v4007
          %vm4013 = vcmask 261120
          %v4015 = vsel %vm4013, %v3989, 0
          %4017 = vmatprep.subr.bf16.mxu0 0
          %4018 = vmatpush1.bf16.msra.mxu0 %v4009
          %4019 = vmatprep.subr.bf16.mxu0 0
          %4020 = vmatpush1.bf16.msra.mxu0 %v4010
          %4021 = vmatprep.subr.bf16.mxu0 0
          %4022 = vmatpush1.bf16.msra.mxu0 0
          %4023 = vmatprep.subr.bf16.mxu0 0
          %4024 = vmatpush1.bf16.msra.mxu0 0
          %4025 = vmatprep.subr.bf16.mxu0 0
          %4026 = vmatpush1.bf16.msra.mxu0 0
          %4027 = vmatprep.subr.bf16.mxu0 0
          %4028 = vmatpush1.bf16.msra.mxu0 0
          %4029 = vmatprep.subr.bf16.mxu0 0
          %4030 = vmatpush1.bf16.msra.mxu0 0
          %4031 = vmatprep.subr.bf16.mxu0 0
          %4032 = vmatpush1.bf16.msra.mxu0 0
          %4033 = vmatprep.subr.bf16.mxu0 0
          %4034 = vmatpush1.bf16.msra.mxu0 0
          %4035 = vmatprep.subr.bf16.mxu0 0
          %4036 = vmatpush1.bf16.msra.mxu0 0
          %4037 = vmatprep.subr.bf16.mxu0 0
          %4038 = vmatpush1.bf16.msra.mxu0 0
          %4039 = vmatprep.subr.bf16.mxu0 0
          %4040 = vmatpush1.bf16.msra.mxu0 0
          %4041 = vmatprep.subr.bf16.mxu0 0
          %4042 = vmatpush1.bf16.msra.mxu0 0
          %4043 = vmatprep.subr.bf16.mxu0 0
          %4044 = vmatpush1.bf16.msra.mxu0 0
          %4045 = vmatprep.subr.bf16.mxu0 0
          %4046 = vmatpush1.bf16.msra.mxu0 0
          %4047 = vmatprep.subr.bf16.mxu0 0
          %4048 = vmatpush1.bf16.msra.mxu0 0
          %4049 = vmatprep.mubr.bf16.mxu0 0
          %4050 = vmatmul.mubr.bf16.gmra.mrb[0].mxu0 %v4015
          %v4051 = vpop.f32.mrb[0].mxu0
          %v4052 = vadd.f32 %v3999, %v4051
          %v4053 = vpop.f32.mrb[0].mxu0
          %v4054 = vpop.f32.mrb[0].mxu0
          %v4055 = vpop.f32.mrb[0].mxu0
          %4056 = vdwg.mxu0
          %vm4057 = vcmask 74752
          %4058 = vst.msk [vmem:[#allocation24] sm:$0x3] %vm4057, %v4052
        $region164: #{xmodel_forward.3} parent=103 // pred_fallthru
          _
        // Predicated region
        $region165: #{xmodel_forward.3} parent=103 // pred_check
          %p4059 = pneg %p545
        $region166: #{xmodel_forward.3} parent=103 // pred_check_branch
          %4061 = sbr.rel (%p4059) target = $region168
        $region167: #{xmodel_forward.3} parent=103 // pred_region
          %s4063 = ssub.s32 32, 32
          %4064 = vsyncadd [#allocation5], %s4063
          %s4066 = sshll.u32 [#allocation24], 4
          %s4067 = int_to_ptr.vmem [resolvable:$true] %s4066
          %4069 = dma.vmem_to_hbm [thread:$0]  %s4067, 32, %s21, [#allocation5]
        $region168: #{xmodel_forward.3} parent=103 // pred_fallthru
          _
        // Predicated region
        $region169: #{xmodel_forward.3} parent=103 // pred_check
          %p4070 = pneg %p545
        $region170: #{xmodel_forward.3} parent=103 // pred_check_branch
          %4072 = sbr.rel (%p4070) target = $region172
        $region171: #{xmodel_forward.3} parent=103 // pred_region
          %4073 = dma.done [#allocation5], 32
        $region172: #{xmodel_forward.3} parent=103 // pred_fallthru
          _
      $region104: #{xmodel_forward.3} parent=5 // pred_fallthru
        _
      %p4074 = scmp.le.s32.totalorder 2, %s41
      // Predicated region
      $region173: #{xmodel_forward.3} parent=5 // pred_check
        %p4075 = pneg %p4074
      $region174: #{xmodel_forward.3} parent=5 // pred_check_branch
        %4077 = sbr.rel (%p4075) target = $region176
      $region175: #{xmodel_forward.3} parent=5 // pred_region
        %s4078 = ssub.s32 %s41, 2
      $region176: #{xmodel_forward.3} parent=5 // pred_fallthru
        _
    $region6: #{xmodel_forward.3} parent=1 // loop_footer
      %s45 = sadd.s32 1, %s41
    $region7: #{xmodel_forward.3} parent=1 // loop_footer_branch
      %40 = sbr.rel target = $region3
    $region8: #{xmodel_forward.3} parent=1 // loop_exit
      _
    %4079 = vsyncpa [#allocation4], 1
    %s4080 = scalar_lea.sflag [#allocation4], 1
    %4081 = vsyncpa %s4080, 1
    %4082 = vsyncpa [#allocation7], 1
    %4083 = vsyncpa [#allocation10], 1
    %s4084 = scalar_lea.sflag [#allocation10], 1
    %4085 = vsyncpa %s4084, 1
    %4086 = vsyncpa [#allocation13], 1
    %s4087 = scalar_lea.sflag [#allocation13], 1
    %4088 = vsyncpa %s4087, 1
    %4089 = vsyncpa [#allocation16], 1
    %s4090 = scalar_lea.sflag [#allocation16], 1
    %4091 = vsyncpa %s4090, 1
    %4092 = vsyncpa [#allocation19], 1
    %4093 = vsyncpa [#allocation22], 1
    %4094 = vsyncpa [#allocation5], 1
    %s4095 = scalar_lea.sflag [#allocation5], 1
    %4096 = vsyncpa %s4095, 1

</llo_original>
